<compile_context>
chip_gen: v5e
topology: v5e:2x2
jax: 0.10.0
libtpu: 0.0.40
codegen_flags: <defaults>
</compile_context>

<pallas_src>
import numpy as np
import jax
import jax.numpy as jnp
from jax.experimental import pallas as pl
from jax.experimental.pallas import tpu as pltpu


# ----------------------------------------------------------------------------
# Shared math helpers
# ----------------------------------------------------------------------------
def _layer_norm(x, gamma, eps=1e-5):
    """LayerNorm over the last axis, weight only (bias=False)."""
    mean = jnp.mean(x, axis=-1, keepdims=True)
    var = jnp.mean((x - mean) ** 2, axis=-1, keepdims=True)
    return (x - mean) * jax.lax.rsqrt(var + eps) * gamma


def _swap_minor(x):
    """(B, M, N) -> (B, N, M) via per-sample 2-D transposes.

    B static 2-D transposes + a major-axis stack: each op lowers cleanly on
    the Mosaic backend and the XLU cost equals a batched minor-dim transpose.
    """
    return jnp.stack([x[b].T for b in range(x.shape[0])], axis=0)


# ----------------------------------------------------------------------------
# Batched TransformerEncoderLayer (post-norm, ReLU, no dropout, no bias,
# n_head == d_model so head_dim == 1 and the attention scale is 1).
# ----------------------------------------------------------------------------
def _encoder_block(x, wq_t, wk_t, wv_t, wo_t, w1, w2r, g1, g2):
    """x: (B, S, D).  wq_t/wk_t/wv_t/wo_t are PRE-TRANSPOSED (D, D) weights so
    projections are plain `x @ W_t`.  w1: (1, D) = linear1; w2r: (1, D) =
    linear2 (D,1) stored transposed; g1/g2: (1, D) LayerNorm weights.
    """
    B, S, D = x.shape
    f32 = jnp.float32

    # Batched projections: one (B*S, D) x (D, D) MXU matmul each (leading-dim
    # collapse only; minor dims / tiling untouched).
    x2 = x.reshape(B * S, D)
    q = jnp.dot(x2, wq_t, preferred_element_type=f32).reshape(B, S, D)
    k = jnp.dot(x2, wk_t, preferred_element_type=f32).reshape(B, S, D)
    v = jnp.dot(x2, wv_t, preferred_element_type=f32).reshape(B, S, D)

    # head_dim == 1: per-head scores are outer products q[b,i,h] * k[b,j,h].
    # The reduced key axis j sits on a MAJOR axis -> softmax max/sum and the
    # value-weighted sum are vreg-wise (VPU) reductions, no transposes.
    s = k[:, :, None, :] * q[:, None, :, :]              # (B, S_k, S_q, H=D)
    m = jnp.max(s, axis=1, keepdims=True)                # (B, 1,  S_q, H)
    p = jnp.exp(s - m)                                   # EUP
    ctx = jnp.sum(p * v[:, :, None, :], axis=1)          # (B, S_q, H)
    denom = jnp.sum(p, axis=1)                           # (B, S_q, H)
    # Normalize AFTER the value-weighted sum: one approximate reciprocal
    # (EUP slot, ~free) per (b, i, h) instead of S_k divisions on the scores.
    ctx = ctx * pl.reciprocal(denom, approx=True)

    attn = jnp.dot(ctx.reshape(B * S, D), wo_t, preferred_element_type=f32)
    h = _layer_norm(x2 + attn, g1)                        # (B*S, D)
    # FFN: Linear(D->1) -> ReLU -> Linear(1->D), done elementwise.
    ff = jnp.maximum(jnp.sum(h * w1, axis=-1, keepdims=True), 0.0) * w2r
    out = _layer_norm(h + ff, g2)                         # (B*S, D)
    return out.reshape(B, S, D)


# ----------------------------------------------------------------------------
# Pallas kernel: Reasoner forward for one block of B_blk samples.
#   sq*  : (4, D, D)  stacked pre-transposed [wq_t, wk_t, wv_t, wo_t]
#   vec* : (4, 1, D)  stacked [w1, w2r, ln1_gamma, ln2_gamma]
# ----------------------------------------------------------------------------
def reasoner_kernel(x_ref, sq1_ref, vec1_ref, sq2_ref, vec2_ref, out_ref):
    x = x_ref[...]                                        # (B, VC, VL)
    B, VC, VL = x.shape

    # Encoder #1: seq = VC, features = VL (natural frame, no transpose).
    y = _encoder_block(x,
                       sq1_ref[0], sq1_ref[1], sq1_ref[2], sq1_ref[3],
                       vec1_ref[0], vec1_ref[1], vec1_ref[2], vec1_ref[3])

    # Encoder #2 runs in the transposed frame (seq = VL, features = VC).
    # This is the only per-sample minor-dim transpose in the kernel; the final
    # softmax and the store stay in the transposed frame (the wrapper
    # un-permutes the output).
    yt = _swap_minor(y)                                   # (B, VL, VC)
    z = _encoder_block(yt,
                       sq2_ref[0], sq2_ref[1], sq2_ref[2], sq2_ref[3],
                       vec2_ref[0], vec2_ref[1], vec2_ref[2], vec2_ref[3])

    # Final softmax over VC (== dim=1 of the original (NS, VC, VL) tensor).
    # Lay the block out lane-dense as (VC, B*VL) = (8, 128): exp / reciprocal
    # run on full vregs and the store is an unmasked, full-lane store.
    zt = z.reshape(B * VL, VC).T                          # (VC, B*VL)
    zt = zt - jnp.max(zt, axis=0, keepdims=True)
    e = jnp.exp(zt)
    inv = pl.reciprocal(jnp.sum(e, axis=0, keepdims=True), approx=True)
    out_ref[...] = e * inv


# ----------------------------------------------------------------------------
# Wrapper
# ----------------------------------------------------------------------------
def _pack_encoder_params(p):
    """Pre-transpose the square projection weights (PyTorch Linear is x@W.T)
    and stack each encoder's weights into two operands (fewer tiny DMAs)."""
    wq, wk, wv, wo, w1, w2r, g1, g2 = p
    sq = jnp.stack([wq.T, wk.T, wv.T, wo.T], axis=0)      # (4, D, D)
    vec = jnp.stack([w1, w2r, g1, g2], axis=0)            # (4, 1, D)
    return sq, vec


def reasoner_forward(mem, params1, params2, block_ns=8):
    """mem: (NS, VC, VL) float32.  params*: PyTorch-convention weights."""
    NS, VC, VL = mem.shape

    # Per-step sample block: a divisor of NS whose lane-dense output slab
    # (B_blk * VL) is a multiple of 128, keeping >= 2 grid steps when possible
    # so both v7x TensorCores stay busy on the "parallel" grid axis.
    b_blk = min(block_ns, NS)
    while b_blk > 1 and (NS % b_blk or (b_blk * VL) % 128):
        b_blk -= 1
    if (b_blk * VL) % 128 and b_blk != NS:
        b_blk = NS                       # single full block (always legal)
    grid = (NS // b_blk,)

    sq1, vec1 = _pack_encoder_params(params1)
    sq2, vec2 = _pack_encoder_params(params2)

    # Constant index maps: each packed weight array is DMA'd once and stays
    # resident across all grid steps (block == full array, so the (8,128)
    # tiling rule is satisfied by the full-extent exemption).
    in_specs = [
        pl.BlockSpec((b_blk, VC, VL), lambda g: (g, 0, 0)),
        pl.BlockSpec(sq1.shape, lambda g: (0, 0, 0)),
        pl.BlockSpec(vec1.shape, lambda g: (0, 0, 0)),
        pl.BlockSpec(sq2.shape, lambda g: (0, 0, 0)),
        pl.BlockSpec(vec2.shape, lambda g: (0, 0, 0)),
    ]

    # Lane-dense output layout: (VC, NS*VL) with a (VC, b_blk*VL) block per
    # grid step; un-permuted back to (NS, VC, VL) below (wrapper-side layout
    # plumbing, not compute).
    out_specs = pl.BlockSpec((VC, b_blk * VL), lambda g: (0, g))

    # VMEM note (v7x: 64 MiB physical / ~32 MiB scoped): per-step footprint is
    # a few hundred KiB at these shapes (activations + quadratic score
    # intermediates + double-buffered blocks), so the defaults are fine.
    # Re-budget (and set vmem_limit_bytes) before scaling b_blk / VC / VL.
    out = pl.pallas_call(
        reasoner_kernel,
        out_shape=jax.ShapeDtypeStruct((VC, NS * VL), jnp.float32),
        grid_spec=pltpu.PrefetchScalarGridSpec(
            num_scalar_prefetch=0,
            grid=grid,
            in_specs=in_specs,
            out_specs=out_specs,
        ),
        compiler_params=pltpu.CompilerParams(
            dimension_semantics=("parallel",)),
    )(mem, sq1, vec1, sq2, vec2)

    # (VC, NS*VL) -> (NS, VC, VL)
    return out.reshape(VC, NS, VL).transpose(1, 0, 2)


# ----------------------------------------------------------------------------
# Deterministic parameter construction (synthetic; matches module shapes)
# ----------------------------------------------------------------------------
def init_encoder_params(key, d):
    ks = jax.random.split(key, 6)
    scale = 0.2
    wq = jax.random.normal(ks[0], (d, d), jnp.float32) * scale
    wk = jax.random.normal(ks[1], (d, d), jnp.float32) * scale
    wv = jax.random.normal(ks[2], (d, d), jnp.float32) * scale
    wo = jax.random.normal(ks[3], (d, d), jnp.float32) * scale
    w1 = jax.random.normal(ks[4], (1, d), jnp.float32) * scale   # linear1 (1, d)
    w2r = jax.random.normal(ks[5], (1, d), jnp.float32) * scale  # linear2 (d,1) stored as (1, d)
    g1 = jnp.ones((1, d), jnp.float32)                            # LayerNorm weights
    g2 = jnp.ones((1, d), jnp.float32)
    return (wq, wk, wv, wo, w1, w2r, g1, g2)


# ----------------------------------------------------------------------------
# Pure-JAX reference (per-sample, PyTorch convention, exact division)
# ----------------------------------------------------------------------------
def _encoder_layer_ref(x, wq, wk, wv, wo, w1, w2r, g1, g2):
    q = x @ wq.T
    k = x @ wk.T
    v = x @ wv.T
    s = q[:, None, :] * k[None, :, :]                 # (S_q, S_k, H)
    s = s - jnp.max(s, axis=1, keepdims=True)
    p = jnp.exp(s)
    p = p / jnp.sum(p, axis=1, keepdims=True)
    ctx = jnp.sum(p * v[None, :, :], axis=1)
    x = _layer_norm(x + ctx @ wo.T, g1)
    h = jnp.maximum(jnp.sum(x * w1, axis=-1, keepdims=True), 0.0)
    x = _layer_norm(x + h * w2r, g2)
    return x


def reference(mem, p1, p2):
    def one(x):
        y = _encoder_layer_ref(x, *p1)
        z = _encoder_layer_ref(y.T, *p2).T
        return jax.nn.softmax(z, axis=0)
    return jax.vmap(one)(mem)


if __name__ == "__main__":
    NS, VC, VL = 16, 8, 16        # small, but enough for 2 batched grid steps
    key = jax.random.PRNGKey(0)
    k_mem, k_p1, k_p2 = jax.random.split(key, 3)

    mem = jax.random.normal(k_mem, (NS, VC, VL), jnp.float32)
    p1 = init_encoder_params(k_p1, VL)   # attn_VL_self (feature dim = VL)
    p2 = init_encoder_params(k_p2, VC)   # attn_VC_self (feature dim = VC)

    out = jax.block_until_ready(reasoner_forward(mem, p1, p2))
    ref = jax.block_until_ready(reference(mem, p1, p2))

    # approx reciprocal (EUP) in the kernel -> slightly looser tolerances
    np.testing.assert_allclose(np.asarray(out), np.asarray(ref),
                               rtol=2e-3, atol=2e-3)
    # columns of the VC-softmax sum to 1
    np.testing.assert_allclose(np.asarray(out).sum(axis=1), 1.0,
                               rtol=2e-3, atol=2e-3)

    print("KERNEL_OK")
</pallas_src>

<mosaic_0001>
module attributes {stable_mosaic.version = 11 : i64} {
  func.func @reasoner_kernel(%arg0: i32, %arg1: memref<8x8x16xf32, #tpu.memory_space<vmem>>, %arg2: memref<4x16x16xf32, #tpu.memory_space<vmem>>, %arg3: memref<4x1x16xf32, #tpu.memory_space<vmem>>, %arg4: memref<4x8x8xf32, #tpu.memory_space<vmem>>, %arg5: memref<4x1x8xf32, #tpu.memory_space<vmem>>, %arg6: memref<8x128xf32, #tpu.memory_space<vmem>>) attributes {dimension_semantics = [#tpu.dimension_semantics<parallel>], iteration_bounds = array<i64: 2>, scalar_prefetch = 0 : i64, scratch_operands = 0 : i64, tpu.core_type = #tpu.core_type<tc>, window_params = [{transform_indices = @transform_0, window_bounds = array<i64: 8, 8, 16>}, {pipeline_mode = #tpu.pipeline_mode<synchronous>, transform_indices = @transform_1, window_bounds = array<i64: 4, 16, 16>}, {pipeline_mode = #tpu.pipeline_mode<synchronous>, transform_indices = @transform_2, window_bounds = array<i64: 4, 1, 16>}, {pipeline_mode = #tpu.pipeline_mode<synchronous>, transform_indices = @transform_3, window_bounds = array<i64: 4, 8, 8>}, {pipeline_mode = #tpu.pipeline_mode<synchronous>, transform_indices = @transform_4, window_bounds = array<i64: 4, 1, 8>}, {transform_indices = @transform_5, window_bounds = array<i64: 8, 128>}]} {
    %c0 = arith.constant 0 : index
    %c0_0 = arith.constant 0 : index
    %c0_1 = arith.constant 0 : index
    %0 = vector.load %arg1[%c0, %c0_0, %c0_1] : memref<8x8x16xf32, #tpu.memory_space<vmem>>, vector<8x8x16xf32>
    %c0_2 = arith.constant 0 : index
    %c0_3 = arith.constant 0 : index
    %c0_4 = arith.constant 0 : index
    %1 = vector.load %arg2[%c0_2, %c0_3, %c0_4] : memref<4x16x16xf32, #tpu.memory_space<vmem>>, vector<1x16x16xf32>
    %2 = vector.shape_cast %1 : vector<1x16x16xf32> to vector<16x16xf32>
    %c1 = arith.constant 1 : index
    %c0_5 = arith.constant 0 : index
    %c0_6 = arith.constant 0 : index
    %3 = vector.load %arg2[%c1, %c0_5, %c0_6] : memref<4x16x16xf32, #tpu.memory_space<vmem>>, vector<1x16x16xf32>
    %4 = vector.shape_cast %3 : vector<1x16x16xf32> to vector<16x16xf32>
    %c2 = arith.constant 2 : index
    %c0_7 = arith.constant 0 : index
    %c0_8 = arith.constant 0 : index
    %5 = vector.load %arg2[%c2, %c0_7, %c0_8] : memref<4x16x16xf32, #tpu.memory_space<vmem>>, vector<1x16x16xf32>
    %6 = vector.shape_cast %5 : vector<1x16x16xf32> to vector<16x16xf32>
    %c3 = arith.constant 3 : index
    %c0_9 = arith.constant 0 : index
    %c0_10 = arith.constant 0 : index
    %7 = vector.load %arg2[%c3, %c0_9, %c0_10] : memref<4x16x16xf32, #tpu.memory_space<vmem>>, vector<1x16x16xf32>
    %8 = vector.shape_cast %7 : vector<1x16x16xf32> to vector<16x16xf32>
    %c0_11 = arith.constant 0 : index
    %c0_12 = arith.constant 0 : index
    %c0_13 = arith.constant 0 : index
    %9 = vector.load %arg3[%c0_11, %c0_12, %c0_13] : memref<4x1x16xf32, #tpu.memory_space<vmem>>, vector<1x1x16xf32>
    %10 = vector.shape_cast %9 : vector<1x1x16xf32> to vector<1x16xf32>
    %c1_14 = arith.constant 1 : index
    %c0_15 = arith.constant 0 : index
    %c0_16 = arith.constant 0 : index
    %11 = vector.load %arg3[%c1_14, %c0_15, %c0_16] : memref<4x1x16xf32, #tpu.memory_space<vmem>>, vector<1x1x16xf32>
    %12 = vector.shape_cast %11 : vector<1x1x16xf32> to vector<1x16xf32>
    %c2_17 = arith.constant 2 : index
    %c0_18 = arith.constant 0 : index
    %c0_19 = arith.constant 0 : index
    %13 = vector.load %arg3[%c2_17, %c0_18, %c0_19] : memref<4x1x16xf32, #tpu.memory_space<vmem>>, vector<1x1x16xf32>
    %14 = vector.shape_cast %13 : vector<1x1x16xf32> to vector<1x16xf32>
    %c3_20 = arith.constant 3 : index
    %c0_21 = arith.constant 0 : index
    %c0_22 = arith.constant 0 : index
    %15 = vector.load %arg3[%c3_20, %c0_21, %c0_22] : memref<4x1x16xf32, #tpu.memory_space<vmem>>, vector<1x1x16xf32>
    %16 = vector.shape_cast %15 : vector<1x1x16xf32> to vector<1x16xf32>
    %17 = vector.shape_cast %0 : vector<8x8x16xf32> to vector<64x16xf32>
    %cst = arith.constant dense<0.000000e+00> : vector<64x16xf32>
    %18 = tpu.matmul %17, %2, %cst {dimension_numbers = #tpu.dot_dimension_numbers<[1], [0], [0], [1], [0, 0, 1, 1], [], []>} : vector<64x16xf32>, vector<16x16xf32>, vector<64x16xf32> -> vector<64x16xf32>
    %19 = vector.shape_cast %18 : vector<64x16xf32> to vector<8x8x16xf32>
    %cst_23 = arith.constant dense<0.000000e+00> : vector<64x16xf32>
    %20 = tpu.matmul %17, %4, %cst_23 {dimension_numbers = #tpu.dot_dimension_numbers<[1], [0], [0], [1], [0, 0, 1, 1], [], []>} : vector<64x16xf32>, vector<16x16xf32>, vector<64x16xf32> -> vector<64x16xf32>
    %21 = vector.shape_cast %20 : vector<64x16xf32> to vector<8x8x16xf32>
    %cst_24 = arith.constant dense<0.000000e+00> : vector<64x16xf32>
    %22 = tpu.matmul %17, %6, %cst_24 {dimension_numbers = #tpu.dot_dimension_numbers<[1], [0], [0], [1], [0, 0, 1, 1], [], []>} : vector<64x16xf32>, vector<16x16xf32>, vector<64x16xf32> -> vector<64x16xf32>
    %23 = vector.shape_cast %22 : vector<64x16xf32> to vector<8x8x16xf32>
    %24 = vector.shape_cast %21 : vector<8x8x16xf32> to vector<8x8x1x16xf32>
    %25 = vector.shape_cast %19 : vector<8x8x16xf32> to vector<8x1x8x16xf32>
    %26 = vector.broadcast %24 : vector<8x8x1x16xf32> to vector<8x8x8x16xf32>
    %27 = vector.broadcast %25 : vector<8x1x8x16xf32> to vector<8x8x8x16xf32>
    %28 = arith.mulf %26, %27 : vector<8x8x8x16xf32>
    %cst_25 = arith.constant dense<0xFF800000> : vector<8x8x16xf32>
    %29 = vector.multi_reduction <maximumf>, %28, %cst_25 [1] : vector<8x8x8x16xf32> to vector<8x8x16xf32>
    %30 = vector.shape_cast %29 : vector<8x8x16xf32> to vector<8x1x8x16xf32>
    %31 = vector.broadcast %30 : vector<8x1x8x16xf32> to vector<8x8x8x16xf32>
    %32 = arith.subf %28, %31 : vector<8x8x8x16xf32>
    %33 = math.exp %32 : vector<8x8x8x16xf32>
    %34 = vector.shape_cast %23 : vector<8x8x16xf32> to vector<8x8x1x16xf32>
    %35 = vector.broadcast %34 : vector<8x8x1x16xf32> to vector<8x8x8x16xf32>
    %36 = arith.mulf %33, %35 : vector<8x8x8x16xf32>
    %cst_26 = arith.constant dense<0.000000e+00> : vector<8x8x16xf32>
    %37 = vector.multi_reduction <add>, %36, %cst_26 [1] : vector<8x8x8x16xf32> to vector<8x8x16xf32>
    %cst_27 = arith.constant dense<0.000000e+00> : vector<8x8x16xf32>
    %38 = vector.multi_reduction <add>, %33, %cst_27 [1] : vector<8x8x8x16xf32> to vector<8x8x16xf32>
    %39 = tpu.reciprocal %38 {approx = true} : vector<8x8x16xf32> -> vector<8x8x16xf32>
    %40 = arith.mulf %37, %39 : vector<8x8x16xf32>
    %41 = vector.shape_cast %40 : vector<8x8x16xf32> to vector<64x16xf32>
    %cst_28 = arith.constant dense<0.000000e+00> : vector<64x16xf32>
    %42 = tpu.matmul %41, %8, %cst_28 {dimension_numbers = #tpu.dot_dimension_numbers<[1], [0], [0], [1], [0, 0, 1, 1], [], []>} : vector<64x16xf32>, vector<16x16xf32>, vector<64x16xf32> -> vector<64x16xf32>
    %43 = arith.addf %17, %42 : vector<64x16xf32>
    %cst_29 = arith.constant dense<0.000000e+00> : vector<64xf32>
    %44 = vector.multi_reduction <add>, %43, %cst_29 [1] : vector<64x16xf32> to vector<64xf32>
    %45 = vector.shape_cast %44 : vector<64xf32> to vector<64x1xf32>
    %cst_30 = arith.constant 1.600000e+01 : f32
    %46 = vector.broadcast %cst_30 : f32 to vector<64x1xf32>
    %47 = arith.divf %45, %46 : vector<64x1xf32>
    %48 = vector.broadcast %47 : vector<64x1xf32> to vector<64x16xf32>
    %49 = arith.subf %43, %48 : vector<64x16xf32>
    %50 = arith.mulf %49, %49 : vector<64x16xf32>
    %cst_31 = arith.constant dense<0.000000e+00> : vector<64xf32>
    %51 = vector.multi_reduction <add>, %50, %cst_31 [1] : vector<64x16xf32> to vector<64xf32>
    %52 = vector.shape_cast %51 : vector<64xf32> to vector<64x1xf32>
    %cst_32 = arith.constant 1.600000e+01 : f32
    %53 = vector.broadcast %cst_32 : f32 to vector<64x1xf32>
    %54 = arith.divf %52, %53 : vector<64x1xf32>
    %55 = vector.broadcast %47 : vector<64x1xf32> to vector<64x16xf32>
    %56 = arith.subf %43, %55 : vector<64x16xf32>
    %cst_33 = arith.constant 9.99999974E-6 : f32
    %57 = vector.broadcast %cst_33 : f32 to vector<64x1xf32>
    %58 = arith.addf %54, %57 : vector<64x1xf32>
    %59 = math.rsqrt %58 : vector<64x1xf32>
    %60 = vector.broadcast %59 : vector<64x1xf32> to vector<64x16xf32>
    %61 = arith.mulf %56, %60 : vector<64x16xf32>
    %62 = vector.broadcast %14 : vector<1x16xf32> to vector<64x16xf32>
    %63 = arith.mulf %61, %62 : vector<64x16xf32>
    %64 = vector.broadcast %10 : vector<1x16xf32> to vector<64x16xf32>
    %65 = arith.mulf %63, %64 : vector<64x16xf32>
    %cst_34 = arith.constant dense<0.000000e+00> : vector<64xf32>
    %66 = vector.multi_reduction <add>, %65, %cst_34 [1] : vector<64x16xf32> to vector<64xf32>
    %67 = vector.shape_cast %66 : vector<64xf32> to vector<64x1xf32>
    %cst_35 = arith.constant 0.000000e+00 : f32
    %68 = vector.broadcast %cst_35 : f32 to vector<64x1xf32>
    %69 = arith.maximumf %67, %68 : vector<64x1xf32>
    %70 = vector.broadcast %69 : vector<64x1xf32> to vector<64x16xf32>
    %71 = vector.broadcast %12 : vector<1x16xf32> to vector<64x16xf32>
    %72 = arith.mulf %70, %71 : vector<64x16xf32>
    %73 = arith.addf %63, %72 : vector<64x16xf32>
    %cst_36 = arith.constant dense<0.000000e+00> : vector<64xf32>
    %74 = vector.multi_reduction <add>, %73, %cst_36 [1] : vector<64x16xf32> to vector<64xf32>
    %75 = vector.shape_cast %74 : vector<64xf32> to vector<64x1xf32>
    %cst_37 = arith.constant 1.600000e+01 : f32
    %76 = vector.broadcast %cst_37 : f32 to vector<64x1xf32>
    %77 = arith.divf %75, %76 : vector<64x1xf32>
    %78 = vector.broadcast %77 : vector<64x1xf32> to vector<64x16xf32>
    %79 = arith.subf %73, %78 : vector<64x16xf32>
    %80 = arith.mulf %79, %79 : vector<64x16xf32>
    %cst_38 = arith.constant dense<0.000000e+00> : vector<64xf32>
    %81 = vector.multi_reduction <add>, %80, %cst_38 [1] : vector<64x16xf32> to vector<64xf32>
    %82 = vector.shape_cast %81 : vector<64xf32> to vector<64x1xf32>
    %cst_39 = arith.constant 1.600000e+01 : f32
    %83 = vector.broadcast %cst_39 : f32 to vector<64x1xf32>
    %84 = arith.divf %82, %83 : vector<64x1xf32>
    %85 = vector.broadcast %77 : vector<64x1xf32> to vector<64x16xf32>
    %86 = arith.subf %73, %85 : vector<64x16xf32>
    %cst_40 = arith.constant 9.99999974E-6 : f32
    %87 = vector.broadcast %cst_40 : f32 to vector<64x1xf32>
    %88 = arith.addf %84, %87 : vector<64x1xf32>
    %89 = math.rsqrt %88 : vector<64x1xf32>
    %90 = vector.broadcast %89 : vector<64x1xf32> to vector<64x16xf32>
    %91 = arith.mulf %86, %90 : vector<64x16xf32>
    %92 = vector.broadcast %16 : vector<1x16xf32> to vector<64x16xf32>
    %93 = arith.mulf %91, %92 : vector<64x16xf32>
    %94 = vector.shape_cast %93 : vector<64x16xf32> to vector<8x8x16xf32>
    %95 = vector.extract_strided_slice %94 {offsets = [0, 0, 0], sizes = [1, 8, 16], strides = [1, 1, 1]} : vector<8x8x16xf32> to vector<1x8x16xf32>
    %96 = vector.shape_cast %95 : vector<1x8x16xf32> to vector<8x16xf32>
    %97 = tpu.transpose %96, [1, 0] : vector<8x16xf32> -> vector<16x8xf32>
    %98 = vector.extract_strided_slice %94 {offsets = [1, 0, 0], sizes = [1, 8, 16], strides = [1, 1, 1]} : vector<8x8x16xf32> to vector<1x8x16xf32>
    %99 = vector.shape_cast %98 : vector<1x8x16xf32> to vector<8x16xf32>
    %100 = tpu.transpose %99, [1, 0] : vector<8x16xf32> -> vector<16x8xf32>
    %101 = vector.extract_strided_slice %94 {offsets = [2, 0, 0], sizes = [1, 8, 16], strides = [1, 1, 1]} : vector<8x8x16xf32> to vector<1x8x16xf32>
    %102 = vector.shape_cast %101 : vector<1x8x16xf32> to vector<8x16xf32>
    %103 = tpu.transpose %102, [1, 0] : vector<8x16xf32> -> vector<16x8xf32>
    %104 = vector.extract_strided_slice %94 {offsets = [3, 0, 0], sizes = [1, 8, 16], strides = [1, 1, 1]} : vector<8x8x16xf32> to vector<1x8x16xf32>
    %105 = vector.shape_cast %104 : vector<1x8x16xf32> to vector<8x16xf32>
    %106 = tpu.transpose %105, [1, 0] : vector<8x16xf32> -> vector<16x8xf32>
    %107 = vector.extract_strided_slice %94 {offsets = [4, 0, 0], sizes = [1, 8, 16], strides = [1, 1, 1]} : vector<8x8x16xf32> to vector<1x8x16xf32>
    %108 = vector.shape_cast %107 : vector<1x8x16xf32> to vector<8x16xf32>
    %109 = tpu.transpose %108, [1, 0] : vector<8x16xf32> -> vector<16x8xf32>
    %110 = vector.extract_strided_slice %94 {offsets = [5, 0, 0], sizes = [1, 8, 16], strides = [1, 1, 1]} : vector<8x8x16xf32> to vector<1x8x16xf32>
    %111 = vector.shape_cast %110 : vector<1x8x16xf32> to vector<8x16xf32>
    %112 = tpu.transpose %111, [1, 0] : vector<8x16xf32> -> vector<16x8xf32>
    %113 = vector.extract_strided_slice %94 {offsets = [6, 0, 0], sizes = [1, 8, 16], strides = [1, 1, 1]} : vector<8x8x16xf32> to vector<1x8x16xf32>
    %114 = vector.shape_cast %113 : vector<1x8x16xf32> to vector<8x16xf32>
    %115 = tpu.transpose %114, [1, 0] : vector<8x16xf32> -> vector<16x8xf32>
    %116 = vector.extract_strided_slice %94 {offsets = [7, 0, 0], sizes = [1, 8, 16], strides = [1, 1, 1]} : vector<8x8x16xf32> to vector<1x8x16xf32>
    %117 = vector.shape_cast %116 : vector<1x8x16xf32> to vector<8x16xf32>
    %118 = tpu.transpose %117, [1, 0] : vector<8x16xf32> -> vector<16x8xf32>
    %119 = vector.shape_cast %97 : vector<16x8xf32> to vector<1x16x8xf32>
    %120 = vector.shape_cast %100 : vector<16x8xf32> to vector<1x16x8xf32>
    %121 = vector.shape_cast %103 : vector<16x8xf32> to vector<1x16x8xf32>
    %122 = vector.shape_cast %106 : vector<16x8xf32> to vector<1x16x8xf32>
    %123 = vector.shape_cast %109 : vector<16x8xf32> to vector<1x16x8xf32>
    %124 = vector.shape_cast %112 : vector<16x8xf32> to vector<1x16x8xf32>
    %125 = vector.shape_cast %115 : vector<16x8xf32> to vector<1x16x8xf32>
    %126 = vector.shape_cast %118 : vector<16x8xf32> to vector<1x16x8xf32>
    %127 = tpu.concatenate %119, %120, %121, %122, %123, %124, %125, %126 in 0 : vector<1x16x8xf32>, vector<1x16x8xf32>, vector<1x16x8xf32>, vector<1x16x8xf32>, vector<1x16x8xf32>, vector<1x16x8xf32>, vector<1x16x8xf32>, vector<1x16x8xf32> -> vector<8x16x8xf32>
    %c0_41 = arith.constant 0 : index
    %c0_42 = arith.constant 0 : index
    %c0_43 = arith.constant 0 : index
    %128 = vector.load %arg4[%c0_41, %c0_42, %c0_43] : memref<4x8x8xf32, #tpu.memory_space<vmem>>, vector<1x8x8xf32>
    %129 = vector.shape_cast %128 : vector<1x8x8xf32> to vector<8x8xf32>
    %c1_44 = arith.constant 1 : index
    %c0_45 = arith.constant 0 : index
    %c0_46 = arith.constant 0 : index
    %130 = vector.load %arg4[%c1_44, %c0_45, %c0_46] : memref<4x8x8xf32, #tpu.memory_space<vmem>>, vector<1x8x8xf32>
    %131 = vector.shape_cast %130 : vector<1x8x8xf32> to vector<8x8xf32>
    %c2_47 = arith.constant 2 : index
    %c0_48 = arith.constant 0 : index
    %c0_49 = arith.constant 0 : index
    %132 = vector.load %arg4[%c2_47, %c0_48, %c0_49] : memref<4x8x8xf32, #tpu.memory_space<vmem>>, vector<1x8x8xf32>
    %133 = vector.shape_cast %132 : vector<1x8x8xf32> to vector<8x8xf32>
    %c3_50 = arith.constant 3 : index
    %c0_51 = arith.constant 0 : index
    %c0_52 = arith.constant 0 : index
    %134 = vector.load %arg4[%c3_50, %c0_51, %c0_52] : memref<4x8x8xf32, #tpu.memory_space<vmem>>, vector<1x8x8xf32>
    %135 = vector.shape_cast %134 : vector<1x8x8xf32> to vector<8x8xf32>
    %c0_53 = arith.constant 0 : index
    %c0_54 = arith.constant 0 : index
    %c0_55 = arith.constant 0 : index
    %136 = vector.load %arg5[%c0_53, %c0_54, %c0_55] : memref<4x1x8xf32, #tpu.memory_space<vmem>>, vector<1x1x8xf32>
    %137 = vector.shape_cast %136 : vector<1x1x8xf32> to vector<1x8xf32>
    %c1_56 = arith.constant 1 : index
    %c0_57 = arith.constant 0 : index
    %c0_58 = arith.constant 0 : index
    %138 = vector.load %arg5[%c1_56, %c0_57, %c0_58] : memref<4x1x8xf32, #tpu.memory_space<vmem>>, vector<1x1x8xf32>
    %139 = vector.shape_cast %138 : vector<1x1x8xf32> to vector<1x8xf32>
    %c2_59 = arith.constant 2 : index
    %c0_60 = arith.constant 0 : index
    %c0_61 = arith.constant 0 : index
    %140 = vector.load %arg5[%c2_59, %c0_60, %c0_61] : memref<4x1x8xf32, #tpu.memory_space<vmem>>, vector<1x1x8xf32>
    %141 = vector.shape_cast %140 : vector<1x1x8xf32> to vector<1x8xf32>
    %c3_62 = arith.constant 3 : index
    %c0_63 = arith.constant 0 : index
    %c0_64 = arith.constant 0 : index
    %142 = vector.load %arg5[%c3_62, %c0_63, %c0_64] : memref<4x1x8xf32, #tpu.memory_space<vmem>>, vector<1x1x8xf32>
    %143 = vector.shape_cast %142 : vector<1x1x8xf32> to vector<1x8xf32>
    %144 = vector.shape_cast %127 : vector<8x16x8xf32> to vector<128x8xf32>
    %cst_65 = arith.constant dense<0.000000e+00> : vector<128x8xf32>
    %145 = tpu.matmul %144, %129, %cst_65 {dimension_numbers = #tpu.dot_dimension_numbers<[1], [0], [0], [1], [0, 0, 1, 1], [], []>} : vector<128x8xf32>, vector<8x8xf32>, vector<128x8xf32> -> vector<128x8xf32>
    %146 = vector.shape_cast %145 : vector<128x8xf32> to vector<8x16x8xf32>
    %cst_66 = arith.constant dense<0.000000e+00> : vector<128x8xf32>
    %147 = tpu.matmul %144, %131, %cst_66 {dimension_numbers = #tpu.dot_dimension_numbers<[1], [0], [0], [1], [0, 0, 1, 1], [], []>} : vector<128x8xf32>, vector<8x8xf32>, vector<128x8xf32> -> vector<128x8xf32>
    %148 = vector.shape_cast %147 : vector<128x8xf32> to vector<8x16x8xf32>
    %cst_67 = arith.constant dense<0.000000e+00> : vector<128x8xf32>
    %149 = tpu.matmul %144, %133, %cst_67 {dimension_numbers = #tpu.dot_dimension_numbers<[1], [0], [0], [1], [0, 0, 1, 1], [], []>} : vector<128x8xf32>, vector<8x8xf32>, vector<128x8xf32> -> vector<128x8xf32>
    %150 = vector.shape_cast %149 : vector<128x8xf32> to vector<8x16x8xf32>
    %151 = vector.shape_cast %148 : vector<8x16x8xf32> to vector<8x16x1x8xf32>
    %152 = vector.shape_cast %146 : vector<8x16x8xf32> to vector<8x1x16x8xf32>
    %153 = vector.broadcast %151 : vector<8x16x1x8xf32> to vector<8x16x16x8xf32>
    %154 = vector.broadcast %152 : vector<8x1x16x8xf32> to vector<8x16x16x8xf32>
    %155 = arith.mulf %153, %154 : vector<8x16x16x8xf32>
    %cst_68 = arith.constant dense<0xFF800000> : vector<8x16x8xf32>
    %156 = vector.multi_reduction <maximumf>, %155, %cst_68 [1] : vector<8x16x16x8xf32> to vector<8x16x8xf32>
    %157 = vector.shape_cast %156 : vector<8x16x8xf32> to vector<8x1x16x8xf32>
    %158 = vector.broadcast %157 : vector<8x1x16x8xf32> to vector<8x16x16x8xf32>
    %159 = arith.subf %155, %158 : vector<8x16x16x8xf32>
    %160 = math.exp %159 : vector<8x16x16x8xf32>
    %161 = vector.shape_cast %150 : vector<8x16x8xf32> to vector<8x16x1x8xf32>
    %162 = vector.broadcast %161 : vector<8x16x1x8xf32> to vector<8x16x16x8xf32>
    %163 = arith.mulf %160, %162 : vector<8x16x16x8xf32>
    %cst_69 = arith.constant dense<0.000000e+00> : vector<8x16x8xf32>
    %164 = vector.multi_reduction <add>, %163, %cst_69 [1] : vector<8x16x16x8xf32> to vector<8x16x8xf32>
    %cst_70 = arith.constant dense<0.000000e+00> : vector<8x16x8xf32>
    %165 = vector.multi_reduction <add>, %160, %cst_70 [1] : vector<8x16x16x8xf32> to vector<8x16x8xf32>
    %166 = tpu.reciprocal %165 {approx = true} : vector<8x16x8xf32> -> vector<8x16x8xf32>
    %167 = arith.mulf %164, %166 : vector<8x16x8xf32>
    %168 = vector.shape_cast %167 : vector<8x16x8xf32> to vector<128x8xf32>
    %cst_71 = arith.constant dense<0.000000e+00> : vector<128x8xf32>
    %169 = tpu.matmul %168, %135, %cst_71 {dimension_numbers = #tpu.dot_dimension_numbers<[1], [0], [0], [1], [0, 0, 1, 1], [], []>} : vector<128x8xf32>, vector<8x8xf32>, vector<128x8xf32> -> vector<128x8xf32>
    %170 = arith.addf %144, %169 : vector<128x8xf32>
    %cst_72 = arith.constant dense<0.000000e+00> : vector<128xf32>
    %171 = vector.multi_reduction <add>, %170, %cst_72 [1] : vector<128x8xf32> to vector<128xf32>
    %172 = vector.shape_cast %171 : vector<128xf32> to vector<128x1xf32>
    %cst_73 = arith.constant 8.000000e+00 : f32
    %173 = vector.broadcast %cst_73 : f32 to vector<128x1xf32>
    %174 = arith.divf %172, %173 : vector<128x1xf32>
    %175 = vector.broadcast %174 : vector<128x1xf32> to vector<128x8xf32>
    %176 = arith.subf %170, %175 : vector<128x8xf32>
    %177 = arith.mulf %176, %176 : vector<128x8xf32>
    %cst_74 = arith.constant dense<0.000000e+00> : vector<128xf32>
    %178 = vector.multi_reduction <add>, %177, %cst_74 [1] : vector<128x8xf32> to vector<128xf32>
    %179 = vector.shape_cast %178 : vector<128xf32> to vector<128x1xf32>
    %cst_75 = arith.constant 8.000000e+00 : f32
    %180 = vector.broadcast %cst_75 : f32 to vector<128x1xf32>
    %181 = arith.divf %179, %180 : vector<128x1xf32>
    %182 = vector.broadcast %174 : vector<128x1xf32> to vector<128x8xf32>
    %183 = arith.subf %170, %182 : vector<128x8xf32>
    %cst_76 = arith.constant 9.99999974E-6 : f32
    %184 = vector.broadcast %cst_76 : f32 to vector<128x1xf32>
    %185 = arith.addf %181, %184 : vector<128x1xf32>
    %186 = math.rsqrt %185 : vector<128x1xf32>
    %187 = vector.broadcast %186 : vector<128x1xf32> to vector<128x8xf32>
    %188 = arith.mulf %183, %187 : vector<128x8xf32>
    %189 = vector.broadcast %141 : vector<1x8xf32> to vector<128x8xf32>
    %190 = arith.mulf %188, %189 : vector<128x8xf32>
    %191 = vector.broadcast %137 : vector<1x8xf32> to vector<128x8xf32>
    %192 = arith.mulf %190, %191 : vector<128x8xf32>
    %cst_77 = arith.constant dense<0.000000e+00> : vector<128xf32>
    %193 = vector.multi_reduction <add>, %192, %cst_77 [1] : vector<128x8xf32> to vector<128xf32>
    %194 = vector.shape_cast %193 : vector<128xf32> to vector<128x1xf32>
    %cst_78 = arith.constant 0.000000e+00 : f32
    %195 = vector.broadcast %cst_78 : f32 to vector<128x1xf32>
    %196 = arith.maximumf %194, %195 : vector<128x1xf32>
    %197 = vector.broadcast %196 : vector<128x1xf32> to vector<128x8xf32>
    %198 = vector.broadcast %139 : vector<1x8xf32> to vector<128x8xf32>
    %199 = arith.mulf %197, %198 : vector<128x8xf32>
    %200 = arith.addf %190, %199 : vector<128x8xf32>
    %cst_79 = arith.constant dense<0.000000e+00> : vector<128xf32>
    %201 = vector.multi_reduction <add>, %200, %cst_79 [1] : vector<128x8xf32> to vector<128xf32>
    %202 = vector.shape_cast %201 : vector<128xf32> to vector<128x1xf32>
    %cst_80 = arith.constant 8.000000e+00 : f32
    %203 = vector.broadcast %cst_80 : f32 to vector<128x1xf32>
    %204 = arith.divf %202, %203 : vector<128x1xf32>
    %205 = vector.broadcast %204 : vector<128x1xf32> to vector<128x8xf32>
    %206 = arith.subf %200, %205 : vector<128x8xf32>
    %207 = arith.mulf %206, %206 : vector<128x8xf32>
    %cst_81 = arith.constant dense<0.000000e+00> : vector<128xf32>
    %208 = vector.multi_reduction <add>, %207, %cst_81 [1] : vector<128x8xf32> to vector<128xf32>
    %209 = vector.shape_cast %208 : vector<128xf32> to vector<128x1xf32>
    %cst_82 = arith.constant 8.000000e+00 : f32
    %210 = vector.broadcast %cst_82 : f32 to vector<128x1xf32>
    %211 = arith.divf %209, %210 : vector<128x1xf32>
    %212 = vector.broadcast %204 : vector<128x1xf32> to vector<128x8xf32>
    %213 = arith.subf %200, %212 : vector<128x8xf32>
    %cst_83 = arith.constant 9.99999974E-6 : f32
    %214 = vector.broadcast %cst_83 : f32 to vector<128x1xf32>
    %215 = arith.addf %211, %214 : vector<128x1xf32>
    %216 = math.rsqrt %215 : vector<128x1xf32>
    %217 = vector.broadcast %216 : vector<128x1xf32> to vector<128x8xf32>
    %218 = arith.mulf %213, %217 : vector<128x8xf32>
    %219 = vector.broadcast %143 : vector<1x8xf32> to vector<128x8xf32>
    %220 = arith.mulf %218, %219 : vector<128x8xf32>
    %221 = vector.shape_cast %220 : vector<128x8xf32> to vector<8x16x8xf32>
    %222 = vector.shape_cast %221 : vector<8x16x8xf32> to vector<128x8xf32>
    %223 = tpu.transpose %222, [1, 0] : vector<128x8xf32> -> vector<8x128xf32>
    %cst_84 = arith.constant dense<0xFF800000> : vector<128xf32>
    %224 = vector.multi_reduction <maximumf>, %223, %cst_84 [0] : vector<8x128xf32> to vector<128xf32>
    %225 = vector.shape_cast %224 : vector<128xf32> to vector<1x128xf32>
    %226 = vector.broadcast %225 : vector<1x128xf32> to vector<8x128xf32>
    %227 = arith.subf %223, %226 : vector<8x128xf32>
    %228 = math.exp %227 : vector<8x128xf32>
    %cst_85 = arith.constant dense<0.000000e+00> : vector<128xf32>
    %229 = vector.multi_reduction <add>, %228, %cst_85 [0] : vector<8x128xf32> to vector<128xf32>
    %230 = vector.shape_cast %229 : vector<128xf32> to vector<1x128xf32>
    %231 = tpu.reciprocal %230 {approx = true} : vector<1x128xf32> -> vector<1x128xf32>
    %232 = vector.broadcast %231 : vector<1x128xf32> to vector<8x128xf32>
    %233 = arith.mulf %228, %232 : vector<8x128xf32>
    %c0_86 = arith.constant 0 : index
    %c0_87 = arith.constant 0 : index
    %234 = vector.load %arg6[%c0_86, %c0_87] : memref<8x128xf32, #tpu.memory_space<vmem>>, vector<8x128xf32>
    tpu.vector_store %arg6[%c0_86, %c0_87], %233 {strides = array<i32>} : memref<8x128xf32, #tpu.memory_space<vmem>>, vector<8x128xf32>,
    return
  }
  func.func @transform_0(%arg0: i32) -> (i32, i32, i32) {
    %c0_i32 = arith.constant 0 : i32
    %c0_i32_0 = arith.constant 0 : i32
    %c0_i32_1 = arith.constant 0 : i32
    return %arg0, %c0_i32, %c0_i32_0 : i32, i32, i32
  }
  func.func @transform_1(%arg0: i32) -> (i32, i32, i32) {
    %c0_i32 = arith.constant 0 : i32
    %c0_i32_0 = arith.constant 0 : i32
    %c0_i32_1 = arith.constant 0 : i32
    %c0_i32_2 = arith.constant 0 : i32
    return %c0_i32, %c0_i32_0, %c0_i32_1 : i32, i32, i32
  }
  func.func @transform_2(%arg0: i32) -> (i32, i32, i32) {
    %c0_i32 = arith.constant 0 : i32
    %c0_i32_0 = arith.constant 0 : i32
    %c0_i32_1 = arith.constant 0 : i32
    %c0_i32_2 = arith.constant 0 : i32
    return %c0_i32, %c0_i32_0, %c0_i32_1 : i32, i32, i32
  }
  func.func @transform_3(%arg0: i32) -> (i32, i32, i32) {
    %c0_i32 = arith.constant 0 : i32
    %c0_i32_0 = arith.constant 0 : i32
    %c0_i32_1 = arith.constant 0 : i32
    %c0_i32_2 = arith.constant 0 : i32
    return %c0_i32, %c0_i32_0, %c0_i32_1 : i32, i32, i32
  }
  func.func @transform_4(%arg0: i32) -> (i32, i32, i32) {
    %c0_i32 = arith.constant 0 : i32
    %c0_i32_0 = arith.constant 0 : i32
    %c0_i32_1 = arith.constant 0 : i32
    %c0_i32_2 = arith.constant 0 : i32
    return %c0_i32, %c0_i32_0, %c0_i32_1 : i32, i32, i32
  }
  func.func @transform_5(%arg0: i32) -> (i32, i32) {
    %c0_i32 = arith.constant 0 : i32
    %c0_i32_0 = arith.constant 0 : i32
    return %c0_i32, %arg0 : i32, i32
  }
}

</mosaic_0001>

<llo_original>
// kernel: tpu_custom_call.1
$region0: #{tpu_custom_call.1}
  #allocation0 [shape = 'u32[]', space=smem, size = 0x4, offset = 0x4, fixed_abs, tag = 'smem constant byte address 0x4 - core index']
  #allocation1 [shape = 'u32[72,128]{1,0:T(1,128)}', space=vmem, size = 0x9000, scoped, tag = 'internal scratch']
  %s0 = inlined_call_operand.hbm [shape: f32[16,8,16], index: 0, kind: input, shape index: {}]
  %s1 = inlined_call_operand.hbm [shape: f32[4,16,16], index: 1, kind: input, shape index: {}]
  %s2 = inlined_call_operand.hbm [shape: f32[4,1,16], index: 2, kind: input, shape index: {}]
  %s3 = inlined_call_operand.hbm [shape: f32[4,8,8], index: 3, kind: input, shape index: {}]
  %s4 = inlined_call_operand.hbm [shape: f32[4,1,8], index: 4, kind: input, shape index: {}]
  %s5 = inlined_call_operand.hbm [shape: f32[8,256], index: 5, kind: output, shape index: {}]
  %s6 = sld [smem:[#allocation0]]
  $region73: #{tpu_custom_call.1} parent=0
    _
  %s8 = ssub.s32 1, %s6
  %s9 = scalar_select 0, %s8, %s6
  $region1: #{tpu_custom_call.1} parent=0
    #allocation2 [shape = 'u8[65536]{0}', space=vmem, size = 0x10000, scoped, tag = 'input window, operand 0']
    #allocation3 [shape = 's32[2]{0}', space=sflag, size = 0x8, scoped, tag = 'scoped memory for tpu_custom_call.1']
    #allocation4 [shape = 's32[2]{0}', space=sflag, size = 0x8, scoped, tag = 'scoped memory for tpu_custom_call.1']
    #allocation5 [shape = 'u8[32768]{0}', space=vmem, size = 0x8000, scoped, tag = 'input window, operand 1, single buffered']
    #allocation6 [shape = 's32[1]{0}', space=sflag, size = 0x4, scoped, tag = 'scoped memory for tpu_custom_call.1']
    #allocation7 [shape = 'u8[2048]{0}', space=vmem, size = 0x800, scoped, tag = 'input window, operand 2, single buffered']
    #allocation8 [shape = 'u8[16384]{0}', space=vmem, size = 0x4000, scoped, tag = 'input window, operand 3, single buffered']
    #allocation9 [shape = 's32[1]{0}', space=sflag, size = 0x4, scoped, tag = 'scoped memory for tpu_custom_call.1']
    #allocation10 [shape = 'u8[2048]{0}', space=vmem, size = 0x800, scoped, tag = 'input window, operand 4, single buffered']
    #allocation11 [shape = 'u8[8192]{0}', space=vmem, size = 0x2000, scoped, tag = 'output window, operand 0']
    %10 = vsyncpa [#allocation3], 0
    %s11 = scalar_lea.sflag [#allocation3], 1
    %12 = vsyncpa %s11, 0
    %13 = vsyncpa [#allocation6], 0
    %14 = vsyncpa [#allocation9], 0
    %15 = vsyncpa [#allocation4], 0
    %s16 = scalar_lea.sflag [#allocation4], 1
    %17 = vsyncpa %s16, 0
    loop: start=0, step=1, limit=4
    $region2: #{tpu_custom_call.1} parent=1 // loop_pre_header
      _
    $region3: #{tpu_custom_call.1} parent=1 // loop_header
      %s19 = sphi 0, %s23
      %p20 = scmp.ge.s32.totalorder %s19, 4
      %s29 = sphi 0, %s31
      %s32 = sphi 0, %s29
      %s33 = sphi 0, %s32
      %s49 = sphi 0, %s33
      %s53 = sphi 0, %s53
      %s55 = sphi 0, %s53
      %s56 = sphi 0, %s55
      %s70 = sphi 0, %s56
      %s74 = sphi 0, %s74
      %s76 = sphi 0, %s74
      %s77 = sphi 0, %s76
      %s91 = sphi 0, %s77
      %s95 = sphi 0, %s95
      %s97 = sphi 0, %s95
      %s98 = sphi 0, %s97
      %s112 = sphi 0, %s98
      %s116 = sphi 0, %s116
      %s118 = sphi 0, %s116
      %s119 = sphi 0, %s118
      %s133 = sphi 0, %s119
      %s139 = sphi 0, %s141
      %s142 = sphi 0, %s139
      %s143 = sphi 0, %s142
      %s159 = sphi 0, %s143
    $region4: #{tpu_custom_call.1} parent=1 // loop_header_branch
      %22 = sbr.rel (%p20) target = $region8
    $region5: #{tpu_custom_call.1} parent=1 // loop_body
      %s24 = ssub.s32 %s19, 1
      %s25 = ssub.s32 %s19, 2
      %s26 = sadd.s32 %s19, 1
      %s27 = ssub.s32 %s19, %s26
      %p28 = scmp.eq.s32.totalorder %s27, 0
      %s30 = sadd.s32 %s29, 1
      %s31 = scalar_select %p28, %s29, %s30
      %p34 = pneg %p28
      %p35 = scmp.eq.s32.totalorder %s19, 1
      %p36 = por %p34, %p35
      %p37 = scmp.ne.s32.totalorder %s29, %s32
      %p38 = scmp.eq.s32.totalorder %s19, 0
      %p39 = por %p37, %p38
      %p40 = scmp.ne.s32.totalorder %s29, %s32
      %p41 = scmp.eq.s32.totalorder %s24, 1
      %p42 = por %p40, %p41
      %p43 = scmp.ne.s32.totalorder %s32, %s33
      %p44 = scmp.eq.s32.totalorder %s24, 0
      %p45 = por %p43, %p44
      %p46 = scmp.ne.s32.totalorder %s32, %s33
      %p47 = scmp.eq.s32.totalorder %s25, 1
      %p48 = por %p46, %p47
      %p50 = scmp.ne.s32.totalorder %s33, %s49
      %p51 = scmp.eq.s32.totalorder %s25, 0
      %p52 = por %p50, %p51
      %s54 = sadd.s32 %s53, 1
      %p57 = scmp.eq.s32.totalorder %s19, 1
      %p58 = scmp.ne.s32.totalorder %s53, %s55
      %p59 = scmp.eq.s32.totalorder %s19, 0
      %p60 = por %p58, %p59
      %p61 = scmp.ne.s32.totalorder %s53, %s55
      %p62 = scmp.eq.s32.totalorder %s24, 1
      %p63 = por %p61, %p62
      %p64 = scmp.ne.s32.totalorder %s55, %s56
      %p65 = scmp.eq.s32.totalorder %s24, 0
      %p66 = por %p64, %p65
      %p67 = scmp.ne.s32.totalorder %s55, %s56
      %p68 = scmp.eq.s32.totalorder %s25, 1
      %p69 = por %p67, %p68
      %p71 = scmp.ne.s32.totalorder %s56, %s70
      %p72 = scmp.eq.s32.totalorder %s25, 0
      %p73 = por %p71, %p72
      %s75 = sadd.s32 %s74, 1
      %p78 = scmp.eq.s32.totalorder %s19, 1
      %p79 = scmp.ne.s32.totalorder %s74, %s76
      %p80 = scmp.eq.s32.totalorder %s19, 0
      %p81 = por %p79, %p80
      %p82 = scmp.ne.s32.totalorder %s74, %s76
      %p83 = scmp.eq.s32.totalorder %s24, 1
      %p84 = por %p82, %p83
      %p85 = scmp.ne.s32.totalorder %s76, %s77
      %p86 = scmp.eq.s32.totalorder %s24, 0
      %p87 = por %p85, %p86
      %p88 = scmp.ne.s32.totalorder %s76, %s77
      %p89 = scmp.eq.s32.totalorder %s25, 1
      %p90 = por %p88, %p89
      %p92 = scmp.ne.s32.totalorder %s77, %s91
      %p93 = scmp.eq.s32.totalorder %s25, 0
      %p94 = por %p92, %p93
      %s96 = sadd.s32 %s95, 1
      %p99 = scmp.eq.s32.totalorder %s19, 1
      %p100 = scmp.ne.s32.totalorder %s95, %s97
      %p101 = scmp.eq.s32.totalorder %s19, 0
      %p102 = por %p100, %p101
      %p103 = scmp.ne.s32.totalorder %s95, %s97
      %p104 = scmp.eq.s32.totalorder %s24, 1
      %p105 = por %p103, %p104
      %p106 = scmp.ne.s32.totalorder %s97, %s98
      %p107 = scmp.eq.s32.totalorder %s24, 0
      %p108 = por %p106, %p107
      %p109 = scmp.ne.s32.totalorder %s97, %s98
      %p110 = scmp.eq.s32.totalorder %s25, 1
      %p111 = por %p109, %p110
      %p113 = scmp.ne.s32.totalorder %s98, %s112
      %p114 = scmp.eq.s32.totalorder %s25, 0
      %p115 = por %p113, %p114
      %s117 = sadd.s32 %s116, 1
      %p120 = scmp.eq.s32.totalorder %s19, 1
      %p121 = scmp.ne.s32.totalorder %s116, %s118
      %p122 = scmp.eq.s32.totalorder %s19, 0
      %p123 = por %p121, %p122
      %p124 = scmp.ne.s32.totalorder %s116, %s118
      %p125 = scmp.eq.s32.totalorder %s24, 1
      %p126 = por %p124, %p125
      %p127 = scmp.ne.s32.totalorder %s118, %s119
      %p128 = scmp.eq.s32.totalorder %s24, 0
      %p129 = por %p127, %p128
      %p130 = scmp.ne.s32.totalorder %s118, %s119
      %p131 = scmp.eq.s32.totalorder %s25, 1
      %p132 = por %p130, %p131
      %p134 = scmp.ne.s32.totalorder %s119, %s133
      %p135 = scmp.eq.s32.totalorder %s25, 0
      %p136 = por %p134, %p135
      %s137 = ssub.s32 %s19, %s26
      %p138 = scmp.eq.s32.totalorder %s137, 0
      %s140 = sadd.s32 %s139, 1
      %s141 = scalar_select %p138, %s139, %s140
      %p144 = pneg %p138
      %p145 = scmp.eq.s32.totalorder %s19, 1
      %p146 = por %p144, %p145
      %p147 = scmp.ne.s32.totalorder %s139, %s142
      %p148 = scmp.eq.s32.totalorder %s19, 0
      %p149 = por %p147, %p148
      %p150 = scmp.ne.s32.totalorder %s139, %s142
      %p151 = scmp.eq.s32.totalorder %s24, 1
      %p152 = por %p150, %p151
      %p153 = scmp.ne.s32.totalorder %s142, %s143
      %p154 = scmp.eq.s32.totalorder %s24, 0
      %p155 = por %p153, %p154
      %p156 = scmp.ne.s32.totalorder %s142, %s143
      %p157 = scmp.eq.s32.totalorder %s25, 1
      %p158 = por %p156, %p157
      %p160 = scmp.ne.s32.totalorder %s143, %s159
      %p161 = scmp.eq.s32.totalorder %s25, 0
      %p162 = por %p160, %p161
      %p163 = scmp.le.s32.totalorder 1, %s19
      %p164 = scmp.lt.s32.totalorder %s19, 3
      %p165 = pnand %p163, %p164
      %p166 = pneg %p165
      // Predicated region
      $region9: #{tpu_custom_call.1} parent=5 // pred_check
        _
      $region10: #{tpu_custom_call.1} parent=5 // pred_check_branch
        %168 = sbr.rel (%p165) target = $region12
      $region11: #{tpu_custom_call.1} parent=5 // pred_region
        %s169 = ssub.s32 %s19, 1
        // Predicated region
        $region13: #{tpu_custom_call.1} parent=11 // pred_check
          %p170 = pneg %p66
        $region14: #{tpu_custom_call.1} parent=11 // pred_check_branch
          %172 = sbr.rel (%p170) target = $region16
        $region15: #{tpu_custom_call.1} parent=11 // pred_region
          %174 = vsyncadd [#allocation6], 0
          %s175 = sshll.u32 %s1, 4
          %s176 = int_to_ptr.hbm [resolvable:$true] %s175
          %s177 = sshll.u32 [#allocation5], 4
          %s178 = int_to_ptr.vmem [resolvable:$true] %s177
          %183 = dma.hbm_to_vmem [thread:$0]  %s176, 1024, %s178, [#allocation6], 128, 128, 8
        $region16: #{tpu_custom_call.1} parent=11 // pred_fallthru
          _
        // Predicated region
        $region17: #{tpu_custom_call.1} parent=11 // pred_check
          %p184 = pneg %p87
        $region18: #{tpu_custom_call.1} parent=11 // pred_check_branch
          %186 = sbr.rel (%p184) target = $region20
        $region19: #{tpu_custom_call.1} parent=11 // pred_region
          %188 = vsyncadd [#allocation6], 0
          %s189 = sshll.u32 %s2, 4
          %s190 = int_to_ptr.hbm [resolvable:$true] %s189
          %s191 = sshll.u32 [#allocation7], 4
          %s192 = int_to_ptr.vmem [resolvable:$true] %s191
          %197 = dma.hbm_to_vmem [thread:$0]  %s190, 64, %s192, [#allocation6], 16, 16, 1
        $region20: #{tpu_custom_call.1} parent=11 // pred_fallthru
          _
        // Predicated region
        $region21: #{tpu_custom_call.1} parent=11 // pred_check
          %p198 = pneg %p108
        $region22: #{tpu_custom_call.1} parent=11 // pred_check_branch
          %200 = sbr.rel (%p198) target = $region24
        $region23: #{tpu_custom_call.1} parent=11 // pred_region
          %202 = vsyncadd [#allocation9], 0
          %s203 = sshll.u32 %s3, 4
          %s204 = int_to_ptr.hbm [resolvable:$true] %s203
          %s205 = sshll.u32 [#allocation8], 4
          %s206 = int_to_ptr.vmem [resolvable:$true] %s205
          %211 = dma.hbm_to_vmem [thread:$0]  %s204, 512, %s206, [#allocation9], 128, 128, 8
        $region24: #{tpu_custom_call.1} parent=11 // pred_fallthru
          _
        // Predicated region
        $region25: #{tpu_custom_call.1} parent=11 // pred_check
          %p212 = pneg %p129
        $region26: #{tpu_custom_call.1} parent=11 // pred_check_branch
          %214 = sbr.rel (%p212) target = $region28
        $region27: #{tpu_custom_call.1} parent=11 // pred_region
          %216 = vsyncadd [#allocation9], 0
          %s217 = sshll.u32 %s4, 4
          %s218 = int_to_ptr.hbm [resolvable:$true] %s217
          %s219 = sshll.u32 [#allocation10], 4
          %s220 = int_to_ptr.vmem [resolvable:$true] %s219
          %225 = dma.hbm_to_vmem [thread:$0]  %s218, 64, %s220, [#allocation9], 16, 16, 1
        $region28: #{tpu_custom_call.1} parent=11 // pred_fallthru
          _
      $region12: #{tpu_custom_call.1} parent=5 // pred_fallthru
        _
      %p226 = scmp.lt.s32.totalorder %s19, 2
      // Predicated region
      $region29: #{tpu_custom_call.1} parent=5 // pred_check
        %p227 = pneg %p226
      $region30: #{tpu_custom_call.1} parent=5 // pred_check_branch
        %229 = sbr.rel (%p227) target = $region32
      $region31: #{tpu_custom_call.1} parent=5 // pred_region
        // Predicated region
        $region33: #{tpu_custom_call.1} parent=31 // pred_check
          %p230 = pneg %p39
        $region34: #{tpu_custom_call.1} parent=31 // pred_check_branch
          %232 = sbr.rel (%p230) target = $region36
        $region35: #{tpu_custom_call.1} parent=31 // pred_region
          %s233 = sand.u32 %s29, 1
          %s234 = scalar_lea.sflag [#allocation3], %s233
          %s235 = sand.u32 %s29, 1
          %s236 = smul.addr %s235, 64
          %s237 = scalar_lea.vmem [#allocation2], %s236
          %s238 = smul.u32 8, %s19
          %240 = vsyncadd %s234, 0
          %s241 = smul.addr %s238, 8
          %s242 = scalar_lea.hbm %s0, %s241
          %s243 = sshll.u32 %s242, 4
          %s244 = int_to_ptr.hbm [resolvable:$true] %s243
          %s245 = sshll.u32 %s237, 4
          %s246 = int_to_ptr.vmem [resolvable:$true] %s245
          %251 = dma.hbm_to_vmem [thread:$0]  %s244, 1024, %s246, %s234, 128, 128, 8
        $region36: #{tpu_custom_call.1} parent=31 // pred_fallthru
          _
      $region32: #{tpu_custom_call.1} parent=5 // pred_fallthru
        _
      %p252 = scmp.le.s32.totalorder 1, %s19
      %p253 = scmp.lt.s32.totalorder %s19, 3
      %p254 = pnand %p252, %p253
      %p255 = pneg %p254
      // Predicated region
      $region37: #{tpu_custom_call.1} parent=5 // pred_check
        _
      $region38: #{tpu_custom_call.1} parent=5 // pred_check_branch
        %257 = sbr.rel (%p254) target = $region40
      $region39: #{tpu_custom_call.1} parent=5 // pred_region
        %s258 = ssub.s32 %s19, 1
        %s259 = sand.u32 %s32, 1
        %s260 = scalar_lea.sflag [#allocation3], %s259
        %s261 = sand.u32 %s32, 1
        %s262 = smul.addr %s261, 64
        %s263 = scalar_lea.vmem [#allocation2], %s262
        // Predicated region
        $region41: #{tpu_custom_call.1} parent=39 // pred_check
          %p264 = pneg %p45
        $region42: #{tpu_custom_call.1} parent=39 // pred_check_branch
          %266 = sbr.rel (%p264) target = $region44
        $region43: #{tpu_custom_call.1} parent=39 // pred_region
          %268 = dma.done %s260, 1024
        $region44: #{tpu_custom_call.1} parent=39 // pred_fallthru
          _
        // Predicated region
        $region45: #{tpu_custom_call.1} parent=39 // pred_check
          %p269 = pneg %p66
        $region46: #{tpu_custom_call.1} parent=39 // pred_check_branch
          %271 = sbr.rel (%p269) target = $region48
        $region47: #{tpu_custom_call.1} parent=39 // pred_region
          %273 = dma.done [#allocation6], 1024
        $region48: #{tpu_custom_call.1} parent=39 // pred_fallthru
          _
        // Predicated region
        $region49: #{tpu_custom_call.1} parent=39 // pred_check
          %p274 = pneg %p87
        $region50: #{tpu_custom_call.1} parent=39 // pred_check_branch
          %276 = sbr.rel (%p274) target = $region52
        $region51: #{tpu_custom_call.1} parent=39 // pred_region
          %278 = dma.done [#allocation6], 64
        $region52: #{tpu_custom_call.1} parent=39 // pred_fallthru
          _
        // Predicated region
        $region53: #{tpu_custom_call.1} parent=39 // pred_check
          %p279 = pneg %p108
        $region54: #{tpu_custom_call.1} parent=39 // pred_check_branch
          %281 = sbr.rel (%p279) target = $region56
        $region55: #{tpu_custom_call.1} parent=39 // pred_region
          %283 = dma.done [#allocation9], 512
        $region56: #{tpu_custom_call.1} parent=39 // pred_fallthru
          _
        // Predicated region
        $region57: #{tpu_custom_call.1} parent=39 // pred_check
          %p284 = pneg %p129
        $region58: #{tpu_custom_call.1} parent=39 // pred_check_branch
          %286 = sbr.rel (%p284) target = $region60
        $region59: #{tpu_custom_call.1} parent=39 // pred_region
          %288 = dma.done [#allocation9], 64
        $region60: #{tpu_custom_call.1} parent=39 // pred_fallthru
          _
        %s289 = sand.u32 %s32, 1
        %s290 = scalar_lea.sflag [#allocation3], %s289
        %s291 = sand.u32 %s32, 1
        %s292 = smul.addr %s291, 64
        %s293 = scalar_lea.vmem [#allocation2], %s292
        %p294 = pneg %p45
        %p295 = pneg %p42
        %p296 = pneg %p66
        %p297 = pneg %p63
        %p298 = pneg %p87
        %p299 = pneg %p84
        %p300 = pneg %p108
        %p301 = pneg %p105
        %p302 = pneg %p129
        %p303 = pneg %p126
        %p304 = pneg %p155
        %p305 = pneg %p152
        %s306 = sand.u32 %s142, 1
        %s307 = scalar_lea.sflag [#allocation4], %s306
        %s308 = sand.u32 %s142, 1
        %s309 = smul.addr %s308, 8
        %s310 = scalar_lea.vmem [#allocation11], %s309
        %s311 = smul.u32 8, %s24
        %v312 = vld [vmem:[%s263] sm:$0xff]
        %v313 = vld [vmem:[%s263 + $0x8] sm:$0xff]
        %v314 = vld [vmem:[%s263 + $0x10] sm:$0xff]
        %v315 = vld [vmem:[%s263 + $0x18] sm:$0xff]
        %v316 = vld [vmem:[%s263 + $0x20] sm:$0xff]
        %v317 = vld [vmem:[%s263 + $0x28] sm:$0xff]
        %v318 = vld [vmem:[%s263 + $0x30] sm:$0xff]
        %v319 = vld [vmem:[%s263 + $0x38] sm:$0xff]
        %v320 = vld [vmem:[#allocation5] sm:$0xff]
        %v321 = vld [vmem:[#allocation5 + $0x8] sm:$0xff]
        %s322 = scalar_lea.vmem [#allocation5], 16
        %v323 = vld [vmem:[%s322] sm:$0xff]
        %v324 = vld [vmem:[%s322 + $0x8] sm:$0xff]
        %s325 = scalar_lea.vmem [#allocation5], 32
        %v326 = vld [vmem:[%s325] sm:$0xff]
        %v327 = vld [vmem:[%s325 + $0x8] sm:$0xff]
        %s328 = scalar_lea.vmem [#allocation5], 48
        %v329 = vld [vmem:[%s328] sm:$0xff]
        %v330 = vld [vmem:[%s328 + $0x8] sm:$0xff]
        %v331 = vld [vmem:[#allocation7] sm:$0x1]
        %s332 = scalar_lea.vmem [#allocation7], 1
        %v333 = vld [vmem:[%s332] sm:$0x1]
        %s334 = scalar_lea.vmem [#allocation7], 2
        %v335 = vld [vmem:[%s334] sm:$0x1]
        %s336 = scalar_lea.vmem [#allocation7], 3
        %v337 = vld [vmem:[%s336] sm:$0x1]
        %vm338 = vcmask 130048
        %v340 = vsel %vm338, %v312, 0
        %v343 = vsel %vm338, %v313, 0
        %v346 = vsel %vm338, %v314, 0
        %v349 = vsel %vm338, %v315, 0
        %v352 = vsel %vm338, %v316, 0
        %v355 = vsel %vm338, %v317, 0
        %v358 = vsel %vm338, %v318, 0
        %v361 = vsel %vm338, %v319, 0
        %363 = vmatpush.msra.mxu0 0.0
        %364 = vmatpush.msra.mxu0 0.0
        %365 = vmatpush.msra.mxu0 0.0
        %366 = vmatpush.msra.mxu0 0.0
        %367 = vmatpush.msra.mxu0 0.0
        %368 = vmatpush.msra.mxu0 0.0
        %369 = vmatpush.msra.mxu0 0.0
        %370 = vmatpush.msra.mxu0 0.0
        %371 = vmatpush.msra.mxu0 0.0
        %372 = vmatpush.msra.mxu0 0.0
        %373 = vmatpush.msra.mxu0 0.0
        %374 = vmatpush.msra.mxu0 0.0
        %375 = vmatpush.msra.mxu0 0.0
        %376 = vmatpush.msra.mxu0 0.0
        %377 = vmatpush.msra.mxu0 %v321
        %378 = vmatpush.msra.mxu0 %v320
        %379 = vmatmul.f32.gmra.mxu0 %v340
        %v380 = vpop.f32.mrf.mxu0
        %v381 = vadd.f32 0.0, %v380
        %382 = vmatmul.f32.gmra.mxu0 %v343
        %v383 = vpop.f32.mrf.mxu0
        %v384 = vadd.f32 0.0, %v383
        %385 = vmatmul.f32.gmra.mxu0 %v346
        %v386 = vpop.f32.mrf.mxu0
        %v387 = vadd.f32 0.0, %v386
        %388 = vmatmul.f32.gmra.mxu0 %v349
        %v389 = vpop.f32.mrf.mxu0
        %v390 = vadd.f32 0.0, %v389
        %391 = vmatmul.f32.gmra.mxu0 %v352
        %v392 = vpop.f32.mrf.mxu0
        %v393 = vadd.f32 0.0, %v392
        %394 = vmatmul.f32.gmra.mxu0 %v355
        %v395 = vpop.f32.mrf.mxu0
        %v396 = vadd.f32 0.0, %v395
        %397 = vmatmul.f32.gmra.mxu0 %v358
        %v398 = vpop.f32.mrf.mxu0
        %v399 = vadd.f32 0.0, %v398
        %400 = vmatmul.f32.gmra.mxu0 %v361
        %v401 = vpop.f32.mrf.mxu0
        %v402 = vadd.f32 0.0, %v401
        %403 = vdwg.mxu0
        %404 = vmatpush.msra.mxu0 0.0
        %405 = vmatpush.msra.mxu0 0.0
        %406 = vmatpush.msra.mxu0 0.0
        %407 = vmatpush.msra.mxu0 0.0
        %408 = vmatpush.msra.mxu0 0.0
        %409 = vmatpush.msra.mxu0 0.0
        %410 = vmatpush.msra.mxu0 0.0
        %411 = vmatpush.msra.mxu0 0.0
        %412 = vmatpush.msra.mxu0 0.0
        %413 = vmatpush.msra.mxu0 0.0
        %414 = vmatpush.msra.mxu0 0.0
        %415 = vmatpush.msra.mxu0 0.0
        %416 = vmatpush.msra.mxu0 0.0
        %417 = vmatpush.msra.mxu0 0.0
        %418 = vmatpush.msra.mxu0 %v324
        %419 = vmatpush.msra.mxu0 %v323
        %420 = vmatmul.f32.gmra.mxu0 %v340
        %v421 = vpop.f32.mrf.mxu0
        %v422 = vadd.f32 0.0, %v421
        %423 = vmatmul.f32.gmra.mxu0 %v343
        %v424 = vpop.f32.mrf.mxu0
        %v425 = vadd.f32 0.0, %v424
        %426 = vmatmul.f32.gmra.mxu0 %v346
        %v427 = vpop.f32.mrf.mxu0
        %v428 = vadd.f32 0.0, %v427
        %429 = vmatmul.f32.gmra.mxu0 %v349
        %v430 = vpop.f32.mrf.mxu0
        %v431 = vadd.f32 0.0, %v430
        %432 = vmatmul.f32.gmra.mxu0 %v352
        %v433 = vpop.f32.mrf.mxu0
        %v434 = vadd.f32 0.0, %v433
        %435 = vmatmul.f32.gmra.mxu0 %v355
        %v436 = vpop.f32.mrf.mxu0
        %v437 = vadd.f32 0.0, %v436
        %438 = vmatmul.f32.gmra.mxu0 %v358
        %v439 = vpop.f32.mrf.mxu0
        %v440 = vadd.f32 0.0, %v439
        %441 = vmatmul.f32.gmra.mxu0 %v361
        %v442 = vpop.f32.mrf.mxu0
        %v443 = vadd.f32 0.0, %v442
        %444 = vdwg.mxu0
        %445 = vmatpush.msra.mxu0 0.0
        %446 = vmatpush.msra.mxu0 0.0
        %447 = vmatpush.msra.mxu0 0.0
        %448 = vmatpush.msra.mxu0 0.0
        %449 = vmatpush.msra.mxu0 0.0
        %450 = vmatpush.msra.mxu0 0.0
        %451 = vmatpush.msra.mxu0 0.0
        %452 = vmatpush.msra.mxu0 0.0
        %453 = vmatpush.msra.mxu0 0.0
        %454 = vmatpush.msra.mxu0 0.0
        %455 = vmatpush.msra.mxu0 0.0
        %456 = vmatpush.msra.mxu0 0.0
        %457 = vmatpush.msra.mxu0 0.0
        %458 = vmatpush.msra.mxu0 0.0
        %459 = vmatpush.msra.mxu0 %v327
        %460 = vmatpush.msra.mxu0 %v326
        %461 = vmatmul.f32.gmra.mxu0 %v340
        %v462 = vpop.f32.mrf.mxu0
        %v463 = vadd.f32 0.0, %v462
        %464 = vmatmul.f32.gmra.mxu0 %v343
        %v465 = vpop.f32.mrf.mxu0
        %v466 = vadd.f32 0.0, %v465
        %467 = vmatmul.f32.gmra.mxu0 %v346
        %v468 = vpop.f32.mrf.mxu0
        %v469 = vadd.f32 0.0, %v468
        %470 = vmatmul.f32.gmra.mxu0 %v349
        %v471 = vpop.f32.mrf.mxu0
        %v472 = vadd.f32 0.0, %v471
        %473 = vmatmul.f32.gmra.mxu0 %v352
        %v474 = vpop.f32.mrf.mxu0
        %v475 = vadd.f32 0.0, %v474
        %476 = vmatmul.f32.gmra.mxu0 %v355
        %v477 = vpop.f32.mrf.mxu0
        %v478 = vadd.f32 0.0, %v477
        %479 = vmatmul.f32.gmra.mxu0 %v358
        %v480 = vpop.f32.mrf.mxu0
        %v481 = vadd.f32 0.0, %v480
        %482 = vmatmul.f32.gmra.mxu0 %v361
        %v483 = vpop.f32.mrf.mxu0
        %v484 = vadd.f32 0.0, %v483
        %485 = vdwg.mxu0
        %v494 = vrot.slane %v422, 1
        %v495 = vrot.slane %v422, 2
        %v496 = vrot.slane %v422, 3
        %v497 = vrot.slane %v422, 4
        %v498 = vrot.slane %v422, 5
        %v499 = vrot.slane %v422, 6
        %v500 = vrot.slane %v422, 7
        %v501 = vrot.slane %v425, 1
        %v502 = vrot.slane %v425, 2
        %v503 = vrot.slane %v425, 3
        %v504 = vrot.slane %v425, 4
        %v505 = vrot.slane %v425, 5
        %v506 = vrot.slane %v425, 6
        %v507 = vrot.slane %v425, 7
        %v508 = vrot.slane %v428, 1
        %v509 = vrot.slane %v428, 2
        %v510 = vrot.slane %v428, 3
        %v511 = vrot.slane %v428, 4
        %v512 = vrot.slane %v428, 5
        %v513 = vrot.slane %v428, 6
        %v514 = vrot.slane %v428, 7
        %v515 = vrot.slane %v431, 1
        %v516 = vrot.slane %v431, 2
        %v517 = vrot.slane %v431, 3
        %v518 = vrot.slane %v431, 4
        %v519 = vrot.slane %v431, 5
        %v520 = vrot.slane %v431, 6
        %v521 = vrot.slane %v431, 7
        %v522 = vrot.slane %v434, 1
        %v523 = vrot.slane %v434, 2
        %v524 = vrot.slane %v434, 3
        %v525 = vrot.slane %v434, 4
        %v526 = vrot.slane %v434, 5
        %v527 = vrot.slane %v434, 6
        %v528 = vrot.slane %v434, 7
        %v529 = vrot.slane %v437, 1
        %v530 = vrot.slane %v437, 2
        %v531 = vrot.slane %v437, 3
        %v532 = vrot.slane %v437, 4
        %v533 = vrot.slane %v437, 5
        %v534 = vrot.slane %v437, 6
        %v535 = vrot.slane %v437, 7
        %v536 = vrot.slane %v440, 1
        %v537 = vrot.slane %v440, 2
        %v538 = vrot.slane %v440, 3
        %v539 = vrot.slane %v440, 4
        %v540 = vrot.slane %v440, 5
        %v541 = vrot.slane %v440, 6
        %v542 = vrot.slane %v440, 7
        %v543 = vrot.slane %v443, 1
        %v544 = vrot.slane %v443, 2
        %v545 = vrot.slane %v443, 3
        %v546 = vrot.slane %v443, 4
        %v547 = vrot.slane %v443, 5
        %v548 = vrot.slane %v443, 6
        %v549 = vrot.slane %v443, 7
        %v550 = vperm.slane %v422, 0
        %v551 = vperm.slane %v494, 0
        %v552 = vperm.slane %v495, 0
        %v553 = vperm.slane %v496, 0
        %v554 = vperm.slane %v497, 0
        %v555 = vperm.slane %v498, 0
        %v556 = vperm.slane %v499, 0
        %v557 = vperm.slane %v500, 0
        %v558 = vperm.slane %v425, 0
        %v559 = vperm.slane %v501, 0
        %v560 = vperm.slane %v502, 0
        %v561 = vperm.slane %v503, 0
        %v562 = vperm.slane %v504, 0
        %v563 = vperm.slane %v505, 0
        %v564 = vperm.slane %v506, 0
        %v565 = vperm.slane %v507, 0
        %v566 = vperm.slane %v428, 0
        %v567 = vperm.slane %v508, 0
        %v568 = vperm.slane %v509, 0
        %v569 = vperm.slane %v510, 0
        %v570 = vperm.slane %v511, 0
        %v571 = vperm.slane %v512, 0
        %v572 = vperm.slane %v513, 0
        %v573 = vperm.slane %v514, 0
        %v574 = vperm.slane %v431, 0
        %v575 = vperm.slane %v515, 0
        %v576 = vperm.slane %v516, 0
        %v577 = vperm.slane %v517, 0
        %v578 = vperm.slane %v518, 0
        %v579 = vperm.slane %v519, 0
        %v580 = vperm.slane %v520, 0
        %v581 = vperm.slane %v521, 0
        %v582 = vperm.slane %v434, 0
        %v583 = vperm.slane %v522, 0
        %v584 = vperm.slane %v523, 0
        %v585 = vperm.slane %v524, 0
        %v586 = vperm.slane %v525, 0
        %v587 = vperm.slane %v526, 0
        %v588 = vperm.slane %v527, 0
        %v589 = vperm.slane %v528, 0
        %v590 = vperm.slane %v437, 0
        %v591 = vperm.slane %v529, 0
        %v592 = vperm.slane %v530, 0
        %v593 = vperm.slane %v531, 0
        %v594 = vperm.slane %v532, 0
        %v595 = vperm.slane %v533, 0
        %v596 = vperm.slane %v534, 0
        %v597 = vperm.slane %v535, 0
        %v598 = vperm.slane %v440, 0
        %v599 = vperm.slane %v536, 0
        %v600 = vperm.slane %v537, 0
        %v601 = vperm.slane %v538, 0
        %v602 = vperm.slane %v539, 0
        %v603 = vperm.slane %v540, 0
        %v604 = vperm.slane %v541, 0
        %v605 = vperm.slane %v542, 0
        %v606 = vperm.slane %v443, 0
        %v607 = vperm.slane %v543, 0
        %v608 = vperm.slane %v544, 0
        %v609 = vperm.slane %v545, 0
        %v610 = vperm.slane %v546, 0
        %v611 = vperm.slane %v547, 0
        %v612 = vperm.slane %v548, 0
        %v613 = vperm.slane %v549, 0
        %v678 = vmul.f32 %v550, %v381
        %v679 = vmul.f32 %v551, %v381
        %v680 = vmul.f32 %v552, %v381
        %v681 = vmul.f32 %v553, %v381
        %v682 = vmul.f32 %v554, %v381
        %v683 = vmul.f32 %v555, %v381
        %v684 = vmul.f32 %v556, %v381
        %v685 = vmul.f32 %v557, %v381
        %v686 = vmul.f32 %v558, %v384
        %v687 = vmul.f32 %v559, %v384
        %v688 = vmul.f32 %v560, %v384
        %v689 = vmul.f32 %v561, %v384
        %v690 = vmul.f32 %v562, %v384
        %v691 = vmul.f32 %v563, %v384
        %v692 = vmul.f32 %v564, %v384
        %v693 = vmul.f32 %v565, %v384
        %v694 = vmul.f32 %v566, %v387
        %v695 = vmul.f32 %v567, %v387
        %v696 = vmul.f32 %v568, %v387
        %v697 = vmul.f32 %v569, %v387
        %v698 = vmul.f32 %v570, %v387
        %v699 = vmul.f32 %v571, %v387
        %v700 = vmul.f32 %v572, %v387
        %v701 = vmul.f32 %v573, %v387
        %v702 = vmul.f32 %v574, %v390
        %v703 = vmul.f32 %v575, %v390
        %v704 = vmul.f32 %v576, %v390
        %v705 = vmul.f32 %v577, %v390
        %v706 = vmul.f32 %v578, %v390
        %v707 = vmul.f32 %v579, %v390
        %v708 = vmul.f32 %v580, %v390
        %v709 = vmul.f32 %v581, %v390
        %v710 = vmul.f32 %v582, %v393
        %v711 = vmul.f32 %v583, %v393
        %v712 = vmul.f32 %v584, %v393
        %v713 = vmul.f32 %v585, %v393
        %v714 = vmul.f32 %v586, %v393
        %v715 = vmul.f32 %v587, %v393
        %v716 = vmul.f32 %v588, %v393
        %v717 = vmul.f32 %v589, %v393
        %v718 = vmul.f32 %v590, %v396
        %v719 = vmul.f32 %v591, %v396
        %v720 = vmul.f32 %v592, %v396
        %v721 = vmul.f32 %v593, %v396
        %v722 = vmul.f32 %v594, %v396
        %v723 = vmul.f32 %v595, %v396
        %v724 = vmul.f32 %v596, %v396
        %v725 = vmul.f32 %v597, %v396
        %v726 = vmul.f32 %v598, %v399
        %v727 = vmul.f32 %v599, %v399
        %v728 = vmul.f32 %v600, %v399
        %v729 = vmul.f32 %v601, %v399
        %v730 = vmul.f32 %v602, %v399
        %v731 = vmul.f32 %v603, %v399
        %v732 = vmul.f32 %v604, %v399
        %v733 = vmul.f32 %v605, %v399
        %v734 = vmul.f32 %v606, %v402
        %v735 = vmul.f32 %v607, %v402
        %v736 = vmul.f32 %v608, %v402
        %v737 = vmul.f32 %v609, %v402
        %v738 = vmul.f32 %v610, %v402
        %v739 = vmul.f32 %v611, %v402
        %v740 = vmul.f32 %v612, %v402
        %v741 = vmul.f32 %v613, %v402
        %v742 = vsel %vm338, %v678, -inf
        %v743 = vsel %vm338, %v679, -inf
        %v744 = vmax.f32 %v742, %v743
        %v745 = vsel %vm338, %v680, -inf
        %v746 = vmax.f32 %v744, %v745
        %v747 = vsel %vm338, %v681, -inf
        %v748 = vmax.f32 %v746, %v747
        %v749 = vsel %vm338, %v682, -inf
        %v750 = vmax.f32 %v748, %v749
        %v751 = vsel %vm338, %v683, -inf
        %v752 = vmax.f32 %v750, %v751
        %v753 = vsel %vm338, %v684, -inf
        %v754 = vmax.f32 %v752, %v753
        %v755 = vsel %vm338, %v685, -inf
        %v756 = vmax.f32 %v754, %v755
        %v757 = vsel %vm338, %v686, -inf
        %v758 = vsel %vm338, %v687, -inf
        %v759 = vmax.f32 %v757, %v758
        %v760 = vsel %vm338, %v688, -inf
        %v761 = vmax.f32 %v759, %v760
        %v762 = vsel %vm338, %v689, -inf
        %v763 = vmax.f32 %v761, %v762
        %v764 = vsel %vm338, %v690, -inf
        %v765 = vmax.f32 %v763, %v764
        %v766 = vsel %vm338, %v691, -inf
        %v767 = vmax.f32 %v765, %v766
        %v768 = vsel %vm338, %v692, -inf
        %v769 = vmax.f32 %v767, %v768
        %v770 = vsel %vm338, %v693, -inf
        %v771 = vmax.f32 %v769, %v770
        %v772 = vsel %vm338, %v694, -inf
        %v773 = vsel %vm338, %v695, -inf
        %v774 = vmax.f32 %v772, %v773
        %v775 = vsel %vm338, %v696, -inf
        %v776 = vmax.f32 %v774, %v775
        %v777 = vsel %vm338, %v697, -inf
        %v778 = vmax.f32 %v776, %v777
        %v779 = vsel %vm338, %v698, -inf
        %v780 = vmax.f32 %v778, %v779
        %v781 = vsel %vm338, %v699, -inf
        %v782 = vmax.f32 %v780, %v781
        %v783 = vsel %vm338, %v700, -inf
        %v784 = vmax.f32 %v782, %v783
        %v785 = vsel %vm338, %v701, -inf
        %v786 = vmax.f32 %v784, %v785
        %v787 = vsel %vm338, %v702, -inf
        %v788 = vsel %vm338, %v703, -inf
        %v789 = vmax.f32 %v787, %v788
        %v790 = vsel %vm338, %v704, -inf
        %v791 = vmax.f32 %v789, %v790
        %v792 = vsel %vm338, %v705, -inf
        %v793 = vmax.f32 %v791, %v792
        %v794 = vsel %vm338, %v706, -inf
        %v795 = vmax.f32 %v793, %v794
        %v796 = vsel %vm338, %v707, -inf
        %v797 = vmax.f32 %v795, %v796
        %v798 = vsel %vm338, %v708, -inf
        %v799 = vmax.f32 %v797, %v798
        %v800 = vsel %vm338, %v709, -inf
        %v801 = vmax.f32 %v799, %v800
        %v802 = vsel %vm338, %v710, -inf
        %v803 = vsel %vm338, %v711, -inf
        %v804 = vmax.f32 %v802, %v803
        %v805 = vsel %vm338, %v712, -inf
        %v806 = vmax.f32 %v804, %v805
        %v807 = vsel %vm338, %v713, -inf
        %v808 = vmax.f32 %v806, %v807
        %v809 = vsel %vm338, %v714, -inf
        %v810 = vmax.f32 %v808, %v809
        %v811 = vsel %vm338, %v715, -inf
        %v812 = vmax.f32 %v810, %v811
        %v813 = vsel %vm338, %v716, -inf
        %v814 = vmax.f32 %v812, %v813
        %v815 = vsel %vm338, %v717, -inf
        %v816 = vmax.f32 %v814, %v815
        %v817 = vsel %vm338, %v718, -inf
        %v818 = vsel %vm338, %v719, -inf
        %v819 = vmax.f32 %v817, %v818
        %v820 = vsel %vm338, %v720, -inf
        %v821 = vmax.f32 %v819, %v820
        %v822 = vsel %vm338, %v721, -inf
        %v823 = vmax.f32 %v821, %v822
        %v824 = vsel %vm338, %v722, -inf
        %v825 = vmax.f32 %v823, %v824
        %v826 = vsel %vm338, %v723, -inf
        %v827 = vmax.f32 %v825, %v826
        %v828 = vsel %vm338, %v724, -inf
        %v829 = vmax.f32 %v827, %v828
        %v830 = vsel %vm338, %v725, -inf
        %v831 = vmax.f32 %v829, %v830
        %v832 = vsel %vm338, %v726, -inf
        %v833 = vsel %vm338, %v727, -inf
        %v834 = vmax.f32 %v832, %v833
        %v835 = vsel %vm338, %v728, -inf
        %v836 = vmax.f32 %v834, %v835
        %v837 = vsel %vm338, %v729, -inf
        %v838 = vmax.f32 %v836, %v837
        %v839 = vsel %vm338, %v730, -inf
        %v840 = vmax.f32 %v838, %v839
        %v841 = vsel %vm338, %v731, -inf
        %v842 = vmax.f32 %v840, %v841
        %v843 = vsel %vm338, %v732, -inf
        %v844 = vmax.f32 %v842, %v843
        %v845 = vsel %vm338, %v733, -inf
        %v846 = vmax.f32 %v844, %v845
        %v847 = vsel %vm338, %v734, -inf
        %v848 = vsel %vm338, %v735, -inf
        %v849 = vmax.f32 %v847, %v848
        %v850 = vsel %vm338, %v736, -inf
        %v851 = vmax.f32 %v849, %v850
        %v852 = vsel %vm338, %v737, -inf
        %v853 = vmax.f32 %v851, %v852
        %v854 = vsel %vm338, %v738, -inf
        %v855 = vmax.f32 %v853, %v854
        %v856 = vsel %vm338, %v739, -inf
        %v857 = vmax.f32 %v855, %v856
        %v858 = vsel %vm338, %v740, -inf
        %v859 = vmax.f32 %v857, %v858
        %v860 = vsel %vm338, %v741, -inf
        %v861 = vmax.f32 %v859, %v860
        %v862 = vsub.f32 %v678, %v756
        %v863 = vsub.f32 %v679, %v756
        %v864 = vsub.f32 %v680, %v756
        %v865 = vsub.f32 %v681, %v756
        %v866 = vsub.f32 %v682, %v756
        %v867 = vsub.f32 %v683, %v756
        %v868 = vsub.f32 %v684, %v756
        %v869 = vsub.f32 %v685, %v756
        %v870 = vsub.f32 %v686, %v771
        %v871 = vsub.f32 %v687, %v771
        %v872 = vsub.f32 %v688, %v771
        %v873 = vsub.f32 %v689, %v771
        %v874 = vsub.f32 %v690, %v771
        %v875 = vsub.f32 %v691, %v771
        %v876 = vsub.f32 %v692, %v771
        %v877 = vsub.f32 %v693, %v771
        %v878 = vsub.f32 %v694, %v786
        %v879 = vsub.f32 %v695, %v786
        %v880 = vsub.f32 %v696, %v786
        %v881 = vsub.f32 %v697, %v786
        %v882 = vsub.f32 %v698, %v786
        %v883 = vsub.f32 %v699, %v786
        %v884 = vsub.f32 %v700, %v786
        %v885 = vsub.f32 %v701, %v786
        %v886 = vsub.f32 %v702, %v801
        %v887 = vsub.f32 %v703, %v801
        %v888 = vsub.f32 %v704, %v801
        %v889 = vsub.f32 %v705, %v801
        %v890 = vsub.f32 %v706, %v801
        %v891 = vsub.f32 %v707, %v801
        %v892 = vsub.f32 %v708, %v801
        %v893 = vsub.f32 %v709, %v801
        %v894 = vsub.f32 %v710, %v816
        %v895 = vsub.f32 %v711, %v816
        %v896 = vsub.f32 %v712, %v816
        %v897 = vsub.f32 %v713, %v816
        %v898 = vsub.f32 %v714, %v816
        %v899 = vsub.f32 %v715, %v816
        %v900 = vsub.f32 %v716, %v816
        %v901 = vsub.f32 %v717, %v816
        %v902 = vsub.f32 %v718, %v831
        %v903 = vsub.f32 %v719, %v831
        %v904 = vsub.f32 %v720, %v831
        %v905 = vsub.f32 %v721, %v831
        %v906 = vsub.f32 %v722, %v831
        %v907 = vsub.f32 %v723, %v831
        %v908 = vsub.f32 %v724, %v831
        %v909 = vsub.f32 %v725, %v831
        %v910 = vsub.f32 %v726, %v846
        %v911 = vsub.f32 %v727, %v846
        %v912 = vsub.f32 %v728, %v846
        %v913 = vsub.f32 %v729, %v846
        %v914 = vsub.f32 %v730, %v846
        %v915 = vsub.f32 %v731, %v846
        %v916 = vsub.f32 %v732, %v846
        %v917 = vsub.f32 %v733, %v846
        %v918 = vsub.f32 %v734, %v861
        %v919 = vsub.f32 %v735, %v861
        %v920 = vsub.f32 %v736, %v861
        %v921 = vsub.f32 %v737, %v861
        %v922 = vsub.f32 %v738, %v861
        %v923 = vsub.f32 %v739, %v861
        %v924 = vsub.f32 %v740, %v861
        %v925 = vsub.f32 %v741, %v861
        %v926 = vmul.f32 %v862, 1.442695
        %v927 = vpow.pop %v926
        %v928 = vmul.f32 %v863, 1.442695
        %v929 = vpow.pop %v928
        %v930 = vmul.f32 %v864, 1.442695
        %v931 = vpow.pop %v930
        %v932 = vmul.f32 %v865, 1.442695
        %v933 = vpow.pop %v932
        %v934 = vmul.f32 %v866, 1.442695
        %v935 = vpow.pop %v934
        %v936 = vmul.f32 %v867, 1.442695
        %v937 = vpow.pop %v936
        %v938 = vmul.f32 %v868, 1.442695
        %v939 = vpow.pop %v938
        %v940 = vmul.f32 %v869, 1.442695
        %v941 = vpow.pop %v940
        %v942 = vmul.f32 %v870, 1.442695
        %v943 = vpow.pop %v942
        %v944 = vmul.f32 %v871, 1.442695
        %v945 = vpow.pop %v944
        %v946 = vmul.f32 %v872, 1.442695
        %v947 = vpow.pop %v946
        %v948 = vmul.f32 %v873, 1.442695
        %v949 = vpow.pop %v948
        %v950 = vmul.f32 %v874, 1.442695
        %v951 = vpow.pop %v950
        %v952 = vmul.f32 %v875, 1.442695
        %v953 = vpow.pop %v952
        %v954 = vmul.f32 %v876, 1.442695
        %v955 = vpow.pop %v954
        %v956 = vmul.f32 %v877, 1.442695
        %v957 = vpow.pop %v956
        %v958 = vmul.f32 %v878, 1.442695
        %v959 = vpow.pop %v958
        %v960 = vmul.f32 %v879, 1.442695
        %v961 = vpow.pop %v960
        %v962 = vmul.f32 %v880, 1.442695
        %v963 = vpow.pop %v962
        %v964 = vmul.f32 %v881, 1.442695
        %v965 = vpow.pop %v964
        %v966 = vmul.f32 %v882, 1.442695
        %v967 = vpow.pop %v966
        %v968 = vmul.f32 %v883, 1.442695
        %v969 = vpow.pop %v968
        %v970 = vmul.f32 %v884, 1.442695
        %v971 = vpow.pop %v970
        %v972 = vmul.f32 %v885, 1.442695
        %v973 = vpow.pop %v972
        %v974 = vmul.f32 %v886, 1.442695
        %v975 = vpow.pop %v974
        %v976 = vmul.f32 %v887, 1.442695
        %v977 = vpow.pop %v976
        %v978 = vmul.f32 %v888, 1.442695
        %v979 = vpow.pop %v978
        %v980 = vmul.f32 %v889, 1.442695
        %v981 = vpow.pop %v980
        %v982 = vmul.f32 %v890, 1.442695
        %v983 = vpow.pop %v982
        %v984 = vmul.f32 %v891, 1.442695
        %v985 = vpow.pop %v984
        %v986 = vmul.f32 %v892, 1.442695
        %v987 = vpow.pop %v986
        %v988 = vmul.f32 %v893, 1.442695
        %v989 = vpow.pop %v988
        %v990 = vmul.f32 %v894, 1.442695
        %v991 = vpow.pop %v990
        %v992 = vmul.f32 %v895, 1.442695
        %v993 = vpow.pop %v992
        %v994 = vmul.f32 %v896, 1.442695
        %v995 = vpow.pop %v994
        %v996 = vmul.f32 %v897, 1.442695
        %v997 = vpow.pop %v996
        %v998 = vmul.f32 %v898, 1.442695
        %v999 = vpow.pop %v998
        %v1000 = vmul.f32 %v899, 1.442695
        %v1001 = vpow.pop %v1000
        %v1002 = vmul.f32 %v900, 1.442695
        %v1003 = vpow.pop %v1002
        %v1004 = vmul.f32 %v901, 1.442695
        %v1005 = vpow.pop %v1004
        %v1006 = vmul.f32 %v902, 1.442695
        %v1007 = vpow.pop %v1006
        %v1008 = vmul.f32 %v903, 1.442695
        %v1009 = vpow.pop %v1008
        %v1010 = vmul.f32 %v904, 1.442695
        %v1011 = vpow.pop %v1010
        %v1012 = vmul.f32 %v905, 1.442695
        %v1013 = vpow.pop %v1012
        %v1014 = vmul.f32 %v906, 1.442695
        %v1015 = vpow.pop %v1014
        %v1016 = vmul.f32 %v907, 1.442695
        %v1017 = vpow.pop %v1016
        %v1018 = vmul.f32 %v908, 1.442695
        %v1019 = vpow.pop %v1018
        %v1020 = vmul.f32 %v909, 1.442695
        %v1021 = vpow.pop %v1020
        %v1022 = vmul.f32 %v910, 1.442695
        %v1023 = vpow.pop %v1022
        %v1024 = vmul.f32 %v911, 1.442695
        %v1025 = vpow.pop %v1024
        %v1026 = vmul.f32 %v912, 1.442695
        %v1027 = vpow.pop %v1026
        %v1028 = vmul.f32 %v913, 1.442695
        %v1029 = vpow.pop %v1028
        %v1030 = vmul.f32 %v914, 1.442695
        %v1031 = vpow.pop %v1030
        %v1032 = vmul.f32 %v915, 1.442695
        %v1033 = vpow.pop %v1032
        %v1034 = vmul.f32 %v916, 1.442695
        %v1035 = vpow.pop %v1034
        %v1036 = vmul.f32 %v917, 1.442695
        %v1037 = vpow.pop %v1036
        %v1038 = vmul.f32 %v918, 1.442695
        %v1039 = vpow.pop %v1038
        %v1040 = vmul.f32 %v919, 1.442695
        %v1041 = vpow.pop %v1040
        %v1042 = vmul.f32 %v920, 1.442695
        %v1043 = vpow.pop %v1042
        %v1044 = vmul.f32 %v921, 1.442695
        %v1045 = vpow.pop %v1044
        %v1046 = vmul.f32 %v922, 1.442695
        %v1047 = vpow.pop %v1046
        %v1048 = vmul.f32 %v923, 1.442695
        %v1049 = vpow.pop %v1048
        %v1050 = vmul.f32 %v924, 1.442695
        %v1051 = vpow.pop %v1050
        %v1052 = vmul.f32 %v925, 1.442695
        %v1053 = vpow.pop %v1052
        %v1062 = vrot.slane %v463, 1
        %v1063 = vrot.slane %v463, 2
        %v1064 = vrot.slane %v463, 3
        %v1065 = vrot.slane %v463, 4
        %v1066 = vrot.slane %v463, 5
        %v1067 = vrot.slane %v463, 6
        %v1068 = vrot.slane %v463, 7
        %v1069 = vrot.slane %v466, 1
        %v1070 = vrot.slane %v466, 2
        %v1071 = vrot.slane %v466, 3
        %v1072 = vrot.slane %v466, 4
        %v1073 = vrot.slane %v466, 5
        %v1074 = vrot.slane %v466, 6
        %v1075 = vrot.slane %v466, 7
        %v1076 = vrot.slane %v469, 1
        %v1077 = vrot.slane %v469, 2
        %v1078 = vrot.slane %v469, 3
        %v1079 = vrot.slane %v469, 4
        %v1080 = vrot.slane %v469, 5
        %v1081 = vrot.slane %v469, 6
        %v1082 = vrot.slane %v469, 7
        %v1083 = vrot.slane %v472, 1
        %v1084 = vrot.slane %v472, 2
        %v1085 = vrot.slane %v472, 3
        %v1086 = vrot.slane %v472, 4
        %v1087 = vrot.slane %v472, 5
        %v1088 = vrot.slane %v472, 6
        %v1089 = vrot.slane %v472, 7
        %v1090 = vrot.slane %v475, 1
        %v1091 = vrot.slane %v475, 2
        %v1092 = vrot.slane %v475, 3
        %v1093 = vrot.slane %v475, 4
        %v1094 = vrot.slane %v475, 5
        %v1095 = vrot.slane %v475, 6
        %v1096 = vrot.slane %v475, 7
        %v1097 = vrot.slane %v478, 1
        %v1098 = vrot.slane %v478, 2
        %v1099 = vrot.slane %v478, 3
        %v1100 = vrot.slane %v478, 4
        %v1101 = vrot.slane %v478, 5
        %v1102 = vrot.slane %v478, 6
        %v1103 = vrot.slane %v478, 7
        %v1104 = vrot.slane %v481, 1
        %v1105 = vrot.slane %v481, 2
        %v1106 = vrot.slane %v481, 3
        %v1107 = vrot.slane %v481, 4
        %v1108 = vrot.slane %v481, 5
        %v1109 = vrot.slane %v481, 6
        %v1110 = vrot.slane %v481, 7
        %v1111 = vrot.slane %v484, 1
        %v1112 = vrot.slane %v484, 2
        %v1113 = vrot.slane %v484, 3
        %v1114 = vrot.slane %v484, 4
        %v1115 = vrot.slane %v484, 5
        %v1116 = vrot.slane %v484, 6
        %v1117 = vrot.slane %v484, 7
        %v1118 = vperm.slane %v463, 0
        %v1119 = vperm.slane %v1062, 0
        %v1120 = vperm.slane %v1063, 0
        %v1121 = vperm.slane %v1064, 0
        %v1122 = vperm.slane %v1065, 0
        %v1123 = vperm.slane %v1066, 0
        %v1124 = vperm.slane %v1067, 0
        %v1125 = vperm.slane %v1068, 0
        %v1126 = vperm.slane %v466, 0
        %v1127 = vperm.slane %v1069, 0
        %v1128 = vperm.slane %v1070, 0
        %v1129 = vperm.slane %v1071, 0
        %v1130 = vperm.slane %v1072, 0
        %v1131 = vperm.slane %v1073, 0
        %v1132 = vperm.slane %v1074, 0
        %v1133 = vperm.slane %v1075, 0
        %v1134 = vperm.slane %v469, 0
        %v1135 = vperm.slane %v1076, 0
        %v1136 = vperm.slane %v1077, 0
        %v1137 = vperm.slane %v1078, 0
        %v1138 = vperm.slane %v1079, 0
        %v1139 = vperm.slane %v1080, 0
        %v1140 = vperm.slane %v1081, 0
        %v1141 = vperm.slane %v1082, 0
        %v1142 = vperm.slane %v472, 0
        %v1143 = vperm.slane %v1083, 0
        %v1144 = vperm.slane %v1084, 0
        %v1145 = vperm.slane %v1085, 0
        %v1146 = vperm.slane %v1086, 0
        %v1147 = vperm.slane %v1087, 0
        %v1148 = vperm.slane %v1088, 0
        %v1149 = vperm.slane %v1089, 0
        %v1150 = vperm.slane %v475, 0
        %v1151 = vperm.slane %v1090, 0
        %v1152 = vperm.slane %v1091, 0
        %v1153 = vperm.slane %v1092, 0
        %v1154 = vperm.slane %v1093, 0
        %v1155 = vperm.slane %v1094, 0
        %v1156 = vperm.slane %v1095, 0
        %v1157 = vperm.slane %v1096, 0
        %v1158 = vperm.slane %v478, 0
        %v1159 = vperm.slane %v1097, 0
        %v1160 = vperm.slane %v1098, 0
        %v1161 = vperm.slane %v1099, 0
        %v1162 = vperm.slane %v1100, 0
        %v1163 = vperm.slane %v1101, 0
        %v1164 = vperm.slane %v1102, 0
        %v1165 = vperm.slane %v1103, 0
        %v1166 = vperm.slane %v481, 0
        %v1167 = vperm.slane %v1104, 0
        %v1168 = vperm.slane %v1105, 0
        %v1169 = vperm.slane %v1106, 0
        %v1170 = vperm.slane %v1107, 0
        %v1171 = vperm.slane %v1108, 0
        %v1172 = vperm.slane %v1109, 0
        %v1173 = vperm.slane %v1110, 0
        %v1174 = vperm.slane %v484, 0
        %v1175 = vperm.slane %v1111, 0
        %v1176 = vperm.slane %v1112, 0
        %v1177 = vperm.slane %v1113, 0
        %v1178 = vperm.slane %v1114, 0
        %v1179 = vperm.slane %v1115, 0
        %v1180 = vperm.slane %v1116, 0
        %v1181 = vperm.slane %v1117, 0
        %v1246 = vmul.f32 %v927, %v1118
        %v1247 = vmul.f32 %v929, %v1119
        %v1248 = vmul.f32 %v931, %v1120
        %v1249 = vmul.f32 %v933, %v1121
        %v1250 = vmul.f32 %v935, %v1122
        %v1251 = vmul.f32 %v937, %v1123
        %v1252 = vmul.f32 %v939, %v1124
        %v1253 = vmul.f32 %v941, %v1125
        %v1254 = vmul.f32 %v943, %v1126
        %v1255 = vmul.f32 %v945, %v1127
        %v1256 = vmul.f32 %v947, %v1128
        %v1257 = vmul.f32 %v949, %v1129
        %v1258 = vmul.f32 %v951, %v1130
        %v1259 = vmul.f32 %v953, %v1131
        %v1260 = vmul.f32 %v955, %v1132
        %v1261 = vmul.f32 %v957, %v1133
        %v1262 = vmul.f32 %v959, %v1134
        %v1263 = vmul.f32 %v961, %v1135
        %v1264 = vmul.f32 %v963, %v1136
        %v1265 = vmul.f32 %v965, %v1137
        %v1266 = vmul.f32 %v967, %v1138
        %v1267 = vmul.f32 %v969, %v1139
        %v1268 = vmul.f32 %v971, %v1140
        %v1269 = vmul.f32 %v973, %v1141
        %v1270 = vmul.f32 %v975, %v1142
        %v1271 = vmul.f32 %v977, %v1143
        %v1272 = vmul.f32 %v979, %v1144
        %v1273 = vmul.f32 %v981, %v1145
        %v1274 = vmul.f32 %v983, %v1146
        %v1275 = vmul.f32 %v985, %v1147
        %v1276 = vmul.f32 %v987, %v1148
        %v1277 = vmul.f32 %v989, %v1149
        %v1278 = vmul.f32 %v991, %v1150
        %v1279 = vmul.f32 %v993, %v1151
        %v1280 = vmul.f32 %v995, %v1152
        %v1281 = vmul.f32 %v997, %v1153
        %v1282 = vmul.f32 %v999, %v1154
        %v1283 = vmul.f32 %v1001, %v1155
        %v1284 = vmul.f32 %v1003, %v1156
        %v1285 = vmul.f32 %v1005, %v1157
        %v1286 = vmul.f32 %v1007, %v1158
        %v1287 = vmul.f32 %v1009, %v1159
        %v1288 = vmul.f32 %v1011, %v1160
        %v1289 = vmul.f32 %v1013, %v1161
        %v1290 = vmul.f32 %v1015, %v1162
        %v1291 = vmul.f32 %v1017, %v1163
        %v1292 = vmul.f32 %v1019, %v1164
        %v1293 = vmul.f32 %v1021, %v1165
        %v1294 = vmul.f32 %v1023, %v1166
        %v1295 = vmul.f32 %v1025, %v1167
        %v1296 = vmul.f32 %v1027, %v1168
        %v1297 = vmul.f32 %v1029, %v1169
        %v1298 = vmul.f32 %v1031, %v1170
        %v1299 = vmul.f32 %v1033, %v1171
        %v1300 = vmul.f32 %v1035, %v1172
        %v1301 = vmul.f32 %v1037, %v1173
        %v1302 = vmul.f32 %v1039, %v1174
        %v1303 = vmul.f32 %v1041, %v1175
        %v1304 = vmul.f32 %v1043, %v1176
        %v1305 = vmul.f32 %v1045, %v1177
        %v1306 = vmul.f32 %v1047, %v1178
        %v1307 = vmul.f32 %v1049, %v1179
        %v1308 = vmul.f32 %v1051, %v1180
        %v1309 = vmul.f32 %v1053, %v1181
        %v1310 = vsel %vm338, %v1246, 0.0
        %v1311 = vsel %vm338, %v1247, 0.0
        %v1312 = vadd.f32 %v1310, %v1311
        %v1313 = vsel %vm338, %v1248, 0.0
        %v1314 = vadd.f32 %v1312, %v1313
        %v1315 = vsel %vm338, %v1249, 0.0
        %v1316 = vadd.f32 %v1314, %v1315
        %v1317 = vsel %vm338, %v1250, 0.0
        %v1318 = vadd.f32 %v1316, %v1317
        %v1319 = vsel %vm338, %v1251, 0.0
        %v1320 = vadd.f32 %v1318, %v1319
        %v1321 = vsel %vm338, %v1252, 0.0
        %v1322 = vadd.f32 %v1320, %v1321
        %v1323 = vsel %vm338, %v1253, 0.0
        %v1324 = vadd.f32 %v1322, %v1323
        %v1325 = vsel %vm338, %v1254, 0.0
        %v1326 = vsel %vm338, %v1255, 0.0
        %v1327 = vadd.f32 %v1325, %v1326
        %v1328 = vsel %vm338, %v1256, 0.0
        %v1329 = vadd.f32 %v1327, %v1328
        %v1330 = vsel %vm338, %v1257, 0.0
        %v1331 = vadd.f32 %v1329, %v1330
        %v1332 = vsel %vm338, %v1258, 0.0
        %v1333 = vadd.f32 %v1331, %v1332
        %v1334 = vsel %vm338, %v1259, 0.0
        %v1335 = vadd.f32 %v1333, %v1334
        %v1336 = vsel %vm338, %v1260, 0.0
        %v1337 = vadd.f32 %v1335, %v1336
        %v1338 = vsel %vm338, %v1261, 0.0
        %v1339 = vadd.f32 %v1337, %v1338
        %v1340 = vsel %vm338, %v1262, 0.0
        %v1341 = vsel %vm338, %v1263, 0.0
        %v1342 = vadd.f32 %v1340, %v1341
        %v1343 = vsel %vm338, %v1264, 0.0
        %v1344 = vadd.f32 %v1342, %v1343
        %v1345 = vsel %vm338, %v1265, 0.0
        %v1346 = vadd.f32 %v1344, %v1345
        %v1347 = vsel %vm338, %v1266, 0.0
        %v1348 = vadd.f32 %v1346, %v1347
        %v1349 = vsel %vm338, %v1267, 0.0
        %v1350 = vadd.f32 %v1348, %v1349
        %v1351 = vsel %vm338, %v1268, 0.0
        %v1352 = vadd.f32 %v1350, %v1351
        %v1353 = vsel %vm338, %v1269, 0.0
        %v1354 = vadd.f32 %v1352, %v1353
        %v1355 = vsel %vm338, %v1270, 0.0
        %v1356 = vsel %vm338, %v1271, 0.0
        %v1357 = vadd.f32 %v1355, %v1356
        %v1358 = vsel %vm338, %v1272, 0.0
        %v1359 = vadd.f32 %v1357, %v1358
        %v1360 = vsel %vm338, %v1273, 0.0
        %v1361 = vadd.f32 %v1359, %v1360
        %v1362 = vsel %vm338, %v1274, 0.0
        %v1363 = vadd.f32 %v1361, %v1362
        %v1364 = vsel %vm338, %v1275, 0.0
        %v1365 = vadd.f32 %v1363, %v1364
        %v1366 = vsel %vm338, %v1276, 0.0
        %v1367 = vadd.f32 %v1365, %v1366
        %v1368 = vsel %vm338, %v1277, 0.0
        %v1369 = vadd.f32 %v1367, %v1368
        %v1370 = vsel %vm338, %v1278, 0.0
        %v1371 = vsel %vm338, %v1279, 0.0
        %v1372 = vadd.f32 %v1370, %v1371
        %v1373 = vsel %vm338, %v1280, 0.0
        %v1374 = vadd.f32 %v1372, %v1373
        %v1375 = vsel %vm338, %v1281, 0.0
        %v1376 = vadd.f32 %v1374, %v1375
        %v1377 = vsel %vm338, %v1282, 0.0
        %v1378 = vadd.f32 %v1376, %v1377
        %v1379 = vsel %vm338, %v1283, 0.0
        %v1380 = vadd.f32 %v1378, %v1379
        %v1381 = vsel %vm338, %v1284, 0.0
        %v1382 = vadd.f32 %v1380, %v1381
        %v1383 = vsel %vm338, %v1285, 0.0
        %v1384 = vadd.f32 %v1382, %v1383
        %v1385 = vsel %vm338, %v1286, 0.0
        %v1386 = vsel %vm338, %v1287, 0.0
        %v1387 = vadd.f32 %v1385, %v1386
        %v1388 = vsel %vm338, %v1288, 0.0
        %v1389 = vadd.f32 %v1387, %v1388
        %v1390 = vsel %vm338, %v1289, 0.0
        %v1391 = vadd.f32 %v1389, %v1390
        %v1392 = vsel %vm338, %v1290, 0.0
        %v1393 = vadd.f32 %v1391, %v1392
        %v1394 = vsel %vm338, %v1291, 0.0
        %v1395 = vadd.f32 %v1393, %v1394
        %v1396 = vsel %vm338, %v1292, 0.0
        %v1397 = vadd.f32 %v1395, %v1396
        %v1398 = vsel %vm338, %v1293, 0.0
        %v1399 = vadd.f32 %v1397, %v1398
        %v1400 = vsel %vm338, %v1294, 0.0
        %v1401 = vsel %vm338, %v1295, 0.0
        %v1402 = vadd.f32 %v1400, %v1401
        %v1403 = vsel %vm338, %v1296, 0.0
        %v1404 = vadd.f32 %v1402, %v1403
        %v1405 = vsel %vm338, %v1297, 0.0
        %v1406 = vadd.f32 %v1404, %v1405
        %v1407 = vsel %vm338, %v1298, 0.0
        %v1408 = vadd.f32 %v1406, %v1407
        %v1409 = vsel %vm338, %v1299, 0.0
        %v1410 = vadd.f32 %v1408, %v1409
        %v1411 = vsel %vm338, %v1300, 0.0
        %v1412 = vadd.f32 %v1410, %v1411
        %v1413 = vsel %vm338, %v1301, 0.0
        %v1414 = vadd.f32 %v1412, %v1413
        %v1415 = vsel %vm338, %v1302, 0.0
        %v1416 = vsel %vm338, %v1303, 0.0
        %v1417 = vadd.f32 %v1415, %v1416
        %v1418 = vsel %vm338, %v1304, 0.0
        %v1419 = vadd.f32 %v1417, %v1418
        %v1420 = vsel %vm338, %v1305, 0.0
        %v1421 = vadd.f32 %v1419, %v1420
        %v1422 = vsel %vm338, %v1306, 0.0
        %v1423 = vadd.f32 %v1421, %v1422
        %v1424 = vsel %vm338, %v1307, 0.0
        %v1425 = vadd.f32 %v1423, %v1424
        %v1426 = vsel %vm338, %v1308, 0.0
        %v1427 = vadd.f32 %v1425, %v1426
        %v1428 = vsel %vm338, %v1309, 0.0
        %v1429 = vadd.f32 %v1427, %v1428
        %v1430 = vsel %vm338, %v927, 0.0
        %v1431 = vsel %vm338, %v929, 0.0
        %v1432 = vadd.f32 %v1430, %v1431
        %v1433 = vsel %vm338, %v931, 0.0
        %v1434 = vadd.f32 %v1432, %v1433
        %v1435 = vsel %vm338, %v933, 0.0
        %v1436 = vadd.f32 %v1434, %v1435
        %v1437 = vsel %vm338, %v935, 0.0
        %v1438 = vadd.f32 %v1436, %v1437
        %v1439 = vsel %vm338, %v937, 0.0
        %v1440 = vadd.f32 %v1438, %v1439
        %v1441 = vsel %vm338, %v939, 0.0
        %v1442 = vadd.f32 %v1440, %v1441
        %v1443 = vsel %vm338, %v941, 0.0
        %v1444 = vadd.f32 %v1442, %v1443
        %v1445 = vsel %vm338, %v943, 0.0
        %v1446 = vsel %vm338, %v945, 0.0
        %v1447 = vadd.f32 %v1445, %v1446
        %v1448 = vsel %vm338, %v947, 0.0
        %v1449 = vadd.f32 %v1447, %v1448
        %v1450 = vsel %vm338, %v949, 0.0
        %v1451 = vadd.f32 %v1449, %v1450
        %v1452 = vsel %vm338, %v951, 0.0
        %v1453 = vadd.f32 %v1451, %v1452
        %v1454 = vsel %vm338, %v953, 0.0
        %v1455 = vadd.f32 %v1453, %v1454
        %v1456 = vsel %vm338, %v955, 0.0
        %v1457 = vadd.f32 %v1455, %v1456
        %v1458 = vsel %vm338, %v957, 0.0
        %v1459 = vadd.f32 %v1457, %v1458
        %v1460 = vsel %vm338, %v959, 0.0
        %v1461 = vsel %vm338, %v961, 0.0
        %v1462 = vadd.f32 %v1460, %v1461
        %v1463 = vsel %vm338, %v963, 0.0
        %v1464 = vadd.f32 %v1462, %v1463
        %v1465 = vsel %vm338, %v965, 0.0
        %v1466 = vadd.f32 %v1464, %v1465
        %v1467 = vsel %vm338, %v967, 0.0
        %v1468 = vadd.f32 %v1466, %v1467
        %v1469 = vsel %vm338, %v969, 0.0
        %v1470 = vadd.f32 %v1468, %v1469
        %v1471 = vsel %vm338, %v971, 0.0
        %v1472 = vadd.f32 %v1470, %v1471
        %v1473 = vsel %vm338, %v973, 0.0
        %v1474 = vadd.f32 %v1472, %v1473
        %v1475 = vsel %vm338, %v975, 0.0
        %v1476 = vsel %vm338, %v977, 0.0
        %v1477 = vadd.f32 %v1475, %v1476
        %v1478 = vsel %vm338, %v979, 0.0
        %v1479 = vadd.f32 %v1477, %v1478
        %v1480 = vsel %vm338, %v981, 0.0
        %v1481 = vadd.f32 %v1479, %v1480
        %v1482 = vsel %vm338, %v983, 0.0
        %v1483 = vadd.f32 %v1481, %v1482
        %v1484 = vsel %vm338, %v985, 0.0
        %v1485 = vadd.f32 %v1483, %v1484
        %v1486 = vsel %vm338, %v987, 0.0
        %v1487 = vadd.f32 %v1485, %v1486
        %v1488 = vsel %vm338, %v989, 0.0
        %v1489 = vadd.f32 %v1487, %v1488
        %v1490 = vsel %vm338, %v991, 0.0
        %v1491 = vsel %vm338, %v993, 0.0
        %v1492 = vadd.f32 %v1490, %v1491
        %v1493 = vsel %vm338, %v995, 0.0
        %v1494 = vadd.f32 %v1492, %v1493
        %v1495 = vsel %vm338, %v997, 0.0
        %v1496 = vadd.f32 %v1494, %v1495
        %v1497 = vsel %vm338, %v999, 0.0
        %v1498 = vadd.f32 %v1496, %v1497
        %v1499 = vsel %vm338, %v1001, 0.0
        %v1500 = vadd.f32 %v1498, %v1499
        %v1501 = vsel %vm338, %v1003, 0.0
        %v1502 = vadd.f32 %v1500, %v1501
        %v1503 = vsel %vm338, %v1005, 0.0
        %v1504 = vadd.f32 %v1502, %v1503
        %v1505 = vsel %vm338, %v1007, 0.0
        %v1506 = vsel %vm338, %v1009, 0.0
        %v1507 = vadd.f32 %v1505, %v1506
        %v1508 = vsel %vm338, %v1011, 0.0
        %v1509 = vadd.f32 %v1507, %v1508
        %v1510 = vsel %vm338, %v1013, 0.0
        %v1511 = vadd.f32 %v1509, %v1510
        %v1512 = vsel %vm338, %v1015, 0.0
        %v1513 = vadd.f32 %v1511, %v1512
        %v1514 = vsel %vm338, %v1017, 0.0
        %v1515 = vadd.f32 %v1513, %v1514
        %v1516 = vsel %vm338, %v1019, 0.0
        %v1517 = vadd.f32 %v1515, %v1516
        %v1518 = vsel %vm338, %v1021, 0.0
        %v1519 = vadd.f32 %v1517, %v1518
        %v1520 = vsel %vm338, %v1023, 0.0
        %v1521 = vsel %vm338, %v1025, 0.0
        %v1522 = vadd.f32 %v1520, %v1521
        %v1523 = vsel %vm338, %v1027, 0.0
        %v1524 = vadd.f32 %v1522, %v1523
        %v1525 = vsel %vm338, %v1029, 0.0
        %v1526 = vadd.f32 %v1524, %v1525
        %v1527 = vsel %vm338, %v1031, 0.0
        %v1528 = vadd.f32 %v1526, %v1527
        %v1529 = vsel %vm338, %v1033, 0.0
        %v1530 = vadd.f32 %v1528, %v1529
        %v1531 = vsel %vm338, %v1035, 0.0
        %v1532 = vadd.f32 %v1530, %v1531
        %v1533 = vsel %vm338, %v1037, 0.0
        %v1534 = vadd.f32 %v1532, %v1533
        %v1535 = vsel %vm338, %v1039, 0.0
        %v1536 = vsel %vm338, %v1041, 0.0
        %v1537 = vadd.f32 %v1535, %v1536
        %v1538 = vsel %vm338, %v1043, 0.0
        %v1539 = vadd.f32 %v1537, %v1538
        %v1540 = vsel %vm338, %v1045, 0.0
        %v1541 = vadd.f32 %v1539, %v1540
        %v1542 = vsel %vm338, %v1047, 0.0
        %v1543 = vadd.f32 %v1541, %v1542
        %v1544 = vsel %vm338, %v1049, 0.0
        %v1545 = vadd.f32 %v1543, %v1544
        %v1546 = vsel %vm338, %v1051, 0.0
        %v1547 = vadd.f32 %v1545, %v1546
        %v1548 = vsel %vm338, %v1053, 0.0
        %v1549 = vadd.f32 %v1547, %v1548
        %v1550 = vrcp.pop %v1444
        %v1551 = vrcp.pop %v1459
        %v1552 = vrcp.pop %v1474
        %v1553 = vrcp.pop %v1489
        %v1554 = vrcp.pop %v1504
        %v1555 = vrcp.pop %v1519
        %v1556 = vrcp.pop %v1534
        %v1557 = vrcp.pop %v1549
        %v1558 = vmul.f32 %v1324, %v1550
        %v1559 = vmul.f32 %v1339, %v1551
        %v1560 = vmul.f32 %v1354, %v1552
        %v1561 = vmul.f32 %v1369, %v1553
        %v1562 = vmul.f32 %v1384, %v1554
        %v1563 = vmul.f32 %v1399, %v1555
        %v1564 = vmul.f32 %v1414, %v1556
        %v1565 = vmul.f32 %v1429, %v1557
        %v1567 = vsel %vm338, %v1558, 0
        %v1570 = vsel %vm338, %v1559, 0
        %v1573 = vsel %vm338, %v1560, 0
        %v1576 = vsel %vm338, %v1561, 0
        %v1579 = vsel %vm338, %v1562, 0
        %v1582 = vsel %vm338, %v1563, 0
        %v1585 = vsel %vm338, %v1564, 0
        %v1588 = vsel %vm338, %v1565, 0
        %1590 = vmatpush.msra.mxu0 0.0
        %1591 = vmatpush.msra.mxu0 0.0
        %1592 = vmatpush.msra.mxu0 0.0
        %1593 = vmatpush.msra.mxu0 0.0
        %1594 = vmatpush.msra.mxu0 0.0
        %1595 = vmatpush.msra.mxu0 0.0
        %1596 = vmatpush.msra.mxu0 0.0
        %1597 = vmatpush.msra.mxu0 0.0
        %1598 = vmatpush.msra.mxu0 0.0
        %1599 = vmatpush.msra.mxu0 0.0
        %1600 = vmatpush.msra.mxu0 0.0
        %1601 = vmatpush.msra.mxu0 0.0
        %1602 = vmatpush.msra.mxu0 0.0
        %1603 = vmatpush.msra.mxu0 0.0
        %1604 = vmatpush.msra.mxu0 %v330
        %1605 = vmatpush.msra.mxu0 %v329
        %1606 = vmatmul.f32.gmra.mxu0 %v1567
        %v1607 = vpop.f32.mrf.mxu0
        %v1608 = vadd.f32 0.0, %v1607
        %1609 = vmatmul.f32.gmra.mxu0 %v1570
        %v1610 = vpop.f32.mrf.mxu0
        %v1611 = vadd.f32 0.0, %v1610
        %1612 = vmatmul.f32.gmra.mxu0 %v1573
        %v1613 = vpop.f32.mrf.mxu0
        %v1614 = vadd.f32 0.0, %v1613
        %1615 = vmatmul.f32.gmra.mxu0 %v1576
        %v1616 = vpop.f32.mrf.mxu0
        %v1617 = vadd.f32 0.0, %v1616
        %1618 = vmatmul.f32.gmra.mxu0 %v1579
        %v1619 = vpop.f32.mrf.mxu0
        %v1620 = vadd.f32 0.0, %v1619
        %1621 = vmatmul.f32.gmra.mxu0 %v1582
        %v1622 = vpop.f32.mrf.mxu0
        %v1623 = vadd.f32 0.0, %v1622
        %1624 = vmatmul.f32.gmra.mxu0 %v1585
        %v1625 = vpop.f32.mrf.mxu0
        %v1626 = vadd.f32 0.0, %v1625
        %1627 = vmatmul.f32.gmra.mxu0 %v1588
        %v1628 = vpop.f32.mrf.mxu0
        %v1629 = vadd.f32 0.0, %v1628
        %1630 = vdwg.mxu0
        %v1631 = vadd.f32 %v312, %v1608
        %v1632 = vadd.f32 %v313, %v1611
        %v1633 = vadd.f32 %v314, %v1614
        %v1634 = vadd.f32 %v315, %v1617
        %v1635 = vadd.f32 %v316, %v1620
        %v1636 = vadd.f32 %v317, %v1623
        %v1637 = vadd.f32 %v318, %v1626
        %v1638 = vadd.f32 %v319, %v1629
        %v1639 = vsel %vm338, %v1631, 0.0
        %1640 = vadd.xlane.f32.xlu0 %v1639
        %v1641 = vpop.xlane.xlu0 %1640
        %v1642 = vsel %vm338, %v1632, 0.0
        %1643 = vadd.xlane.f32.xlu0 %v1642
        %v1644 = vpop.xlane.xlu0 %1643
        %v1645 = vsel %vm338, %v1633, 0.0
        %1646 = vadd.xlane.f32.xlu0 %v1645
        %v1647 = vpop.xlane.xlu0 %1646
        %v1648 = vsel %vm338, %v1634, 0.0
        %1649 = vadd.xlane.f32.xlu0 %v1648
        %v1650 = vpop.xlane.xlu0 %1649
        %v1651 = vsel %vm338, %v1635, 0.0
        %1652 = vadd.xlane.f32.xlu0 %v1651
        %v1653 = vpop.xlane.xlu0 %1652
        %v1654 = vsel %vm338, %v1636, 0.0
        %1655 = vadd.xlane.f32.xlu0 %v1654
        %v1656 = vpop.xlane.xlu0 %1655
        %v1657 = vsel %vm338, %v1637, 0.0
        %1658 = vadd.xlane.f32.xlu0 %v1657
        %v1659 = vpop.xlane.xlu0 %1658
        %v1660 = vsel %vm338, %v1638, 0.0
        %1661 = vadd.xlane.f32.xlu0 %v1660
        %v1662 = vpop.xlane.xlu0 %1661
        %v1663 = vrcp.pop 16.0
        %v1664 = vmul.f32 16.0, %v1663
        %v1665 = vsub.f32 1.0, %v1664
        %v1666 = vmul.f32 %v1663, %v1665
        %v1667 = vadd.f32 %v1663, %v1666
        %vm1668 = vweird.f32 %v1663
        %v1669 = vsel %vm1668, %v1663, %v1667
        %v1670 = vmul.f32 %v1641, %v1669
        %v1671 = vmul.f32 %v1644, %v1669
        %v1672 = vmul.f32 %v1647, %v1669
        %v1673 = vmul.f32 %v1650, %v1669
        %v1674 = vmul.f32 %v1653, %v1669
        %v1675 = vmul.f32 %v1656, %v1669
        %v1676 = vmul.f32 %v1659, %v1669
        %v1677 = vmul.f32 %v1662, %v1669
        %v1678 = vsub.f32 %v1631, %v1670
        %v1679 = vsub.f32 %v1632, %v1671
        %v1680 = vsub.f32 %v1633, %v1672
        %v1681 = vsub.f32 %v1634, %v1673
        %v1682 = vsub.f32 %v1635, %v1674
        %v1683 = vsub.f32 %v1636, %v1675
        %v1684 = vsub.f32 %v1637, %v1676
        %v1685 = vsub.f32 %v1638, %v1677
        %v1686 = vmul.f32 %v1678, %v1678
        %v1687 = vmul.f32 %v1679, %v1679
        %v1688 = vmul.f32 %v1680, %v1680
        %v1689 = vmul.f32 %v1681, %v1681
        %v1690 = vmul.f32 %v1682, %v1682
        %v1691 = vmul.f32 %v1683, %v1683
        %v1692 = vmul.f32 %v1684, %v1684
        %v1693 = vmul.f32 %v1685, %v1685
        %v1694 = vsel %vm338, %v1686, 0.0
        %1695 = vadd.xlane.f32.xlu0 %v1694
        %v1696 = vpop.xlane.xlu0 %1695
        %v1697 = vsel %vm338, %v1687, 0.0
        %1698 = vadd.xlane.f32.xlu0 %v1697
        %v1699 = vpop.xlane.xlu0 %1698
        %v1700 = vsel %vm338, %v1688, 0.0
        %1701 = vadd.xlane.f32.xlu0 %v1700
        %v1702 = vpop.xlane.xlu0 %1701
        %v1703 = vsel %vm338, %v1689, 0.0
        %1704 = vadd.xlane.f32.xlu0 %v1703
        %v1705 = vpop.xlane.xlu0 %1704
        %v1706 = vsel %vm338, %v1690, 0.0
        %1707 = vadd.xlane.f32.xlu0 %v1706
        %v1708 = vpop.xlane.xlu0 %1707
        %v1709 = vsel %vm338, %v1691, 0.0
        %1710 = vadd.xlane.f32.xlu0 %v1709
        %v1711 = vpop.xlane.xlu0 %1710
        %v1712 = vsel %vm338, %v1692, 0.0
        %1713 = vadd.xlane.f32.xlu0 %v1712
        %v1714 = vpop.xlane.xlu0 %1713
        %v1715 = vsel %vm338, %v1693, 0.0
        %1716 = vadd.xlane.f32.xlu0 %v1715
        %v1717 = vpop.xlane.xlu0 %1716
        %v1718 = vmul.f32 %v1696, %v1669
        %v1719 = vmul.f32 %v1699, %v1669
        %v1720 = vmul.f32 %v1702, %v1669
        %v1721 = vmul.f32 %v1705, %v1669
        %v1722 = vmul.f32 %v1708, %v1669
        %v1723 = vmul.f32 %v1711, %v1669
        %v1724 = vmul.f32 %v1714, %v1669
        %v1725 = vmul.f32 %v1717, %v1669
        %v1726 = vadd.f32 %v1718, 1e-05
        %v1727 = vadd.f32 %v1719, 1e-05
        %v1728 = vadd.f32 %v1720, 1e-05
        %v1729 = vadd.f32 %v1721, 1e-05
        %v1730 = vadd.f32 %v1722, 1e-05
        %v1731 = vadd.f32 %v1723, 1e-05
        %v1732 = vadd.f32 %v1724, 1e-05
        %v1733 = vadd.f32 %v1725, 1e-05
        %v1734 = vrsqrt.pop %v1726
        %v1735 = vmul.f32 %v1734, %v1726
        %v1736 = vmul.f32 %v1735, %v1734
        %v1737 = vmul.f32 0.5, %v1736
        %v1738 = vsub.f32 1.5, %v1737
        %v1739 = vmul.f32 %v1734, %v1738
        %vm1740 = vweird.f32 %v1726
        %vm1741 = vweird.f32 %v1734
        %vm1742 = vmor %vm1740, %vm1741
        %v1743 = vsel %vm1742, %v1734, %v1739
        %v1744 = vrsqrt.pop %v1727
        %v1745 = vmul.f32 %v1744, %v1727
        %v1746 = vmul.f32 %v1745, %v1744
        %v1747 = vmul.f32 0.5, %v1746
        %v1748 = vsub.f32 1.5, %v1747
        %v1749 = vmul.f32 %v1744, %v1748
        %vm1750 = vweird.f32 %v1727
        %vm1751 = vweird.f32 %v1744
        %vm1752 = vmor %vm1750, %vm1751
        %v1753 = vsel %vm1752, %v1744, %v1749
        %v1754 = vrsqrt.pop %v1728
        %v1755 = vmul.f32 %v1754, %v1728
        %v1756 = vmul.f32 %v1755, %v1754
        %v1757 = vmul.f32 0.5, %v1756
        %v1758 = vsub.f32 1.5, %v1757
        %v1759 = vmul.f32 %v1754, %v1758
        %vm1760 = vweird.f32 %v1728
        %vm1761 = vweird.f32 %v1754
        %vm1762 = vmor %vm1760, %vm1761
        %v1763 = vsel %vm1762, %v1754, %v1759
        %v1764 = vrsqrt.pop %v1729
        %v1765 = vmul.f32 %v1764, %v1729
        %v1766 = vmul.f32 %v1765, %v1764
        %v1767 = vmul.f32 0.5, %v1766
        %v1768 = vsub.f32 1.5, %v1767
        %v1769 = vmul.f32 %v1764, %v1768
        %vm1770 = vweird.f32 %v1729
        %vm1771 = vweird.f32 %v1764
        %vm1772 = vmor %vm1770, %vm1771
        %v1773 = vsel %vm1772, %v1764, %v1769
        %v1774 = vrsqrt.pop %v1730
        %v1775 = vmul.f32 %v1774, %v1730
        %v1776 = vmul.f32 %v1775, %v1774
        %v1777 = vmul.f32 0.5, %v1776
        %v1778 = vsub.f32 1.5, %v1777
        %v1779 = vmul.f32 %v1774, %v1778
        %vm1780 = vweird.f32 %v1730
        %vm1781 = vweird.f32 %v1774
        %vm1782 = vmor %vm1780, %vm1781
        %v1783 = vsel %vm1782, %v1774, %v1779
        %v1784 = vrsqrt.pop %v1731
        %v1785 = vmul.f32 %v1784, %v1731
        %v1786 = vmul.f32 %v1785, %v1784
        %v1787 = vmul.f32 0.5, %v1786
        %v1788 = vsub.f32 1.5, %v1787
        %v1789 = vmul.f32 %v1784, %v1788
        %vm1790 = vweird.f32 %v1731
        %vm1791 = vweird.f32 %v1784
        %vm1792 = vmor %vm1790, %vm1791
        %v1793 = vsel %vm1792, %v1784, %v1789
        %v1794 = vrsqrt.pop %v1732
        %v1795 = vmul.f32 %v1794, %v1732
        %v1796 = vmul.f32 %v1795, %v1794
        %v1797 = vmul.f32 0.5, %v1796
        %v1798 = vsub.f32 1.5, %v1797
        %v1799 = vmul.f32 %v1794, %v1798
        %vm1800 = vweird.f32 %v1732
        %vm1801 = vweird.f32 %v1794
        %vm1802 = vmor %vm1800, %vm1801
        %v1803 = vsel %vm1802, %v1794, %v1799
        %v1804 = vrsqrt.pop %v1733
        %v1805 = vmul.f32 %v1804, %v1733
        %v1806 = vmul.f32 %v1805, %v1804
        %v1807 = vmul.f32 0.5, %v1806
        %v1808 = vsub.f32 1.5, %v1807
        %v1809 = vmul.f32 %v1804, %v1808
        %vm1810 = vweird.f32 %v1733
        %vm1811 = vweird.f32 %v1804
        %vm1812 = vmor %vm1810, %vm1811
        %v1813 = vsel %vm1812, %v1804, %v1809
        %v1814 = vmul.f32 %v1678, %v1743
        %v1815 = vmul.f32 %v1679, %v1753
        %v1816 = vmul.f32 %v1680, %v1763
        %v1817 = vmul.f32 %v1681, %v1773
        %v1818 = vmul.f32 %v1682, %v1783
        %v1819 = vmul.f32 %v1683, %v1793
        %v1820 = vmul.f32 %v1684, %v1803
        %v1821 = vmul.f32 %v1685, %v1813
        %v1823 = vperm.slane %v335, 0
        %v1825 = vmul.f32 %v1814, %v1823
        %v1826 = vmul.f32 %v1815, %v1823
        %v1827 = vmul.f32 %v1816, %v1823
        %v1828 = vmul.f32 %v1817, %v1823
        %v1829 = vmul.f32 %v1818, %v1823
        %v1830 = vmul.f32 %v1819, %v1823
        %v1831 = vmul.f32 %v1820, %v1823
        %v1832 = vmul.f32 %v1821, %v1823
        %v1834 = vperm.slane %v331, 0
        %v1836 = vmul.f32 %v1825, %v1834
        %v1837 = vmul.f32 %v1826, %v1834
        %v1838 = vmul.f32 %v1827, %v1834
        %v1839 = vmul.f32 %v1828, %v1834
        %v1840 = vmul.f32 %v1829, %v1834
        %v1841 = vmul.f32 %v1830, %v1834
        %v1842 = vmul.f32 %v1831, %v1834
        %v1843 = vmul.f32 %v1832, %v1834
        %v1844 = vsel %vm338, %v1836, 0.0
        %1845 = vadd.xlane.f32.xlu0 %v1844
        %v1846 = vpop.xlane.xlu0 %1845
        %v1847 = vsel %vm338, %v1837, 0.0
        %1848 = vadd.xlane.f32.xlu0 %v1847
        %v1849 = vpop.xlane.xlu0 %1848
        %v1850 = vsel %vm338, %v1838, 0.0
        %1851 = vadd.xlane.f32.xlu0 %v1850
        %v1852 = vpop.xlane.xlu0 %1851
        %v1853 = vsel %vm338, %v1839, 0.0
        %1854 = vadd.xlane.f32.xlu0 %v1853
        %v1855 = vpop.xlane.xlu0 %1854
        %v1856 = vsel %vm338, %v1840, 0.0
        %1857 = vadd.xlane.f32.xlu0 %v1856
        %v1858 = vpop.xlane.xlu0 %1857
        %v1859 = vsel %vm338, %v1841, 0.0
        %1860 = vadd.xlane.f32.xlu0 %v1859
        %v1861 = vpop.xlane.xlu0 %1860
        %v1862 = vsel %vm338, %v1842, 0.0
        %1863 = vadd.xlane.f32.xlu0 %v1862
        %v1864 = vpop.xlane.xlu0 %1863
        %v1865 = vsel %vm338, %v1843, 0.0
        %1866 = vadd.xlane.f32.xlu0 %v1865
        %v1867 = vpop.xlane.xlu0 %1866
        %v1868 = vmax.f32 %v1846, 0.0
        %v1869 = vmax.f32 %v1849, 0.0
        %v1870 = vmax.f32 %v1852, 0.0
        %v1871 = vmax.f32 %v1855, 0.0
        %v1872 = vmax.f32 %v1858, 0.0
        %v1873 = vmax.f32 %v1861, 0.0
        %v1874 = vmax.f32 %v1864, 0.0
        %v1875 = vmax.f32 %v1867, 0.0
        %v1877 = vperm.slane %v333, 0
        %v1879 = vmul.f32 %v1868, %v1877
        %v1880 = vmul.f32 %v1869, %v1877
        %v1881 = vmul.f32 %v1870, %v1877
        %v1882 = vmul.f32 %v1871, %v1877
        %v1883 = vmul.f32 %v1872, %v1877
        %v1884 = vmul.f32 %v1873, %v1877
        %v1885 = vmul.f32 %v1874, %v1877
        %v1886 = vmul.f32 %v1875, %v1877
        %v1887 = vadd.f32 %v1825, %v1879
        %v1888 = vadd.f32 %v1826, %v1880
        %v1889 = vadd.f32 %v1827, %v1881
        %v1890 = vadd.f32 %v1828, %v1882
        %v1891 = vadd.f32 %v1829, %v1883
        %v1892 = vadd.f32 %v1830, %v1884
        %v1893 = vadd.f32 %v1831, %v1885
        %v1894 = vadd.f32 %v1832, %v1886
        %v1895 = vsel %vm338, %v1887, 0.0
        %1896 = vadd.xlane.f32.xlu0 %v1895
        %v1897 = vpop.xlane.xlu0 %1896
        %v1898 = vsel %vm338, %v1888, 0.0
        %1899 = vadd.xlane.f32.xlu0 %v1898
        %v1900 = vpop.xlane.xlu0 %1899
        %v1901 = vsel %vm338, %v1889, 0.0
        %1902 = vadd.xlane.f32.xlu0 %v1901
        %v1903 = vpop.xlane.xlu0 %1902
        %v1904 = vsel %vm338, %v1890, 0.0
        %1905 = vadd.xlane.f32.xlu0 %v1904
        %v1906 = vpop.xlane.xlu0 %1905
        %v1907 = vsel %vm338, %v1891, 0.0
        %1908 = vadd.xlane.f32.xlu0 %v1907
        %v1909 = vpop.xlane.xlu0 %1908
        %v1910 = vsel %vm338, %v1892, 0.0
        %1911 = vadd.xlane.f32.xlu0 %v1910
        %v1912 = vpop.xlane.xlu0 %1911
        %v1913 = vsel %vm338, %v1893, 0.0
        %1914 = vadd.xlane.f32.xlu0 %v1913
        %v1915 = vpop.xlane.xlu0 %1914
        %v1916 = vsel %vm338, %v1894, 0.0
        %1917 = vadd.xlane.f32.xlu0 %v1916
        %v1918 = vpop.xlane.xlu0 %1917
        %v1919 = vmul.f32 %v1897, %v1669
        %v1920 = vmul.f32 %v1900, %v1669
        %v1921 = vmul.f32 %v1903, %v1669
        %v1922 = vmul.f32 %v1906, %v1669
        %v1923 = vmul.f32 %v1909, %v1669
        %v1924 = vmul.f32 %v1912, %v1669
        %v1925 = vmul.f32 %v1915, %v1669
        %v1926 = vmul.f32 %v1918, %v1669
        %v1927 = vsub.f32 %v1887, %v1919
        %v1928 = vsub.f32 %v1888, %v1920
        %v1929 = vsub.f32 %v1889, %v1921
        %v1930 = vsub.f32 %v1890, %v1922
        %v1931 = vsub.f32 %v1891, %v1923
        %v1932 = vsub.f32 %v1892, %v1924
        %v1933 = vsub.f32 %v1893, %v1925
        %v1934 = vsub.f32 %v1894, %v1926
        %v1935 = vmul.f32 %v1927, %v1927
        %v1936 = vmul.f32 %v1928, %v1928
        %v1937 = vmul.f32 %v1929, %v1929
        %v1938 = vmul.f32 %v1930, %v1930
        %v1939 = vmul.f32 %v1931, %v1931
        %v1940 = vmul.f32 %v1932, %v1932
        %v1941 = vmul.f32 %v1933, %v1933
        %v1942 = vmul.f32 %v1934, %v1934
        %v1943 = vsel %vm338, %v1935, 0.0
        %1944 = vadd.xlane.f32.xlu0 %v1943
        %v1945 = vpop.xlane.xlu0 %1944
        %v1946 = vsel %vm338, %v1936, 0.0
        %1947 = vadd.xlane.f32.xlu0 %v1946
        %v1948 = vpop.xlane.xlu0 %1947
        %v1949 = vsel %vm338, %v1937, 0.0
        %1950 = vadd.xlane.f32.xlu0 %v1949
        %v1951 = vpop.xlane.xlu0 %1950
        %v1952 = vsel %vm338, %v1938, 0.0
        %1953 = vadd.xlane.f32.xlu0 %v1952
        %v1954 = vpop.xlane.xlu0 %1953
        %v1955 = vsel %vm338, %v1939, 0.0
        %1956 = vadd.xlane.f32.xlu0 %v1955
        %v1957 = vpop.xlane.xlu0 %1956
        %v1958 = vsel %vm338, %v1940, 0.0
        %1959 = vadd.xlane.f32.xlu0 %v1958
        %v1960 = vpop.xlane.xlu0 %1959
        %v1961 = vsel %vm338, %v1941, 0.0
        %1962 = vadd.xlane.f32.xlu0 %v1961
        %v1963 = vpop.xlane.xlu0 %1962
        %v1964 = vsel %vm338, %v1942, 0.0
        %1965 = vadd.xlane.f32.xlu0 %v1964
        %v1966 = vpop.xlane.xlu0 %1965
        %v1967 = vmul.f32 %v1945, %v1669
        %v1968 = vmul.f32 %v1948, %v1669
        %v1969 = vmul.f32 %v1951, %v1669
        %v1970 = vmul.f32 %v1954, %v1669
        %v1971 = vmul.f32 %v1957, %v1669
        %v1972 = vmul.f32 %v1960, %v1669
        %v1973 = vmul.f32 %v1963, %v1669
        %v1974 = vmul.f32 %v1966, %v1669
        %v1975 = vadd.f32 %v1967, 1e-05
        %v1976 = vadd.f32 %v1968, 1e-05
        %v1977 = vadd.f32 %v1969, 1e-05
        %v1978 = vadd.f32 %v1970, 1e-05
        %v1979 = vadd.f32 %v1971, 1e-05
        %v1980 = vadd.f32 %v1972, 1e-05
        %v1981 = vadd.f32 %v1973, 1e-05
        %v1982 = vadd.f32 %v1974, 1e-05
        %v1983 = vrsqrt.pop %v1975
        %v1984 = vmul.f32 %v1983, %v1975
        %v1985 = vmul.f32 %v1984, %v1983
        %v1986 = vmul.f32 0.5, %v1985
        %v1987 = vsub.f32 1.5, %v1986
        %v1988 = vmul.f32 %v1983, %v1987
        %vm1989 = vweird.f32 %v1975
        %vm1990 = vweird.f32 %v1983
        %vm1991 = vmor %vm1989, %vm1990
        %v1992 = vsel %vm1991, %v1983, %v1988
        %v1993 = vrsqrt.pop %v1976
        %v1994 = vmul.f32 %v1993, %v1976
        %v1995 = vmul.f32 %v1994, %v1993
        %v1996 = vmul.f32 0.5, %v1995
        %v1997 = vsub.f32 1.5, %v1996
        %v1998 = vmul.f32 %v1993, %v1997
        %vm1999 = vweird.f32 %v1976
        %vm2000 = vweird.f32 %v1993
        %vm2001 = vmor %vm1999, %vm2000
        %v2002 = vsel %vm2001, %v1993, %v1998
        %v2003 = vrsqrt.pop %v1977
        %v2004 = vmul.f32 %v2003, %v1977
        %v2005 = vmul.f32 %v2004, %v2003
        %v2006 = vmul.f32 0.5, %v2005
        %v2007 = vsub.f32 1.5, %v2006
        %v2008 = vmul.f32 %v2003, %v2007
        %vm2009 = vweird.f32 %v1977
        %vm2010 = vweird.f32 %v2003
        %vm2011 = vmor %vm2009, %vm2010
        %v2012 = vsel %vm2011, %v2003, %v2008
        %v2013 = vrsqrt.pop %v1978
        %v2014 = vmul.f32 %v2013, %v1978
        %v2015 = vmul.f32 %v2014, %v2013
        %v2016 = vmul.f32 0.5, %v2015
        %v2017 = vsub.f32 1.5, %v2016
        %v2018 = vmul.f32 %v2013, %v2017
        %vm2019 = vweird.f32 %v1978
        %vm2020 = vweird.f32 %v2013
        %vm2021 = vmor %vm2019, %vm2020
        %v2022 = vsel %vm2021, %v2013, %v2018
        %v2023 = vrsqrt.pop %v1979
        %v2024 = vmul.f32 %v2023, %v1979
        %v2025 = vmul.f32 %v2024, %v2023
        %v2026 = vmul.f32 0.5, %v2025
        %v2027 = vsub.f32 1.5, %v2026
        %v2028 = vmul.f32 %v2023, %v2027
        %vm2029 = vweird.f32 %v1979
        %vm2030 = vweird.f32 %v2023
        %vm2031 = vmor %vm2029, %vm2030
        %v2032 = vsel %vm2031, %v2023, %v2028
        %v2033 = vrsqrt.pop %v1980
        %v2034 = vmul.f32 %v2033, %v1980
        %v2035 = vmul.f32 %v2034, %v2033
        %v2036 = vmul.f32 0.5, %v2035
        %v2037 = vsub.f32 1.5, %v2036
        %v2038 = vmul.f32 %v2033, %v2037
        %vm2039 = vweird.f32 %v1980
        %vm2040 = vweird.f32 %v2033
        %vm2041 = vmor %vm2039, %vm2040
        %v2042 = vsel %vm2041, %v2033, %v2038
        %v2043 = vrsqrt.pop %v1981
        %v2044 = vmul.f32 %v2043, %v1981
        %v2045 = vmul.f32 %v2044, %v2043
        %v2046 = vmul.f32 0.5, %v2045
        %v2047 = vsub.f32 1.5, %v2046
        %v2048 = vmul.f32 %v2043, %v2047
        %vm2049 = vweird.f32 %v1981
        %vm2050 = vweird.f32 %v2043
        %vm2051 = vmor %vm2049, %vm2050
        %v2052 = vsel %vm2051, %v2043, %v2048
        %v2053 = vrsqrt.pop %v1982
        %v2054 = vmul.f32 %v2053, %v1982
        %v2055 = vmul.f32 %v2054, %v2053
        %v2056 = vmul.f32 0.5, %v2055
        %v2057 = vsub.f32 1.5, %v2056
        %v2058 = vmul.f32 %v2053, %v2057
        %vm2059 = vweird.f32 %v1982
        %vm2060 = vweird.f32 %v2053
        %vm2061 = vmor %vm2059, %vm2060
        %v2062 = vsel %vm2061, %v2053, %v2058
        %v2063 = vmul.f32 %v1927, %v1992
        %v2064 = vmul.f32 %v1928, %v2002
        %v2065 = vmul.f32 %v1929, %v2012
        %v2066 = vmul.f32 %v1930, %v2022
        %v2067 = vmul.f32 %v1931, %v2032
        %v2068 = vmul.f32 %v1932, %v2042
        %v2069 = vmul.f32 %v1933, %v2052
        %v2070 = vmul.f32 %v1934, %v2062
        %v2072 = vperm.slane %v337, 0
        %v2074 = vmul.f32 %v2063, %v2072
        %v2075 = vmul.f32 %v2064, %v2072
        %v2076 = vmul.f32 %v2065, %v2072
        %v2077 = vmul.f32 %v2066, %v2072
        %v2078 = vmul.f32 %v2067, %v2072
        %v2079 = vmul.f32 %v2068, %v2072
        %v2080 = vmul.f32 %v2069, %v2072
        %v2081 = vmul.f32 %v2070, %v2072
        %2082 = vxpose.xlu0.b32.start [1/16] %v2074, 128
        %2083 = vxpose.xlu0.b32.cont [2/16] 0.0, 128
        %2084 = vxpose.xlu0.b32.cont [3/16] 0.0, 128
        %2085 = vxpose.xlu0.b32.cont [4/16] 0.0, 128
        %2086 = vxpose.xlu0.b32.cont [5/16] 0.0, 128
        %2087 = vxpose.xlu0.b32.cont [6/16] 0.0, 128
        %2088 = vxpose.xlu0.b32.cont [7/16] 0.0, 128
        %2089 = vxpose.xlu0.b32.cont [8/16] 0.0, 128
        %2090 = vxpose.xlu0.b32.cont [9/16] 0.0, 128
        %2091 = vxpose.xlu0.b32.cont [10/16] 0.0, 128
        %2092 = vxpose.xlu0.b32.cont [11/16] 0.0, 128
        %2093 = vxpose.xlu0.b32.cont [12/16] 0.0, 128
        %2094 = vxpose.xlu0.b32.cont [13/16] 0.0, 128
        %2095 = vxpose.xlu0.b32.cont [14/16] 0.0, 128
        %2096 = vxpose.xlu0.b32.cont [15/16] 0.0, 128
        %2097 = vxpose.xlu0.b32.end [16/16] 0.0, 128
        %v2098 = vpop.trf.xlu0
        %v2099 = vpop.trf.xlu0
        %v2100 = vpop.trf.xlu0
        %v2101 = vpop.trf.xlu0
        %v2102 = vpop.trf.xlu0
        %v2103 = vpop.trf.xlu0
        %v2104 = vpop.trf.xlu0
        %v2105 = vpop.trf.xlu0
        %v2106 = vpop.trf.xlu0
        %v2107 = vpop.trf.xlu0
        %v2108 = vpop.trf.xlu0
        %v2109 = vpop.trf.xlu0
        %v2110 = vpop.trf.xlu0
        %v2111 = vpop.trf.xlu0
        %v2112 = vpop.trf.xlu0
        %v2113 = vpop.trf.xlu0
        %2114 = vxpose.xlu0.b32.start [1/16] %v2075, 128
        %2115 = vxpose.xlu0.b32.cont [2/16] 0.0, 128
        %2116 = vxpose.xlu0.b32.cont [3/16] 0.0, 128
        %2117 = vxpose.xlu0.b32.cont [4/16] 0.0, 128
        %2118 = vxpose.xlu0.b32.cont [5/16] 0.0, 128
        %2119 = vxpose.xlu0.b32.cont [6/16] 0.0, 128
        %2120 = vxpose.xlu0.b32.cont [7/16] 0.0, 128
        %2121 = vxpose.xlu0.b32.cont [8/16] 0.0, 128
        %2122 = vxpose.xlu0.b32.cont [9/16] 0.0, 128
        %2123 = vxpose.xlu0.b32.cont [10/16] 0.0, 128
        %2124 = vxpose.xlu0.b32.cont [11/16] 0.0, 128
        %2125 = vxpose.xlu0.b32.cont [12/16] 0.0, 128
        %2126 = vxpose.xlu0.b32.cont [13/16] 0.0, 128
        %2127 = vxpose.xlu0.b32.cont [14/16] 0.0, 128
        %2128 = vxpose.xlu0.b32.cont [15/16] 0.0, 128
        %2129 = vxpose.xlu0.b32.end [16/16] 0.0, 128
        %v2130 = vpop.trf.xlu0
        %v2131 = vpop.trf.xlu0
        %v2132 = vpop.trf.xlu0
        %v2133 = vpop.trf.xlu0
        %v2134 = vpop.trf.xlu0
        %v2135 = vpop.trf.xlu0
        %v2136 = vpop.trf.xlu0
        %v2137 = vpop.trf.xlu0
        %v2138 = vpop.trf.xlu0
        %v2139 = vpop.trf.xlu0
        %v2140 = vpop.trf.xlu0
        %v2141 = vpop.trf.xlu0
        %v2142 = vpop.trf.xlu0
        %v2143 = vpop.trf.xlu0
        %v2144 = vpop.trf.xlu0
        %v2145 = vpop.trf.xlu0
        %2146 = vxpose.xlu0.b32.start [1/16] %v2076, 128
        %2147 = vxpose.xlu0.b32.cont [2/16] 0.0, 128
        %2148 = vxpose.xlu0.b32.cont [3/16] 0.0, 128
        %2149 = vxpose.xlu0.b32.cont [4/16] 0.0, 128
        %2150 = vxpose.xlu0.b32.cont [5/16] 0.0, 128
        %2151 = vxpose.xlu0.b32.cont [6/16] 0.0, 128
        %2152 = vxpose.xlu0.b32.cont [7/16] 0.0, 128
        %2153 = vxpose.xlu0.b32.cont [8/16] 0.0, 128
        %2154 = vxpose.xlu0.b32.cont [9/16] 0.0, 128
        %2155 = vxpose.xlu0.b32.cont [10/16] 0.0, 128
        %2156 = vxpose.xlu0.b32.cont [11/16] 0.0, 128
        %2157 = vxpose.xlu0.b32.cont [12/16] 0.0, 128
        %2158 = vxpose.xlu0.b32.cont [13/16] 0.0, 128
        %2159 = vxpose.xlu0.b32.cont [14/16] 0.0, 128
        %2160 = vxpose.xlu0.b32.cont [15/16] 0.0, 128
        %2161 = vxpose.xlu0.b32.end [16/16] 0.0, 128
        %v2162 = vpop.trf.xlu0
        %v2163 = vpop.trf.xlu0
        %v2164 = vpop.trf.xlu0
        %v2165 = vpop.trf.xlu0
        %v2166 = vpop.trf.xlu0
        %v2167 = vpop.trf.xlu0
        %v2168 = vpop.trf.xlu0
        %v2169 = vpop.trf.xlu0
        %v2170 = vpop.trf.xlu0
        %v2171 = vpop.trf.xlu0
        %v2172 = vpop.trf.xlu0
        %v2173 = vpop.trf.xlu0
        %v2174 = vpop.trf.xlu0
        %v2175 = vpop.trf.xlu0
        %v2176 = vpop.trf.xlu0
        %v2177 = vpop.trf.xlu0
        %2178 = vxpose.xlu0.b32.start [1/16] %v2077, 128
        %2179 = vxpose.xlu0.b32.cont [2/16] 0.0, 128
        %2180 = vxpose.xlu0.b32.cont [3/16] 0.0, 128
        %2181 = vxpose.xlu0.b32.cont [4/16] 0.0, 128
        %2182 = vxpose.xlu0.b32.cont [5/16] 0.0, 128
        %2183 = vxpose.xlu0.b32.cont [6/16] 0.0, 128
        %2184 = vxpose.xlu0.b32.cont [7/16] 0.0, 128
        %2185 = vxpose.xlu0.b32.cont [8/16] 0.0, 128
        %2186 = vxpose.xlu0.b32.cont [9/16] 0.0, 128
        %2187 = vxpose.xlu0.b32.cont [10/16] 0.0, 128
        %2188 = vxpose.xlu0.b32.cont [11/16] 0.0, 128
        %2189 = vxpose.xlu0.b32.cont [12/16] 0.0, 128
        %2190 = vxpose.xlu0.b32.cont [13/16] 0.0, 128
        %2191 = vxpose.xlu0.b32.cont [14/16] 0.0, 128
        %2192 = vxpose.xlu0.b32.cont [15/16] 0.0, 128
        %2193 = vxpose.xlu0.b32.end [16/16] 0.0, 128
        %v2194 = vpop.trf.xlu0
        %v2195 = vpop.trf.xlu0
        %v2196 = vpop.trf.xlu0
        %v2197 = vpop.trf.xlu0
        %v2198 = vpop.trf.xlu0
        %v2199 = vpop.trf.xlu0
        %v2200 = vpop.trf.xlu0
        %v2201 = vpop.trf.xlu0
        %v2202 = vpop.trf.xlu0
        %v2203 = vpop.trf.xlu0
        %v2204 = vpop.trf.xlu0
        %v2205 = vpop.trf.xlu0
        %v2206 = vpop.trf.xlu0
        %v2207 = vpop.trf.xlu0
        %v2208 = vpop.trf.xlu0
        %v2209 = vpop.trf.xlu0
        %2210 = vxpose.xlu0.b32.start [1/16] %v2078, 128
        %2211 = vxpose.xlu0.b32.cont [2/16] 0.0, 128
        %2212 = vxpose.xlu0.b32.cont [3/16] 0.0, 128
        %2213 = vxpose.xlu0.b32.cont [4/16] 0.0, 128
        %2214 = vxpose.xlu0.b32.cont [5/16] 0.0, 128
        %2215 = vxpose.xlu0.b32.cont [6/16] 0.0, 128
        %2216 = vxpose.xlu0.b32.cont [7/16] 0.0, 128
        %2217 = vxpose.xlu0.b32.cont [8/16] 0.0, 128
        %2218 = vxpose.xlu0.b32.cont [9/16] 0.0, 128
        %2219 = vxpose.xlu0.b32.cont [10/16] 0.0, 128
        %2220 = vxpose.xlu0.b32.cont [11/16] 0.0, 128
        %2221 = vxpose.xlu0.b32.cont [12/16] 0.0, 128
        %2222 = vxpose.xlu0.b32.cont [13/16] 0.0, 128
        %2223 = vxpose.xlu0.b32.cont [14/16] 0.0, 128
        %2224 = vxpose.xlu0.b32.cont [15/16] 0.0, 128
        %2225 = vxpose.xlu0.b32.end [16/16] 0.0, 128
        %v2226 = vpop.trf.xlu0
        %v2227 = vpop.trf.xlu0
        %v2228 = vpop.trf.xlu0
        %v2229 = vpop.trf.xlu0
        %v2230 = vpop.trf.xlu0
        %v2231 = vpop.trf.xlu0
        %v2232 = vpop.trf.xlu0
        %v2233 = vpop.trf.xlu0
        %v2234 = vpop.trf.xlu0
        %v2235 = vpop.trf.xlu0
        %v2236 = vpop.trf.xlu0
        %v2237 = vpop.trf.xlu0
        %v2238 = vpop.trf.xlu0
        %v2239 = vpop.trf.xlu0
        %v2240 = vpop.trf.xlu0
        %v2241 = vpop.trf.xlu0
        %2242 = vxpose.xlu0.b32.start [1/16] %v2079, 128
        %2243 = vxpose.xlu0.b32.cont [2/16] 0.0, 128
        %2244 = vxpose.xlu0.b32.cont [3/16] 0.0, 128
        %2245 = vxpose.xlu0.b32.cont [4/16] 0.0, 128
        %2246 = vxpose.xlu0.b32.cont [5/16] 0.0, 128
        %2247 = vxpose.xlu0.b32.cont [6/16] 0.0, 128
        %2248 = vxpose.xlu0.b32.cont [7/16] 0.0, 128
        %2249 = vxpose.xlu0.b32.cont [8/16] 0.0, 128
        %2250 = vxpose.xlu0.b32.cont [9/16] 0.0, 128
        %2251 = vxpose.xlu0.b32.cont [10/16] 0.0, 128
        %2252 = vxpose.xlu0.b32.cont [11/16] 0.0, 128
        %2253 = vxpose.xlu0.b32.cont [12/16] 0.0, 128
        %2254 = vxpose.xlu0.b32.cont [13/16] 0.0, 128
        %2255 = vxpose.xlu0.b32.cont [14/16] 0.0, 128
        %2256 = vxpose.xlu0.b32.cont [15/16] 0.0, 128
        %2257 = vxpose.xlu0.b32.end [16/16] 0.0, 128
        %v2258 = vpop.trf.xlu0
        %v2259 = vpop.trf.xlu0
        %v2260 = vpop.trf.xlu0
        %v2261 = vpop.trf.xlu0
        %v2262 = vpop.trf.xlu0
        %v2263 = vpop.trf.xlu0
        %v2264 = vpop.trf.xlu0
        %v2265 = vpop.trf.xlu0
        %v2266 = vpop.trf.xlu0
        %v2267 = vpop.trf.xlu0
        %v2268 = vpop.trf.xlu0
        %v2269 = vpop.trf.xlu0
        %v2270 = vpop.trf.xlu0
        %v2271 = vpop.trf.xlu0
        %v2272 = vpop.trf.xlu0
        %v2273 = vpop.trf.xlu0
        %2274 = vxpose.xlu0.b32.start [1/16] %v2080, 128
        %2275 = vxpose.xlu0.b32.cont [2/16] 0.0, 128
        %2276 = vxpose.xlu0.b32.cont [3/16] 0.0, 128
        %2277 = vxpose.xlu0.b32.cont [4/16] 0.0, 128
        %2278 = vxpose.xlu0.b32.cont [5/16] 0.0, 128
        %2279 = vxpose.xlu0.b32.cont [6/16] 0.0, 128
        %2280 = vxpose.xlu0.b32.cont [7/16] 0.0, 128
        %2281 = vxpose.xlu0.b32.cont [8/16] 0.0, 128
        %2282 = vxpose.xlu0.b32.cont [9/16] 0.0, 128
        %2283 = vxpose.xlu0.b32.cont [10/16] 0.0, 128
        %2284 = vxpose.xlu0.b32.cont [11/16] 0.0, 128
        %2285 = vxpose.xlu0.b32.cont [12/16] 0.0, 128
        %2286 = vxpose.xlu0.b32.cont [13/16] 0.0, 128
        %2287 = vxpose.xlu0.b32.cont [14/16] 0.0, 128
        %2288 = vxpose.xlu0.b32.cont [15/16] 0.0, 128
        %2289 = vxpose.xlu0.b32.end [16/16] 0.0, 128
        %v2290 = vpop.trf.xlu0
        %v2291 = vpop.trf.xlu0
        %v2292 = vpop.trf.xlu0
        %v2293 = vpop.trf.xlu0
        %v2294 = vpop.trf.xlu0
        %v2295 = vpop.trf.xlu0
        %v2296 = vpop.trf.xlu0
        %v2297 = vpop.trf.xlu0
        %v2298 = vpop.trf.xlu0
        %v2299 = vpop.trf.xlu0
        %v2300 = vpop.trf.xlu0
        %v2301 = vpop.trf.xlu0
        %v2302 = vpop.trf.xlu0
        %v2303 = vpop.trf.xlu0
        %v2304 = vpop.trf.xlu0
        %v2305 = vpop.trf.xlu0
        %2306 = vxpose.xlu0.b32.start [1/16] %v2081, 128
        %2307 = vxpose.xlu0.b32.cont [2/16] 0.0, 128
        %2308 = vxpose.xlu0.b32.cont [3/16] 0.0, 128
        %2309 = vxpose.xlu0.b32.cont [4/16] 0.0, 128
        %2310 = vxpose.xlu0.b32.cont [5/16] 0.0, 128
        %2311 = vxpose.xlu0.b32.cont [6/16] 0.0, 128
        %2312 = vxpose.xlu0.b32.cont [7/16] 0.0, 128
        %2313 = vxpose.xlu0.b32.cont [8/16] 0.0, 128
        %2314 = vxpose.xlu0.b32.cont [9/16] 0.0, 128
        %2315 = vxpose.xlu0.b32.cont [10/16] 0.0, 128
        %2316 = vxpose.xlu0.b32.cont [11/16] 0.0, 128
        %2317 = vxpose.xlu0.b32.cont [12/16] 0.0, 128
        %2318 = vxpose.xlu0.b32.cont [13/16] 0.0, 128
        %2319 = vxpose.xlu0.b32.cont [14/16] 0.0, 128
        %2320 = vxpose.xlu0.b32.cont [15/16] 0.0, 128
        %2321 = vxpose.xlu0.b32.end [16/16] 0.0, 128
        %v2322 = vpop.trf.xlu0
        %v2323 = vpop.trf.xlu0
        %v2324 = vpop.trf.xlu0
        %v2325 = vpop.trf.xlu0
        %v2326 = vpop.trf.xlu0
        %v2327 = vpop.trf.xlu0
        %v2328 = vpop.trf.xlu0
        %v2329 = vpop.trf.xlu0
        %v2330 = vpop.trf.xlu0
        %v2331 = vpop.trf.xlu0
        %v2332 = vpop.trf.xlu0
        %v2333 = vpop.trf.xlu0
        %v2334 = vpop.trf.xlu0
        %v2335 = vpop.trf.xlu0
        %v2336 = vpop.trf.xlu0
        %v2337 = vpop.trf.xlu0
        %v2338 = vld [vmem:[#allocation8] sm:$0xff]
        %s2339 = scalar_lea.vmem [#allocation8], 8
        %v2340 = vld [vmem:[%s2339] sm:$0xff]
        %s2341 = scalar_lea.vmem [#allocation8], 16
        %v2342 = vld [vmem:[%s2341] sm:$0xff]
        %s2343 = scalar_lea.vmem [#allocation8], 24
        %v2344 = vld [vmem:[%s2343] sm:$0xff]
        %v2345 = vld [vmem:[#allocation10] sm:$0x1]
        %s2346 = scalar_lea.vmem [#allocation10], 1
        %v2347 = vld [vmem:[%s2346] sm:$0x1]
        %s2348 = scalar_lea.vmem [#allocation10], 2
        %v2349 = vld [vmem:[%s2348] sm:$0x1]
        %s2350 = scalar_lea.vmem [#allocation10], 3
        %v2351 = vld [vmem:[%s2350] sm:$0x1]
        %vm2352 = vcmask 64512
        %v2354 = vsel %vm2352, %v2098, 0
        %v2357 = vsel %vm2352, %v2099, 0
        %v2360 = vsel %vm2352, %v2130, 0
        %v2363 = vsel %vm2352, %v2131, 0
        %v2366 = vsel %vm2352, %v2162, 0
        %v2369 = vsel %vm2352, %v2163, 0
        %v2372 = vsel %vm2352, %v2194, 0
        %v2375 = vsel %vm2352, %v2195, 0
        %v2378 = vsel %vm2352, %v2226, 0
        %v2381 = vsel %vm2352, %v2227, 0
        %v2384 = vsel %vm2352, %v2258, 0
        %v2387 = vsel %vm2352, %v2259, 0
        %v2390 = vsel %vm2352, %v2290, 0
        %v2393 = vsel %vm2352, %v2291, 0
        %v2396 = vsel %vm2352, %v2322, 0
        %v2399 = vsel %vm2352, %v2323, 0
        %2401 = vmatpush.msra.mxu0 0.0
        %2402 = vmatpush.msra.mxu0 0.0
        %2403 = vmatpush.msra.mxu0 0.0
        %2404 = vmatpush.msra.mxu0 0.0
        %2405 = vmatpush.msra.mxu0 0.0
        %2406 = vmatpush.msra.mxu0 0.0
        %2407 = vmatpush.msra.mxu0 0.0
        %2408 = vmatpush.msra.mxu0 0.0
        %2409 = vmatpush.msra.mxu0 0.0
        %2410 = vmatpush.msra.mxu0 0.0
        %2411 = vmatpush.msra.mxu0 0.0
        %2412 = vmatpush.msra.mxu0 0.0
        %2413 = vmatpush.msra.mxu0 0.0
        %2414 = vmatpush.msra.mxu0 0.0
        %2415 = vmatpush.msra.mxu0 0.0
        %2416 = vmatpush.msra.mxu0 %v2338
        %2417 = vmatmul.f32.gmra.mxu0 %v2354
        %v2418 = vpop.f32.mrf.mxu0
        %v2419 = vadd.f32 0.0, %v2418
        %2420 = vmatmul.f32.gmra.mxu0 %v2357
        %v2421 = vpop.f32.mrf.mxu0
        %v2422 = vadd.f32 0.0, %v2421
        %2423 = vmatmul.f32.gmra.mxu0 %v2360
        %v2424 = vpop.f32.mrf.mxu0
        %v2425 = vadd.f32 0.0, %v2424
        %2426 = vmatmul.f32.gmra.mxu0 %v2363
        %v2427 = vpop.f32.mrf.mxu0
        %v2428 = vadd.f32 0.0, %v2427
        %2429 = vmatmul.f32.gmra.mxu0 %v2366
        %v2430 = vpop.f32.mrf.mxu0
        %v2431 = vadd.f32 0.0, %v2430
        %2432 = vmatmul.f32.gmra.mxu0 %v2369
        %v2433 = vpop.f32.mrf.mxu0
        %v2434 = vadd.f32 0.0, %v2433
        %2435 = vmatmul.f32.gmra.mxu0 %v2372
        %v2436 = vpop.f32.mrf.mxu0
        %v2437 = vadd.f32 0.0, %v2436
        %2438 = vmatmul.f32.gmra.mxu0 %v2375
        %v2439 = vpop.f32.mrf.mxu0
        %v2440 = vadd.f32 0.0, %v2439
        %2441 = vmatmul.f32.gmra.mxu0 %v2378
        %v2442 = vpop.f32.mrf.mxu0
        %v2443 = vadd.f32 0.0, %v2442
        %2444 = vmatmul.f32.gmra.mxu0 %v2381
        %v2445 = vpop.f32.mrf.mxu0
        %v2446 = vadd.f32 0.0, %v2445
        %2447 = vmatmul.f32.gmra.mxu0 %v2384
        %v2448 = vpop.f32.mrf.mxu0
        %v2449 = vadd.f32 0.0, %v2448
        %2450 = vmatmul.f32.gmra.mxu0 %v2387
        %v2451 = vpop.f32.mrf.mxu0
        %v2452 = vadd.f32 0.0, %v2451
        %2453 = vmatmul.f32.gmra.mxu0 %v2390
        %v2454 = vpop.f32.mrf.mxu0
        %v2455 = vadd.f32 0.0, %v2454
        %2456 = vmatmul.f32.gmra.mxu0 %v2393
        %v2457 = vpop.f32.mrf.mxu0
        %v2458 = vadd.f32 0.0, %v2457
        %2459 = vmatmul.f32.gmra.mxu0 %v2396
        %v2460 = vpop.f32.mrf.mxu0
        %v2461 = vadd.f32 0.0, %v2460
        %2462 = vmatmul.f32.gmra.mxu0 %v2399
        %v2463 = vpop.f32.mrf.mxu0
        %v2464 = vadd.f32 0.0, %v2463
        %2465 = vdwg.mxu0
        %2466 = vmatpush.msra.mxu0 0.0
        %2467 = vmatpush.msra.mxu0 0.0
        %2468 = vmatpush.msra.mxu0 0.0
        %2469 = vmatpush.msra.mxu0 0.0
        %2470 = vmatpush.msra.mxu0 0.0
        %2471 = vmatpush.msra.mxu0 0.0
        %2472 = vmatpush.msra.mxu0 0.0
        %2473 = vmatpush.msra.mxu0 0.0
        %2474 = vmatpush.msra.mxu0 0.0
        %2475 = vmatpush.msra.mxu0 0.0
        %2476 = vmatpush.msra.mxu0 0.0
        %2477 = vmatpush.msra.mxu0 0.0
        %2478 = vmatpush.msra.mxu0 0.0
        %2479 = vmatpush.msra.mxu0 0.0
        %2480 = vmatpush.msra.mxu0 0.0
        %2481 = vmatpush.msra.mxu0 %v2340
        %2482 = vmatmul.f32.gmra.mxu0 %v2354
        %v2483 = vpop.f32.mrf.mxu0
        %v2484 = vadd.f32 0.0, %v2483
        %2485 = vmatmul.f32.gmra.mxu0 %v2357
        %v2486 = vpop.f32.mrf.mxu0
        %v2487 = vadd.f32 0.0, %v2486
        %2488 = vmatmul.f32.gmra.mxu0 %v2360
        %v2489 = vpop.f32.mrf.mxu0
        %v2490 = vadd.f32 0.0, %v2489
        %2491 = vmatmul.f32.gmra.mxu0 %v2363
        %v2492 = vpop.f32.mrf.mxu0
        %v2493 = vadd.f32 0.0, %v2492
        %2494 = vmatmul.f32.gmra.mxu0 %v2366
        %v2495 = vpop.f32.mrf.mxu0
        %v2496 = vadd.f32 0.0, %v2495
        %2497 = vmatmul.f32.gmra.mxu0 %v2369
        %v2498 = vpop.f32.mrf.mxu0
        %v2499 = vadd.f32 0.0, %v2498
        %2500 = vmatmul.f32.gmra.mxu0 %v2372
        %v2501 = vpop.f32.mrf.mxu0
        %v2502 = vadd.f32 0.0, %v2501
        %2503 = vmatmul.f32.gmra.mxu0 %v2375
        %v2504 = vpop.f32.mrf.mxu0
        %v2505 = vadd.f32 0.0, %v2504
        %2506 = vmatmul.f32.gmra.mxu0 %v2378
        %v2507 = vpop.f32.mrf.mxu0
        %v2508 = vadd.f32 0.0, %v2507
        %2509 = vmatmul.f32.gmra.mxu0 %v2381
        %v2510 = vpop.f32.mrf.mxu0
        %v2511 = vadd.f32 0.0, %v2510
        %2512 = vmatmul.f32.gmra.mxu0 %v2384
        %v2513 = vpop.f32.mrf.mxu0
        %v2514 = vadd.f32 0.0, %v2513
        %2515 = vmatmul.f32.gmra.mxu0 %v2387
        %v2516 = vpop.f32.mrf.mxu0
        %v2517 = vadd.f32 0.0, %v2516
        %2518 = vmatmul.f32.gmra.mxu0 %v2390
        %v2519 = vpop.f32.mrf.mxu0
        %v2520 = vadd.f32 0.0, %v2519
        %2521 = vmatmul.f32.gmra.mxu0 %v2393
        %v2522 = vpop.f32.mrf.mxu0
        %v2523 = vadd.f32 0.0, %v2522
        %2524 = vmatmul.f32.gmra.mxu0 %v2396
        %v2525 = vpop.f32.mrf.mxu0
        %v2526 = vadd.f32 0.0, %v2525
        %2527 = vmatmul.f32.gmra.mxu0 %v2399
        %v2528 = vpop.f32.mrf.mxu0
        %v2529 = vadd.f32 0.0, %v2528
        %2530 = vdwg.mxu0
        %2531 = vmatpush.msra.mxu0 0.0
        %2532 = vmatpush.msra.mxu0 0.0
        %2533 = vmatpush.msra.mxu0 0.0
        %2534 = vmatpush.msra.mxu0 0.0
        %2535 = vmatpush.msra.mxu0 0.0
        %2536 = vmatpush.msra.mxu0 0.0
        %2537 = vmatpush.msra.mxu0 0.0
        %2538 = vmatpush.msra.mxu0 0.0
        %2539 = vmatpush.msra.mxu0 0.0
        %2540 = vmatpush.msra.mxu0 0.0
        %2541 = vmatpush.msra.mxu0 0.0
        %2542 = vmatpush.msra.mxu0 0.0
        %2543 = vmatpush.msra.mxu0 0.0
        %2544 = vmatpush.msra.mxu0 0.0
        %2545 = vmatpush.msra.mxu0 0.0
        %2546 = vmatpush.msra.mxu0 %v2342
        %2547 = vmatmul.f32.gmra.mxu0 %v2354
        %v2548 = vpop.f32.mrf.mxu0
        %v2549 = vadd.f32 0.0, %v2548
        %2550 = vmatmul.f32.gmra.mxu0 %v2357
        %v2551 = vpop.f32.mrf.mxu0
        %v2552 = vadd.f32 0.0, %v2551
        %2553 = vmatmul.f32.gmra.mxu0 %v2360
        %v2554 = vpop.f32.mrf.mxu0
        %v2555 = vadd.f32 0.0, %v2554
        %2556 = vmatmul.f32.gmra.mxu0 %v2363
        %v2557 = vpop.f32.mrf.mxu0
        %v2558 = vadd.f32 0.0, %v2557
        %2559 = vmatmul.f32.gmra.mxu0 %v2366
        %v2560 = vpop.f32.mrf.mxu0
        %v2561 = vadd.f32 0.0, %v2560
        %2562 = vmatmul.f32.gmra.mxu0 %v2369
        %v2563 = vpop.f32.mrf.mxu0
        %v2564 = vadd.f32 0.0, %v2563
        %2565 = vmatmul.f32.gmra.mxu0 %v2372
        %v2566 = vpop.f32.mrf.mxu0
        %v2567 = vadd.f32 0.0, %v2566
        %2568 = vmatmul.f32.gmra.mxu0 %v2375
        %v2569 = vpop.f32.mrf.mxu0
        %v2570 = vadd.f32 0.0, %v2569
        %2571 = vmatmul.f32.gmra.mxu0 %v2378
        %v2572 = vpop.f32.mrf.mxu0
        %v2573 = vadd.f32 0.0, %v2572
        %2574 = vmatmul.f32.gmra.mxu0 %v2381
        %v2575 = vpop.f32.mrf.mxu0
        %v2576 = vadd.f32 0.0, %v2575
        %2577 = vmatmul.f32.gmra.mxu0 %v2384
        %v2578 = vpop.f32.mrf.mxu0
        %v2579 = vadd.f32 0.0, %v2578
        %2580 = vmatmul.f32.gmra.mxu0 %v2387
        %v2581 = vpop.f32.mrf.mxu0
        %v2582 = vadd.f32 0.0, %v2581
        %2583 = vmatmul.f32.gmra.mxu0 %v2390
        %v2584 = vpop.f32.mrf.mxu0
        %v2585 = vadd.f32 0.0, %v2584
        %2586 = vmatmul.f32.gmra.mxu0 %v2393
        %v2587 = vpop.f32.mrf.mxu0
        %v2588 = vadd.f32 0.0, %v2587
        %2589 = vmatmul.f32.gmra.mxu0 %v2396
        %v2590 = vpop.f32.mrf.mxu0
        %v2591 = vadd.f32 0.0, %v2590
        %2592 = vmatmul.f32.gmra.mxu0 %v2399
        %v2593 = vpop.f32.mrf.mxu0
        %v2594 = vadd.f32 0.0, %v2593
        %2595 = vdwg.mxu0
        %v2612 = vrot.slane %v2484, 1
        %v2613 = vrot.slane %v2484, 2
        %v2614 = vrot.slane %v2484, 3
        %v2615 = vrot.slane %v2484, 4
        %v2616 = vrot.slane %v2484, 5
        %v2617 = vrot.slane %v2484, 6
        %v2618 = vrot.slane %v2484, 7
        %v2619 = vrot.slane %v2487, 1
        %v2620 = vrot.slane %v2487, 2
        %v2621 = vrot.slane %v2487, 3
        %v2622 = vrot.slane %v2487, 4
        %v2623 = vrot.slane %v2487, 5
        %v2624 = vrot.slane %v2487, 6
        %v2625 = vrot.slane %v2487, 7
        %v2626 = vrot.slane %v2490, 1
        %v2627 = vrot.slane %v2490, 2
        %v2628 = vrot.slane %v2490, 3
        %v2629 = vrot.slane %v2490, 4
        %v2630 = vrot.slane %v2490, 5
        %v2631 = vrot.slane %v2490, 6
        %v2632 = vrot.slane %v2490, 7
        %v2633 = vrot.slane %v2493, 1
        %v2634 = vrot.slane %v2493, 2
        %v2635 = vrot.slane %v2493, 3
        %v2636 = vrot.slane %v2493, 4
        %v2637 = vrot.slane %v2493, 5
        %v2638 = vrot.slane %v2493, 6
        %v2639 = vrot.slane %v2493, 7
        %v2640 = vrot.slane %v2496, 1
        %v2641 = vrot.slane %v2496, 2
        %v2642 = vrot.slane %v2496, 3
        %v2643 = vrot.slane %v2496, 4
        %v2644 = vrot.slane %v2496, 5
        %v2645 = vrot.slane %v2496, 6
        %v2646 = vrot.slane %v2496, 7
        %v2647 = vrot.slane %v2499, 1
        %v2648 = vrot.slane %v2499, 2
        %v2649 = vrot.slane %v2499, 3
        %v2650 = vrot.slane %v2499, 4
        %v2651 = vrot.slane %v2499, 5
        %v2652 = vrot.slane %v2499, 6
        %v2653 = vrot.slane %v2499, 7
        %v2654 = vrot.slane %v2502, 1
        %v2655 = vrot.slane %v2502, 2
        %v2656 = vrot.slane %v2502, 3
        %v2657 = vrot.slane %v2502, 4
        %v2658 = vrot.slane %v2502, 5
        %v2659 = vrot.slane %v2502, 6
        %v2660 = vrot.slane %v2502, 7
        %v2661 = vrot.slane %v2505, 1
        %v2662 = vrot.slane %v2505, 2
        %v2663 = vrot.slane %v2505, 3
        %v2664 = vrot.slane %v2505, 4
        %v2665 = vrot.slane %v2505, 5
        %v2666 = vrot.slane %v2505, 6
        %v2667 = vrot.slane %v2505, 7
        %v2668 = vrot.slane %v2508, 1
        %v2669 = vrot.slane %v2508, 2
        %v2670 = vrot.slane %v2508, 3
        %v2671 = vrot.slane %v2508, 4
        %v2672 = vrot.slane %v2508, 5
        %v2673 = vrot.slane %v2508, 6
        %v2674 = vrot.slane %v2508, 7
        %v2675 = vrot.slane %v2511, 1
        %v2676 = vrot.slane %v2511, 2
        %v2677 = vrot.slane %v2511, 3
        %v2678 = vrot.slane %v2511, 4
        %v2679 = vrot.slane %v2511, 5
        %v2680 = vrot.slane %v2511, 6
        %v2681 = vrot.slane %v2511, 7
        %v2682 = vrot.slane %v2514, 1
        %v2683 = vrot.slane %v2514, 2
        %v2684 = vrot.slane %v2514, 3
        %v2685 = vrot.slane %v2514, 4
        %v2686 = vrot.slane %v2514, 5
        %v2687 = vrot.slane %v2514, 6
        %v2688 = vrot.slane %v2514, 7
        %v2689 = vrot.slane %v2517, 1
        %v2690 = vrot.slane %v2517, 2
        %v2691 = vrot.slane %v2517, 3
        %v2692 = vrot.slane %v2517, 4
        %v2693 = vrot.slane %v2517, 5
        %v2694 = vrot.slane %v2517, 6
        %v2695 = vrot.slane %v2517, 7
        %v2696 = vrot.slane %v2520, 1
        %v2697 = vrot.slane %v2520, 2
        %v2698 = vrot.slane %v2520, 3
        %v2699 = vrot.slane %v2520, 4
        %v2700 = vrot.slane %v2520, 5
        %v2701 = vrot.slane %v2520, 6
        %v2702 = vrot.slane %v2520, 7
        %v2703 = vrot.slane %v2523, 1
        %v2704 = vrot.slane %v2523, 2
        %v2705 = vrot.slane %v2523, 3
        %v2706 = vrot.slane %v2523, 4
        %v2707 = vrot.slane %v2523, 5
        %v2708 = vrot.slane %v2523, 6
        %v2709 = vrot.slane %v2523, 7
        %v2710 = vrot.slane %v2526, 1
        %v2711 = vrot.slane %v2526, 2
        %v2712 = vrot.slane %v2526, 3
        %v2713 = vrot.slane %v2526, 4
        %v2714 = vrot.slane %v2526, 5
        %v2715 = vrot.slane %v2526, 6
        %v2716 = vrot.slane %v2526, 7
        %v2717 = vrot.slane %v2529, 1
        %v2718 = vrot.slane %v2529, 2
        %v2719 = vrot.slane %v2529, 3
        %v2720 = vrot.slane %v2529, 4
        %v2721 = vrot.slane %v2529, 5
        %v2722 = vrot.slane %v2529, 6
        %v2723 = vrot.slane %v2529, 7
        %v2724 = vperm.slane %v2484, 0
        %v2725 = vperm.slane %v2612, 0
        %v2726 = vperm.slane %v2613, 0
        %v2727 = vperm.slane %v2614, 0
        %v2728 = vperm.slane %v2615, 0
        %v2729 = vperm.slane %v2616, 0
        %v2730 = vperm.slane %v2617, 0
        %v2731 = vperm.slane %v2618, 0
        %v2732 = vperm.slane %v2487, 0
        %v2733 = vperm.slane %v2619, 0
        %v2734 = vperm.slane %v2620, 0
        %v2735 = vperm.slane %v2621, 0
        %v2736 = vperm.slane %v2622, 0
        %v2737 = vperm.slane %v2623, 0
        %v2738 = vperm.slane %v2624, 0
        %v2739 = vperm.slane %v2625, 0
        %v2740 = vperm.slane %v2490, 0
        %v2741 = vperm.slane %v2626, 0
        %v2742 = vperm.slane %v2627, 0
        %v2743 = vperm.slane %v2628, 0
        %v2744 = vperm.slane %v2629, 0
        %v2745 = vperm.slane %v2630, 0
        %v2746 = vperm.slane %v2631, 0
        %v2747 = vperm.slane %v2632, 0
        %v2748 = vperm.slane %v2493, 0
        %v2749 = vperm.slane %v2633, 0
        %v2750 = vperm.slane %v2634, 0
        %v2751 = vperm.slane %v2635, 0
        %v2752 = vperm.slane %v2636, 0
        %v2753 = vperm.slane %v2637, 0
        %v2754 = vperm.slane %v2638, 0
        %v2755 = vperm.slane %v2639, 0
        %v2756 = vperm.slane %v2496, 0
        %v2757 = vperm.slane %v2640, 0
        %v2758 = vperm.slane %v2641, 0
        %v2759 = vperm.slane %v2642, 0
        %v2760 = vperm.slane %v2643, 0
        %v2761 = vperm.slane %v2644, 0
        %v2762 = vperm.slane %v2645, 0
        %v2763 = vperm.slane %v2646, 0
        %v2764 = vperm.slane %v2499, 0
        %v2765 = vperm.slane %v2647, 0
        %v2766 = vperm.slane %v2648, 0
        %v2767 = vperm.slane %v2649, 0
        %v2768 = vperm.slane %v2650, 0
        %v2769 = vperm.slane %v2651, 0
        %v2770 = vperm.slane %v2652, 0
        %v2771 = vperm.slane %v2653, 0
        %v2772 = vperm.slane %v2502, 0
        %v2773 = vperm.slane %v2654, 0
        %v2774 = vperm.slane %v2655, 0
        %v2775 = vperm.slane %v2656, 0
        %v2776 = vperm.slane %v2657, 0
        %v2777 = vperm.slane %v2658, 0
        %v2778 = vperm.slane %v2659, 0
        %v2779 = vperm.slane %v2660, 0
        %v2780 = vperm.slane %v2505, 0
        %v2781 = vperm.slane %v2661, 0
        %v2782 = vperm.slane %v2662, 0
        %v2783 = vperm.slane %v2663, 0
        %v2784 = vperm.slane %v2664, 0
        %v2785 = vperm.slane %v2665, 0
        %v2786 = vperm.slane %v2666, 0
        %v2787 = vperm.slane %v2667, 0
        %v2788 = vperm.slane %v2508, 0
        %v2789 = vperm.slane %v2668, 0
        %v2790 = vperm.slane %v2669, 0
        %v2791 = vperm.slane %v2670, 0
        %v2792 = vperm.slane %v2671, 0
        %v2793 = vperm.slane %v2672, 0
        %v2794 = vperm.slane %v2673, 0
        %v2795 = vperm.slane %v2674, 0
        %v2796 = vperm.slane %v2511, 0
        %v2797 = vperm.slane %v2675, 0
        %v2798 = vperm.slane %v2676, 0
        %v2799 = vperm.slane %v2677, 0
        %v2800 = vperm.slane %v2678, 0
        %v2801 = vperm.slane %v2679, 0
        %v2802 = vperm.slane %v2680, 0
        %v2803 = vperm.slane %v2681, 0
        %v2804 = vperm.slane %v2514, 0
        %v2805 = vperm.slane %v2682, 0
        %v2806 = vperm.slane %v2683, 0
        %v2807 = vperm.slane %v2684, 0
        %v2808 = vperm.slane %v2685, 0
        %v2809 = vperm.slane %v2686, 0
        %v2810 = vperm.slane %v2687, 0
        %v2811 = vperm.slane %v2688, 0
        %v2812 = vperm.slane %v2517, 0
        %v2813 = vperm.slane %v2689, 0
        %v2814 = vperm.slane %v2690, 0
        %v2815 = vperm.slane %v2691, 0
        %v2816 = vperm.slane %v2692, 0
        %v2817 = vperm.slane %v2693, 0
        %v2818 = vperm.slane %v2694, 0
        %v2819 = vperm.slane %v2695, 0
        %v2820 = vperm.slane %v2520, 0
        %v2821 = vperm.slane %v2696, 0
        %v2822 = vperm.slane %v2697, 0
        %v2823 = vperm.slane %v2698, 0
        %v2824 = vperm.slane %v2699, 0
        %v2825 = vperm.slane %v2700, 0
        %v2826 = vperm.slane %v2701, 0
        %v2827 = vperm.slane %v2702, 0
        %v2828 = vperm.slane %v2523, 0
        %v2829 = vperm.slane %v2703, 0
        %v2830 = vperm.slane %v2704, 0
        %v2831 = vperm.slane %v2705, 0
        %v2832 = vperm.slane %v2706, 0
        %v2833 = vperm.slane %v2707, 0
        %v2834 = vperm.slane %v2708, 0
        %v2835 = vperm.slane %v2709, 0
        %v2836 = vperm.slane %v2526, 0
        %v2837 = vperm.slane %v2710, 0
        %v2838 = vperm.slane %v2711, 0
        %v2839 = vperm.slane %v2712, 0
        %v2840 = vperm.slane %v2713, 0
        %v2841 = vperm.slane %v2714, 0
        %v2842 = vperm.slane %v2715, 0
        %v2843 = vperm.slane %v2716, 0
        %v2844 = vperm.slane %v2529, 0
        %v2845 = vperm.slane %v2717, 0
        %v2846 = vperm.slane %v2718, 0
        %v2847 = vperm.slane %v2719, 0
        %v2848 = vperm.slane %v2720, 0
        %v2849 = vperm.slane %v2721, 0
        %v2850 = vperm.slane %v2722, 0
        %v2851 = vperm.slane %v2723, 0
        %v2980 = vmul.f32 %v2724, %v2419
        %v2981 = vmul.f32 %v2724, %v2422
        %v2982 = vmul.f32 %v2725, %v2419
        %v2983 = vmul.f32 %v2725, %v2422
        %v2984 = vmul.f32 %v2726, %v2419
        %v2985 = vmul.f32 %v2726, %v2422
        %v2986 = vmul.f32 %v2727, %v2419
        %v2987 = vmul.f32 %v2727, %v2422
        %v2988 = vmul.f32 %v2728, %v2419
        %v2989 = vmul.f32 %v2728, %v2422
        %v2990 = vmul.f32 %v2729, %v2419
        %v2991 = vmul.f32 %v2729, %v2422
        %v2992 = vmul.f32 %v2730, %v2419
        %v2993 = vmul.f32 %v2730, %v2422
        %v2994 = vmul.f32 %v2731, %v2419
        %v2995 = vmul.f32 %v2731, %v2422
        %v2996 = vmul.f32 %v2732, %v2419
        %v2997 = vmul.f32 %v2732, %v2422
        %v2998 = vmul.f32 %v2733, %v2419
        %v2999 = vmul.f32 %v2733, %v2422
        %v3000 = vmul.f32 %v2734, %v2419
        %v3001 = vmul.f32 %v2734, %v2422
        %v3002 = vmul.f32 %v2735, %v2419
        %v3003 = vmul.f32 %v2735, %v2422
        %v3004 = vmul.f32 %v2736, %v2419
        %v3005 = vmul.f32 %v2736, %v2422
        %v3006 = vmul.f32 %v2737, %v2419
        %v3007 = vmul.f32 %v2737, %v2422
        %v3008 = vmul.f32 %v2738, %v2419
        %v3009 = vmul.f32 %v2738, %v2422
        %v3010 = vmul.f32 %v2739, %v2419
        %v3011 = vmul.f32 %v2739, %v2422
        %v3012 = vmul.f32 %v2740, %v2425
        %v3013 = vmul.f32 %v2740, %v2428
        %v3014 = vmul.f32 %v2741, %v2425
        %v3015 = vmul.f32 %v2741, %v2428
        %v3016 = vmul.f32 %v2742, %v2425
        %v3017 = vmul.f32 %v2742, %v2428
        %v3018 = vmul.f32 %v2743, %v2425
        %v3019 = vmul.f32 %v2743, %v2428
        %v3020 = vmul.f32 %v2744, %v2425
        %v3021 = vmul.f32 %v2744, %v2428
        %v3022 = vmul.f32 %v2745, %v2425
        %v3023 = vmul.f32 %v2745, %v2428
        %v3024 = vmul.f32 %v2746, %v2425
        %v3025 = vmul.f32 %v2746, %v2428
        %v3026 = vmul.f32 %v2747, %v2425
        %v3027 = vmul.f32 %v2747, %v2428
        %v3028 = vmul.f32 %v2748, %v2425
        %v3029 = vmul.f32 %v2748, %v2428
        %v3030 = vmul.f32 %v2749, %v2425
        %v3031 = vmul.f32 %v2749, %v2428
        %v3032 = vmul.f32 %v2750, %v2425
        %v3033 = vmul.f32 %v2750, %v2428
        %v3034 = vmul.f32 %v2751, %v2425
        %v3035 = vmul.f32 %v2751, %v2428
        %v3036 = vmul.f32 %v2752, %v2425
        %v3037 = vmul.f32 %v2752, %v2428
        %v3038 = vmul.f32 %v2753, %v2425
        %v3039 = vmul.f32 %v2753, %v2428
        %v3040 = vmul.f32 %v2754, %v2425
        %v3041 = vmul.f32 %v2754, %v2428
        %v3042 = vmul.f32 %v2755, %v2425
        %v3043 = vmul.f32 %v2755, %v2428
        %v3044 = vmul.f32 %v2756, %v2431
        %v3045 = vmul.f32 %v2756, %v2434
        %v3046 = vmul.f32 %v2757, %v2431
        %v3047 = vmul.f32 %v2757, %v2434
        %v3048 = vmul.f32 %v2758, %v2431
        %v3049 = vmul.f32 %v2758, %v2434
        %v3050 = vmul.f32 %v2759, %v2431
        %v3051 = vmul.f32 %v2759, %v2434
        %v3052 = vmul.f32 %v2760, %v2431
        %v3053 = vmul.f32 %v2760, %v2434
        %v3054 = vmul.f32 %v2761, %v2431
        %v3055 = vmul.f32 %v2761, %v2434
        %v3056 = vmul.f32 %v2762, %v2431
        %v3057 = vmul.f32 %v2762, %v2434
        %v3058 = vmul.f32 %v2763, %v2431
        %v3059 = vmul.f32 %v2763, %v2434
        %v3060 = vmul.f32 %v2764, %v2431
        %v3061 = vmul.f32 %v2764, %v2434
        %v3062 = vmul.f32 %v2765, %v2431
        %v3063 = vmul.f32 %v2765, %v2434
        %v3064 = vmul.f32 %v2766, %v2431
        %v3065 = vmul.f32 %v2766, %v2434
        %v3066 = vmul.f32 %v2767, %v2431
        %v3067 = vmul.f32 %v2767, %v2434
        %v3068 = vmul.f32 %v2768, %v2431
        %v3069 = vmul.f32 %v2768, %v2434
        %v3070 = vmul.f32 %v2769, %v2431
        %v3071 = vmul.f32 %v2769, %v2434
        %v3072 = vmul.f32 %v2770, %v2431
        %v3073 = vmul.f32 %v2770, %v2434
        %v3074 = vmul.f32 %v2771, %v2431
        %v3075 = vmul.f32 %v2771, %v2434
        %v3076 = vmul.f32 %v2772, %v2437
        %v3077 = vmul.f32 %v2772, %v2440
        %v3078 = vmul.f32 %v2773, %v2437
        %v3079 = vmul.f32 %v2773, %v2440
        %v3080 = vmul.f32 %v2774, %v2437
        %v3081 = vmul.f32 %v2774, %v2440
        %v3082 = vmul.f32 %v2775, %v2437
        %v3083 = vmul.f32 %v2775, %v2440
        %v3084 = vmul.f32 %v2776, %v2437
        %v3085 = vmul.f32 %v2776, %v2440
        %v3086 = vmul.f32 %v2777, %v2437
        %v3087 = vmul.f32 %v2777, %v2440
        %v3088 = vmul.f32 %v2778, %v2437
        %v3089 = vmul.f32 %v2778, %v2440
        %v3090 = vmul.f32 %v2779, %v2437
        %v3091 = vmul.f32 %v2779, %v2440
        %v3092 = vmul.f32 %v2780, %v2437
        %v3093 = vmul.f32 %v2780, %v2440
        %v3094 = vmul.f32 %v2781, %v2437
        %v3095 = vmul.f32 %v2781, %v2440
        %v3096 = vmul.f32 %v2782, %v2437
        %v3097 = vmul.f32 %v2782, %v2440
        %v3098 = vmul.f32 %v2783, %v2437
        %v3099 = vmul.f32 %v2783, %v2440
        %v3100 = vmul.f32 %v2784, %v2437
        %v3101 = vmul.f32 %v2784, %v2440
        %v3102 = vmul.f32 %v2785, %v2437
        %v3103 = vmul.f32 %v2785, %v2440
        %v3104 = vmul.f32 %v2786, %v2437
        %v3105 = vmul.f32 %v2786, %v2440
        %v3106 = vmul.f32 %v2787, %v2437
        %v3107 = vmul.f32 %v2787, %v2440
        %v3108 = vmul.f32 %v2788, %v2443
        %v3109 = vmul.f32 %v2788, %v2446
        %v3110 = vmul.f32 %v2789, %v2443
        %v3111 = vmul.f32 %v2789, %v2446
        %v3112 = vmul.f32 %v2790, %v2443
        %v3113 = vmul.f32 %v2790, %v2446
        %v3114 = vmul.f32 %v2791, %v2443
        %v3115 = vmul.f32 %v2791, %v2446
        %v3116 = vmul.f32 %v2792, %v2443
        %v3117 = vmul.f32 %v2792, %v2446
        %v3118 = vmul.f32 %v2793, %v2443
        %v3119 = vmul.f32 %v2793, %v2446
        %v3120 = vmul.f32 %v2794, %v2443
        %v3121 = vmul.f32 %v2794, %v2446
        %v3122 = vmul.f32 %v2795, %v2443
        %v3123 = vmul.f32 %v2795, %v2446
        %v3124 = vmul.f32 %v2796, %v2443
        %v3125 = vmul.f32 %v2796, %v2446
        %v3126 = vmul.f32 %v2797, %v2443
        %v3127 = vmul.f32 %v2797, %v2446
        %v3128 = vmul.f32 %v2798, %v2443
        %v3129 = vmul.f32 %v2798, %v2446
        %v3130 = vmul.f32 %v2799, %v2443
        %v3131 = vmul.f32 %v2799, %v2446
        %v3132 = vmul.f32 %v2800, %v2443
        %v3133 = vmul.f32 %v2800, %v2446
        %v3134 = vmul.f32 %v2801, %v2443
        %v3135 = vmul.f32 %v2801, %v2446
        %v3136 = vmul.f32 %v2802, %v2443
        %v3137 = vmul.f32 %v2802, %v2446
        %v3138 = vmul.f32 %v2803, %v2443
        %v3139 = vmul.f32 %v2803, %v2446
        %v3140 = vmul.f32 %v2804, %v2449
        %v3141 = vmul.f32 %v2804, %v2452
        %v3142 = vmul.f32 %v2805, %v2449
        %v3143 = vmul.f32 %v2805, %v2452
        %v3144 = vmul.f32 %v2806, %v2449
        %v3145 = vmul.f32 %v2806, %v2452
        %v3146 = vmul.f32 %v2807, %v2449
        %v3147 = vmul.f32 %v2807, %v2452
        %v3148 = vmul.f32 %v2808, %v2449
        %v3149 = vmul.f32 %v2808, %v2452
        %v3150 = vmul.f32 %v2809, %v2449
        %v3151 = vmul.f32 %v2809, %v2452
        %v3152 = vmul.f32 %v2810, %v2449
        %v3153 = vmul.f32 %v2810, %v2452
        %v3154 = vmul.f32 %v2811, %v2449
        %v3155 = vmul.f32 %v2811, %v2452
        %v3156 = vmul.f32 %v2812, %v2449
        %v3157 = vmul.f32 %v2812, %v2452
        %v3158 = vmul.f32 %v2813, %v2449
        %v3159 = vmul.f32 %v2813, %v2452
        %v3160 = vmul.f32 %v2814, %v2449
        %v3161 = vmul.f32 %v2814, %v2452
        %v3162 = vmul.f32 %v2815, %v2449
        %v3163 = vmul.f32 %v2815, %v2452
        %v3164 = vmul.f32 %v2816, %v2449
        %v3165 = vmul.f32 %v2816, %v2452
        %v3166 = vmul.f32 %v2817, %v2449
        %v3167 = vmul.f32 %v2817, %v2452
        %v3168 = vmul.f32 %v2818, %v2449
        %v3169 = vmul.f32 %v2818, %v2452
        %v3170 = vmul.f32 %v2819, %v2449
        %v3171 = vmul.f32 %v2819, %v2452
        %v3172 = vmul.f32 %v2820, %v2455
        %v3173 = vmul.f32 %v2820, %v2458
        %v3174 = vmul.f32 %v2821, %v2455
        %v3175 = vmul.f32 %v2821, %v2458
        %v3176 = vmul.f32 %v2822, %v2455
        %v3177 = vmul.f32 %v2822, %v2458
        %v3178 = vmul.f32 %v2823, %v2455
        %v3179 = vmul.f32 %v2823, %v2458
        %v3180 = vmul.f32 %v2824, %v2455
        %v3181 = vmul.f32 %v2824, %v2458
        %v3182 = vmul.f32 %v2825, %v2455
        %v3183 = vmul.f32 %v2825, %v2458
        %v3184 = vmul.f32 %v2826, %v2455
        %v3185 = vmul.f32 %v2826, %v2458
        %v3186 = vmul.f32 %v2827, %v2455
        %v3187 = vmul.f32 %v2827, %v2458
        %v3188 = vmul.f32 %v2828, %v2455
        %v3189 = vmul.f32 %v2828, %v2458
        %v3190 = vmul.f32 %v2829, %v2455
        %v3191 = vmul.f32 %v2829, %v2458
        %v3192 = vmul.f32 %v2830, %v2455
        %v3193 = vmul.f32 %v2830, %v2458
        %v3194 = vmul.f32 %v2831, %v2455
        %v3195 = vmul.f32 %v2831, %v2458
        %v3196 = vmul.f32 %v2832, %v2455
        %v3197 = vmul.f32 %v2832, %v2458
        %v3198 = vmul.f32 %v2833, %v2455
        %v3199 = vmul.f32 %v2833, %v2458
        %v3200 = vmul.f32 %v2834, %v2455
        %v3201 = vmul.f32 %v2834, %v2458
        %v3202 = vmul.f32 %v2835, %v2455
        %v3203 = vmul.f32 %v2835, %v2458
        %v3204 = vmul.f32 %v2836, %v2461
        %v3205 = vmul.f32 %v2836, %v2464
        %v3206 = vmul.f32 %v2837, %v2461
        %v3207 = vmul.f32 %v2837, %v2464
        %v3208 = vmul.f32 %v2838, %v2461
        %v3209 = vmul.f32 %v2838, %v2464
        %v3210 = vmul.f32 %v2839, %v2461
        %v3211 = vmul.f32 %v2839, %v2464
        %v3212 = vmul.f32 %v2840, %v2461
        %v3213 = vmul.f32 %v2840, %v2464
        %v3214 = vmul.f32 %v2841, %v2461
        %v3215 = vmul.f32 %v2841, %v2464
        %v3216 = vmul.f32 %v2842, %v2461
        %v3217 = vmul.f32 %v2842, %v2464
        %v3218 = vmul.f32 %v2843, %v2461
        %v3219 = vmul.f32 %v2843, %v2464
        %v3220 = vmul.f32 %v2844, %v2461
        %v3221 = vmul.f32 %v2844, %v2464
        %v3222 = vmul.f32 %v2845, %v2461
        %v3223 = vmul.f32 %v2845, %v2464
        %v3224 = vmul.f32 %v2846, %v2461
        %v3225 = vmul.f32 %v2846, %v2464
        %v3226 = vmul.f32 %v2847, %v2461
        %v3227 = vmul.f32 %v2847, %v2464
        %v3228 = vmul.f32 %v2848, %v2461
        %v3229 = vmul.f32 %v2848, %v2464
        %v3230 = vmul.f32 %v2849, %v2461
        %v3231 = vmul.f32 %v2849, %v2464
        %v3232 = vmul.f32 %v2850, %v2461
        %v3233 = vmul.f32 %v2850, %v2464
        %v3234 = vmul.f32 %v2851, %v2461
        %v3235 = vmul.f32 %v2851, %v2464
        %v3236 = vsel %vm2352, %v2980, -inf
        %v3237 = vsel %vm2352, %v2982, -inf
        %v3238 = vmax.f32 %v3236, %v3237
        %v3239 = vsel %vm2352, %v2984, -inf
        %v3240 = vmax.f32 %v3238, %v3239
        %v3241 = vsel %vm2352, %v2986, -inf
        %v3242 = vmax.f32 %v3240, %v3241
        %v3243 = vsel %vm2352, %v2988, -inf
        %v3244 = vmax.f32 %v3242, %v3243
        %v3245 = vsel %vm2352, %v2990, -inf
        %v3246 = vmax.f32 %v3244, %v3245
        %v3247 = vsel %vm2352, %v2992, -inf
        %v3248 = vmax.f32 %v3246, %v3247
        %v3249 = vsel %vm2352, %v2994, -inf
        %v3250 = vmax.f32 %v3248, %v3249
        %v3251 = vsel %vm2352, %v2996, -inf
        %v3252 = vmax.f32 %v3250, %v3251
        %v3253 = vsel %vm2352, %v2998, -inf
        %v3254 = vmax.f32 %v3252, %v3253
        %v3255 = vsel %vm2352, %v3000, -inf
        %v3256 = vmax.f32 %v3254, %v3255
        %v3257 = vsel %vm2352, %v3002, -inf
        %v3258 = vmax.f32 %v3256, %v3257
        %v3259 = vsel %vm2352, %v3004, -inf
        %v3260 = vmax.f32 %v3258, %v3259
        %v3261 = vsel %vm2352, %v3006, -inf
        %v3262 = vmax.f32 %v3260, %v3261
        %v3263 = vsel %vm2352, %v3008, -inf
        %v3264 = vmax.f32 %v3262, %v3263
        %v3265 = vsel %vm2352, %v3010, -inf
        %v3266 = vmax.f32 %v3264, %v3265
        %v3267 = vsel %vm2352, %v2981, -inf
        %v3268 = vsel %vm2352, %v2983, -inf
        %v3269 = vmax.f32 %v3267, %v3268
        %v3270 = vsel %vm2352, %v2985, -inf
        %v3271 = vmax.f32 %v3269, %v3270
        %v3272 = vsel %vm2352, %v2987, -inf
        %v3273 = vmax.f32 %v3271, %v3272
        %v3274 = vsel %vm2352, %v2989, -inf
        %v3275 = vmax.f32 %v3273, %v3274
        %v3276 = vsel %vm2352, %v2991, -inf
        %v3277 = vmax.f32 %v3275, %v3276
        %v3278 = vsel %vm2352, %v2993, -inf
        %v3279 = vmax.f32 %v3277, %v3278
        %v3280 = vsel %vm2352, %v2995, -inf
        %v3281 = vmax.f32 %v3279, %v3280
        %v3282 = vsel %vm2352, %v2997, -inf
        %v3283 = vmax.f32 %v3281, %v3282
        %v3284 = vsel %vm2352, %v2999, -inf
        %v3285 = vmax.f32 %v3283, %v3284
        %v3286 = vsel %vm2352, %v3001, -inf
        %v3287 = vmax.f32 %v3285, %v3286
        %v3288 = vsel %vm2352, %v3003, -inf
        %v3289 = vmax.f32 %v3287, %v3288
        %v3290 = vsel %vm2352, %v3005, -inf
        %v3291 = vmax.f32 %v3289, %v3290
        %v3292 = vsel %vm2352, %v3007, -inf
        %v3293 = vmax.f32 %v3291, %v3292
        %v3294 = vsel %vm2352, %v3009, -inf
        %v3295 = vmax.f32 %v3293, %v3294
        %v3296 = vsel %vm2352, %v3011, -inf
        %v3297 = vmax.f32 %v3295, %v3296
        %v3298 = vsel %vm2352, %v3012, -inf
        %v3299 = vsel %vm2352, %v3014, -inf
        %v3300 = vmax.f32 %v3298, %v3299
        %v3301 = vsel %vm2352, %v3016, -inf
        %v3302 = vmax.f32 %v3300, %v3301
        %v3303 = vsel %vm2352, %v3018, -inf
        %v3304 = vmax.f32 %v3302, %v3303
        %v3305 = vsel %vm2352, %v3020, -inf
        %v3306 = vmax.f32 %v3304, %v3305
        %v3307 = vsel %vm2352, %v3022, -inf
        %v3308 = vmax.f32 %v3306, %v3307
        %v3309 = vsel %vm2352, %v3024, -inf
        %v3310 = vmax.f32 %v3308, %v3309
        %v3311 = vsel %vm2352, %v3026, -inf
        %v3312 = vmax.f32 %v3310, %v3311
        %v3313 = vsel %vm2352, %v3028, -inf
        %v3314 = vmax.f32 %v3312, %v3313
        %v3315 = vsel %vm2352, %v3030, -inf
        %v3316 = vmax.f32 %v3314, %v3315
        %v3317 = vsel %vm2352, %v3032, -inf
        %v3318 = vmax.f32 %v3316, %v3317
        %v3319 = vsel %vm2352, %v3034, -inf
        %v3320 = vmax.f32 %v3318, %v3319
        %v3321 = vsel %vm2352, %v3036, -inf
        %v3322 = vmax.f32 %v3320, %v3321
        %v3323 = vsel %vm2352, %v3038, -inf
        %v3324 = vmax.f32 %v3322, %v3323
        %v3325 = vsel %vm2352, %v3040, -inf
        %v3326 = vmax.f32 %v3324, %v3325
        %v3327 = vsel %vm2352, %v3042, -inf
        %v3328 = vmax.f32 %v3326, %v3327
        %v3329 = vsel %vm2352, %v3013, -inf
        %v3330 = vsel %vm2352, %v3015, -inf
        %v3331 = vmax.f32 %v3329, %v3330
        %v3332 = vsel %vm2352, %v3017, -inf
        %v3333 = vmax.f32 %v3331, %v3332
        %v3334 = vsel %vm2352, %v3019, -inf
        %v3335 = vmax.f32 %v3333, %v3334
        %v3336 = vsel %vm2352, %v3021, -inf
        %v3337 = vmax.f32 %v3335, %v3336
        %v3338 = vsel %vm2352, %v3023, -inf
        %v3339 = vmax.f32 %v3337, %v3338
        %v3340 = vsel %vm2352, %v3025, -inf
        %v3341 = vmax.f32 %v3339, %v3340
        %v3342 = vsel %vm2352, %v3027, -inf
        %v3343 = vmax.f32 %v3341, %v3342
        %v3344 = vsel %vm2352, %v3029, -inf
        %v3345 = vmax.f32 %v3343, %v3344
        %v3346 = vsel %vm2352, %v3031, -inf
        %v3347 = vmax.f32 %v3345, %v3346
        %v3348 = vsel %vm2352, %v3033, -inf
        %v3349 = vmax.f32 %v3347, %v3348
        %v3350 = vsel %vm2352, %v3035, -inf
        %v3351 = vmax.f32 %v3349, %v3350
        %v3352 = vsel %vm2352, %v3037, -inf
        %v3353 = vmax.f32 %v3351, %v3352
        %v3354 = vsel %vm2352, %v3039, -inf
        %v3355 = vmax.f32 %v3353, %v3354
        %v3356 = vsel %vm2352, %v3041, -inf
        %v3357 = vmax.f32 %v3355, %v3356
        %v3358 = vsel %vm2352, %v3043, -inf
        %v3359 = vmax.f32 %v3357, %v3358
        %v3360 = vsel %vm2352, %v3044, -inf
        %v3361 = vsel %vm2352, %v3046, -inf
        %v3362 = vmax.f32 %v3360, %v3361
        %v3363 = vsel %vm2352, %v3048, -inf
        %v3364 = vmax.f32 %v3362, %v3363
        %v3365 = vsel %vm2352, %v3050, -inf
        %v3366 = vmax.f32 %v3364, %v3365
        %v3367 = vsel %vm2352, %v3052, -inf
        %v3368 = vmax.f32 %v3366, %v3367
        %v3369 = vsel %vm2352, %v3054, -inf
        %v3370 = vmax.f32 %v3368, %v3369
        %v3371 = vsel %vm2352, %v3056, -inf
        %v3372 = vmax.f32 %v3370, %v3371
        %v3373 = vsel %vm2352, %v3058, -inf
        %v3374 = vmax.f32 %v3372, %v3373
        %v3375 = vsel %vm2352, %v3060, -inf
        %v3376 = vmax.f32 %v3374, %v3375
        %v3377 = vsel %vm2352, %v3062, -inf
        %v3378 = vmax.f32 %v3376, %v3377
        %v3379 = vsel %vm2352, %v3064, -inf
        %v3380 = vmax.f32 %v3378, %v3379
        %v3381 = vsel %vm2352, %v3066, -inf
        %v3382 = vmax.f32 %v3380, %v3381
        %v3383 = vsel %vm2352, %v3068, -inf
        %v3384 = vmax.f32 %v3382, %v3383
        %v3385 = vsel %vm2352, %v3070, -inf
        %v3386 = vmax.f32 %v3384, %v3385
        %v3387 = vsel %vm2352, %v3072, -inf
        %v3388 = vmax.f32 %v3386, %v3387
        %v3389 = vsel %vm2352, %v3074, -inf
        %v3390 = vmax.f32 %v3388, %v3389
        %v3391 = vsel %vm2352, %v3045, -inf
        %v3392 = vsel %vm2352, %v3047, -inf
        %v3393 = vmax.f32 %v3391, %v3392
        %v3394 = vsel %vm2352, %v3049, -inf
        %v3395 = vmax.f32 %v3393, %v3394
        %v3396 = vsel %vm2352, %v3051, -inf
        %v3397 = vmax.f32 %v3395, %v3396
        %v3398 = vsel %vm2352, %v3053, -inf
        %v3399 = vmax.f32 %v3397, %v3398
        %v3400 = vsel %vm2352, %v3055, -inf
        %v3401 = vmax.f32 %v3399, %v3400
        %v3402 = vsel %vm2352, %v3057, -inf
        %v3403 = vmax.f32 %v3401, %v3402
        %v3404 = vsel %vm2352, %v3059, -inf
        %v3405 = vmax.f32 %v3403, %v3404
        %v3406 = vsel %vm2352, %v3061, -inf
        %v3407 = vmax.f32 %v3405, %v3406
        %v3408 = vsel %vm2352, %v3063, -inf
        %v3409 = vmax.f32 %v3407, %v3408
        %v3410 = vsel %vm2352, %v3065, -inf
        %v3411 = vmax.f32 %v3409, %v3410
        %v3412 = vsel %vm2352, %v3067, -inf
        %v3413 = vmax.f32 %v3411, %v3412
        %v3414 = vsel %vm2352, %v3069, -inf
        %v3415 = vmax.f32 %v3413, %v3414
        %v3416 = vsel %vm2352, %v3071, -inf
        %v3417 = vmax.f32 %v3415, %v3416
        %v3418 = vsel %vm2352, %v3073, -inf
        %v3419 = vmax.f32 %v3417, %v3418
        %v3420 = vsel %vm2352, %v3075, -inf
        %v3421 = vmax.f32 %v3419, %v3420
        %v3422 = vsel %vm2352, %v3076, -inf
        %v3423 = vsel %vm2352, %v3078, -inf
        %v3424 = vmax.f32 %v3422, %v3423
        %v3425 = vsel %vm2352, %v3080, -inf
        %v3426 = vmax.f32 %v3424, %v3425
        %v3427 = vsel %vm2352, %v3082, -inf
        %v3428 = vmax.f32 %v3426, %v3427
        %v3429 = vsel %vm2352, %v3084, -inf
        %v3430 = vmax.f32 %v3428, %v3429
        %v3431 = vsel %vm2352, %v3086, -inf
        %v3432 = vmax.f32 %v3430, %v3431
        %v3433 = vsel %vm2352, %v3088, -inf
        %v3434 = vmax.f32 %v3432, %v3433
        %v3435 = vsel %vm2352, %v3090, -inf
        %v3436 = vmax.f32 %v3434, %v3435
        %v3437 = vsel %vm2352, %v3092, -inf
        %v3438 = vmax.f32 %v3436, %v3437
        %v3439 = vsel %vm2352, %v3094, -inf
        %v3440 = vmax.f32 %v3438, %v3439
        %v3441 = vsel %vm2352, %v3096, -inf
        %v3442 = vmax.f32 %v3440, %v3441
        %v3443 = vsel %vm2352, %v3098, -inf
        %v3444 = vmax.f32 %v3442, %v3443
        %v3445 = vsel %vm2352, %v3100, -inf
        %v3446 = vmax.f32 %v3444, %v3445
        %v3447 = vsel %vm2352, %v3102, -inf
        %v3448 = vmax.f32 %v3446, %v3447
        %v3449 = vsel %vm2352, %v3104, -inf
        %v3450 = vmax.f32 %v3448, %v3449
        %v3451 = vsel %vm2352, %v3106, -inf
        %v3452 = vmax.f32 %v3450, %v3451
        %v3453 = vsel %vm2352, %v3077, -inf
        %v3454 = vsel %vm2352, %v3079, -inf
        %v3455 = vmax.f32 %v3453, %v3454
        %v3456 = vsel %vm2352, %v3081, -inf
        %v3457 = vmax.f32 %v3455, %v3456
        %v3458 = vsel %vm2352, %v3083, -inf
        %v3459 = vmax.f32 %v3457, %v3458
        %v3460 = vsel %vm2352, %v3085, -inf
        %v3461 = vmax.f32 %v3459, %v3460
        %v3462 = vsel %vm2352, %v3087, -inf
        %v3463 = vmax.f32 %v3461, %v3462
        %v3464 = vsel %vm2352, %v3089, -inf
        %v3465 = vmax.f32 %v3463, %v3464
        %v3466 = vsel %vm2352, %v3091, -inf
        %v3467 = vmax.f32 %v3465, %v3466
        %v3468 = vsel %vm2352, %v3093, -inf
        %v3469 = vmax.f32 %v3467, %v3468
        %v3470 = vsel %vm2352, %v3095, -inf
        %v3471 = vmax.f32 %v3469, %v3470
        %v3472 = vsel %vm2352, %v3097, -inf
        %v3473 = vmax.f32 %v3471, %v3472
        %v3474 = vsel %vm2352, %v3099, -inf
        %v3475 = vmax.f32 %v3473, %v3474
        %v3476 = vsel %vm2352, %v3101, -inf
        %v3477 = vmax.f32 %v3475, %v3476
        %v3478 = vsel %vm2352, %v3103, -inf
        %v3479 = vmax.f32 %v3477, %v3478
        %v3480 = vsel %vm2352, %v3105, -inf
        %v3481 = vmax.f32 %v3479, %v3480
        %v3482 = vsel %vm2352, %v3107, -inf
        %v3483 = vmax.f32 %v3481, %v3482
        %v3484 = vsel %vm2352, %v3108, -inf
        %v3485 = vsel %vm2352, %v3110, -inf
        %v3486 = vmax.f32 %v3484, %v3485
        %v3487 = vsel %vm2352, %v3112, -inf
        %v3488 = vmax.f32 %v3486, %v3487
        %v3489 = vsel %vm2352, %v3114, -inf
        %v3490 = vmax.f32 %v3488, %v3489
        %v3491 = vsel %vm2352, %v3116, -inf
        %v3492 = vmax.f32 %v3490, %v3491
        %v3493 = vsel %vm2352, %v3118, -inf
        %v3494 = vmax.f32 %v3492, %v3493
        %v3495 = vsel %vm2352, %v3120, -inf
        %v3496 = vmax.f32 %v3494, %v3495
        %v3497 = vsel %vm2352, %v3122, -inf
        %v3498 = vmax.f32 %v3496, %v3497
        %v3499 = vsel %vm2352, %v3124, -inf
        %v3500 = vmax.f32 %v3498, %v3499
        %v3501 = vsel %vm2352, %v3126, -inf
        %v3502 = vmax.f32 %v3500, %v3501
        %v3503 = vsel %vm2352, %v3128, -inf
        %v3504 = vmax.f32 %v3502, %v3503
        %v3505 = vsel %vm2352, %v3130, -inf
        %v3506 = vmax.f32 %v3504, %v3505
        %v3507 = vsel %vm2352, %v3132, -inf
        %v3508 = vmax.f32 %v3506, %v3507
        %v3509 = vsel %vm2352, %v3134, -inf
        %v3510 = vmax.f32 %v3508, %v3509
        %v3511 = vsel %vm2352, %v3136, -inf
        %v3512 = vmax.f32 %v3510, %v3511
        %v3513 = vsel %vm2352, %v3138, -inf
        %v3514 = vmax.f32 %v3512, %v3513
        %v3515 = vsel %vm2352, %v3109, -inf
        %v3516 = vsel %vm2352, %v3111, -inf
        %v3517 = vmax.f32 %v3515, %v3516
        %v3518 = vsel %vm2352, %v3113, -inf
        %v3519 = vmax.f32 %v3517, %v3518
        %v3520 = vsel %vm2352, %v3115, -inf
        %v3521 = vmax.f32 %v3519, %v3520
        %v3522 = vsel %vm2352, %v3117, -inf
        %v3523 = vmax.f32 %v3521, %v3522
        %v3524 = vsel %vm2352, %v3119, -inf
        %v3525 = vmax.f32 %v3523, %v3524
        %v3526 = vsel %vm2352, %v3121, -inf
        %v3527 = vmax.f32 %v3525, %v3526
        %v3528 = vsel %vm2352, %v3123, -inf
        %v3529 = vmax.f32 %v3527, %v3528
        %v3530 = vsel %vm2352, %v3125, -inf
        %v3531 = vmax.f32 %v3529, %v3530
        %v3532 = vsel %vm2352, %v3127, -inf
        %v3533 = vmax.f32 %v3531, %v3532
        %v3534 = vsel %vm2352, %v3129, -inf
        %v3535 = vmax.f32 %v3533, %v3534
        %v3536 = vsel %vm2352, %v3131, -inf
        %v3537 = vmax.f32 %v3535, %v3536
        %v3538 = vsel %vm2352, %v3133, -inf
        %v3539 = vmax.f32 %v3537, %v3538
        %v3540 = vsel %vm2352, %v3135, -inf
        %v3541 = vmax.f32 %v3539, %v3540
        %v3542 = vsel %vm2352, %v3137, -inf
        %v3543 = vmax.f32 %v3541, %v3542
        %v3544 = vsel %vm2352, %v3139, -inf
        %v3545 = vmax.f32 %v3543, %v3544
        %v3546 = vsel %vm2352, %v3140, -inf
        %v3547 = vsel %vm2352, %v3142, -inf
        %v3548 = vmax.f32 %v3546, %v3547
        %v3549 = vsel %vm2352, %v3144, -inf
        %v3550 = vmax.f32 %v3548, %v3549
        %v3551 = vsel %vm2352, %v3146, -inf
        %v3552 = vmax.f32 %v3550, %v3551
        %v3553 = vsel %vm2352, %v3148, -inf
        %v3554 = vmax.f32 %v3552, %v3553
        %v3555 = vsel %vm2352, %v3150, -inf
        %v3556 = vmax.f32 %v3554, %v3555
        %v3557 = vsel %vm2352, %v3152, -inf
        %v3558 = vmax.f32 %v3556, %v3557
        %v3559 = vsel %vm2352, %v3154, -inf
        %v3560 = vmax.f32 %v3558, %v3559
        %v3561 = vsel %vm2352, %v3156, -inf
        %v3562 = vmax.f32 %v3560, %v3561
        %v3563 = vsel %vm2352, %v3158, -inf
        %v3564 = vmax.f32 %v3562, %v3563
        %v3565 = vsel %vm2352, %v3160, -inf
        %v3566 = vmax.f32 %v3564, %v3565
        %v3567 = vsel %vm2352, %v3162, -inf
        %v3568 = vmax.f32 %v3566, %v3567
        %v3569 = vsel %vm2352, %v3164, -inf
        %v3570 = vmax.f32 %v3568, %v3569
        %v3571 = vsel %vm2352, %v3166, -inf
        %v3572 = vmax.f32 %v3570, %v3571
        %v3573 = vsel %vm2352, %v3168, -inf
        %v3574 = vmax.f32 %v3572, %v3573
        %v3575 = vsel %vm2352, %v3170, -inf
        %v3576 = vmax.f32 %v3574, %v3575
        %v3577 = vsel %vm2352, %v3141, -inf
        %v3578 = vsel %vm2352, %v3143, -inf
        %v3579 = vmax.f32 %v3577, %v3578
        %v3580 = vsel %vm2352, %v3145, -inf
        %v3581 = vmax.f32 %v3579, %v3580
        %v3582 = vsel %vm2352, %v3147, -inf
        %v3583 = vmax.f32 %v3581, %v3582
        %v3584 = vsel %vm2352, %v3149, -inf
        %v3585 = vmax.f32 %v3583, %v3584
        %v3586 = vsel %vm2352, %v3151, -inf
        %v3587 = vmax.f32 %v3585, %v3586
        %v3588 = vsel %vm2352, %v3153, -inf
        %v3589 = vmax.f32 %v3587, %v3588
        %v3590 = vsel %vm2352, %v3155, -inf
        %v3591 = vmax.f32 %v3589, %v3590
        %v3592 = vsel %vm2352, %v3157, -inf
        %v3593 = vmax.f32 %v3591, %v3592
        %v3594 = vsel %vm2352, %v3159, -inf
        %v3595 = vmax.f32 %v3593, %v3594
        %v3596 = vsel %vm2352, %v3161, -inf
        %v3597 = vmax.f32 %v3595, %v3596
        %v3598 = vsel %vm2352, %v3163, -inf
        %v3599 = vmax.f32 %v3597, %v3598
        %v3600 = vsel %vm2352, %v3165, -inf
        %v3601 = vmax.f32 %v3599, %v3600
        %v3602 = vsel %vm2352, %v3167, -inf
        %v3603 = vmax.f32 %v3601, %v3602
        %v3604 = vsel %vm2352, %v3169, -inf
        %v3605 = vmax.f32 %v3603, %v3604
        %v3606 = vsel %vm2352, %v3171, -inf
        %v3607 = vmax.f32 %v3605, %v3606
        %v3608 = vsel %vm2352, %v3172, -inf
        %v3609 = vsel %vm2352, %v3174, -inf
        %v3610 = vmax.f32 %v3608, %v3609
        %v3611 = vsel %vm2352, %v3176, -inf
        %v3612 = vmax.f32 %v3610, %v3611
        %v3613 = vsel %vm2352, %v3178, -inf
        %v3614 = vmax.f32 %v3612, %v3613
        %v3615 = vsel %vm2352, %v3180, -inf
        %v3616 = vmax.f32 %v3614, %v3615
        %v3617 = vsel %vm2352, %v3182, -inf
        %v3618 = vmax.f32 %v3616, %v3617
        %v3619 = vsel %vm2352, %v3184, -inf
        %v3620 = vmax.f32 %v3618, %v3619
        %v3621 = vsel %vm2352, %v3186, -inf
        %v3622 = vmax.f32 %v3620, %v3621
        %v3623 = vsel %vm2352, %v3188, -inf
        %v3624 = vmax.f32 %v3622, %v3623
        %v3625 = vsel %vm2352, %v3190, -inf
        %v3626 = vmax.f32 %v3624, %v3625
        %v3627 = vsel %vm2352, %v3192, -inf
        %v3628 = vmax.f32 %v3626, %v3627
        %v3629 = vsel %vm2352, %v3194, -inf
        %v3630 = vmax.f32 %v3628, %v3629
        %v3631 = vsel %vm2352, %v3196, -inf
        %v3632 = vmax.f32 %v3630, %v3631
        %v3633 = vsel %vm2352, %v3198, -inf
        %v3634 = vmax.f32 %v3632, %v3633
        %v3635 = vsel %vm2352, %v3200, -inf
        %v3636 = vmax.f32 %v3634, %v3635
        %v3637 = vsel %vm2352, %v3202, -inf
        %v3638 = vmax.f32 %v3636, %v3637
        %v3639 = vsel %vm2352, %v3173, -inf
        %v3640 = vsel %vm2352, %v3175, -inf
        %v3641 = vmax.f32 %v3639, %v3640
        %v3642 = vsel %vm2352, %v3177, -inf
        %v3643 = vmax.f32 %v3641, %v3642
        %v3644 = vsel %vm2352, %v3179, -inf
        %v3645 = vmax.f32 %v3643, %v3644
        %v3646 = vsel %vm2352, %v3181, -inf
        %v3647 = vmax.f32 %v3645, %v3646
        %v3648 = vsel %vm2352, %v3183, -inf
        %v3649 = vmax.f32 %v3647, %v3648
        %v3650 = vsel %vm2352, %v3185, -inf
        %v3651 = vmax.f32 %v3649, %v3650
        %v3652 = vsel %vm2352, %v3187, -inf
        %v3653 = vmax.f32 %v3651, %v3652
        %v3654 = vsel %vm2352, %v3189, -inf
        %v3655 = vmax.f32 %v3653, %v3654
        %v3656 = vsel %vm2352, %v3191, -inf
        %v3657 = vmax.f32 %v3655, %v3656
        %v3658 = vsel %vm2352, %v3193, -inf
        %v3659 = vmax.f32 %v3657, %v3658
        %v3660 = vsel %vm2352, %v3195, -inf
        %v3661 = vmax.f32 %v3659, %v3660
        %v3662 = vsel %vm2352, %v3197, -inf
        %v3663 = vmax.f32 %v3661, %v3662
        %v3664 = vsel %vm2352, %v3199, -inf
        %v3665 = vmax.f32 %v3663, %v3664
        %v3666 = vsel %vm2352, %v3201, -inf
        %v3667 = vmax.f32 %v3665, %v3666
        %v3668 = vsel %vm2352, %v3203, -inf
        %v3669 = vmax.f32 %v3667, %v3668
        %v3670 = vsel %vm2352, %v3204, -inf
        %v3671 = vsel %vm2352, %v3206, -inf
        %v3672 = vmax.f32 %v3670, %v3671
        %v3673 = vsel %vm2352, %v3208, -inf
        %v3674 = vmax.f32 %v3672, %v3673
        %v3675 = vsel %vm2352, %v3210, -inf
        %v3676 = vmax.f32 %v3674, %v3675
        %v3677 = vsel %vm2352, %v3212, -inf
        %v3678 = vmax.f32 %v3676, %v3677
        %v3679 = vsel %vm2352, %v3214, -inf
        %v3680 = vmax.f32 %v3678, %v3679
        %v3681 = vsel %vm2352, %v3216, -inf
        %v3682 = vmax.f32 %v3680, %v3681
        %v3683 = vsel %vm2352, %v3218, -inf
        %v3684 = vmax.f32 %v3682, %v3683
        %v3685 = vsel %vm2352, %v3220, -inf
        %v3686 = vmax.f32 %v3684, %v3685
        %v3687 = vsel %vm2352, %v3222, -inf
        %v3688 = vmax.f32 %v3686, %v3687
        %v3689 = vsel %vm2352, %v3224, -inf
        %v3690 = vmax.f32 %v3688, %v3689
        %v3691 = vsel %vm2352, %v3226, -inf
        %v3692 = vmax.f32 %v3690, %v3691
        %v3693 = vsel %vm2352, %v3228, -inf
        %v3694 = vmax.f32 %v3692, %v3693
        %v3695 = vsel %vm2352, %v3230, -inf
        %v3696 = vmax.f32 %v3694, %v3695
        %v3697 = vsel %vm2352, %v3232, -inf
        %v3698 = vmax.f32 %v3696, %v3697
        %v3699 = vsel %vm2352, %v3234, -inf
        %v3700 = vmax.f32 %v3698, %v3699
        %v3701 = vsel %vm2352, %v3205, -inf
        %v3702 = vsel %vm2352, %v3207, -inf
        %v3703 = vmax.f32 %v3701, %v3702
        %v3704 = vsel %vm2352, %v3209, -inf
        %v3705 = vmax.f32 %v3703, %v3704
        %v3706 = vsel %vm2352, %v3211, -inf
        %v3707 = vmax.f32 %v3705, %v3706
        %v3708 = vsel %vm2352, %v3213, -inf
        %v3709 = vmax.f32 %v3707, %v3708
        %v3710 = vsel %vm2352, %v3215, -inf
        %v3711 = vmax.f32 %v3709, %v3710
        %v3712 = vsel %vm2352, %v3217, -inf
        %v3713 = vmax.f32 %v3711, %v3712
        %v3714 = vsel %vm2352, %v3219, -inf
        %v3715 = vmax.f32 %v3713, %v3714
        %v3716 = vsel %vm2352, %v3221, -inf
        %v3717 = vmax.f32 %v3715, %v3716
        %v3718 = vsel %vm2352, %v3223, -inf
        %v3719 = vmax.f32 %v3717, %v3718
        %v3720 = vsel %vm2352, %v3225, -inf
        %v3721 = vmax.f32 %v3719, %v3720
        %v3722 = vsel %vm2352, %v3227, -inf
        %v3723 = vmax.f32 %v3721, %v3722
        %v3724 = vsel %vm2352, %v3229, -inf
        %v3725 = vmax.f32 %v3723, %v3724
        %v3726 = vsel %vm2352, %v3231, -inf
        %v3727 = vmax.f32 %v3725, %v3726
        %v3728 = vsel %vm2352, %v3233, -inf
        %v3729 = vmax.f32 %v3727, %v3728
        %v3730 = vsel %vm2352, %v3235, -inf
        %v3731 = vmax.f32 %v3729, %v3730
        %v3732 = vsub.f32 %v2980, %v3266
        %v3733 = vsub.f32 %v2981, %v3297
        %v3734 = vsub.f32 %v2982, %v3266
        %v3735 = vsub.f32 %v2983, %v3297
        %v3736 = vsub.f32 %v2984, %v3266
        %v3737 = vsub.f32 %v2985, %v3297
        %v3738 = vsub.f32 %v2986, %v3266
        %v3739 = vsub.f32 %v2987, %v3297
        %v3740 = vsub.f32 %v2988, %v3266
        %v3741 = vsub.f32 %v2989, %v3297
        %v3742 = vsub.f32 %v2990, %v3266
        %v3743 = vsub.f32 %v2991, %v3297
        %v3744 = vsub.f32 %v2992, %v3266
        %v3745 = vsub.f32 %v2993, %v3297
        %v3746 = vsub.f32 %v2994, %v3266
        %v3747 = vsub.f32 %v2995, %v3297
        %v3748 = vsub.f32 %v2996, %v3266
        %v3749 = vsub.f32 %v2997, %v3297
        %v3750 = vsub.f32 %v2998, %v3266
        %v3751 = vsub.f32 %v2999, %v3297
        %v3752 = vsub.f32 %v3000, %v3266
        %v3753 = vsub.f32 %v3001, %v3297
        %v3754 = vsub.f32 %v3002, %v3266
        %v3755 = vsub.f32 %v3003, %v3297
        %v3756 = vsub.f32 %v3004, %v3266
        %v3757 = vsub.f32 %v3005, %v3297
        %v3758 = vsub.f32 %v3006, %v3266
        %v3759 = vsub.f32 %v3007, %v3297
        %v3760 = vsub.f32 %v3008, %v3266
        %v3761 = vsub.f32 %v3009, %v3297
        %v3762 = vsub.f32 %v3010, %v3266
        %v3763 = vsub.f32 %v3011, %v3297
        %v3764 = vsub.f32 %v3012, %v3328
        %v3765 = vsub.f32 %v3013, %v3359
        %v3766 = vsub.f32 %v3014, %v3328
        %v3767 = vsub.f32 %v3015, %v3359
        %v3768 = vsub.f32 %v3016, %v3328
        %v3769 = vsub.f32 %v3017, %v3359
        %v3770 = vsub.f32 %v3018, %v3328
        %v3771 = vsub.f32 %v3019, %v3359
        %v3772 = vsub.f32 %v3020, %v3328
        %v3773 = vsub.f32 %v3021, %v3359
        %v3774 = vsub.f32 %v3022, %v3328
        %v3775 = vsub.f32 %v3023, %v3359
        %v3776 = vsub.f32 %v3024, %v3328
        %v3777 = vsub.f32 %v3025, %v3359
        %v3778 = vsub.f32 %v3026, %v3328
        %v3779 = vsub.f32 %v3027, %v3359
        %v3780 = vsub.f32 %v3028, %v3328
        %v3781 = vsub.f32 %v3029, %v3359
        %v3782 = vsub.f32 %v3030, %v3328
        %v3783 = vsub.f32 %v3031, %v3359
        %v3784 = vsub.f32 %v3032, %v3328
        %v3785 = vsub.f32 %v3033, %v3359
        %v3786 = vsub.f32 %v3034, %v3328
        %v3787 = vsub.f32 %v3035, %v3359
        %v3788 = vsub.f32 %v3036, %v3328
        %v3789 = vsub.f32 %v3037, %v3359
        %v3790 = vsub.f32 %v3038, %v3328
        %v3791 = vsub.f32 %v3039, %v3359
        %v3792 = vsub.f32 %v3040, %v3328
        %v3793 = vsub.f32 %v3041, %v3359
        %v3794 = vsub.f32 %v3042, %v3328
        %v3795 = vsub.f32 %v3043, %v3359
        %v3796 = vsub.f32 %v3044, %v3390
        %v3797 = vsub.f32 %v3045, %v3421
        %v3798 = vsub.f32 %v3046, %v3390
        %v3799 = vsub.f32 %v3047, %v3421
        %v3800 = vsub.f32 %v3048, %v3390
        %v3801 = vsub.f32 %v3049, %v3421
        %v3802 = vsub.f32 %v3050, %v3390
        %v3803 = vsub.f32 %v3051, %v3421
        %v3804 = vsub.f32 %v3052, %v3390
        %v3805 = vsub.f32 %v3053, %v3421
        %v3806 = vsub.f32 %v3054, %v3390
        %v3807 = vsub.f32 %v3055, %v3421
        %v3808 = vsub.f32 %v3056, %v3390
        %v3809 = vsub.f32 %v3057, %v3421
        %v3810 = vsub.f32 %v3058, %v3390
        %v3811 = vsub.f32 %v3059, %v3421
        %v3812 = vsub.f32 %v3060, %v3390
        %v3813 = vsub.f32 %v3061, %v3421
        %v3814 = vsub.f32 %v3062, %v3390
        %v3815 = vsub.f32 %v3063, %v3421
        %v3816 = vsub.f32 %v3064, %v3390
        %v3817 = vsub.f32 %v3065, %v3421
        %v3818 = vsub.f32 %v3066, %v3390
        %v3819 = vsub.f32 %v3067, %v3421
        %v3820 = vsub.f32 %v3068, %v3390
        %v3821 = vsub.f32 %v3069, %v3421
        %v3822 = vsub.f32 %v3070, %v3390
        %v3823 = vsub.f32 %v3071, %v3421
        %v3824 = vsub.f32 %v3072, %v3390
        %v3825 = vsub.f32 %v3073, %v3421
        %v3826 = vsub.f32 %v3074, %v3390
        %v3827 = vsub.f32 %v3075, %v3421
        %v3828 = vsub.f32 %v3076, %v3452
        %v3829 = vsub.f32 %v3077, %v3483
        %v3830 = vsub.f32 %v3078, %v3452
        %v3831 = vsub.f32 %v3079, %v3483
        %v3832 = vsub.f32 %v3080, %v3452
        %v3833 = vsub.f32 %v3081, %v3483
        %v3834 = vsub.f32 %v3082, %v3452
        %v3835 = vsub.f32 %v3083, %v3483
        %v3836 = vsub.f32 %v3084, %v3452
        %v3837 = vsub.f32 %v3085, %v3483
        %v3838 = vsub.f32 %v3086, %v3452
        %v3839 = vsub.f32 %v3087, %v3483
        %v3840 = vsub.f32 %v3088, %v3452
        %v3841 = vsub.f32 %v3089, %v3483
        %v3842 = vsub.f32 %v3090, %v3452
        %v3843 = vsub.f32 %v3091, %v3483
        %v3844 = vsub.f32 %v3092, %v3452
        %v3845 = vsub.f32 %v3093, %v3483
        %v3846 = vsub.f32 %v3094, %v3452
        %v3847 = vsub.f32 %v3095, %v3483
        %v3848 = vsub.f32 %v3096, %v3452
        %v3849 = vsub.f32 %v3097, %v3483
        %v3850 = vsub.f32 %v3098, %v3452
        %v3851 = vsub.f32 %v3099, %v3483
        %v3852 = vsub.f32 %v3100, %v3452
        %v3853 = vsub.f32 %v3101, %v3483
        %v3854 = vsub.f32 %v3102, %v3452
        %v3855 = vsub.f32 %v3103, %v3483
        %v3856 = vsub.f32 %v3104, %v3452
        %v3857 = vsub.f32 %v3105, %v3483
        %v3858 = vsub.f32 %v3106, %v3452
        %v3859 = vsub.f32 %v3107, %v3483
        %v3860 = vsub.f32 %v3108, %v3514
        %v3861 = vsub.f32 %v3109, %v3545
        %v3862 = vsub.f32 %v3110, %v3514
        %v3863 = vsub.f32 %v3111, %v3545
        %v3864 = vsub.f32 %v3112, %v3514
        %v3865 = vsub.f32 %v3113, %v3545
        %v3866 = vsub.f32 %v3114, %v3514
        %v3867 = vsub.f32 %v3115, %v3545
        %v3868 = vsub.f32 %v3116, %v3514
        %v3869 = vsub.f32 %v3117, %v3545
        %v3870 = vsub.f32 %v3118, %v3514
        %v3871 = vsub.f32 %v3119, %v3545
        %v3872 = vsub.f32 %v3120, %v3514
        %v3873 = vsub.f32 %v3121, %v3545
        %v3874 = vsub.f32 %v3122, %v3514
        %v3875 = vsub.f32 %v3123, %v3545
        %v3876 = vsub.f32 %v3124, %v3514
        %v3877 = vsub.f32 %v3125, %v3545
        %v3878 = vsub.f32 %v3126, %v3514
        %v3879 = vsub.f32 %v3127, %v3545
        %v3880 = vsub.f32 %v3128, %v3514
        %v3881 = vsub.f32 %v3129, %v3545
        %v3882 = vsub.f32 %v3130, %v3514
        %v3883 = vsub.f32 %v3131, %v3545
        %v3884 = vsub.f32 %v3132, %v3514
        %v3885 = vsub.f32 %v3133, %v3545
        %v3886 = vsub.f32 %v3134, %v3514
        %v3887 = vsub.f32 %v3135, %v3545
        %v3888 = vsub.f32 %v3136, %v3514
        %v3889 = vsub.f32 %v3137, %v3545
        %v3890 = vsub.f32 %v3138, %v3514
        %v3891 = vsub.f32 %v3139, %v3545
        %v3892 = vsub.f32 %v3140, %v3576
        %v3893 = vsub.f32 %v3141, %v3607
        %v3894 = vsub.f32 %v3142, %v3576
        %v3895 = vsub.f32 %v3143, %v3607
        %v3896 = vsub.f32 %v3144, %v3576
        %v3897 = vsub.f32 %v3145, %v3607
        %v3898 = vsub.f32 %v3146, %v3576
        %v3899 = vsub.f32 %v3147, %v3607
        %v3900 = vsub.f32 %v3148, %v3576
        %v3901 = vsub.f32 %v3149, %v3607
        %v3902 = vsub.f32 %v3150, %v3576
        %v3903 = vsub.f32 %v3151, %v3607
        %v3904 = vsub.f32 %v3152, %v3576
        %v3905 = vsub.f32 %v3153, %v3607
        %v3906 = vsub.f32 %v3154, %v3576
        %v3907 = vsub.f32 %v3155, %v3607
        %v3908 = vsub.f32 %v3156, %v3576
        %v3909 = vsub.f32 %v3157, %v3607
        %v3910 = vsub.f32 %v3158, %v3576
        %v3911 = vsub.f32 %v3159, %v3607
        %v3912 = vsub.f32 %v3160, %v3576
        %v3913 = vsub.f32 %v3161, %v3607
        %v3914 = vsub.f32 %v3162, %v3576
        %v3915 = vsub.f32 %v3163, %v3607
        %v3916 = vsub.f32 %v3164, %v3576
        %v3917 = vsub.f32 %v3165, %v3607
        %v3918 = vsub.f32 %v3166, %v3576
        %v3919 = vsub.f32 %v3167, %v3607
        %v3920 = vsub.f32 %v3168, %v3576
        %v3921 = vsub.f32 %v3169, %v3607
        %v3922 = vsub.f32 %v3170, %v3576
        %v3923 = vsub.f32 %v3171, %v3607
        %v3924 = vsub.f32 %v3172, %v3638
        %v3925 = vsub.f32 %v3173, %v3669
        %v3926 = vsub.f32 %v3174, %v3638
        %v3927 = vsub.f32 %v3175, %v3669
        %v3928 = vsub.f32 %v3176, %v3638
        %v3929 = vsub.f32 %v3177, %v3669
        %v3930 = vsub.f32 %v3178, %v3638
        %v3931 = vsub.f32 %v3179, %v3669
        %v3932 = vsub.f32 %v3180, %v3638
        %v3933 = vsub.f32 %v3181, %v3669
        %v3934 = vsub.f32 %v3182, %v3638
        %v3935 = vsub.f32 %v3183, %v3669
        %v3936 = vsub.f32 %v3184, %v3638
        %v3937 = vsub.f32 %v3185, %v3669
        %v3938 = vsub.f32 %v3186, %v3638
        %v3939 = vsub.f32 %v3187, %v3669
        %v3940 = vsub.f32 %v3188, %v3638
        %v3941 = vsub.f32 %v3189, %v3669
        %v3942 = vsub.f32 %v3190, %v3638
        %v3943 = vsub.f32 %v3191, %v3669
        %v3944 = vsub.f32 %v3192, %v3638
        %v3945 = vsub.f32 %v3193, %v3669
        %v3946 = vsub.f32 %v3194, %v3638
        %v3947 = vsub.f32 %v3195, %v3669
        %v3948 = vsub.f32 %v3196, %v3638
        %v3949 = vsub.f32 %v3197, %v3669
        %v3950 = vsub.f32 %v3198, %v3638
        %v3951 = vsub.f32 %v3199, %v3669
        %v3952 = vsub.f32 %v3200, %v3638
        %v3953 = vsub.f32 %v3201, %v3669
        %v3954 = vsub.f32 %v3202, %v3638
        %v3955 = vsub.f32 %v3203, %v3669
        %v3956 = vsub.f32 %v3204, %v3700
        %v3957 = vsub.f32 %v3205, %v3731
        %v3958 = vsub.f32 %v3206, %v3700
        %v3959 = vsub.f32 %v3207, %v3731
        %v3960 = vsub.f32 %v3208, %v3700
        %v3961 = vsub.f32 %v3209, %v3731
        %v3962 = vsub.f32 %v3210, %v3700
        %v3963 = vsub.f32 %v3211, %v3731
        %v3964 = vsub.f32 %v3212, %v3700
        %v3965 = vsub.f32 %v3213, %v3731
        %v3966 = vsub.f32 %v3214, %v3700
        %v3967 = vsub.f32 %v3215, %v3731
        %v3968 = vsub.f32 %v3216, %v3700
        %v3969 = vsub.f32 %v3217, %v3731
        %v3970 = vsub.f32 %v3218, %v3700
        %v3971 = vsub.f32 %v3219, %v3731
        %v3972 = vsub.f32 %v3220, %v3700
        %v3973 = vsub.f32 %v3221, %v3731
        %v3974 = vsub.f32 %v3222, %v3700
        %v3975 = vsub.f32 %v3223, %v3731
        %v3976 = vsub.f32 %v3224, %v3700
        %v3977 = vsub.f32 %v3225, %v3731
        %v3978 = vsub.f32 %v3226, %v3700
        %v3979 = vsub.f32 %v3227, %v3731
        %v3980 = vsub.f32 %v3228, %v3700
        %v3981 = vsub.f32 %v3229, %v3731
        %v3982 = vsub.f32 %v3230, %v3700
        %v3983 = vsub.f32 %v3231, %v3731
        %v3984 = vsub.f32 %v3232, %v3700
        %v3985 = vsub.f32 %v3233, %v3731
        %v3986 = vsub.f32 %v3234, %v3700
        %v3987 = vsub.f32 %v3235, %v3731
        %v3988 = vmul.f32 %v3732, 1.442695
        %v3989 = vpow.pop %v3988
        %v3990 = vmul.f32 %v3733, 1.442695
        %v3991 = vpow.pop %v3990
        %v3992 = vmul.f32 %v3734, 1.442695
        %v3993 = vpow.pop %v3992
        %v3994 = vmul.f32 %v3735, 1.442695
        %v3995 = vpow.pop %v3994
        %v3996 = vmul.f32 %v3736, 1.442695
        %v3997 = vpow.pop %v3996
        %v3998 = vmul.f32 %v3737, 1.442695
        %v3999 = vpow.pop %v3998
        %v4000 = vmul.f32 %v3738, 1.442695
        %v4001 = vpow.pop %v4000
        %v4002 = vmul.f32 %v3739, 1.442695
        %v4003 = vpow.pop %v4002
        %v4004 = vmul.f32 %v3740, 1.442695
        %v4005 = vpow.pop %v4004
        %v4006 = vmul.f32 %v3741, 1.442695
        %v4007 = vpow.pop %v4006
        %v4008 = vmul.f32 %v3742, 1.442695
        %v4009 = vpow.pop %v4008
        %v4010 = vmul.f32 %v3743, 1.442695
        %v4011 = vpow.pop %v4010
        %v4012 = vmul.f32 %v3744, 1.442695
        %v4013 = vpow.pop %v4012
        %v4014 = vmul.f32 %v3745, 1.442695
        %v4015 = vpow.pop %v4014
        %v4016 = vmul.f32 %v3746, 1.442695
        %v4017 = vpow.pop %v4016
        %v4018 = vmul.f32 %v3747, 1.442695
        %v4019 = vpow.pop %v4018
        %v4020 = vmul.f32 %v3748, 1.442695
        %v4021 = vpow.pop %v4020
        %v4022 = vmul.f32 %v3749, 1.442695
        %v4023 = vpow.pop %v4022
        %v4024 = vmul.f32 %v3750, 1.442695
        %v4025 = vpow.pop %v4024
        %v4026 = vmul.f32 %v3751, 1.442695
        %v4027 = vpow.pop %v4026
        %v4028 = vmul.f32 %v3752, 1.442695
        %v4029 = vpow.pop %v4028
        %v4030 = vmul.f32 %v3753, 1.442695
        %v4031 = vpow.pop %v4030
        %v4032 = vmul.f32 %v3754, 1.442695
        %v4033 = vpow.pop %v4032
        %v4034 = vmul.f32 %v3755, 1.442695
        %v4035 = vpow.pop %v4034
        %v4036 = vmul.f32 %v3756, 1.442695
        %v4037 = vpow.pop %v4036
        %v4038 = vmul.f32 %v3757, 1.442695
        %v4039 = vpow.pop %v4038
        %v4040 = vmul.f32 %v3758, 1.442695
        %v4041 = vpow.pop %v4040
        %v4042 = vmul.f32 %v3759, 1.442695
        %v4043 = vpow.pop %v4042
        %v4044 = vmul.f32 %v3760, 1.442695
        %v4045 = vpow.pop %v4044
        %v4046 = vmul.f32 %v3761, 1.442695
        %v4047 = vpow.pop %v4046
        %v4048 = vmul.f32 %v3762, 1.442695
        %v4049 = vpow.pop %v4048
        %v4050 = vmul.f32 %v3763, 1.442695
        %v4051 = vpow.pop %v4050
        %v4052 = vmul.f32 %v3764, 1.442695
        %v4053 = vpow.pop %v4052
        %v4054 = vmul.f32 %v3765, 1.442695
        %v4055 = vpow.pop %v4054
        %v4056 = vmul.f32 %v3766, 1.442695
        %v4057 = vpow.pop %v4056
        %v4058 = vmul.f32 %v3767, 1.442695
        %v4059 = vpow.pop %v4058
        %v4060 = vmul.f32 %v3768, 1.442695
        %v4061 = vpow.pop %v4060
        %v4062 = vmul.f32 %v3769, 1.442695
        %v4063 = vpow.pop %v4062
        %v4064 = vmul.f32 %v3770, 1.442695
        %v4065 = vpow.pop %v4064
        %v4066 = vmul.f32 %v3771, 1.442695
        %v4067 = vpow.pop %v4066
        %v4068 = vmul.f32 %v3772, 1.442695
        %v4069 = vpow.pop %v4068
        %v4070 = vmul.f32 %v3773, 1.442695
        %v4071 = vpow.pop %v4070
        %v4072 = vmul.f32 %v3774, 1.442695
        %v4073 = vpow.pop %v4072
        %v4074 = vmul.f32 %v3775, 1.442695
        %v4075 = vpow.pop %v4074
        %v4076 = vmul.f32 %v3776, 1.442695
        %v4077 = vpow.pop %v4076
        %v4078 = vmul.f32 %v3777, 1.442695
        %v4079 = vpow.pop %v4078
        %v4080 = vmul.f32 %v3778, 1.442695
        %v4081 = vpow.pop %v4080
        %v4082 = vmul.f32 %v3779, 1.442695
        %v4083 = vpow.pop %v4082
        %v4084 = vmul.f32 %v3780, 1.442695
        %v4085 = vpow.pop %v4084
        %v4086 = vmul.f32 %v3781, 1.442695
        %v4087 = vpow.pop %v4086
        %v4088 = vmul.f32 %v3782, 1.442695
        %v4089 = vpow.pop %v4088
        %v4090 = vmul.f32 %v3783, 1.442695
        %v4091 = vpow.pop %v4090
        %v4092 = vmul.f32 %v3784, 1.442695
        %v4093 = vpow.pop %v4092
        %v4094 = vmul.f32 %v3785, 1.442695
        %v4095 = vpow.pop %v4094
        %v4096 = vmul.f32 %v3786, 1.442695
        %v4097 = vpow.pop %v4096
        %v4098 = vmul.f32 %v3787, 1.442695
        %v4099 = vpow.pop %v4098
        %v4100 = vmul.f32 %v3788, 1.442695
        %v4101 = vpow.pop %v4100
        %v4102 = vmul.f32 %v3789, 1.442695
        %v4103 = vpow.pop %v4102
        %v4104 = vmul.f32 %v3790, 1.442695
        %v4105 = vpow.pop %v4104
        %v4106 = vmul.f32 %v3791, 1.442695
        %v4107 = vpow.pop %v4106
        %v4108 = vmul.f32 %v3792, 1.442695
        %v4109 = vpow.pop %v4108
        %v4110 = vmul.f32 %v3793, 1.442695
        %v4111 = vpow.pop %v4110
        %v4112 = vmul.f32 %v3794, 1.442695
        %v4113 = vpow.pop %v4112
        %v4114 = vmul.f32 %v3795, 1.442695
        %v4115 = vpow.pop %v4114
        %v4116 = vmul.f32 %v3796, 1.442695
        %v4117 = vpow.pop %v4116
        %v4118 = vmul.f32 %v3797, 1.442695
        %v4119 = vpow.pop %v4118
        %v4120 = vmul.f32 %v3798, 1.442695
        %v4121 = vpow.pop %v4120
        %v4122 = vmul.f32 %v3799, 1.442695
        %v4123 = vpow.pop %v4122
        %v4124 = vmul.f32 %v3800, 1.442695
        %v4125 = vpow.pop %v4124
        %v4126 = vmul.f32 %v3801, 1.442695
        %v4127 = vpow.pop %v4126
        %v4128 = vmul.f32 %v3802, 1.442695
        %v4129 = vpow.pop %v4128
        %v4130 = vmul.f32 %v3803, 1.442695
        %v4131 = vpow.pop %v4130
        %v4132 = vmul.f32 %v3804, 1.442695
        %v4133 = vpow.pop %v4132
        %v4134 = vmul.f32 %v3805, 1.442695
        %v4135 = vpow.pop %v4134
        %v4136 = vmul.f32 %v3806, 1.442695
        %v4137 = vpow.pop %v4136
        %v4138 = vmul.f32 %v3807, 1.442695
        %v4139 = vpow.pop %v4138
        %v4140 = vmul.f32 %v3808, 1.442695
        %v4141 = vpow.pop %v4140
        %v4142 = vmul.f32 %v3809, 1.442695
        %v4143 = vpow.pop %v4142
        %v4144 = vmul.f32 %v3810, 1.442695
        %v4145 = vpow.pop %v4144
        %v4146 = vmul.f32 %v3811, 1.442695
        %v4147 = vpow.pop %v4146
        %v4148 = vmul.f32 %v3812, 1.442695
        %v4149 = vpow.pop %v4148
        %v4150 = vmul.f32 %v3813, 1.442695
        %v4151 = vpow.pop %v4150
        %v4152 = vmul.f32 %v3814, 1.442695
        %v4153 = vpow.pop %v4152
        %v4154 = vmul.f32 %v3815, 1.442695
        %v4155 = vpow.pop %v4154
        %v4156 = vmul.f32 %v3816, 1.442695
        %v4157 = vpow.pop %v4156
        %v4158 = vmul.f32 %v3817, 1.442695
        %v4159 = vpow.pop %v4158
        %v4160 = vmul.f32 %v3818, 1.442695
        %v4161 = vpow.pop %v4160
        %v4162 = vmul.f32 %v3819, 1.442695
        %v4163 = vpow.pop %v4162
        %v4164 = vmul.f32 %v3820, 1.442695
        %v4165 = vpow.pop %v4164
        %v4166 = vmul.f32 %v3821, 1.442695
        %v4167 = vpow.pop %v4166
        %v4168 = vmul.f32 %v3822, 1.442695
        %v4169 = vpow.pop %v4168
        %v4170 = vmul.f32 %v3823, 1.442695
        %v4171 = vpow.pop %v4170
        %v4172 = vmul.f32 %v3824, 1.442695
        %v4173 = vpow.pop %v4172
        %v4174 = vmul.f32 %v3825, 1.442695
        %v4175 = vpow.pop %v4174
        %v4176 = vmul.f32 %v3826, 1.442695
        %v4177 = vpow.pop %v4176
        %v4178 = vmul.f32 %v3827, 1.442695
        %v4179 = vpow.pop %v4178
        %v4180 = vmul.f32 %v3828, 1.442695
        %v4181 = vpow.pop %v4180
        %v4182 = vmul.f32 %v3829, 1.442695
        %v4183 = vpow.pop %v4182
        %v4184 = vmul.f32 %v3830, 1.442695
        %v4185 = vpow.pop %v4184
        %v4186 = vmul.f32 %v3831, 1.442695
        %v4187 = vpow.pop %v4186
        %v4188 = vmul.f32 %v3832, 1.442695
        %v4189 = vpow.pop %v4188
        %v4190 = vmul.f32 %v3833, 1.442695
        %v4191 = vpow.pop %v4190
        %v4192 = vmul.f32 %v3834, 1.442695
        %v4193 = vpow.pop %v4192
        %v4194 = vmul.f32 %v3835, 1.442695
        %v4195 = vpow.pop %v4194
        %v4196 = vmul.f32 %v3836, 1.442695
        %v4197 = vpow.pop %v4196
        %v4198 = vmul.f32 %v3837, 1.442695
        %v4199 = vpow.pop %v4198
        %v4200 = vmul.f32 %v3838, 1.442695
        %v4201 = vpow.pop %v4200
        %v4202 = vmul.f32 %v3839, 1.442695
        %v4203 = vpow.pop %v4202
        %v4204 = vmul.f32 %v3840, 1.442695
        %v4205 = vpow.pop %v4204
        %v4206 = vmul.f32 %v3841, 1.442695
        %v4207 = vpow.pop %v4206
        %v4208 = vmul.f32 %v3842, 1.442695
        %v4209 = vpow.pop %v4208
        %v4210 = vmul.f32 %v3843, 1.442695
        %v4211 = vpow.pop %v4210
        %v4212 = vmul.f32 %v3844, 1.442695
        %v4213 = vpow.pop %v4212
        %v4214 = vmul.f32 %v3845, 1.442695
        %v4215 = vpow.pop %v4214
        %v4216 = vmul.f32 %v3846, 1.442695
        %v4217 = vpow.pop %v4216
        %v4218 = vmul.f32 %v3847, 1.442695
        %v4219 = vpow.pop %v4218
        %v4220 = vmul.f32 %v3848, 1.442695
        %v4221 = vpow.pop %v4220
        %v4222 = vmul.f32 %v3849, 1.442695
        %v4223 = vpow.pop %v4222
        %v4224 = vmul.f32 %v3850, 1.442695
        %v4225 = vpow.pop %v4224
        %v4226 = vmul.f32 %v3851, 1.442695
        %v4227 = vpow.pop %v4226
        %v4228 = vmul.f32 %v3852, 1.442695
        %v4229 = vpow.pop %v4228
        %v4230 = vmul.f32 %v3853, 1.442695
        %v4231 = vpow.pop %v4230
        %v4232 = vmul.f32 %v3854, 1.442695
        %v4233 = vpow.pop %v4232
        %v4234 = vmul.f32 %v3855, 1.442695
        %v4235 = vpow.pop %v4234
        %v4236 = vmul.f32 %v3856, 1.442695
        %v4237 = vpow.pop %v4236
        %v4238 = vmul.f32 %v3857, 1.442695
        %v4239 = vpow.pop %v4238
        %v4240 = vmul.f32 %v3858, 1.442695
        %v4241 = vpow.pop %v4240
        %v4242 = vmul.f32 %v3859, 1.442695
        %v4243 = vpow.pop %v4242
        %v4244 = vmul.f32 %v3860, 1.442695
        %v4245 = vpow.pop %v4244
        %v4246 = vmul.f32 %v3861, 1.442695
        %v4247 = vpow.pop %v4246
        %v4248 = vmul.f32 %v3862, 1.442695
        %v4249 = vpow.pop %v4248
        %v4250 = vmul.f32 %v3863, 1.442695
        %v4251 = vpow.pop %v4250
        %v4252 = vmul.f32 %v3864, 1.442695
        %v4253 = vpow.pop %v4252
        %v4254 = vmul.f32 %v3865, 1.442695
        %v4255 = vpow.pop %v4254
        %v4256 = vmul.f32 %v3866, 1.442695
        %v4257 = vpow.pop %v4256
        %v4258 = vmul.f32 %v3867, 1.442695
        %v4259 = vpow.pop %v4258
        %v4260 = vmul.f32 %v3868, 1.442695
        %v4261 = vpow.pop %v4260
        %v4262 = vmul.f32 %v3869, 1.442695
        %v4263 = vpow.pop %v4262
        %v4264 = vmul.f32 %v3870, 1.442695
        %v4265 = vpow.pop %v4264
        %v4266 = vmul.f32 %v3871, 1.442695
        %v4267 = vpow.pop %v4266
        %v4268 = vmul.f32 %v3872, 1.442695
        %v4269 = vpow.pop %v4268
        %v4270 = vmul.f32 %v3873, 1.442695
        %v4271 = vpow.pop %v4270
        %v4272 = vmul.f32 %v3874, 1.442695
        %v4273 = vpow.pop %v4272
        %v4274 = vmul.f32 %v3875, 1.442695
        %v4275 = vpow.pop %v4274
        %v4276 = vmul.f32 %v3876, 1.442695
        %v4277 = vpow.pop %v4276
        %v4278 = vmul.f32 %v3877, 1.442695
        %v4279 = vpow.pop %v4278
        %v4280 = vmul.f32 %v3878, 1.442695
        %v4281 = vpow.pop %v4280
        %v4282 = vmul.f32 %v3879, 1.442695
        %v4283 = vpow.pop %v4282
        %v4284 = vmul.f32 %v3880, 1.442695
        %v4285 = vpow.pop %v4284
        %v4286 = vmul.f32 %v3881, 1.442695
        %v4287 = vpow.pop %v4286
        %v4288 = vmul.f32 %v3882, 1.442695
        %v4289 = vpow.pop %v4288
        %v4290 = vmul.f32 %v3883, 1.442695
        %v4291 = vpow.pop %v4290
        %v4292 = vmul.f32 %v3884, 1.442695
        %v4293 = vpow.pop %v4292
        %v4294 = vmul.f32 %v3885, 1.442695
        %v4295 = vpow.pop %v4294
        %v4296 = vmul.f32 %v3886, 1.442695
        %v4297 = vpow.pop %v4296
        %v4298 = vmul.f32 %v3887, 1.442695
        %v4299 = vpow.pop %v4298
        %v4300 = vmul.f32 %v3888, 1.442695
        %v4301 = vpow.pop %v4300
        %v4302 = vmul.f32 %v3889, 1.442695
        %v4303 = vpow.pop %v4302
        %v4304 = vmul.f32 %v3890, 1.442695
        %v4305 = vpow.pop %v4304
        %v4306 = vmul.f32 %v3891, 1.442695
        %v4307 = vpow.pop %v4306
        %v4308 = vmul.f32 %v3892, 1.442695
        %v4309 = vpow.pop %v4308
        %v4310 = vmul.f32 %v3893, 1.442695
        %v4311 = vpow.pop %v4310
        %v4312 = vmul.f32 %v3894, 1.442695
        %v4313 = vpow.pop %v4312
        %v4314 = vmul.f32 %v3895, 1.442695
        %v4315 = vpow.pop %v4314
        %v4316 = vmul.f32 %v3896, 1.442695
        %v4317 = vpow.pop %v4316
        %v4318 = vmul.f32 %v3897, 1.442695
        %v4319 = vpow.pop %v4318
        %v4320 = vmul.f32 %v3898, 1.442695
        %v4321 = vpow.pop %v4320
        %v4322 = vmul.f32 %v3899, 1.442695
        %v4323 = vpow.pop %v4322
        %v4324 = vmul.f32 %v3900, 1.442695
        %v4325 = vpow.pop %v4324
        %v4326 = vmul.f32 %v3901, 1.442695
        %v4327 = vpow.pop %v4326
        %v4328 = vmul.f32 %v3902, 1.442695
        %v4329 = vpow.pop %v4328
        %v4330 = vmul.f32 %v3903, 1.442695
        %v4331 = vpow.pop %v4330
        %v4332 = vmul.f32 %v3904, 1.442695
        %v4333 = vpow.pop %v4332
        %v4334 = vmul.f32 %v3905, 1.442695
        %v4335 = vpow.pop %v4334
        %v4336 = vmul.f32 %v3906, 1.442695
        %v4337 = vpow.pop %v4336
        %v4338 = vmul.f32 %v3907, 1.442695
        %v4339 = vpow.pop %v4338
        %v4340 = vmul.f32 %v3908, 1.442695
        %v4341 = vpow.pop %v4340
        %v4342 = vmul.f32 %v3909, 1.442695
        %v4343 = vpow.pop %v4342
        %v4344 = vmul.f32 %v3910, 1.442695
        %v4345 = vpow.pop %v4344
        %v4346 = vmul.f32 %v3911, 1.442695
        %v4347 = vpow.pop %v4346
        %v4348 = vmul.f32 %v3912, 1.442695
        %v4349 = vpow.pop %v4348
        %v4350 = vmul.f32 %v3913, 1.442695
        %v4351 = vpow.pop %v4350
        %v4352 = vmul.f32 %v3914, 1.442695
        %v4353 = vpow.pop %v4352
        %v4354 = vmul.f32 %v3915, 1.442695
        %v4355 = vpow.pop %v4354
        %v4356 = vmul.f32 %v3916, 1.442695
        %v4357 = vpow.pop %v4356
        %v4358 = vmul.f32 %v3917, 1.442695
        %v4359 = vpow.pop %v4358
        %v4360 = vmul.f32 %v3918, 1.442695
        %v4361 = vpow.pop %v4360
        %v4362 = vmul.f32 %v3919, 1.442695
        %v4363 = vpow.pop %v4362
        %v4364 = vmul.f32 %v3920, 1.442695
        %v4365 = vpow.pop %v4364
        %v4366 = vmul.f32 %v3921, 1.442695
        %v4367 = vpow.pop %v4366
        %v4368 = vmul.f32 %v3922, 1.442695
        %v4369 = vpow.pop %v4368
        %v4370 = vmul.f32 %v3923, 1.442695
        %v4371 = vpow.pop %v4370
        %v4372 = vmul.f32 %v3924, 1.442695
        %v4373 = vpow.pop %v4372
        %v4374 = vmul.f32 %v3925, 1.442695
        %v4375 = vpow.pop %v4374
        %v4376 = vmul.f32 %v3926, 1.442695
        %v4377 = vpow.pop %v4376
        %v4378 = vmul.f32 %v3927, 1.442695
        %v4379 = vpow.pop %v4378
        %v4380 = vmul.f32 %v3928, 1.442695
        %v4381 = vpow.pop %v4380
        %v4382 = vmul.f32 %v3929, 1.442695
        %v4383 = vpow.pop %v4382
        %v4384 = vmul.f32 %v3930, 1.442695
        %v4385 = vpow.pop %v4384
        %v4386 = vmul.f32 %v3931, 1.442695
        %v4387 = vpow.pop %v4386
        %v4388 = vmul.f32 %v3932, 1.442695
        %v4389 = vpow.pop %v4388
        %v4390 = vmul.f32 %v3933, 1.442695
        %v4391 = vpow.pop %v4390
        %v4392 = vmul.f32 %v3934, 1.442695
        %v4393 = vpow.pop %v4392
        %v4394 = vmul.f32 %v3935, 1.442695
        %v4395 = vpow.pop %v4394
        %v4396 = vmul.f32 %v3936, 1.442695
        %v4397 = vpow.pop %v4396
        %v4398 = vmul.f32 %v3937, 1.442695
        %v4399 = vpow.pop %v4398
        %v4400 = vmul.f32 %v3938, 1.442695
        %v4401 = vpow.pop %v4400
        %v4402 = vmul.f32 %v3939, 1.442695
        %v4403 = vpow.pop %v4402
        %v4404 = vmul.f32 %v3940, 1.442695
        %v4405 = vpow.pop %v4404
        %v4406 = vmul.f32 %v3941, 1.442695
        %v4407 = vpow.pop %v4406
        %v4408 = vmul.f32 %v3942, 1.442695
        %v4409 = vpow.pop %v4408
        %v4410 = vmul.f32 %v3943, 1.442695
        %v4411 = vpow.pop %v4410
        %v4412 = vmul.f32 %v3944, 1.442695
        %v4413 = vpow.pop %v4412
        %v4414 = vmul.f32 %v3945, 1.442695
        %v4415 = vpow.pop %v4414
        %v4416 = vmul.f32 %v3946, 1.442695
        %v4417 = vpow.pop %v4416
        %v4418 = vmul.f32 %v3947, 1.442695
        %v4419 = vpow.pop %v4418
        %v4420 = vmul.f32 %v3948, 1.442695
        %v4421 = vpow.pop %v4420
        %v4422 = vmul.f32 %v3949, 1.442695
        %v4423 = vpow.pop %v4422
        %v4424 = vmul.f32 %v3950, 1.442695
        %v4425 = vpow.pop %v4424
        %v4426 = vmul.f32 %v3951, 1.442695
        %v4427 = vpow.pop %v4426
        %v4428 = vmul.f32 %v3952, 1.442695
        %v4429 = vpow.pop %v4428
        %v4430 = vmul.f32 %v3953, 1.442695
        %v4431 = vpow.pop %v4430
        %v4432 = vmul.f32 %v3954, 1.442695
        %v4433 = vpow.pop %v4432
        %v4434 = vmul.f32 %v3955, 1.442695
        %v4435 = vpow.pop %v4434
        %v4436 = vmul.f32 %v3956, 1.442695
        %v4437 = vpow.pop %v4436
        %v4438 = vmul.f32 %v3957, 1.442695
        %v4439 = vpow.pop %v4438
        %v4440 = vmul.f32 %v3958, 1.442695
        %v4441 = vpow.pop %v4440
        %v4442 = vmul.f32 %v3959, 1.442695
        %v4443 = vpow.pop %v4442
        %v4444 = vmul.f32 %v3960, 1.442695
        %v4445 = vpow.pop %v4444
        %v4446 = vmul.f32 %v3961, 1.442695
        %v4447 = vpow.pop %v4446
        %v4448 = vmul.f32 %v3962, 1.442695
        %v4449 = vpow.pop %v4448
        %v4450 = vmul.f32 %v3963, 1.442695
        %v4451 = vpow.pop %v4450
        %v4452 = vmul.f32 %v3964, 1.442695
        %v4453 = vpow.pop %v4452
        %v4454 = vmul.f32 %v3965, 1.442695
        %v4455 = vpow.pop %v4454
        %v4456 = vmul.f32 %v3966, 1.442695
        %v4457 = vpow.pop %v4456
        %v4458 = vmul.f32 %v3967, 1.442695
        %v4459 = vpow.pop %v4458
        %v4460 = vmul.f32 %v3968, 1.442695
        %v4461 = vpow.pop %v4460
        %v4462 = vmul.f32 %v3969, 1.442695
        %v4463 = vpow.pop %v4462
        %v4464 = vmul.f32 %v3970, 1.442695
        %v4465 = vpow.pop %v4464
        %v4466 = vmul.f32 %v3971, 1.442695
        %v4467 = vpow.pop %v4466
        %v4468 = vmul.f32 %v3972, 1.442695
        %v4469 = vpow.pop %v4468
        %v4470 = vmul.f32 %v3973, 1.442695
        %v4471 = vpow.pop %v4470
        %v4472 = vmul.f32 %v3974, 1.442695
        %v4473 = vpow.pop %v4472
        %v4474 = vmul.f32 %v3975, 1.442695
        %v4475 = vpow.pop %v4474
        %v4476 = vmul.f32 %v3976, 1.442695
        %v4477 = vpow.pop %v4476
        %v4478 = vmul.f32 %v3977, 1.442695
        %v4479 = vpow.pop %v4478
        %v4480 = vmul.f32 %v3978, 1.442695
        %v4481 = vpow.pop %v4480
        %v4482 = vmul.f32 %v3979, 1.442695
        %v4483 = vpow.pop %v4482
        %v4484 = vmul.f32 %v3980, 1.442695
        %v4485 = vpow.pop %v4484
        %v4486 = vmul.f32 %v3981, 1.442695
        %v4487 = vpow.pop %v4486
        %v4488 = vmul.f32 %v3982, 1.442695
        %v4489 = vpow.pop %v4488
        %v4490 = vmul.f32 %v3983, 1.442695
        %v4491 = vpow.pop %v4490
        %v4492 = vmul.f32 %v3984, 1.442695
        %v4493 = vpow.pop %v4492
        %v4494 = vmul.f32 %v3985, 1.442695
        %v4495 = vpow.pop %v4494
        %v4496 = vmul.f32 %v3986, 1.442695
        %v4497 = vpow.pop %v4496
        %v4498 = vmul.f32 %v3987, 1.442695
        %v4499 = vpow.pop %v4498
        %v4516 = vrot.slane %v2549, 1
        %v4517 = vrot.slane %v2549, 2
        %v4518 = vrot.slane %v2549, 3
        %v4519 = vrot.slane %v2549, 4
        %v4520 = vrot.slane %v2549, 5
        %v4521 = vrot.slane %v2549, 6
        %v4522 = vrot.slane %v2549, 7
        %v4523 = vrot.slane %v2552, 1
        %v4524 = vrot.slane %v2552, 2
        %v4525 = vrot.slane %v2552, 3
        %v4526 = vrot.slane %v2552, 4
        %v4527 = vrot.slane %v2552, 5
        %v4528 = vrot.slane %v2552, 6
        %v4529 = vrot.slane %v2552, 7
        %v4530 = vrot.slane %v2555, 1
        %v4531 = vrot.slane %v2555, 2
        %v4532 = vrot.slane %v2555, 3
        %v4533 = vrot.slane %v2555, 4
        %v4534 = vrot.slane %v2555, 5
        %v4535 = vrot.slane %v2555, 6
        %v4536 = vrot.slane %v2555, 7
        %v4537 = vrot.slane %v2558, 1
        %v4538 = vrot.slane %v2558, 2
        %v4539 = vrot.slane %v2558, 3
        %v4540 = vrot.slane %v2558, 4
        %v4541 = vrot.slane %v2558, 5
        %v4542 = vrot.slane %v2558, 6
        %v4543 = vrot.slane %v2558, 7
        %v4544 = vrot.slane %v2561, 1
        %v4545 = vrot.slane %v2561, 2
        %v4546 = vrot.slane %v2561, 3
        %v4547 = vrot.slane %v2561, 4
        %v4548 = vrot.slane %v2561, 5
        %v4549 = vrot.slane %v2561, 6
        %v4550 = vrot.slane %v2561, 7
        %v4551 = vrot.slane %v2564, 1
        %v4552 = vrot.slane %v2564, 2
        %v4553 = vrot.slane %v2564, 3
        %v4554 = vrot.slane %v2564, 4
        %v4555 = vrot.slane %v2564, 5
        %v4556 = vrot.slane %v2564, 6
        %v4557 = vrot.slane %v2564, 7
        %v4558 = vrot.slane %v2567, 1
        %v4559 = vrot.slane %v2567, 2
        %v4560 = vrot.slane %v2567, 3
        %v4561 = vrot.slane %v2567, 4
        %v4562 = vrot.slane %v2567, 5
        %v4563 = vrot.slane %v2567, 6
        %v4564 = vrot.slane %v2567, 7
        %v4565 = vrot.slane %v2570, 1
        %v4566 = vrot.slane %v2570, 2
        %v4567 = vrot.slane %v2570, 3
        %v4568 = vrot.slane %v2570, 4
        %v4569 = vrot.slane %v2570, 5
        %v4570 = vrot.slane %v2570, 6
        %v4571 = vrot.slane %v2570, 7
        %v4572 = vrot.slane %v2573, 1
        %v4573 = vrot.slane %v2573, 2
        %v4574 = vrot.slane %v2573, 3
        %v4575 = vrot.slane %v2573, 4
        %v4576 = vrot.slane %v2573, 5
        %v4577 = vrot.slane %v2573, 6
        %v4578 = vrot.slane %v2573, 7
        %v4579 = vrot.slane %v2576, 1
        %v4580 = vrot.slane %v2576, 2
        %v4581 = vrot.slane %v2576, 3
        %v4582 = vrot.slane %v2576, 4
        %v4583 = vrot.slane %v2576, 5
        %v4584 = vrot.slane %v2576, 6
        %v4585 = vrot.slane %v2576, 7
        %v4586 = vrot.slane %v2579, 1
        %v4587 = vrot.slane %v2579, 2
        %v4588 = vrot.slane %v2579, 3
        %v4589 = vrot.slane %v2579, 4
        %v4590 = vrot.slane %v2579, 5
        %v4591 = vrot.slane %v2579, 6
        %v4592 = vrot.slane %v2579, 7
        %v4593 = vrot.slane %v2582, 1
        %v4594 = vrot.slane %v2582, 2
        %v4595 = vrot.slane %v2582, 3
        %v4596 = vrot.slane %v2582, 4
        %v4597 = vrot.slane %v2582, 5
        %v4598 = vrot.slane %v2582, 6
        %v4599 = vrot.slane %v2582, 7
        %v4600 = vrot.slane %v2585, 1
        %v4601 = vrot.slane %v2585, 2
        %v4602 = vrot.slane %v2585, 3
        %v4603 = vrot.slane %v2585, 4
        %v4604 = vrot.slane %v2585, 5
        %v4605 = vrot.slane %v2585, 6
        %v4606 = vrot.slane %v2585, 7
        %v4607 = vrot.slane %v2588, 1
        %v4608 = vrot.slane %v2588, 2
        %v4609 = vrot.slane %v2588, 3
        %v4610 = vrot.slane %v2588, 4
        %v4611 = vrot.slane %v2588, 5
        %v4612 = vrot.slane %v2588, 6
        %v4613 = vrot.slane %v2588, 7
        %v4614 = vrot.slane %v2591, 1
        %v4615 = vrot.slane %v2591, 2
        %v4616 = vrot.slane %v2591, 3
        %v4617 = vrot.slane %v2591, 4
        %v4618 = vrot.slane %v2591, 5
        %v4619 = vrot.slane %v2591, 6
        %v4620 = vrot.slane %v2591, 7
        %v4621 = vrot.slane %v2594, 1
        %v4622 = vrot.slane %v2594, 2
        %v4623 = vrot.slane %v2594, 3
        %v4624 = vrot.slane %v2594, 4
        %v4625 = vrot.slane %v2594, 5
        %v4626 = vrot.slane %v2594, 6
        %v4627 = vrot.slane %v2594, 7
        %v4628 = vperm.slane %v2549, 0
        %v4629 = vperm.slane %v4516, 0
        %v4630 = vperm.slane %v4517, 0
        %v4631 = vperm.slane %v4518, 0
        %v4632 = vperm.slane %v4519, 0
        %v4633 = vperm.slane %v4520, 0
        %v4634 = vperm.slane %v4521, 0
        %v4635 = vperm.slane %v4522, 0
        %v4636 = vperm.slane %v2552, 0
        %v4637 = vperm.slane %v4523, 0
        %v4638 = vperm.slane %v4524, 0
        %v4639 = vperm.slane %v4525, 0
        %v4640 = vperm.slane %v4526, 0
        %v4641 = vperm.slane %v4527, 0
        %v4642 = vperm.slane %v4528, 0
        %v4643 = vperm.slane %v4529, 0
        %v4644 = vperm.slane %v2555, 0
        %v4645 = vperm.slane %v4530, 0
        %v4646 = vperm.slane %v4531, 0
        %v4647 = vperm.slane %v4532, 0
        %v4648 = vperm.slane %v4533, 0
        %v4649 = vperm.slane %v4534, 0
        %v4650 = vperm.slane %v4535, 0
        %v4651 = vperm.slane %v4536, 0
        %v4652 = vperm.slane %v2558, 0
        %v4653 = vperm.slane %v4537, 0
        %v4654 = vperm.slane %v4538, 0
        %v4655 = vperm.slane %v4539, 0
        %v4656 = vperm.slane %v4540, 0
        %v4657 = vperm.slane %v4541, 0
        %v4658 = vperm.slane %v4542, 0
        %v4659 = vperm.slane %v4543, 0
        %v4660 = vperm.slane %v2561, 0
        %v4661 = vperm.slane %v4544, 0
        %v4662 = vperm.slane %v4545, 0
        %v4663 = vperm.slane %v4546, 0
        %v4664 = vperm.slane %v4547, 0
        %v4665 = vperm.slane %v4548, 0
        %v4666 = vperm.slane %v4549, 0
        %v4667 = vperm.slane %v4550, 0
        %v4668 = vperm.slane %v2564, 0
        %v4669 = vperm.slane %v4551, 0
        %v4670 = vperm.slane %v4552, 0
        %v4671 = vperm.slane %v4553, 0
        %v4672 = vperm.slane %v4554, 0
        %v4673 = vperm.slane %v4555, 0
        %v4674 = vperm.slane %v4556, 0
        %v4675 = vperm.slane %v4557, 0
        %v4676 = vperm.slane %v2567, 0
        %v4677 = vperm.slane %v4558, 0
        %v4678 = vperm.slane %v4559, 0
        %v4679 = vperm.slane %v4560, 0
        %v4680 = vperm.slane %v4561, 0
        %v4681 = vperm.slane %v4562, 0
        %v4682 = vperm.slane %v4563, 0
        %v4683 = vperm.slane %v4564, 0
        %v4684 = vperm.slane %v2570, 0
        %v4685 = vperm.slane %v4565, 0
        %v4686 = vperm.slane %v4566, 0
        %v4687 = vperm.slane %v4567, 0
        %v4688 = vperm.slane %v4568, 0
        %v4689 = vperm.slane %v4569, 0
        %v4690 = vperm.slane %v4570, 0
        %v4691 = vperm.slane %v4571, 0
        %v4692 = vperm.slane %v2573, 0
        %v4693 = vperm.slane %v4572, 0
        %v4694 = vperm.slane %v4573, 0
        %v4695 = vperm.slane %v4574, 0
        %v4696 = vperm.slane %v4575, 0
        %v4697 = vperm.slane %v4576, 0
        %v4698 = vperm.slane %v4577, 0
        %v4699 = vperm.slane %v4578, 0
        %v4700 = vperm.slane %v2576, 0
        %v4701 = vperm.slane %v4579, 0
        %v4702 = vperm.slane %v4580, 0
        %v4703 = vperm.slane %v4581, 0
        %v4704 = vperm.slane %v4582, 0
        %v4705 = vperm.slane %v4583, 0
        %v4706 = vperm.slane %v4584, 0
        %v4707 = vperm.slane %v4585, 0
        %v4708 = vperm.slane %v2579, 0
        %v4709 = vperm.slane %v4586, 0
        %v4710 = vperm.slane %v4587, 0
        %v4711 = vperm.slane %v4588, 0
        %v4712 = vperm.slane %v4589, 0
        %v4713 = vperm.slane %v4590, 0
        %v4714 = vperm.slane %v4591, 0
        %v4715 = vperm.slane %v4592, 0
        %v4716 = vperm.slane %v2582, 0
        %v4717 = vperm.slane %v4593, 0
        %v4718 = vperm.slane %v4594, 0
        %v4719 = vperm.slane %v4595, 0
        %v4720 = vperm.slane %v4596, 0
        %v4721 = vperm.slane %v4597, 0
        %v4722 = vperm.slane %v4598, 0
        %v4723 = vperm.slane %v4599, 0
        %v4724 = vperm.slane %v2585, 0
        %v4725 = vperm.slane %v4600, 0
        %v4726 = vperm.slane %v4601, 0
        %v4727 = vperm.slane %v4602, 0
        %v4728 = vperm.slane %v4603, 0
        %v4729 = vperm.slane %v4604, 0
        %v4730 = vperm.slane %v4605, 0
        %v4731 = vperm.slane %v4606, 0
        %v4732 = vperm.slane %v2588, 0
        %v4733 = vperm.slane %v4607, 0
        %v4734 = vperm.slane %v4608, 0
        %v4735 = vperm.slane %v4609, 0
        %v4736 = vperm.slane %v4610, 0
        %v4737 = vperm.slane %v4611, 0
        %v4738 = vperm.slane %v4612, 0
        %v4739 = vperm.slane %v4613, 0
        %v4740 = vperm.slane %v2591, 0
        %v4741 = vperm.slane %v4614, 0
        %v4742 = vperm.slane %v4615, 0
        %v4743 = vperm.slane %v4616, 0
        %v4744 = vperm.slane %v4617, 0
        %v4745 = vperm.slane %v4618, 0
        %v4746 = vperm.slane %v4619, 0
        %v4747 = vperm.slane %v4620, 0
        %v4748 = vperm.slane %v2594, 0
        %v4749 = vperm.slane %v4621, 0
        %v4750 = vperm.slane %v4622, 0
        %v4751 = vperm.slane %v4623, 0
        %v4752 = vperm.slane %v4624, 0
        %v4753 = vperm.slane %v4625, 0
        %v4754 = vperm.slane %v4626, 0
        %v4755 = vperm.slane %v4627, 0
        %v4884 = vmul.f32 %v3989, %v4628
        %v4885 = vmul.f32 %v3991, %v4628
        %v4886 = vmul.f32 %v3993, %v4629
        %v4887 = vmul.f32 %v3995, %v4629
        %v4888 = vmul.f32 %v3997, %v4630
        %v4889 = vmul.f32 %v3999, %v4630
        %v4890 = vmul.f32 %v4001, %v4631
        %v4891 = vmul.f32 %v4003, %v4631
        %v4892 = vmul.f32 %v4005, %v4632
        %v4893 = vmul.f32 %v4007, %v4632
        %v4894 = vmul.f32 %v4009, %v4633
        %v4895 = vmul.f32 %v4011, %v4633
        %v4896 = vmul.f32 %v4013, %v4634
        %v4897 = vmul.f32 %v4015, %v4634
        %v4898 = vmul.f32 %v4017, %v4635
        %v4899 = vmul.f32 %v4019, %v4635
        %v4900 = vmul.f32 %v4021, %v4636
        %v4901 = vmul.f32 %v4023, %v4636
        %v4902 = vmul.f32 %v4025, %v4637
        %v4903 = vmul.f32 %v4027, %v4637
        %v4904 = vmul.f32 %v4029, %v4638
        %v4905 = vmul.f32 %v4031, %v4638
        %v4906 = vmul.f32 %v4033, %v4639
        %v4907 = vmul.f32 %v4035, %v4639
        %v4908 = vmul.f32 %v4037, %v4640
        %v4909 = vmul.f32 %v4039, %v4640
        %v4910 = vmul.f32 %v4041, %v4641
        %v4911 = vmul.f32 %v4043, %v4641
        %v4912 = vmul.f32 %v4045, %v4642
        %v4913 = vmul.f32 %v4047, %v4642
        %v4914 = vmul.f32 %v4049, %v4643
        %v4915 = vmul.f32 %v4051, %v4643
        %v4916 = vmul.f32 %v4053, %v4644
        %v4917 = vmul.f32 %v4055, %v4644
        %v4918 = vmul.f32 %v4057, %v4645
        %v4919 = vmul.f32 %v4059, %v4645
        %v4920 = vmul.f32 %v4061, %v4646
        %v4921 = vmul.f32 %v4063, %v4646
        %v4922 = vmul.f32 %v4065, %v4647
        %v4923 = vmul.f32 %v4067, %v4647
        %v4924 = vmul.f32 %v4069, %v4648
        %v4925 = vmul.f32 %v4071, %v4648
        %v4926 = vmul.f32 %v4073, %v4649
        %v4927 = vmul.f32 %v4075, %v4649
        %v4928 = vmul.f32 %v4077, %v4650
        %v4929 = vmul.f32 %v4079, %v4650
        %v4930 = vmul.f32 %v4081, %v4651
        %v4931 = vmul.f32 %v4083, %v4651
        %v4932 = vmul.f32 %v4085, %v4652
        %v4933 = vmul.f32 %v4087, %v4652
        %v4934 = vmul.f32 %v4089, %v4653
        %v4935 = vmul.f32 %v4091, %v4653
        %v4936 = vmul.f32 %v4093, %v4654
        %v4937 = vmul.f32 %v4095, %v4654
        %v4938 = vmul.f32 %v4097, %v4655
        %v4939 = vmul.f32 %v4099, %v4655
        %v4940 = vmul.f32 %v4101, %v4656
        %v4941 = vmul.f32 %v4103, %v4656
        %v4942 = vmul.f32 %v4105, %v4657
        %v4943 = vmul.f32 %v4107, %v4657
        %v4944 = vmul.f32 %v4109, %v4658
        %v4945 = vmul.f32 %v4111, %v4658
        %v4946 = vmul.f32 %v4113, %v4659
        %v4947 = vmul.f32 %v4115, %v4659
        %v4948 = vmul.f32 %v4117, %v4660
        %v4949 = vmul.f32 %v4119, %v4660
        %v4950 = vmul.f32 %v4121, %v4661
        %v4951 = vmul.f32 %v4123, %v4661
        %v4952 = vmul.f32 %v4125, %v4662
        %v4953 = vmul.f32 %v4127, %v4662
        %v4954 = vmul.f32 %v4129, %v4663
        %v4955 = vmul.f32 %v4131, %v4663
        %v4956 = vmul.f32 %v4133, %v4664
        %v4957 = vmul.f32 %v4135, %v4664
        %v4958 = vmul.f32 %v4137, %v4665
        %v4959 = vmul.f32 %v4139, %v4665
        %v4960 = vmul.f32 %v4141, %v4666
        %v4961 = vmul.f32 %v4143, %v4666
        %v4962 = vmul.f32 %v4145, %v4667
        %v4963 = vmul.f32 %v4147, %v4667
        %v4964 = vmul.f32 %v4149, %v4668
        %v4965 = vmul.f32 %v4151, %v4668
        %v4966 = vmul.f32 %v4153, %v4669
        %v4967 = vmul.f32 %v4155, %v4669
        %v4968 = vmul.f32 %v4157, %v4670
        %v4969 = vmul.f32 %v4159, %v4670
        %v4970 = vmul.f32 %v4161, %v4671
        %v4971 = vmul.f32 %v4163, %v4671
        %v4972 = vmul.f32 %v4165, %v4672
        %v4973 = vmul.f32 %v4167, %v4672
        %v4974 = vmul.f32 %v4169, %v4673
        %v4975 = vmul.f32 %v4171, %v4673
        %v4976 = vmul.f32 %v4173, %v4674
        %v4977 = vmul.f32 %v4175, %v4674
        %v4978 = vmul.f32 %v4177, %v4675
        %v4979 = vmul.f32 %v4179, %v4675
        %v4980 = vmul.f32 %v4181, %v4676
        %v4981 = vmul.f32 %v4183, %v4676
        %v4982 = vmul.f32 %v4185, %v4677
        %v4983 = vmul.f32 %v4187, %v4677
        %v4984 = vmul.f32 %v4189, %v4678
        %v4985 = vmul.f32 %v4191, %v4678
        %v4986 = vmul.f32 %v4193, %v4679
        %v4987 = vmul.f32 %v4195, %v4679
        %v4988 = vmul.f32 %v4197, %v4680
        %v4989 = vmul.f32 %v4199, %v4680
        %v4990 = vmul.f32 %v4201, %v4681
        %v4991 = vmul.f32 %v4203, %v4681
        %v4992 = vmul.f32 %v4205, %v4682
        %v4993 = vmul.f32 %v4207, %v4682
        %v4994 = vmul.f32 %v4209, %v4683
        %v4995 = vmul.f32 %v4211, %v4683
        %v4996 = vmul.f32 %v4213, %v4684
        %v4997 = vmul.f32 %v4215, %v4684
        %v4998 = vmul.f32 %v4217, %v4685
        %v4999 = vmul.f32 %v4219, %v4685
        %v5000 = vmul.f32 %v4221, %v4686
        %v5001 = vmul.f32 %v4223, %v4686
        %v5002 = vmul.f32 %v4225, %v4687
        %v5003 = vmul.f32 %v4227, %v4687
        %v5004 = vmul.f32 %v4229, %v4688
        %v5005 = vmul.f32 %v4231, %v4688
        %v5006 = vmul.f32 %v4233, %v4689
        %v5007 = vmul.f32 %v4235, %v4689
        %v5008 = vmul.f32 %v4237, %v4690
        %v5009 = vmul.f32 %v4239, %v4690
        %v5010 = vmul.f32 %v4241, %v4691
        %v5011 = vmul.f32 %v4243, %v4691
        %v5012 = vmul.f32 %v4245, %v4692
        %v5013 = vmul.f32 %v4247, %v4692
        %v5014 = vmul.f32 %v4249, %v4693
        %v5015 = vmul.f32 %v4251, %v4693
        %v5016 = vmul.f32 %v4253, %v4694
        %v5017 = vmul.f32 %v4255, %v4694
        %v5018 = vmul.f32 %v4257, %v4695
        %v5019 = vmul.f32 %v4259, %v4695
        %v5020 = vmul.f32 %v4261, %v4696
        %v5021 = vmul.f32 %v4263, %v4696
        %v5022 = vmul.f32 %v4265, %v4697
        %v5023 = vmul.f32 %v4267, %v4697
        %v5024 = vmul.f32 %v4269, %v4698
        %v5025 = vmul.f32 %v4271, %v4698
        %v5026 = vmul.f32 %v4273, %v4699
        %v5027 = vmul.f32 %v4275, %v4699
        %v5028 = vmul.f32 %v4277, %v4700
        %v5029 = vmul.f32 %v4279, %v4700
        %v5030 = vmul.f32 %v4281, %v4701
        %v5031 = vmul.f32 %v4283, %v4701
        %v5032 = vmul.f32 %v4285, %v4702
        %v5033 = vmul.f32 %v4287, %v4702
        %v5034 = vmul.f32 %v4289, %v4703
        %v5035 = vmul.f32 %v4291, %v4703
        %v5036 = vmul.f32 %v4293, %v4704
        %v5037 = vmul.f32 %v4295, %v4704
        %v5038 = vmul.f32 %v4297, %v4705
        %v5039 = vmul.f32 %v4299, %v4705
        %v5040 = vmul.f32 %v4301, %v4706
        %v5041 = vmul.f32 %v4303, %v4706
        %v5042 = vmul.f32 %v4305, %v4707
        %v5043 = vmul.f32 %v4307, %v4707
        %v5044 = vmul.f32 %v4309, %v4708
        %v5045 = vmul.f32 %v4311, %v4708
        %v5046 = vmul.f32 %v4313, %v4709
        %v5047 = vmul.f32 %v4315, %v4709
        %v5048 = vmul.f32 %v4317, %v4710
        %v5049 = vmul.f32 %v4319, %v4710
        %v5050 = vmul.f32 %v4321, %v4711
        %v5051 = vmul.f32 %v4323, %v4711
        %v5052 = vmul.f32 %v4325, %v4712
        %v5053 = vmul.f32 %v4327, %v4712
        %v5054 = vmul.f32 %v4329, %v4713
        %v5055 = vmul.f32 %v4331, %v4713
        %v5056 = vmul.f32 %v4333, %v4714
        %v5057 = vmul.f32 %v4335, %v4714
        %v5058 = vmul.f32 %v4337, %v4715
        %v5059 = vmul.f32 %v4339, %v4715
        %v5060 = vmul.f32 %v4341, %v4716
        %v5061 = vmul.f32 %v4343, %v4716
        %v5062 = vmul.f32 %v4345, %v4717
        %v5063 = vmul.f32 %v4347, %v4717
        %v5064 = vmul.f32 %v4349, %v4718
        %v5065 = vmul.f32 %v4351, %v4718
        %v5066 = vmul.f32 %v4353, %v4719
        %v5067 = vmul.f32 %v4355, %v4719
        %v5068 = vmul.f32 %v4357, %v4720
        %v5069 = vmul.f32 %v4359, %v4720
        %v5070 = vmul.f32 %v4361, %v4721
        %v5071 = vmul.f32 %v4363, %v4721
        %v5072 = vmul.f32 %v4365, %v4722
        %v5073 = vmul.f32 %v4367, %v4722
        %v5074 = vmul.f32 %v4369, %v4723
        %v5075 = vmul.f32 %v4371, %v4723
        %v5076 = vmul.f32 %v4373, %v4724
        %v5077 = vmul.f32 %v4375, %v4724
        %v5078 = vmul.f32 %v4377, %v4725
        %v5079 = vmul.f32 %v4379, %v4725
        %v5080 = vmul.f32 %v4381, %v4726
        %v5081 = vmul.f32 %v4383, %v4726
        %v5082 = vmul.f32 %v4385, %v4727
        %v5083 = vmul.f32 %v4387, %v4727
        %v5084 = vmul.f32 %v4389, %v4728
        %v5085 = vmul.f32 %v4391, %v4728
        %v5086 = vmul.f32 %v4393, %v4729
        %v5087 = vmul.f32 %v4395, %v4729
        %v5088 = vmul.f32 %v4397, %v4730
        %v5089 = vmul.f32 %v4399, %v4730
        %v5090 = vmul.f32 %v4401, %v4731
        %v5091 = vmul.f32 %v4403, %v4731
        %v5092 = vmul.f32 %v4405, %v4732
        %v5093 = vmul.f32 %v4407, %v4732
        %v5094 = vmul.f32 %v4409, %v4733
        %v5095 = vmul.f32 %v4411, %v4733
        %v5096 = vmul.f32 %v4413, %v4734
        %v5097 = vmul.f32 %v4415, %v4734
        %v5098 = vmul.f32 %v4417, %v4735
        %v5099 = vmul.f32 %v4419, %v4735
        %v5100 = vmul.f32 %v4421, %v4736
        %v5101 = vmul.f32 %v4423, %v4736
        %v5102 = vmul.f32 %v4425, %v4737
        %v5103 = vmul.f32 %v4427, %v4737
        %v5104 = vmul.f32 %v4429, %v4738
        %v5105 = vmul.f32 %v4431, %v4738
        %v5106 = vmul.f32 %v4433, %v4739
        %v5107 = vmul.f32 %v4435, %v4739
        %v5108 = vmul.f32 %v4437, %v4740
        %v5109 = vmul.f32 %v4439, %v4740
        %v5110 = vmul.f32 %v4441, %v4741
        %v5111 = vmul.f32 %v4443, %v4741
        %v5112 = vmul.f32 %v4445, %v4742
        %v5113 = vmul.f32 %v4447, %v4742
        %v5114 = vmul.f32 %v4449, %v4743
        %v5115 = vmul.f32 %v4451, %v4743
        %v5116 = vmul.f32 %v4453, %v4744
        %v5117 = vmul.f32 %v4455, %v4744
        %v5118 = vmul.f32 %v4457, %v4745
        %v5119 = vmul.f32 %v4459, %v4745
        %v5120 = vmul.f32 %v4461, %v4746
        %v5121 = vmul.f32 %v4463, %v4746
        %v5122 = vmul.f32 %v4465, %v4747
        %v5123 = vmul.f32 %v4467, %v4747
        %v5124 = vmul.f32 %v4469, %v4748
        %v5125 = vmul.f32 %v4471, %v4748
        %v5126 = vmul.f32 %v4473, %v4749
        %v5127 = vmul.f32 %v4475, %v4749
        %v5128 = vmul.f32 %v4477, %v4750
        %v5129 = vmul.f32 %v4479, %v4750
        %v5130 = vmul.f32 %v4481, %v4751
        %v5131 = vmul.f32 %v4483, %v4751
        %v5132 = vmul.f32 %v4485, %v4752
        %v5133 = vmul.f32 %v4487, %v4752
        %v5134 = vmul.f32 %v4489, %v4753
        %v5135 = vmul.f32 %v4491, %v4753
        %v5136 = vmul.f32 %v4493, %v4754
        %v5137 = vmul.f32 %v4495, %v4754
        %v5138 = vmul.f32 %v4497, %v4755
        %v5139 = vmul.f32 %v4499, %v4755
        %v5140 = vsel %vm2352, %v4884, 0.0
        %v5141 = vsel %vm2352, %v4886, 0.0
        %v5142 = vadd.f32 %v5140, %v5141
        %v5143 = vsel %vm2352, %v4888, 0.0
        %v5144 = vadd.f32 %v5142, %v5143
        %v5145 = vsel %vm2352, %v4890, 0.0
        %v5146 = vadd.f32 %v5144, %v5145
        %v5147 = vsel %vm2352, %v4892, 0.0
        %v5148 = vadd.f32 %v5146, %v5147
        %v5149 = vsel %vm2352, %v4894, 0.0
        %v5150 = vadd.f32 %v5148, %v5149
        %v5151 = vsel %vm2352, %v4896, 0.0
        %v5152 = vadd.f32 %v5150, %v5151
        %v5153 = vsel %vm2352, %v4898, 0.0
        %v5154 = vadd.f32 %v5152, %v5153
        %v5155 = vsel %vm2352, %v4900, 0.0
        %v5156 = vadd.f32 %v5154, %v5155
        %v5157 = vsel %vm2352, %v4902, 0.0
        %v5158 = vadd.f32 %v5156, %v5157
        %v5159 = vsel %vm2352, %v4904, 0.0
        %v5160 = vadd.f32 %v5158, %v5159
        %v5161 = vsel %vm2352, %v4906, 0.0
        %v5162 = vadd.f32 %v5160, %v5161
        %v5163 = vsel %vm2352, %v4908, 0.0
        %v5164 = vadd.f32 %v5162, %v5163
        %v5165 = vsel %vm2352, %v4910, 0.0
        %v5166 = vadd.f32 %v5164, %v5165
        %v5167 = vsel %vm2352, %v4912, 0.0
        %v5168 = vadd.f32 %v5166, %v5167
        %v5169 = vsel %vm2352, %v4914, 0.0
        %v5170 = vadd.f32 %v5168, %v5169
        %v5171 = vsel %vm2352, %v4885, 0.0
        %v5172 = vsel %vm2352, %v4887, 0.0
        %v5173 = vadd.f32 %v5171, %v5172
        %v5174 = vsel %vm2352, %v4889, 0.0
        %v5175 = vadd.f32 %v5173, %v5174
        %v5176 = vsel %vm2352, %v4891, 0.0
        %v5177 = vadd.f32 %v5175, %v5176
        %v5178 = vsel %vm2352, %v4893, 0.0
        %v5179 = vadd.f32 %v5177, %v5178
        %v5180 = vsel %vm2352, %v4895, 0.0
        %v5181 = vadd.f32 %v5179, %v5180
        %v5182 = vsel %vm2352, %v4897, 0.0
        %v5183 = vadd.f32 %v5181, %v5182
        %v5184 = vsel %vm2352, %v4899, 0.0
        %v5185 = vadd.f32 %v5183, %v5184
        %v5186 = vsel %vm2352, %v4901, 0.0
        %v5187 = vadd.f32 %v5185, %v5186
        %v5188 = vsel %vm2352, %v4903, 0.0
        %v5189 = vadd.f32 %v5187, %v5188
        %v5190 = vsel %vm2352, %v4905, 0.0
        %v5191 = vadd.f32 %v5189, %v5190
        %v5192 = vsel %vm2352, %v4907, 0.0
        %v5193 = vadd.f32 %v5191, %v5192
        %v5194 = vsel %vm2352, %v4909, 0.0
        %v5195 = vadd.f32 %v5193, %v5194
        %v5196 = vsel %vm2352, %v4911, 0.0
        %v5197 = vadd.f32 %v5195, %v5196
        %v5198 = vsel %vm2352, %v4913, 0.0
        %v5199 = vadd.f32 %v5197, %v5198
        %v5200 = vsel %vm2352, %v4915, 0.0
        %v5201 = vadd.f32 %v5199, %v5200
        %v5202 = vsel %vm2352, %v4916, 0.0
        %v5203 = vsel %vm2352, %v4918, 0.0
        %v5204 = vadd.f32 %v5202, %v5203
        %v5205 = vsel %vm2352, %v4920, 0.0
        %v5206 = vadd.f32 %v5204, %v5205
        %v5207 = vsel %vm2352, %v4922, 0.0
        %v5208 = vadd.f32 %v5206, %v5207
        %v5209 = vsel %vm2352, %v4924, 0.0
        %v5210 = vadd.f32 %v5208, %v5209
        %v5211 = vsel %vm2352, %v4926, 0.0
        %v5212 = vadd.f32 %v5210, %v5211
        %v5213 = vsel %vm2352, %v4928, 0.0
        %v5214 = vadd.f32 %v5212, %v5213
        %v5215 = vsel %vm2352, %v4930, 0.0
        %v5216 = vadd.f32 %v5214, %v5215
        %v5217 = vsel %vm2352, %v4932, 0.0
        %v5218 = vadd.f32 %v5216, %v5217
        %v5219 = vsel %vm2352, %v4934, 0.0
        %v5220 = vadd.f32 %v5218, %v5219
        %v5221 = vsel %vm2352, %v4936, 0.0
        %v5222 = vadd.f32 %v5220, %v5221
        %v5223 = vsel %vm2352, %v4938, 0.0
        %v5224 = vadd.f32 %v5222, %v5223
        %v5225 = vsel %vm2352, %v4940, 0.0
        %v5226 = vadd.f32 %v5224, %v5225
        %v5227 = vsel %vm2352, %v4942, 0.0
        %v5228 = vadd.f32 %v5226, %v5227
        %v5229 = vsel %vm2352, %v4944, 0.0
        %v5230 = vadd.f32 %v5228, %v5229
        %v5231 = vsel %vm2352, %v4946, 0.0
        %v5232 = vadd.f32 %v5230, %v5231
        %v5233 = vsel %vm2352, %v4917, 0.0
        %v5234 = vsel %vm2352, %v4919, 0.0
        %v5235 = vadd.f32 %v5233, %v5234
        %v5236 = vsel %vm2352, %v4921, 0.0
        %v5237 = vadd.f32 %v5235, %v5236
        %v5238 = vsel %vm2352, %v4923, 0.0
        %v5239 = vadd.f32 %v5237, %v5238
        %v5240 = vsel %vm2352, %v4925, 0.0
        %v5241 = vadd.f32 %v5239, %v5240
        %v5242 = vsel %vm2352, %v4927, 0.0
        %v5243 = vadd.f32 %v5241, %v5242
        %v5244 = vsel %vm2352, %v4929, 0.0
        %v5245 = vadd.f32 %v5243, %v5244
        %v5246 = vsel %vm2352, %v4931, 0.0
        %v5247 = vadd.f32 %v5245, %v5246
        %v5248 = vsel %vm2352, %v4933, 0.0
        %v5249 = vadd.f32 %v5247, %v5248
        %v5250 = vsel %vm2352, %v4935, 0.0
        %v5251 = vadd.f32 %v5249, %v5250
        %v5252 = vsel %vm2352, %v4937, 0.0
        %v5253 = vadd.f32 %v5251, %v5252
        %v5254 = vsel %vm2352, %v4939, 0.0
        %v5255 = vadd.f32 %v5253, %v5254
        %v5256 = vsel %vm2352, %v4941, 0.0
        %v5257 = vadd.f32 %v5255, %v5256
        %v5258 = vsel %vm2352, %v4943, 0.0
        %v5259 = vadd.f32 %v5257, %v5258
        %v5260 = vsel %vm2352, %v4945, 0.0
        %v5261 = vadd.f32 %v5259, %v5260
        %v5262 = vsel %vm2352, %v4947, 0.0
        %v5263 = vadd.f32 %v5261, %v5262
        %v5264 = vsel %vm2352, %v4948, 0.0
        %v5265 = vsel %vm2352, %v4950, 0.0
        %v5266 = vadd.f32 %v5264, %v5265
        %v5267 = vsel %vm2352, %v4952, 0.0
        %v5268 = vadd.f32 %v5266, %v5267
        %v5269 = vsel %vm2352, %v4954, 0.0
        %v5270 = vadd.f32 %v5268, %v5269
        %v5271 = vsel %vm2352, %v4956, 0.0
        %v5272 = vadd.f32 %v5270, %v5271
        %v5273 = vsel %vm2352, %v4958, 0.0
        %v5274 = vadd.f32 %v5272, %v5273
        %v5275 = vsel %vm2352, %v4960, 0.0
        %v5276 = vadd.f32 %v5274, %v5275
        %v5277 = vsel %vm2352, %v4962, 0.0
        %v5278 = vadd.f32 %v5276, %v5277
        %v5279 = vsel %vm2352, %v4964, 0.0
        %v5280 = vadd.f32 %v5278, %v5279
        %v5281 = vsel %vm2352, %v4966, 0.0
        %v5282 = vadd.f32 %v5280, %v5281
        %v5283 = vsel %vm2352, %v4968, 0.0
        %v5284 = vadd.f32 %v5282, %v5283
        %v5285 = vsel %vm2352, %v4970, 0.0
        %v5286 = vadd.f32 %v5284, %v5285
        %v5287 = vsel %vm2352, %v4972, 0.0
        %v5288 = vadd.f32 %v5286, %v5287
        %v5289 = vsel %vm2352, %v4974, 0.0
        %v5290 = vadd.f32 %v5288, %v5289
        %v5291 = vsel %vm2352, %v4976, 0.0
        %v5292 = vadd.f32 %v5290, %v5291
        %v5293 = vsel %vm2352, %v4978, 0.0
        %v5294 = vadd.f32 %v5292, %v5293
        %v5295 = vsel %vm2352, %v4949, 0.0
        %v5296 = vsel %vm2352, %v4951, 0.0
        %v5297 = vadd.f32 %v5295, %v5296
        %v5298 = vsel %vm2352, %v4953, 0.0
        %v5299 = vadd.f32 %v5297, %v5298
        %v5300 = vsel %vm2352, %v4955, 0.0
        %v5301 = vadd.f32 %v5299, %v5300
        %v5302 = vsel %vm2352, %v4957, 0.0
        %v5303 = vadd.f32 %v5301, %v5302
        %v5304 = vsel %vm2352, %v4959, 0.0
        %v5305 = vadd.f32 %v5303, %v5304
        %v5306 = vsel %vm2352, %v4961, 0.0
        %v5307 = vadd.f32 %v5305, %v5306
        %v5308 = vsel %vm2352, %v4963, 0.0
        %v5309 = vadd.f32 %v5307, %v5308
        %v5310 = vsel %vm2352, %v4965, 0.0
        %v5311 = vadd.f32 %v5309, %v5310
        %v5312 = vsel %vm2352, %v4967, 0.0
        %v5313 = vadd.f32 %v5311, %v5312
        %v5314 = vsel %vm2352, %v4969, 0.0
        %v5315 = vadd.f32 %v5313, %v5314
        %v5316 = vsel %vm2352, %v4971, 0.0
        %v5317 = vadd.f32 %v5315, %v5316
        %v5318 = vsel %vm2352, %v4973, 0.0
        %v5319 = vadd.f32 %v5317, %v5318
        %v5320 = vsel %vm2352, %v4975, 0.0
        %v5321 = vadd.f32 %v5319, %v5320
        %v5322 = vsel %vm2352, %v4977, 0.0
        %v5323 = vadd.f32 %v5321, %v5322
        %v5324 = vsel %vm2352, %v4979, 0.0
        %v5325 = vadd.f32 %v5323, %v5324
        %v5326 = vsel %vm2352, %v4980, 0.0
        %v5327 = vsel %vm2352, %v4982, 0.0
        %v5328 = vadd.f32 %v5326, %v5327
        %v5329 = vsel %vm2352, %v4984, 0.0
        %v5330 = vadd.f32 %v5328, %v5329
        %v5331 = vsel %vm2352, %v4986, 0.0
        %v5332 = vadd.f32 %v5330, %v5331
        %v5333 = vsel %vm2352, %v4988, 0.0
        %v5334 = vadd.f32 %v5332, %v5333
        %v5335 = vsel %vm2352, %v4990, 0.0
        %v5336 = vadd.f32 %v5334, %v5335
        %v5337 = vsel %vm2352, %v4992, 0.0
        %v5338 = vadd.f32 %v5336, %v5337
        %v5339 = vsel %vm2352, %v4994, 0.0
        %v5340 = vadd.f32 %v5338, %v5339
        %v5341 = vsel %vm2352, %v4996, 0.0
        %v5342 = vadd.f32 %v5340, %v5341
        %v5343 = vsel %vm2352, %v4998, 0.0
        %v5344 = vadd.f32 %v5342, %v5343
        %v5345 = vsel %vm2352, %v5000, 0.0
        %v5346 = vadd.f32 %v5344, %v5345
        %v5347 = vsel %vm2352, %v5002, 0.0
        %v5348 = vadd.f32 %v5346, %v5347
        %v5349 = vsel %vm2352, %v5004, 0.0
        %v5350 = vadd.f32 %v5348, %v5349
        %v5351 = vsel %vm2352, %v5006, 0.0
        %v5352 = vadd.f32 %v5350, %v5351
        %v5353 = vsel %vm2352, %v5008, 0.0
        %v5354 = vadd.f32 %v5352, %v5353
        %v5355 = vsel %vm2352, %v5010, 0.0
        %v5356 = vadd.f32 %v5354, %v5355
        %v5357 = vsel %vm2352, %v4981, 0.0
        %v5358 = vsel %vm2352, %v4983, 0.0
        %v5359 = vadd.f32 %v5357, %v5358
        %v5360 = vsel %vm2352, %v4985, 0.0
        %v5361 = vadd.f32 %v5359, %v5360
        %v5362 = vsel %vm2352, %v4987, 0.0
        %v5363 = vadd.f32 %v5361, %v5362
        %v5364 = vsel %vm2352, %v4989, 0.0
        %v5365 = vadd.f32 %v5363, %v5364
        %v5366 = vsel %vm2352, %v4991, 0.0
        %v5367 = vadd.f32 %v5365, %v5366
        %v5368 = vsel %vm2352, %v4993, 0.0
        %v5369 = vadd.f32 %v5367, %v5368
        %v5370 = vsel %vm2352, %v4995, 0.0
        %v5371 = vadd.f32 %v5369, %v5370
        %v5372 = vsel %vm2352, %v4997, 0.0
        %v5373 = vadd.f32 %v5371, %v5372
        %v5374 = vsel %vm2352, %v4999, 0.0
        %v5375 = vadd.f32 %v5373, %v5374
        %v5376 = vsel %vm2352, %v5001, 0.0
        %v5377 = vadd.f32 %v5375, %v5376
        %v5378 = vsel %vm2352, %v5003, 0.0
        %v5379 = vadd.f32 %v5377, %v5378
        %v5380 = vsel %vm2352, %v5005, 0.0
        %v5381 = vadd.f32 %v5379, %v5380
        %v5382 = vsel %vm2352, %v5007, 0.0
        %v5383 = vadd.f32 %v5381, %v5382
        %v5384 = vsel %vm2352, %v5009, 0.0
        %v5385 = vadd.f32 %v5383, %v5384
        %v5386 = vsel %vm2352, %v5011, 0.0
        %v5387 = vadd.f32 %v5385, %v5386
        %v5388 = vsel %vm2352, %v5012, 0.0
        %v5389 = vsel %vm2352, %v5014, 0.0
        %v5390 = vadd.f32 %v5388, %v5389
        %v5391 = vsel %vm2352, %v5016, 0.0
        %v5392 = vadd.f32 %v5390, %v5391
        %v5393 = vsel %vm2352, %v5018, 0.0
        %v5394 = vadd.f32 %v5392, %v5393
        %v5395 = vsel %vm2352, %v5020, 0.0
        %v5396 = vadd.f32 %v5394, %v5395
        %v5397 = vsel %vm2352, %v5022, 0.0
        %v5398 = vadd.f32 %v5396, %v5397
        %v5399 = vsel %vm2352, %v5024, 0.0
        %v5400 = vadd.f32 %v5398, %v5399
        %v5401 = vsel %vm2352, %v5026, 0.0
        %v5402 = vadd.f32 %v5400, %v5401
        %v5403 = vsel %vm2352, %v5028, 0.0
        %v5404 = vadd.f32 %v5402, %v5403
        %v5405 = vsel %vm2352, %v5030, 0.0
        %v5406 = vadd.f32 %v5404, %v5405
        %v5407 = vsel %vm2352, %v5032, 0.0
        %v5408 = vadd.f32 %v5406, %v5407
        %v5409 = vsel %vm2352, %v5034, 0.0
        %v5410 = vadd.f32 %v5408, %v5409
        %v5411 = vsel %vm2352, %v5036, 0.0
        %v5412 = vadd.f32 %v5410, %v5411
        %v5413 = vsel %vm2352, %v5038, 0.0
        %v5414 = vadd.f32 %v5412, %v5413
        %v5415 = vsel %vm2352, %v5040, 0.0
        %v5416 = vadd.f32 %v5414, %v5415
        %v5417 = vsel %vm2352, %v5042, 0.0
        %v5418 = vadd.f32 %v5416, %v5417
        %v5419 = vsel %vm2352, %v5013, 0.0
        %v5420 = vsel %vm2352, %v5015, 0.0
        %v5421 = vadd.f32 %v5419, %v5420
        %v5422 = vsel %vm2352, %v5017, 0.0
        %v5423 = vadd.f32 %v5421, %v5422
        %v5424 = vsel %vm2352, %v5019, 0.0
        %v5425 = vadd.f32 %v5423, %v5424
        %v5426 = vsel %vm2352, %v5021, 0.0
        %v5427 = vadd.f32 %v5425, %v5426
        %v5428 = vsel %vm2352, %v5023, 0.0
        %v5429 = vadd.f32 %v5427, %v5428
        %v5430 = vsel %vm2352, %v5025, 0.0
        %v5431 = vadd.f32 %v5429, %v5430
        %v5432 = vsel %vm2352, %v5027, 0.0
        %v5433 = vadd.f32 %v5431, %v5432
        %v5434 = vsel %vm2352, %v5029, 0.0
        %v5435 = vadd.f32 %v5433, %v5434
        %v5436 = vsel %vm2352, %v5031, 0.0
        %v5437 = vadd.f32 %v5435, %v5436
        %v5438 = vsel %vm2352, %v5033, 0.0
        %v5439 = vadd.f32 %v5437, %v5438
        %v5440 = vsel %vm2352, %v5035, 0.0
        %v5441 = vadd.f32 %v5439, %v5440
        %v5442 = vsel %vm2352, %v5037, 0.0
        %v5443 = vadd.f32 %v5441, %v5442
        %v5444 = vsel %vm2352, %v5039, 0.0
        %v5445 = vadd.f32 %v5443, %v5444
        %v5446 = vsel %vm2352, %v5041, 0.0
        %v5447 = vadd.f32 %v5445, %v5446
        %v5448 = vsel %vm2352, %v5043, 0.0
        %v5449 = vadd.f32 %v5447, %v5448
        %v5450 = vsel %vm2352, %v5044, 0.0
        %v5451 = vsel %vm2352, %v5046, 0.0
        %v5452 = vadd.f32 %v5450, %v5451
        %v5453 = vsel %vm2352, %v5048, 0.0
        %v5454 = vadd.f32 %v5452, %v5453
        %v5455 = vsel %vm2352, %v5050, 0.0
        %v5456 = vadd.f32 %v5454, %v5455
        %v5457 = vsel %vm2352, %v5052, 0.0
        %v5458 = vadd.f32 %v5456, %v5457
        %v5459 = vsel %vm2352, %v5054, 0.0
        %v5460 = vadd.f32 %v5458, %v5459
        %v5461 = vsel %vm2352, %v5056, 0.0
        %v5462 = vadd.f32 %v5460, %v5461
        %v5463 = vsel %vm2352, %v5058, 0.0
        %v5464 = vadd.f32 %v5462, %v5463
        %v5465 = vsel %vm2352, %v5060, 0.0
        %v5466 = vadd.f32 %v5464, %v5465
        %v5467 = vsel %vm2352, %v5062, 0.0
        %v5468 = vadd.f32 %v5466, %v5467
        %v5469 = vsel %vm2352, %v5064, 0.0
        %v5470 = vadd.f32 %v5468, %v5469
        %v5471 = vsel %vm2352, %v5066, 0.0
        %v5472 = vadd.f32 %v5470, %v5471
        %v5473 = vsel %vm2352, %v5068, 0.0
        %v5474 = vadd.f32 %v5472, %v5473
        %v5475 = vsel %vm2352, %v5070, 0.0
        %v5476 = vadd.f32 %v5474, %v5475
        %v5477 = vsel %vm2352, %v5072, 0.0
        %v5478 = vadd.f32 %v5476, %v5477
        %v5479 = vsel %vm2352, %v5074, 0.0
        %v5480 = vadd.f32 %v5478, %v5479
        %v5481 = vsel %vm2352, %v5045, 0.0
        %v5482 = vsel %vm2352, %v5047, 0.0
        %v5483 = vadd.f32 %v5481, %v5482
        %v5484 = vsel %vm2352, %v5049, 0.0
        %v5485 = vadd.f32 %v5483, %v5484
        %v5486 = vsel %vm2352, %v5051, 0.0
        %v5487 = vadd.f32 %v5485, %v5486
        %v5488 = vsel %vm2352, %v5053, 0.0
        %v5489 = vadd.f32 %v5487, %v5488
        %v5490 = vsel %vm2352, %v5055, 0.0
        %v5491 = vadd.f32 %v5489, %v5490
        %v5492 = vsel %vm2352, %v5057, 0.0
        %v5493 = vadd.f32 %v5491, %v5492
        %v5494 = vsel %vm2352, %v5059, 0.0
        %v5495 = vadd.f32 %v5493, %v5494
        %v5496 = vsel %vm2352, %v5061, 0.0
        %v5497 = vadd.f32 %v5495, %v5496
        %v5498 = vsel %vm2352, %v5063, 0.0
        %v5499 = vadd.f32 %v5497, %v5498
        %v5500 = vsel %vm2352, %v5065, 0.0
        %v5501 = vadd.f32 %v5499, %v5500
        %v5502 = vsel %vm2352, %v5067, 0.0
        %v5503 = vadd.f32 %v5501, %v5502
        %v5504 = vsel %vm2352, %v5069, 0.0
        %v5505 = vadd.f32 %v5503, %v5504
        %v5506 = vsel %vm2352, %v5071, 0.0
        %v5507 = vadd.f32 %v5505, %v5506
        %v5508 = vsel %vm2352, %v5073, 0.0
        %v5509 = vadd.f32 %v5507, %v5508
        %v5510 = vsel %vm2352, %v5075, 0.0
        %v5511 = vadd.f32 %v5509, %v5510
        %v5512 = vsel %vm2352, %v5076, 0.0
        %v5513 = vsel %vm2352, %v5078, 0.0
        %v5514 = vadd.f32 %v5512, %v5513
        %v5515 = vsel %vm2352, %v5080, 0.0
        %v5516 = vadd.f32 %v5514, %v5515
        %v5517 = vsel %vm2352, %v5082, 0.0
        %v5518 = vadd.f32 %v5516, %v5517
        %v5519 = vsel %vm2352, %v5084, 0.0
        %v5520 = vadd.f32 %v5518, %v5519
        %v5521 = vsel %vm2352, %v5086, 0.0
        %v5522 = vadd.f32 %v5520, %v5521
        %v5523 = vsel %vm2352, %v5088, 0.0
        %v5524 = vadd.f32 %v5522, %v5523
        %v5525 = vsel %vm2352, %v5090, 0.0
        %v5526 = vadd.f32 %v5524, %v5525
        %v5527 = vsel %vm2352, %v5092, 0.0
        %v5528 = vadd.f32 %v5526, %v5527
        %v5529 = vsel %vm2352, %v5094, 0.0
        %v5530 = vadd.f32 %v5528, %v5529
        %v5531 = vsel %vm2352, %v5096, 0.0
        %v5532 = vadd.f32 %v5530, %v5531
        %v5533 = vsel %vm2352, %v5098, 0.0
        %v5534 = vadd.f32 %v5532, %v5533
        %v5535 = vsel %vm2352, %v5100, 0.0
        %v5536 = vadd.f32 %v5534, %v5535
        %v5537 = vsel %vm2352, %v5102, 0.0
        %v5538 = vadd.f32 %v5536, %v5537
        %v5539 = vsel %vm2352, %v5104, 0.0
        %v5540 = vadd.f32 %v5538, %v5539
        %v5541 = vsel %vm2352, %v5106, 0.0
        %v5542 = vadd.f32 %v5540, %v5541
        %v5543 = vsel %vm2352, %v5077, 0.0
        %v5544 = vsel %vm2352, %v5079, 0.0
        %v5545 = vadd.f32 %v5543, %v5544
        %v5546 = vsel %vm2352, %v5081, 0.0
        %v5547 = vadd.f32 %v5545, %v5546
        %v5548 = vsel %vm2352, %v5083, 0.0
        %v5549 = vadd.f32 %v5547, %v5548
        %v5550 = vsel %vm2352, %v5085, 0.0
        %v5551 = vadd.f32 %v5549, %v5550
        %v5552 = vsel %vm2352, %v5087, 0.0
        %v5553 = vadd.f32 %v5551, %v5552
        %v5554 = vsel %vm2352, %v5089, 0.0
        %v5555 = vadd.f32 %v5553, %v5554
        %v5556 = vsel %vm2352, %v5091, 0.0
        %v5557 = vadd.f32 %v5555, %v5556
        %v5558 = vsel %vm2352, %v5093, 0.0
        %v5559 = vadd.f32 %v5557, %v5558
        %v5560 = vsel %vm2352, %v5095, 0.0
        %v5561 = vadd.f32 %v5559, %v5560
        %v5562 = vsel %vm2352, %v5097, 0.0
        %v5563 = vadd.f32 %v5561, %v5562
        %v5564 = vsel %vm2352, %v5099, 0.0
        %v5565 = vadd.f32 %v5563, %v5564
        %v5566 = vsel %vm2352, %v5101, 0.0
        %v5567 = vadd.f32 %v5565, %v5566
        %v5568 = vsel %vm2352, %v5103, 0.0
        %v5569 = vadd.f32 %v5567, %v5568
        %v5570 = vsel %vm2352, %v5105, 0.0
        %v5571 = vadd.f32 %v5569, %v5570
        %v5572 = vsel %vm2352, %v5107, 0.0
        %v5573 = vadd.f32 %v5571, %v5572
        %v5574 = vsel %vm2352, %v5108, 0.0
        %v5575 = vsel %vm2352, %v5110, 0.0
        %v5576 = vadd.f32 %v5574, %v5575
        %v5577 = vsel %vm2352, %v5112, 0.0
        %v5578 = vadd.f32 %v5576, %v5577
        %v5579 = vsel %vm2352, %v5114, 0.0
        %v5580 = vadd.f32 %v5578, %v5579
        %v5581 = vsel %vm2352, %v5116, 0.0
        %v5582 = vadd.f32 %v5580, %v5581
        %v5583 = vsel %vm2352, %v5118, 0.0
        %v5584 = vadd.f32 %v5582, %v5583
        %v5585 = vsel %vm2352, %v5120, 0.0
        %v5586 = vadd.f32 %v5584, %v5585
        %v5587 = vsel %vm2352, %v5122, 0.0
        %v5588 = vadd.f32 %v5586, %v5587
        %v5589 = vsel %vm2352, %v5124, 0.0
        %v5590 = vadd.f32 %v5588, %v5589
        %v5591 = vsel %vm2352, %v5126, 0.0
        %v5592 = vadd.f32 %v5590, %v5591
        %v5593 = vsel %vm2352, %v5128, 0.0
        %v5594 = vadd.f32 %v5592, %v5593
        %v5595 = vsel %vm2352, %v5130, 0.0
        %v5596 = vadd.f32 %v5594, %v5595
        %v5597 = vsel %vm2352, %v5132, 0.0
        %v5598 = vadd.f32 %v5596, %v5597
        %v5599 = vsel %vm2352, %v5134, 0.0
        %v5600 = vadd.f32 %v5598, %v5599
        %v5601 = vsel %vm2352, %v5136, 0.0
        %v5602 = vadd.f32 %v5600, %v5601
        %v5603 = vsel %vm2352, %v5138, 0.0
        %v5604 = vadd.f32 %v5602, %v5603
        %v5605 = vsel %vm2352, %v5109, 0.0
        %v5606 = vsel %vm2352, %v5111, 0.0
        %v5607 = vadd.f32 %v5605, %v5606
        %v5608 = vsel %vm2352, %v5113, 0.0
        %v5609 = vadd.f32 %v5607, %v5608
        %v5610 = vsel %vm2352, %v5115, 0.0
        %v5611 = vadd.f32 %v5609, %v5610
        %v5612 = vsel %vm2352, %v5117, 0.0
        %v5613 = vadd.f32 %v5611, %v5612
        %v5614 = vsel %vm2352, %v5119, 0.0
        %v5615 = vadd.f32 %v5613, %v5614
        %v5616 = vsel %vm2352, %v5121, 0.0
        %v5617 = vadd.f32 %v5615, %v5616
        %v5618 = vsel %vm2352, %v5123, 0.0
        %v5619 = vadd.f32 %v5617, %v5618
        %v5620 = vsel %vm2352, %v5125, 0.0
        %v5621 = vadd.f32 %v5619, %v5620
        %v5622 = vsel %vm2352, %v5127, 0.0
        %v5623 = vadd.f32 %v5621, %v5622
        %v5624 = vsel %vm2352, %v5129, 0.0
        %v5625 = vadd.f32 %v5623, %v5624
        %v5626 = vsel %vm2352, %v5131, 0.0
        %v5627 = vadd.f32 %v5625, %v5626
        %v5628 = vsel %vm2352, %v5133, 0.0
        %v5629 = vadd.f32 %v5627, %v5628
        %v5630 = vsel %vm2352, %v5135, 0.0
        %v5631 = vadd.f32 %v5629, %v5630
        %v5632 = vsel %vm2352, %v5137, 0.0
        %v5633 = vadd.f32 %v5631, %v5632
        %v5634 = vsel %vm2352, %v5139, 0.0
        %v5635 = vadd.f32 %v5633, %v5634
        %v5636 = vsel %vm2352, %v3989, 0.0
        %v5637 = vsel %vm2352, %v3993, 0.0
        %v5638 = vadd.f32 %v5636, %v5637
        %v5639 = vsel %vm2352, %v3997, 0.0
        %v5640 = vadd.f32 %v5638, %v5639
        %v5641 = vsel %vm2352, %v4001, 0.0
        %v5642 = vadd.f32 %v5640, %v5641
        %v5643 = vsel %vm2352, %v4005, 0.0
        %v5644 = vadd.f32 %v5642, %v5643
        %v5645 = vsel %vm2352, %v4009, 0.0
        %v5646 = vadd.f32 %v5644, %v5645
        %v5647 = vsel %vm2352, %v4013, 0.0
        %v5648 = vadd.f32 %v5646, %v5647
        %v5649 = vsel %vm2352, %v4017, 0.0
        %v5650 = vadd.f32 %v5648, %v5649
        %v5651 = vsel %vm2352, %v4021, 0.0
        %v5652 = vadd.f32 %v5650, %v5651
        %v5653 = vsel %vm2352, %v4025, 0.0
        %v5654 = vadd.f32 %v5652, %v5653
        %v5655 = vsel %vm2352, %v4029, 0.0
        %v5656 = vadd.f32 %v5654, %v5655
        %v5657 = vsel %vm2352, %v4033, 0.0
        %v5658 = vadd.f32 %v5656, %v5657
        %v5659 = vsel %vm2352, %v4037, 0.0
        %v5660 = vadd.f32 %v5658, %v5659
        %v5661 = vsel %vm2352, %v4041, 0.0
        %v5662 = vadd.f32 %v5660, %v5661
        %v5663 = vsel %vm2352, %v4045, 0.0
        %v5664 = vadd.f32 %v5662, %v5663
        %v5665 = vsel %vm2352, %v4049, 0.0
        %v5666 = vadd.f32 %v5664, %v5665
        %v5667 = vsel %vm2352, %v3991, 0.0
        %v5668 = vsel %vm2352, %v3995, 0.0
        %v5669 = vadd.f32 %v5667, %v5668
        %v5670 = vsel %vm2352, %v3999, 0.0
        %v5671 = vadd.f32 %v5669, %v5670
        %v5672 = vsel %vm2352, %v4003, 0.0
        %v5673 = vadd.f32 %v5671, %v5672
        %v5674 = vsel %vm2352, %v4007, 0.0
        %v5675 = vadd.f32 %v5673, %v5674
        %v5676 = vsel %vm2352, %v4011, 0.0
        %v5677 = vadd.f32 %v5675, %v5676
        %v5678 = vsel %vm2352, %v4015, 0.0
        %v5679 = vadd.f32 %v5677, %v5678
        %v5680 = vsel %vm2352, %v4019, 0.0
        %v5681 = vadd.f32 %v5679, %v5680
        %v5682 = vsel %vm2352, %v4023, 0.0
        %v5683 = vadd.f32 %v5681, %v5682
        %v5684 = vsel %vm2352, %v4027, 0.0
        %v5685 = vadd.f32 %v5683, %v5684
        %v5686 = vsel %vm2352, %v4031, 0.0
        %v5687 = vadd.f32 %v5685, %v5686
        %v5688 = vsel %vm2352, %v4035, 0.0
        %v5689 = vadd.f32 %v5687, %v5688
        %v5690 = vsel %vm2352, %v4039, 0.0
        %v5691 = vadd.f32 %v5689, %v5690
        %v5692 = vsel %vm2352, %v4043, 0.0
        %v5693 = vadd.f32 %v5691, %v5692
        %v5694 = vsel %vm2352, %v4047, 0.0
        %v5695 = vadd.f32 %v5693, %v5694
        %v5696 = vsel %vm2352, %v4051, 0.0
        %v5697 = vadd.f32 %v5695, %v5696
        %v5698 = vsel %vm2352, %v4053, 0.0
        %v5699 = vsel %vm2352, %v4057, 0.0
        %v5700 = vadd.f32 %v5698, %v5699
        %v5701 = vsel %vm2352, %v4061, 0.0
        %v5702 = vadd.f32 %v5700, %v5701
        %v5703 = vsel %vm2352, %v4065, 0.0
        %v5704 = vadd.f32 %v5702, %v5703
        %v5705 = vsel %vm2352, %v4069, 0.0
        %v5706 = vadd.f32 %v5704, %v5705
        %v5707 = vsel %vm2352, %v4073, 0.0
        %v5708 = vadd.f32 %v5706, %v5707
        %v5709 = vsel %vm2352, %v4077, 0.0
        %v5710 = vadd.f32 %v5708, %v5709
        %v5711 = vsel %vm2352, %v4081, 0.0
        %v5712 = vadd.f32 %v5710, %v5711
        %v5713 = vsel %vm2352, %v4085, 0.0
        %v5714 = vadd.f32 %v5712, %v5713
        %v5715 = vsel %vm2352, %v4089, 0.0
        %v5716 = vadd.f32 %v5714, %v5715
        %v5717 = vsel %vm2352, %v4093, 0.0
        %v5718 = vadd.f32 %v5716, %v5717
        %v5719 = vsel %vm2352, %v4097, 0.0
        %v5720 = vadd.f32 %v5718, %v5719
        %v5721 = vsel %vm2352, %v4101, 0.0
        %v5722 = vadd.f32 %v5720, %v5721
        %v5723 = vsel %vm2352, %v4105, 0.0
        %v5724 = vadd.f32 %v5722, %v5723
        %v5725 = vsel %vm2352, %v4109, 0.0
        %v5726 = vadd.f32 %v5724, %v5725
        %v5727 = vsel %vm2352, %v4113, 0.0
        %v5728 = vadd.f32 %v5726, %v5727
        %v5729 = vsel %vm2352, %v4055, 0.0
        %v5730 = vsel %vm2352, %v4059, 0.0
        %v5731 = vadd.f32 %v5729, %v5730
        %v5732 = vsel %vm2352, %v4063, 0.0
        %v5733 = vadd.f32 %v5731, %v5732
        %v5734 = vsel %vm2352, %v4067, 0.0
        %v5735 = vadd.f32 %v5733, %v5734
        %v5736 = vsel %vm2352, %v4071, 0.0
        %v5737 = vadd.f32 %v5735, %v5736
        %v5738 = vsel %vm2352, %v4075, 0.0
        %v5739 = vadd.f32 %v5737, %v5738
        %v5740 = vsel %vm2352, %v4079, 0.0
        %v5741 = vadd.f32 %v5739, %v5740
        %v5742 = vsel %vm2352, %v4083, 0.0
        %v5743 = vadd.f32 %v5741, %v5742
        %v5744 = vsel %vm2352, %v4087, 0.0
        %v5745 = vadd.f32 %v5743, %v5744
        %v5746 = vsel %vm2352, %v4091, 0.0
        %v5747 = vadd.f32 %v5745, %v5746
        %v5748 = vsel %vm2352, %v4095, 0.0
        %v5749 = vadd.f32 %v5747, %v5748
        %v5750 = vsel %vm2352, %v4099, 0.0
        %v5751 = vadd.f32 %v5749, %v5750
        %v5752 = vsel %vm2352, %v4103, 0.0
        %v5753 = vadd.f32 %v5751, %v5752
        %v5754 = vsel %vm2352, %v4107, 0.0
        %v5755 = vadd.f32 %v5753, %v5754
        %v5756 = vsel %vm2352, %v4111, 0.0
        %v5757 = vadd.f32 %v5755, %v5756
        %v5758 = vsel %vm2352, %v4115, 0.0
        %v5759 = vadd.f32 %v5757, %v5758
        %v5760 = vsel %vm2352, %v4117, 0.0
        %v5761 = vsel %vm2352, %v4121, 0.0
        %v5762 = vadd.f32 %v5760, %v5761
        %v5763 = vsel %vm2352, %v4125, 0.0
        %v5764 = vadd.f32 %v5762, %v5763
        %v5765 = vsel %vm2352, %v4129, 0.0
        %v5766 = vadd.f32 %v5764, %v5765
        %v5767 = vsel %vm2352, %v4133, 0.0
        %v5768 = vadd.f32 %v5766, %v5767
        %v5769 = vsel %vm2352, %v4137, 0.0
        %v5770 = vadd.f32 %v5768, %v5769
        %v5771 = vsel %vm2352, %v4141, 0.0
        %v5772 = vadd.f32 %v5770, %v5771
        %v5773 = vsel %vm2352, %v4145, 0.0
        %v5774 = vadd.f32 %v5772, %v5773
        %v5775 = vsel %vm2352, %v4149, 0.0
        %v5776 = vadd.f32 %v5774, %v5775
        %v5777 = vsel %vm2352, %v4153, 0.0
        %v5778 = vadd.f32 %v5776, %v5777
        %v5779 = vsel %vm2352, %v4157, 0.0
        %v5780 = vadd.f32 %v5778, %v5779
        %v5781 = vsel %vm2352, %v4161, 0.0
        %v5782 = vadd.f32 %v5780, %v5781
        %v5783 = vsel %vm2352, %v4165, 0.0
        %v5784 = vadd.f32 %v5782, %v5783
        %v5785 = vsel %vm2352, %v4169, 0.0
        %v5786 = vadd.f32 %v5784, %v5785
        %v5787 = vsel %vm2352, %v4173, 0.0
        %v5788 = vadd.f32 %v5786, %v5787
        %v5789 = vsel %vm2352, %v4177, 0.0
        %v5790 = vadd.f32 %v5788, %v5789
        %v5791 = vsel %vm2352, %v4119, 0.0
        %v5792 = vsel %vm2352, %v4123, 0.0
        %v5793 = vadd.f32 %v5791, %v5792
        %v5794 = vsel %vm2352, %v4127, 0.0
        %v5795 = vadd.f32 %v5793, %v5794
        %v5796 = vsel %vm2352, %v4131, 0.0
        %v5797 = vadd.f32 %v5795, %v5796
        %v5798 = vsel %vm2352, %v4135, 0.0
        %v5799 = vadd.f32 %v5797, %v5798
        %v5800 = vsel %vm2352, %v4139, 0.0
        %v5801 = vadd.f32 %v5799, %v5800
        %v5802 = vsel %vm2352, %v4143, 0.0
        %v5803 = vadd.f32 %v5801, %v5802
        %v5804 = vsel %vm2352, %v4147, 0.0
        %v5805 = vadd.f32 %v5803, %v5804
        %v5806 = vsel %vm2352, %v4151, 0.0
        %v5807 = vadd.f32 %v5805, %v5806
        %v5808 = vsel %vm2352, %v4155, 0.0
        %v5809 = vadd.f32 %v5807, %v5808
        %v5810 = vsel %vm2352, %v4159, 0.0
        %v5811 = vadd.f32 %v5809, %v5810
        %v5812 = vsel %vm2352, %v4163, 0.0
        %v5813 = vadd.f32 %v5811, %v5812
        %v5814 = vsel %vm2352, %v4167, 0.0
        %v5815 = vadd.f32 %v5813, %v5814
        %v5816 = vsel %vm2352, %v4171, 0.0
        %v5817 = vadd.f32 %v5815, %v5816
        %v5818 = vsel %vm2352, %v4175, 0.0
        %v5819 = vadd.f32 %v5817, %v5818
        %v5820 = vsel %vm2352, %v4179, 0.0
        %v5821 = vadd.f32 %v5819, %v5820
        %v5822 = vsel %vm2352, %v4181, 0.0
        %v5823 = vsel %vm2352, %v4185, 0.0
        %v5824 = vadd.f32 %v5822, %v5823
        %v5825 = vsel %vm2352, %v4189, 0.0
        %v5826 = vadd.f32 %v5824, %v5825
        %v5827 = vsel %vm2352, %v4193, 0.0
        %v5828 = vadd.f32 %v5826, %v5827
        %v5829 = vsel %vm2352, %v4197, 0.0
        %v5830 = vadd.f32 %v5828, %v5829
        %v5831 = vsel %vm2352, %v4201, 0.0
        %v5832 = vadd.f32 %v5830, %v5831
        %v5833 = vsel %vm2352, %v4205, 0.0
        %v5834 = vadd.f32 %v5832, %v5833
        %v5835 = vsel %vm2352, %v4209, 0.0
        %v5836 = vadd.f32 %v5834, %v5835
        %v5837 = vsel %vm2352, %v4213, 0.0
        %v5838 = vadd.f32 %v5836, %v5837
        %v5839 = vsel %vm2352, %v4217, 0.0
        %v5840 = vadd.f32 %v5838, %v5839
        %v5841 = vsel %vm2352, %v4221, 0.0
        %v5842 = vadd.f32 %v5840, %v5841
        %v5843 = vsel %vm2352, %v4225, 0.0
        %v5844 = vadd.f32 %v5842, %v5843
        %v5845 = vsel %vm2352, %v4229, 0.0
        %v5846 = vadd.f32 %v5844, %v5845
        %v5847 = vsel %vm2352, %v4233, 0.0
        %v5848 = vadd.f32 %v5846, %v5847
        %v5849 = vsel %vm2352, %v4237, 0.0
        %v5850 = vadd.f32 %v5848, %v5849
        %v5851 = vsel %vm2352, %v4241, 0.0
        %v5852 = vadd.f32 %v5850, %v5851
        %v5853 = vsel %vm2352, %v4183, 0.0
        %v5854 = vsel %vm2352, %v4187, 0.0
        %v5855 = vadd.f32 %v5853, %v5854
        %v5856 = vsel %vm2352, %v4191, 0.0
        %v5857 = vadd.f32 %v5855, %v5856
        %v5858 = vsel %vm2352, %v4195, 0.0
        %v5859 = vadd.f32 %v5857, %v5858
        %v5860 = vsel %vm2352, %v4199, 0.0
        %v5861 = vadd.f32 %v5859, %v5860
        %v5862 = vsel %vm2352, %v4203, 0.0
        %v5863 = vadd.f32 %v5861, %v5862
        %v5864 = vsel %vm2352, %v4207, 0.0
        %v5865 = vadd.f32 %v5863, %v5864
        %v5866 = vsel %vm2352, %v4211, 0.0
        %v5867 = vadd.f32 %v5865, %v5866
        %v5868 = vsel %vm2352, %v4215, 0.0
        %v5869 = vadd.f32 %v5867, %v5868
        %v5870 = vsel %vm2352, %v4219, 0.0
        %v5871 = vadd.f32 %v5869, %v5870
        %v5872 = vsel %vm2352, %v4223, 0.0
        %v5873 = vadd.f32 %v5871, %v5872
        %v5874 = vsel %vm2352, %v4227, 0.0
        %v5875 = vadd.f32 %v5873, %v5874
        %v5876 = vsel %vm2352, %v4231, 0.0
        %v5877 = vadd.f32 %v5875, %v5876
        %v5878 = vsel %vm2352, %v4235, 0.0
        %v5879 = vadd.f32 %v5877, %v5878
        %v5880 = vsel %vm2352, %v4239, 0.0
        %v5881 = vadd.f32 %v5879, %v5880
        %v5882 = vsel %vm2352, %v4243, 0.0
        %v5883 = vadd.f32 %v5881, %v5882
        %v5884 = vsel %vm2352, %v4245, 0.0
        %v5885 = vsel %vm2352, %v4249, 0.0
        %v5886 = vadd.f32 %v5884, %v5885
        %v5887 = vsel %vm2352, %v4253, 0.0
        %v5888 = vadd.f32 %v5886, %v5887
        %v5889 = vsel %vm2352, %v4257, 0.0
        %v5890 = vadd.f32 %v5888, %v5889
        %v5891 = vsel %vm2352, %v4261, 0.0
        %v5892 = vadd.f32 %v5890, %v5891
        %v5893 = vsel %vm2352, %v4265, 0.0
        %v5894 = vadd.f32 %v5892, %v5893
        %v5895 = vsel %vm2352, %v4269, 0.0
        %v5896 = vadd.f32 %v5894, %v5895
        %v5897 = vsel %vm2352, %v4273, 0.0
        %v5898 = vadd.f32 %v5896, %v5897
        %v5899 = vsel %vm2352, %v4277, 0.0
        %v5900 = vadd.f32 %v5898, %v5899
        %v5901 = vsel %vm2352, %v4281, 0.0
        %v5902 = vadd.f32 %v5900, %v5901
        %v5903 = vsel %vm2352, %v4285, 0.0
        %v5904 = vadd.f32 %v5902, %v5903
        %v5905 = vsel %vm2352, %v4289, 0.0
        %v5906 = vadd.f32 %v5904, %v5905
        %v5907 = vsel %vm2352, %v4293, 0.0
        %v5908 = vadd.f32 %v5906, %v5907
        %v5909 = vsel %vm2352, %v4297, 0.0
        %v5910 = vadd.f32 %v5908, %v5909
        %v5911 = vsel %vm2352, %v4301, 0.0
        %v5912 = vadd.f32 %v5910, %v5911
        %v5913 = vsel %vm2352, %v4305, 0.0
        %v5914 = vadd.f32 %v5912, %v5913
        %v5915 = vsel %vm2352, %v4247, 0.0
        %v5916 = vsel %vm2352, %v4251, 0.0
        %v5917 = vadd.f32 %v5915, %v5916
        %v5918 = vsel %vm2352, %v4255, 0.0
        %v5919 = vadd.f32 %v5917, %v5918
        %v5920 = vsel %vm2352, %v4259, 0.0
        %v5921 = vadd.f32 %v5919, %v5920
        %v5922 = vsel %vm2352, %v4263, 0.0
        %v5923 = vadd.f32 %v5921, %v5922
        %v5924 = vsel %vm2352, %v4267, 0.0
        %v5925 = vadd.f32 %v5923, %v5924
        %v5926 = vsel %vm2352, %v4271, 0.0
        %v5927 = vadd.f32 %v5925, %v5926
        %v5928 = vsel %vm2352, %v4275, 0.0
        %v5929 = vadd.f32 %v5927, %v5928
        %v5930 = vsel %vm2352, %v4279, 0.0
        %v5931 = vadd.f32 %v5929, %v5930
        %v5932 = vsel %vm2352, %v4283, 0.0
        %v5933 = vadd.f32 %v5931, %v5932
        %v5934 = vsel %vm2352, %v4287, 0.0
        %v5935 = vadd.f32 %v5933, %v5934
        %v5936 = vsel %vm2352, %v4291, 0.0
        %v5937 = vadd.f32 %v5935, %v5936
        %v5938 = vsel %vm2352, %v4295, 0.0
        %v5939 = vadd.f32 %v5937, %v5938
        %v5940 = vsel %vm2352, %v4299, 0.0
        %v5941 = vadd.f32 %v5939, %v5940
        %v5942 = vsel %vm2352, %v4303, 0.0
        %v5943 = vadd.f32 %v5941, %v5942
        %v5944 = vsel %vm2352, %v4307, 0.0
        %v5945 = vadd.f32 %v5943, %v5944
        %v5946 = vsel %vm2352, %v4309, 0.0
        %v5947 = vsel %vm2352, %v4313, 0.0
        %v5948 = vadd.f32 %v5946, %v5947
        %v5949 = vsel %vm2352, %v4317, 0.0
        %v5950 = vadd.f32 %v5948, %v5949
        %v5951 = vsel %vm2352, %v4321, 0.0
        %v5952 = vadd.f32 %v5950, %v5951
        %v5953 = vsel %vm2352, %v4325, 0.0
        %v5954 = vadd.f32 %v5952, %v5953
        %v5955 = vsel %vm2352, %v4329, 0.0
        %v5956 = vadd.f32 %v5954, %v5955
        %v5957 = vsel %vm2352, %v4333, 0.0
        %v5958 = vadd.f32 %v5956, %v5957
        %v5959 = vsel %vm2352, %v4337, 0.0
        %v5960 = vadd.f32 %v5958, %v5959
        %v5961 = vsel %vm2352, %v4341, 0.0
        %v5962 = vadd.f32 %v5960, %v5961
        %v5963 = vsel %vm2352, %v4345, 0.0
        %v5964 = vadd.f32 %v5962, %v5963
        %v5965 = vsel %vm2352, %v4349, 0.0
        %v5966 = vadd.f32 %v5964, %v5965
        %v5967 = vsel %vm2352, %v4353, 0.0
        %v5968 = vadd.f32 %v5966, %v5967
        %v5969 = vsel %vm2352, %v4357, 0.0
        %v5970 = vadd.f32 %v5968, %v5969
        %v5971 = vsel %vm2352, %v4361, 0.0
        %v5972 = vadd.f32 %v5970, %v5971
        %v5973 = vsel %vm2352, %v4365, 0.0
        %v5974 = vadd.f32 %v5972, %v5973
        %v5975 = vsel %vm2352, %v4369, 0.0
        %v5976 = vadd.f32 %v5974, %v5975
        %v5977 = vsel %vm2352, %v4311, 0.0
        %v5978 = vsel %vm2352, %v4315, 0.0
        %v5979 = vadd.f32 %v5977, %v5978
        %v5980 = vsel %vm2352, %v4319, 0.0
        %v5981 = vadd.f32 %v5979, %v5980
        %v5982 = vsel %vm2352, %v4323, 0.0
        %v5983 = vadd.f32 %v5981, %v5982
        %v5984 = vsel %vm2352, %v4327, 0.0
        %v5985 = vadd.f32 %v5983, %v5984
        %v5986 = vsel %vm2352, %v4331, 0.0
        %v5987 = vadd.f32 %v5985, %v5986
        %v5988 = vsel %vm2352, %v4335, 0.0
        %v5989 = vadd.f32 %v5987, %v5988
        %v5990 = vsel %vm2352, %v4339, 0.0
        %v5991 = vadd.f32 %v5989, %v5990
        %v5992 = vsel %vm2352, %v4343, 0.0
        %v5993 = vadd.f32 %v5991, %v5992
        %v5994 = vsel %vm2352, %v4347, 0.0
        %v5995 = vadd.f32 %v5993, %v5994
        %v5996 = vsel %vm2352, %v4351, 0.0
        %v5997 = vadd.f32 %v5995, %v5996
        %v5998 = vsel %vm2352, %v4355, 0.0
        %v5999 = vadd.f32 %v5997, %v5998
        %v6000 = vsel %vm2352, %v4359, 0.0
        %v6001 = vadd.f32 %v5999, %v6000
        %v6002 = vsel %vm2352, %v4363, 0.0
        %v6003 = vadd.f32 %v6001, %v6002
        %v6004 = vsel %vm2352, %v4367, 0.0
        %v6005 = vadd.f32 %v6003, %v6004
        %v6006 = vsel %vm2352, %v4371, 0.0
        %v6007 = vadd.f32 %v6005, %v6006
        %v6008 = vsel %vm2352, %v4373, 0.0
        %v6009 = vsel %vm2352, %v4377, 0.0
        %v6010 = vadd.f32 %v6008, %v6009
        %v6011 = vsel %vm2352, %v4381, 0.0
        %v6012 = vadd.f32 %v6010, %v6011
        %v6013 = vsel %vm2352, %v4385, 0.0
        %v6014 = vadd.f32 %v6012, %v6013
        %v6015 = vsel %vm2352, %v4389, 0.0
        %v6016 = vadd.f32 %v6014, %v6015
        %v6017 = vsel %vm2352, %v4393, 0.0
        %v6018 = vadd.f32 %v6016, %v6017
        %v6019 = vsel %vm2352, %v4397, 0.0
        %v6020 = vadd.f32 %v6018, %v6019
        %v6021 = vsel %vm2352, %v4401, 0.0
        %v6022 = vadd.f32 %v6020, %v6021
        %v6023 = vsel %vm2352, %v4405, 0.0
        %v6024 = vadd.f32 %v6022, %v6023
        %v6025 = vsel %vm2352, %v4409, 0.0
        %v6026 = vadd.f32 %v6024, %v6025
        %v6027 = vsel %vm2352, %v4413, 0.0
        %v6028 = vadd.f32 %v6026, %v6027
        %v6029 = vsel %vm2352, %v4417, 0.0
        %v6030 = vadd.f32 %v6028, %v6029
        %v6031 = vsel %vm2352, %v4421, 0.0
        %v6032 = vadd.f32 %v6030, %v6031
        %v6033 = vsel %vm2352, %v4425, 0.0
        %v6034 = vadd.f32 %v6032, %v6033
        %v6035 = vsel %vm2352, %v4429, 0.0
        %v6036 = vadd.f32 %v6034, %v6035
        %v6037 = vsel %vm2352, %v4433, 0.0
        %v6038 = vadd.f32 %v6036, %v6037
        %v6039 = vsel %vm2352, %v4375, 0.0
        %v6040 = vsel %vm2352, %v4379, 0.0
        %v6041 = vadd.f32 %v6039, %v6040
        %v6042 = vsel %vm2352, %v4383, 0.0
        %v6043 = vadd.f32 %v6041, %v6042
        %v6044 = vsel %vm2352, %v4387, 0.0
        %v6045 = vadd.f32 %v6043, %v6044
        %v6046 = vsel %vm2352, %v4391, 0.0
        %v6047 = vadd.f32 %v6045, %v6046
        %v6048 = vsel %vm2352, %v4395, 0.0
        %v6049 = vadd.f32 %v6047, %v6048
        %v6050 = vsel %vm2352, %v4399, 0.0
        %v6051 = vadd.f32 %v6049, %v6050
        %v6052 = vsel %vm2352, %v4403, 0.0
        %v6053 = vadd.f32 %v6051, %v6052
        %v6054 = vsel %vm2352, %v4407, 0.0
        %v6055 = vadd.f32 %v6053, %v6054
        %v6056 = vsel %vm2352, %v4411, 0.0
        %v6057 = vadd.f32 %v6055, %v6056
        %v6058 = vsel %vm2352, %v4415, 0.0
        %v6059 = vadd.f32 %v6057, %v6058
        %v6060 = vsel %vm2352, %v4419, 0.0
        %v6061 = vadd.f32 %v6059, %v6060
        %v6062 = vsel %vm2352, %v4423, 0.0
        %v6063 = vadd.f32 %v6061, %v6062
        %v6064 = vsel %vm2352, %v4427, 0.0
        %v6065 = vadd.f32 %v6063, %v6064
        %v6066 = vsel %vm2352, %v4431, 0.0
        %v6067 = vadd.f32 %v6065, %v6066
        %v6068 = vsel %vm2352, %v4435, 0.0
        %v6069 = vadd.f32 %v6067, %v6068
        %v6070 = vsel %vm2352, %v4437, 0.0
        %v6071 = vsel %vm2352, %v4441, 0.0
        %v6072 = vadd.f32 %v6070, %v6071
        %v6073 = vsel %vm2352, %v4445, 0.0
        %v6074 = vadd.f32 %v6072, %v6073
        %v6075 = vsel %vm2352, %v4449, 0.0
        %v6076 = vadd.f32 %v6074, %v6075
        %v6077 = vsel %vm2352, %v4453, 0.0
        %v6078 = vadd.f32 %v6076, %v6077
        %v6079 = vsel %vm2352, %v4457, 0.0
        %v6080 = vadd.f32 %v6078, %v6079
        %v6081 = vsel %vm2352, %v4461, 0.0
        %v6082 = vadd.f32 %v6080, %v6081
        %v6083 = vsel %vm2352, %v4465, 0.0
        %v6084 = vadd.f32 %v6082, %v6083
        %v6085 = vsel %vm2352, %v4469, 0.0
        %v6086 = vadd.f32 %v6084, %v6085
        %v6087 = vsel %vm2352, %v4473, 0.0
        %v6088 = vadd.f32 %v6086, %v6087
        %v6089 = vsel %vm2352, %v4477, 0.0
        %v6090 = vadd.f32 %v6088, %v6089
        %v6091 = vsel %vm2352, %v4481, 0.0
        %v6092 = vadd.f32 %v6090, %v6091
        %v6093 = vsel %vm2352, %v4485, 0.0
        %v6094 = vadd.f32 %v6092, %v6093
        %v6095 = vsel %vm2352, %v4489, 0.0
        %v6096 = vadd.f32 %v6094, %v6095
        %v6097 = vsel %vm2352, %v4493, 0.0
        %v6098 = vadd.f32 %v6096, %v6097
        %v6099 = vsel %vm2352, %v4497, 0.0
        %v6100 = vadd.f32 %v6098, %v6099
        %v6101 = vsel %vm2352, %v4439, 0.0
        %v6102 = vsel %vm2352, %v4443, 0.0
        %v6103 = vadd.f32 %v6101, %v6102
        %v6104 = vsel %vm2352, %v4447, 0.0
        %v6105 = vadd.f32 %v6103, %v6104
        %v6106 = vsel %vm2352, %v4451, 0.0
        %v6107 = vadd.f32 %v6105, %v6106
        %v6108 = vsel %vm2352, %v4455, 0.0
        %v6109 = vadd.f32 %v6107, %v6108
        %v6110 = vsel %vm2352, %v4459, 0.0
        %v6111 = vadd.f32 %v6109, %v6110
        %v6112 = vsel %vm2352, %v4463, 0.0
        %v6113 = vadd.f32 %v6111, %v6112
        %v6114 = vsel %vm2352, %v4467, 0.0
        %v6115 = vadd.f32 %v6113, %v6114
        %v6116 = vsel %vm2352, %v4471, 0.0
        %v6117 = vadd.f32 %v6115, %v6116
        %v6118 = vsel %vm2352, %v4475, 0.0
        %v6119 = vadd.f32 %v6117, %v6118
        %v6120 = vsel %vm2352, %v4479, 0.0
        %v6121 = vadd.f32 %v6119, %v6120
        %v6122 = vsel %vm2352, %v4483, 0.0
        %v6123 = vadd.f32 %v6121, %v6122
        %v6124 = vsel %vm2352, %v4487, 0.0
        %v6125 = vadd.f32 %v6123, %v6124
        %v6126 = vsel %vm2352, %v4491, 0.0
        %v6127 = vadd.f32 %v6125, %v6126
        %v6128 = vsel %vm2352, %v4495, 0.0
        %v6129 = vadd.f32 %v6127, %v6128
        %v6130 = vsel %vm2352, %v4499, 0.0
        %v6131 = vadd.f32 %v6129, %v6130
        %v6132 = vrcp.pop %v5666
        %v6133 = vrcp.pop %v5697
        %v6134 = vrcp.pop %v5728
        %v6135 = vrcp.pop %v5759
        %v6136 = vrcp.pop %v5790
        %v6137 = vrcp.pop %v5821
        %v6138 = vrcp.pop %v5852
        %v6139 = vrcp.pop %v5883
        %v6140 = vrcp.pop %v5914
        %v6141 = vrcp.pop %v5945
        %v6142 = vrcp.pop %v5976
        %v6143 = vrcp.pop %v6007
        %v6144 = vrcp.pop %v6038
        %v6145 = vrcp.pop %v6069
        %v6146 = vrcp.pop %v6100
        %v6147 = vrcp.pop %v6131
        %v6148 = vmul.f32 %v5170, %v6132
        %v6149 = vmul.f32 %v5201, %v6133
        %v6150 = vmul.f32 %v5232, %v6134
        %v6151 = vmul.f32 %v5263, %v6135
        %v6152 = vmul.f32 %v5294, %v6136
        %v6153 = vmul.f32 %v5325, %v6137
        %v6154 = vmul.f32 %v5356, %v6138
        %v6155 = vmul.f32 %v5387, %v6139
        %v6156 = vmul.f32 %v5418, %v6140
        %v6157 = vmul.f32 %v5449, %v6141
        %v6158 = vmul.f32 %v5480, %v6142
        %v6159 = vmul.f32 %v5511, %v6143
        %v6160 = vmul.f32 %v5542, %v6144
        %v6161 = vmul.f32 %v5573, %v6145
        %v6162 = vmul.f32 %v5604, %v6146
        %v6163 = vmul.f32 %v5635, %v6147
        %v6165 = vsel %vm2352, %v6148, 0
        %v6168 = vsel %vm2352, %v6149, 0
        %v6171 = vsel %vm2352, %v6150, 0
        %v6174 = vsel %vm2352, %v6151, 0
        %v6177 = vsel %vm2352, %v6152, 0
        %v6180 = vsel %vm2352, %v6153, 0
        %v6183 = vsel %vm2352, %v6154, 0
        %v6186 = vsel %vm2352, %v6155, 0
        %v6189 = vsel %vm2352, %v6156, 0
        %v6192 = vsel %vm2352, %v6157, 0
        %v6195 = vsel %vm2352, %v6158, 0
        %v6198 = vsel %vm2352, %v6159, 0
        %v6201 = vsel %vm2352, %v6160, 0
        %v6204 = vsel %vm2352, %v6161, 0
        %v6207 = vsel %vm2352, %v6162, 0
        %v6210 = vsel %vm2352, %v6163, 0
        %6212 = vmatpush.msra.mxu0 0.0
        %6213 = vmatpush.msra.mxu0 0.0
        %6214 = vmatpush.msra.mxu0 0.0
        %6215 = vmatpush.msra.mxu0 0.0
        %6216 = vmatpush.msra.mxu0 0.0
        %6217 = vmatpush.msra.mxu0 0.0
        %6218 = vmatpush.msra.mxu0 0.0
        %6219 = vmatpush.msra.mxu0 0.0
        %6220 = vmatpush.msra.mxu0 0.0
        %6221 = vmatpush.msra.mxu0 0.0
        %6222 = vmatpush.msra.mxu0 0.0
        %6223 = vmatpush.msra.mxu0 0.0
        %6224 = vmatpush.msra.mxu0 0.0
        %6225 = vmatpush.msra.mxu0 0.0
        %6226 = vmatpush.msra.mxu0 0.0
        %6227 = vmatpush.msra.mxu0 %v2344
        %6228 = vmatmul.f32.gmra.mxu0 %v6165
        %v6229 = vpop.f32.mrf.mxu0
        %v6230 = vadd.f32 0.0, %v6229
        %6231 = vmatmul.f32.gmra.mxu0 %v6168
        %v6232 = vpop.f32.mrf.mxu0
        %v6233 = vadd.f32 0.0, %v6232
        %6234 = vmatmul.f32.gmra.mxu0 %v6171
        %v6235 = vpop.f32.mrf.mxu0
        %v6236 = vadd.f32 0.0, %v6235
        %6237 = vmatmul.f32.gmra.mxu0 %v6174
        %v6238 = vpop.f32.mrf.mxu0
        %v6239 = vadd.f32 0.0, %v6238
        %6240 = vmatmul.f32.gmra.mxu0 %v6177
        %v6241 = vpop.f32.mrf.mxu0
        %v6242 = vadd.f32 0.0, %v6241
        %6243 = vmatmul.f32.gmra.mxu0 %v6180
        %v6244 = vpop.f32.mrf.mxu0
        %v6245 = vadd.f32 0.0, %v6244
        %6246 = vmatmul.f32.gmra.mxu0 %v6183
        %v6247 = vpop.f32.mrf.mxu0
        %v6248 = vadd.f32 0.0, %v6247
        %6249 = vmatmul.f32.gmra.mxu0 %v6186
        %v6250 = vpop.f32.mrf.mxu0
        %v6251 = vadd.f32 0.0, %v6250
        %6252 = vmatmul.f32.gmra.mxu0 %v6189
        %v6253 = vpop.f32.mrf.mxu0
        %v6254 = vadd.f32 0.0, %v6253
        %6255 = vmatmul.f32.gmra.mxu0 %v6192
        %v6256 = vpop.f32.mrf.mxu0
        %v6257 = vadd.f32 0.0, %v6256
        %6258 = vmatmul.f32.gmra.mxu0 %v6195
        %v6259 = vpop.f32.mrf.mxu0
        %v6260 = vadd.f32 0.0, %v6259
        %6261 = vmatmul.f32.gmra.mxu0 %v6198
        %v6262 = vpop.f32.mrf.mxu0
        %v6263 = vadd.f32 0.0, %v6262
        %6264 = vmatmul.f32.gmra.mxu0 %v6201
        %v6265 = vpop.f32.mrf.mxu0
        %v6266 = vadd.f32 0.0, %v6265
        %6267 = vmatmul.f32.gmra.mxu0 %v6204
        %v6268 = vpop.f32.mrf.mxu0
        %v6269 = vadd.f32 0.0, %v6268
        %6270 = vmatmul.f32.gmra.mxu0 %v6207
        %v6271 = vpop.f32.mrf.mxu0
        %v6272 = vadd.f32 0.0, %v6271
        %6273 = vmatmul.f32.gmra.mxu0 %v6210
        %v6274 = vpop.f32.mrf.mxu0
        %v6275 = vadd.f32 0.0, %v6274
        %6276 = vdwg.mxu0
        %v6277 = vadd.f32 %v2098, %v6230
        %v6278 = vadd.f32 %v2099, %v6233
        %v6279 = vadd.f32 %v2130, %v6236
        %v6280 = vadd.f32 %v2131, %v6239
        %v6281 = vadd.f32 %v2162, %v6242
        %v6282 = vadd.f32 %v2163, %v6245
        %v6283 = vadd.f32 %v2194, %v6248
        %v6284 = vadd.f32 %v2195, %v6251
        %v6285 = vadd.f32 %v2226, %v6254
        %v6286 = vadd.f32 %v2227, %v6257
        %v6287 = vadd.f32 %v2258, %v6260
        %v6288 = vadd.f32 %v2259, %v6263
        %v6289 = vadd.f32 %v2290, %v6266
        %v6290 = vadd.f32 %v2291, %v6269
        %v6291 = vadd.f32 %v2322, %v6272
        %v6292 = vadd.f32 %v2323, %v6275
        %v6293 = vsel %vm2352, %v6277, 0.0
        %6294 = vadd.xlane.f32.xlu0 %v6293
        %v6295 = vpop.xlane.xlu0 %6294
        %v6296 = vsel %vm2352, %v6278, 0.0
        %6297 = vadd.xlane.f32.xlu0 %v6296
        %v6298 = vpop.xlane.xlu0 %6297
        %v6299 = vsel %vm2352, %v6279, 0.0
        %6300 = vadd.xlane.f32.xlu0 %v6299
        %v6301 = vpop.xlane.xlu0 %6300
        %v6302 = vsel %vm2352, %v6280, 0.0
        %6303 = vadd.xlane.f32.xlu0 %v6302
        %v6304 = vpop.xlane.xlu0 %6303
        %v6305 = vsel %vm2352, %v6281, 0.0
        %6306 = vadd.xlane.f32.xlu0 %v6305
        %v6307 = vpop.xlane.xlu0 %6306
        %v6308 = vsel %vm2352, %v6282, 0.0
        %6309 = vadd.xlane.f32.xlu0 %v6308
        %v6310 = vpop.xlane.xlu0 %6309
        %v6311 = vsel %vm2352, %v6283, 0.0
        %6312 = vadd.xlane.f32.xlu0 %v6311
        %v6313 = vpop.xlane.xlu0 %6312
        %v6314 = vsel %vm2352, %v6284, 0.0
        %6315 = vadd.xlane.f32.xlu0 %v6314
        %v6316 = vpop.xlane.xlu0 %6315
        %v6317 = vsel %vm2352, %v6285, 0.0
        %6318 = vadd.xlane.f32.xlu0 %v6317
        %v6319 = vpop.xlane.xlu0 %6318
        %v6320 = vsel %vm2352, %v6286, 0.0
        %6321 = vadd.xlane.f32.xlu0 %v6320
        %v6322 = vpop.xlane.xlu0 %6321
        %v6323 = vsel %vm2352, %v6287, 0.0
        %6324 = vadd.xlane.f32.xlu0 %v6323
        %v6325 = vpop.xlane.xlu0 %6324
        %v6326 = vsel %vm2352, %v6288, 0.0
        %6327 = vadd.xlane.f32.xlu0 %v6326
        %v6328 = vpop.xlane.xlu0 %6327
        %v6329 = vsel %vm2352, %v6289, 0.0
        %6330 = vadd.xlane.f32.xlu0 %v6329
        %v6331 = vpop.xlane.xlu0 %6330
        %v6332 = vsel %vm2352, %v6290, 0.0
        %6333 = vadd.xlane.f32.xlu0 %v6332
        %v6334 = vpop.xlane.xlu0 %6333
        %v6335 = vsel %vm2352, %v6291, 0.0
        %6336 = vadd.xlane.f32.xlu0 %v6335
        %v6337 = vpop.xlane.xlu0 %6336
        %v6338 = vsel %vm2352, %v6292, 0.0
        %6339 = vadd.xlane.f32.xlu0 %v6338
        %v6340 = vpop.xlane.xlu0 %6339
        %v6341 = vrcp.pop 8.0
        %v6342 = vmul.f32 8.0, %v6341
        %v6343 = vsub.f32 1.0, %v6342
        %v6344 = vmul.f32 %v6341, %v6343
        %v6345 = vadd.f32 %v6341, %v6344
        %vm6346 = vweird.f32 %v6341
        %v6347 = vsel %vm6346, %v6341, %v6345
        %v6348 = vmul.f32 %v6295, %v6347
        %v6349 = vmul.f32 %v6298, %v6347
        %v6350 = vmul.f32 %v6301, %v6347
        %v6351 = vmul.f32 %v6304, %v6347
        %v6352 = vmul.f32 %v6307, %v6347
        %v6353 = vmul.f32 %v6310, %v6347
        %v6354 = vmul.f32 %v6313, %v6347
        %v6355 = vmul.f32 %v6316, %v6347
        %v6356 = vmul.f32 %v6319, %v6347
        %v6357 = vmul.f32 %v6322, %v6347
        %v6358 = vmul.f32 %v6325, %v6347
        %v6359 = vmul.f32 %v6328, %v6347
        %v6360 = vmul.f32 %v6331, %v6347
        %v6361 = vmul.f32 %v6334, %v6347
        %v6362 = vmul.f32 %v6337, %v6347
        %v6363 = vmul.f32 %v6340, %v6347
        %v6364 = vsub.f32 %v6277, %v6348
        %v6365 = vsub.f32 %v6278, %v6349
        %v6366 = vsub.f32 %v6279, %v6350
        %v6367 = vsub.f32 %v6280, %v6351
        %v6368 = vsub.f32 %v6281, %v6352
        %v6369 = vsub.f32 %v6282, %v6353
        %v6370 = vsub.f32 %v6283, %v6354
        %v6371 = vsub.f32 %v6284, %v6355
        %v6372 = vsub.f32 %v6285, %v6356
        %v6373 = vsub.f32 %v6286, %v6357
        %v6374 = vsub.f32 %v6287, %v6358
        %v6375 = vsub.f32 %v6288, %v6359
        %v6376 = vsub.f32 %v6289, %v6360
        %v6377 = vsub.f32 %v6290, %v6361
        %v6378 = vsub.f32 %v6291, %v6362
        %v6379 = vsub.f32 %v6292, %v6363
        %v6380 = vmul.f32 %v6364, %v6364
        %v6381 = vmul.f32 %v6365, %v6365
        %v6382 = vmul.f32 %v6366, %v6366
        %v6383 = vmul.f32 %v6367, %v6367
        %v6384 = vmul.f32 %v6368, %v6368
        %v6385 = vmul.f32 %v6369, %v6369
        %v6386 = vmul.f32 %v6370, %v6370
        %v6387 = vmul.f32 %v6371, %v6371
        %v6388 = vmul.f32 %v6372, %v6372
        %v6389 = vmul.f32 %v6373, %v6373
        %v6390 = vmul.f32 %v6374, %v6374
        %v6391 = vmul.f32 %v6375, %v6375
        %v6392 = vmul.f32 %v6376, %v6376
        %v6393 = vmul.f32 %v6377, %v6377
        %v6394 = vmul.f32 %v6378, %v6378
        %v6395 = vmul.f32 %v6379, %v6379
        %v6396 = vsel %vm2352, %v6380, 0.0
        %6397 = vadd.xlane.f32.xlu0 %v6396
        %v6398 = vpop.xlane.xlu0 %6397
        %v6399 = vsel %vm2352, %v6381, 0.0
        %6400 = vadd.xlane.f32.xlu0 %v6399
        %v6401 = vpop.xlane.xlu0 %6400
        %v6402 = vsel %vm2352, %v6382, 0.0
        %6403 = vadd.xlane.f32.xlu0 %v6402
        %v6404 = vpop.xlane.xlu0 %6403
        %v6405 = vsel %vm2352, %v6383, 0.0
        %6406 = vadd.xlane.f32.xlu0 %v6405
        %v6407 = vpop.xlane.xlu0 %6406
        %v6408 = vsel %vm2352, %v6384, 0.0
        %6409 = vadd.xlane.f32.xlu0 %v6408
        %v6410 = vpop.xlane.xlu0 %6409
        %v6411 = vsel %vm2352, %v6385, 0.0
        %6412 = vadd.xlane.f32.xlu0 %v6411
        %v6413 = vpop.xlane.xlu0 %6412
        %v6414 = vsel %vm2352, %v6386, 0.0
        %6415 = vadd.xlane.f32.xlu0 %v6414
        %v6416 = vpop.xlane.xlu0 %6415
        %v6417 = vsel %vm2352, %v6387, 0.0
        %6418 = vadd.xlane.f32.xlu0 %v6417
        %v6419 = vpop.xlane.xlu0 %6418
        %v6420 = vsel %vm2352, %v6388, 0.0
        %6421 = vadd.xlane.f32.xlu0 %v6420
        %v6422 = vpop.xlane.xlu0 %6421
        %v6423 = vsel %vm2352, %v6389, 0.0
        %6424 = vadd.xlane.f32.xlu0 %v6423
        %v6425 = vpop.xlane.xlu0 %6424
        %v6426 = vsel %vm2352, %v6390, 0.0
        %6427 = vadd.xlane.f32.xlu0 %v6426
        %v6428 = vpop.xlane.xlu0 %6427
        %v6429 = vsel %vm2352, %v6391, 0.0
        %6430 = vadd.xlane.f32.xlu0 %v6429
        %v6431 = vpop.xlane.xlu0 %6430
        %v6432 = vsel %vm2352, %v6392, 0.0
        %6433 = vadd.xlane.f32.xlu0 %v6432
        %v6434 = vpop.xlane.xlu0 %6433
        %v6435 = vsel %vm2352, %v6393, 0.0
        %6436 = vadd.xlane.f32.xlu0 %v6435
        %v6437 = vpop.xlane.xlu0 %6436
        %v6438 = vsel %vm2352, %v6394, 0.0
        %6439 = vadd.xlane.f32.xlu0 %v6438
        %v6440 = vpop.xlane.xlu0 %6439
        %v6441 = vsel %vm2352, %v6395, 0.0
        %6442 = vadd.xlane.f32.xlu0 %v6441
        %v6443 = vpop.xlane.xlu0 %6442
        %v6444 = vmul.f32 %v6398, %v6347
        %v6445 = vmul.f32 %v6401, %v6347
        %v6446 = vmul.f32 %v6404, %v6347
        %v6447 = vmul.f32 %v6407, %v6347
        %v6448 = vmul.f32 %v6410, %v6347
        %v6449 = vmul.f32 %v6413, %v6347
        %v6450 = vmul.f32 %v6416, %v6347
        %v6451 = vmul.f32 %v6419, %v6347
        %v6452 = vmul.f32 %v6422, %v6347
        %v6453 = vmul.f32 %v6425, %v6347
        %v6454 = vmul.f32 %v6428, %v6347
        %v6455 = vmul.f32 %v6431, %v6347
        %v6456 = vmul.f32 %v6434, %v6347
        %v6457 = vmul.f32 %v6437, %v6347
        %v6458 = vmul.f32 %v6440, %v6347
        %v6459 = vmul.f32 %v6443, %v6347
        %v6460 = vadd.f32 %v6444, 1e-05
        %v6461 = vadd.f32 %v6445, 1e-05
        %v6462 = vadd.f32 %v6446, 1e-05
        %v6463 = vadd.f32 %v6447, 1e-05
        %v6464 = vadd.f32 %v6448, 1e-05
        %v6465 = vadd.f32 %v6449, 1e-05
        %v6466 = vadd.f32 %v6450, 1e-05
        %v6467 = vadd.f32 %v6451, 1e-05
        %v6468 = vadd.f32 %v6452, 1e-05
        %v6469 = vadd.f32 %v6453, 1e-05
        %v6470 = vadd.f32 %v6454, 1e-05
        %v6471 = vadd.f32 %v6455, 1e-05
        %v6472 = vadd.f32 %v6456, 1e-05
        %v6473 = vadd.f32 %v6457, 1e-05
        %v6474 = vadd.f32 %v6458, 1e-05
        %v6475 = vadd.f32 %v6459, 1e-05
        %v6476 = vrsqrt.pop %v6460
        %v6477 = vmul.f32 %v6476, %v6460
        %v6478 = vmul.f32 %v6477, %v6476
        %v6479 = vmul.f32 0.5, %v6478
        %v6480 = vsub.f32 1.5, %v6479
        %v6481 = vmul.f32 %v6476, %v6480
        %vm6482 = vweird.f32 %v6460
        %vm6483 = vweird.f32 %v6476
        %vm6484 = vmor %vm6482, %vm6483
        %v6485 = vsel %vm6484, %v6476, %v6481
        %v6486 = vrsqrt.pop %v6461
        %v6487 = vmul.f32 %v6486, %v6461
        %v6488 = vmul.f32 %v6487, %v6486
        %v6489 = vmul.f32 0.5, %v6488
        %v6490 = vsub.f32 1.5, %v6489
        %v6491 = vmul.f32 %v6486, %v6490
        %vm6492 = vweird.f32 %v6461
        %vm6493 = vweird.f32 %v6486
        %vm6494 = vmor %vm6492, %vm6493
        %v6495 = vsel %vm6494, %v6486, %v6491
        %v6496 = vrsqrt.pop %v6462
        %v6497 = vmul.f32 %v6496, %v6462
        %v6498 = vmul.f32 %v6497, %v6496
        %v6499 = vmul.f32 0.5, %v6498
        %v6500 = vsub.f32 1.5, %v6499
        %v6501 = vmul.f32 %v6496, %v6500
        %vm6502 = vweird.f32 %v6462
        %vm6503 = vweird.f32 %v6496
        %vm6504 = vmor %vm6502, %vm6503
        %v6505 = vsel %vm6504, %v6496, %v6501
        %v6506 = vrsqrt.pop %v6463
        %v6507 = vmul.f32 %v6506, %v6463
        %v6508 = vmul.f32 %v6507, %v6506
        %v6509 = vmul.f32 0.5, %v6508
        %v6510 = vsub.f32 1.5, %v6509
        %v6511 = vmul.f32 %v6506, %v6510
        %vm6512 = vweird.f32 %v6463
        %vm6513 = vweird.f32 %v6506
        %vm6514 = vmor %vm6512, %vm6513
        %v6515 = vsel %vm6514, %v6506, %v6511
        %v6516 = vrsqrt.pop %v6464
        %v6517 = vmul.f32 %v6516, %v6464
        %v6518 = vmul.f32 %v6517, %v6516
        %v6519 = vmul.f32 0.5, %v6518
        %v6520 = vsub.f32 1.5, %v6519
        %v6521 = vmul.f32 %v6516, %v6520
        %vm6522 = vweird.f32 %v6464
        %vm6523 = vweird.f32 %v6516
        %vm6524 = vmor %vm6522, %vm6523
        %v6525 = vsel %vm6524, %v6516, %v6521
        %v6526 = vrsqrt.pop %v6465
        %v6527 = vmul.f32 %v6526, %v6465
        %v6528 = vmul.f32 %v6527, %v6526
        %v6529 = vmul.f32 0.5, %v6528
        %v6530 = vsub.f32 1.5, %v6529
        %v6531 = vmul.f32 %v6526, %v6530
        %vm6532 = vweird.f32 %v6465
        %vm6533 = vweird.f32 %v6526
        %vm6534 = vmor %vm6532, %vm6533
        %v6535 = vsel %vm6534, %v6526, %v6531
        %v6536 = vrsqrt.pop %v6466
        %v6537 = vmul.f32 %v6536, %v6466
        %v6538 = vmul.f32 %v6537, %v6536
        %v6539 = vmul.f32 0.5, %v6538
        %v6540 = vsub.f32 1.5, %v6539
        %v6541 = vmul.f32 %v6536, %v6540
        %vm6542 = vweird.f32 %v6466
        %vm6543 = vweird.f32 %v6536
        %vm6544 = vmor %vm6542, %vm6543
        %v6545 = vsel %vm6544, %v6536, %v6541
        %v6546 = vrsqrt.pop %v6467
        %v6547 = vmul.f32 %v6546, %v6467
        %v6548 = vmul.f32 %v6547, %v6546
        %v6549 = vmul.f32 0.5, %v6548
        %v6550 = vsub.f32 1.5, %v6549
        %v6551 = vmul.f32 %v6546, %v6550
        %vm6552 = vweird.f32 %v6467
        %vm6553 = vweird.f32 %v6546
        %vm6554 = vmor %vm6552, %vm6553
        %v6555 = vsel %vm6554, %v6546, %v6551
        %v6556 = vrsqrt.pop %v6468
        %v6557 = vmul.f32 %v6556, %v6468
        %v6558 = vmul.f32 %v6557, %v6556
        %v6559 = vmul.f32 0.5, %v6558
        %v6560 = vsub.f32 1.5, %v6559
        %v6561 = vmul.f32 %v6556, %v6560
        %vm6562 = vweird.f32 %v6468
        %vm6563 = vweird.f32 %v6556
        %vm6564 = vmor %vm6562, %vm6563
        %v6565 = vsel %vm6564, %v6556, %v6561
        %v6566 = vrsqrt.pop %v6469
        %v6567 = vmul.f32 %v6566, %v6469
        %v6568 = vmul.f32 %v6567, %v6566
        %v6569 = vmul.f32 0.5, %v6568
        %v6570 = vsub.f32 1.5, %v6569
        %v6571 = vmul.f32 %v6566, %v6570
        %vm6572 = vweird.f32 %v6469
        %vm6573 = vweird.f32 %v6566
        %vm6574 = vmor %vm6572, %vm6573
        %v6575 = vsel %vm6574, %v6566, %v6571
        %v6576 = vrsqrt.pop %v6470
        %v6577 = vmul.f32 %v6576, %v6470
        %v6578 = vmul.f32 %v6577, %v6576
        %v6579 = vmul.f32 0.5, %v6578
        %v6580 = vsub.f32 1.5, %v6579
        %v6581 = vmul.f32 %v6576, %v6580
        %vm6582 = vweird.f32 %v6470
        %vm6583 = vweird.f32 %v6576
        %vm6584 = vmor %vm6582, %vm6583
        %v6585 = vsel %vm6584, %v6576, %v6581
        %v6586 = vrsqrt.pop %v6471
        %v6587 = vmul.f32 %v6586, %v6471
        %v6588 = vmul.f32 %v6587, %v6586
        %v6589 = vmul.f32 0.5, %v6588
        %v6590 = vsub.f32 1.5, %v6589
        %v6591 = vmul.f32 %v6586, %v6590
        %vm6592 = vweird.f32 %v6471
        %vm6593 = vweird.f32 %v6586
        %vm6594 = vmor %vm6592, %vm6593
        %v6595 = vsel %vm6594, %v6586, %v6591
        %v6596 = vrsqrt.pop %v6472
        %v6597 = vmul.f32 %v6596, %v6472
        %v6598 = vmul.f32 %v6597, %v6596
        %v6599 = vmul.f32 0.5, %v6598
        %v6600 = vsub.f32 1.5, %v6599
        %v6601 = vmul.f32 %v6596, %v6600
        %vm6602 = vweird.f32 %v6472
        %vm6603 = vweird.f32 %v6596
        %vm6604 = vmor %vm6602, %vm6603
        %v6605 = vsel %vm6604, %v6596, %v6601
        %v6606 = vrsqrt.pop %v6473
        %v6607 = vmul.f32 %v6606, %v6473
        %v6608 = vmul.f32 %v6607, %v6606
        %v6609 = vmul.f32 0.5, %v6608
        %v6610 = vsub.f32 1.5, %v6609
        %v6611 = vmul.f32 %v6606, %v6610
        %vm6612 = vweird.f32 %v6473
        %vm6613 = vweird.f32 %v6606
        %vm6614 = vmor %vm6612, %vm6613
        %v6615 = vsel %vm6614, %v6606, %v6611
        %v6616 = vrsqrt.pop %v6474
        %v6617 = vmul.f32 %v6616, %v6474
        %v6618 = vmul.f32 %v6617, %v6616
        %v6619 = vmul.f32 0.5, %v6618
        %v6620 = vsub.f32 1.5, %v6619
        %v6621 = vmul.f32 %v6616, %v6620
        %vm6622 = vweird.f32 %v6474
        %vm6623 = vweird.f32 %v6616
        %vm6624 = vmor %vm6622, %vm6623
        %v6625 = vsel %vm6624, %v6616, %v6621
        %v6626 = vrsqrt.pop %v6475
        %v6627 = vmul.f32 %v6626, %v6475
        %v6628 = vmul.f32 %v6627, %v6626
        %v6629 = vmul.f32 0.5, %v6628
        %v6630 = vsub.f32 1.5, %v6629
        %v6631 = vmul.f32 %v6626, %v6630
        %vm6632 = vweird.f32 %v6475
        %vm6633 = vweird.f32 %v6626
        %vm6634 = vmor %vm6632, %vm6633
        %v6635 = vsel %vm6634, %v6626, %v6631
        %v6636 = vmul.f32 %v6364, %v6485
        %v6637 = vmul.f32 %v6365, %v6495
        %v6638 = vmul.f32 %v6366, %v6505
        %v6639 = vmul.f32 %v6367, %v6515
        %v6640 = vmul.f32 %v6368, %v6525
        %v6641 = vmul.f32 %v6369, %v6535
        %v6642 = vmul.f32 %v6370, %v6545
        %v6643 = vmul.f32 %v6371, %v6555
        %v6644 = vmul.f32 %v6372, %v6565
        %v6645 = vmul.f32 %v6373, %v6575
        %v6646 = vmul.f32 %v6374, %v6585
        %v6647 = vmul.f32 %v6375, %v6595
        %v6648 = vmul.f32 %v6376, %v6605
        %v6649 = vmul.f32 %v6377, %v6615
        %v6650 = vmul.f32 %v6378, %v6625
        %v6651 = vmul.f32 %v6379, %v6635
        %v6653 = vperm.slane %v2349, 0
        %v6655 = vmul.f32 %v6636, %v6653
        %v6656 = vmul.f32 %v6637, %v6653
        %v6657 = vmul.f32 %v6638, %v6653
        %v6658 = vmul.f32 %v6639, %v6653
        %v6659 = vmul.f32 %v6640, %v6653
        %v6660 = vmul.f32 %v6641, %v6653
        %v6661 = vmul.f32 %v6642, %v6653
        %v6662 = vmul.f32 %v6643, %v6653
        %v6663 = vmul.f32 %v6644, %v6653
        %v6664 = vmul.f32 %v6645, %v6653
        %v6665 = vmul.f32 %v6646, %v6653
        %v6666 = vmul.f32 %v6647, %v6653
        %v6667 = vmul.f32 %v6648, %v6653
        %v6668 = vmul.f32 %v6649, %v6653
        %v6669 = vmul.f32 %v6650, %v6653
        %v6670 = vmul.f32 %v6651, %v6653
        %v6672 = vperm.slane %v2345, 0
        %v6674 = vmul.f32 %v6655, %v6672
        %v6675 = vmul.f32 %v6656, %v6672
        %v6676 = vmul.f32 %v6657, %v6672
        %v6677 = vmul.f32 %v6658, %v6672
        %v6678 = vmul.f32 %v6659, %v6672
        %v6679 = vmul.f32 %v6660, %v6672
        %v6680 = vmul.f32 %v6661, %v6672
        %v6681 = vmul.f32 %v6662, %v6672
        %v6682 = vmul.f32 %v6663, %v6672
        %v6683 = vmul.f32 %v6664, %v6672
        %v6684 = vmul.f32 %v6665, %v6672
        %v6685 = vmul.f32 %v6666, %v6672
        %v6686 = vmul.f32 %v6667, %v6672
        %v6687 = vmul.f32 %v6668, %v6672
        %v6688 = vmul.f32 %v6669, %v6672
        %v6689 = vmul.f32 %v6670, %v6672
        %v6690 = vsel %vm2352, %v6674, 0.0
        %6691 = vadd.xlane.f32.xlu0 %v6690
        %v6692 = vpop.xlane.xlu0 %6691
        %v6693 = vsel %vm2352, %v6675, 0.0
        %6694 = vadd.xlane.f32.xlu0 %v6693
        %v6695 = vpop.xlane.xlu0 %6694
        %v6696 = vsel %vm2352, %v6676, 0.0
        %6697 = vadd.xlane.f32.xlu0 %v6696
        %v6698 = vpop.xlane.xlu0 %6697
        %v6699 = vsel %vm2352, %v6677, 0.0
        %6700 = vadd.xlane.f32.xlu0 %v6699
        %v6701 = vpop.xlane.xlu0 %6700
        %v6702 = vsel %vm2352, %v6678, 0.0
        %6703 = vadd.xlane.f32.xlu0 %v6702
        %v6704 = vpop.xlane.xlu0 %6703
        %v6705 = vsel %vm2352, %v6679, 0.0
        %6706 = vadd.xlane.f32.xlu0 %v6705
        %v6707 = vpop.xlane.xlu0 %6706
        %v6708 = vsel %vm2352, %v6680, 0.0
        %6709 = vadd.xlane.f32.xlu0 %v6708
        %v6710 = vpop.xlane.xlu0 %6709
        %v6711 = vsel %vm2352, %v6681, 0.0
        %6712 = vadd.xlane.f32.xlu0 %v6711
        %v6713 = vpop.xlane.xlu0 %6712
        %v6714 = vsel %vm2352, %v6682, 0.0
        %6715 = vadd.xlane.f32.xlu0 %v6714
        %v6716 = vpop.xlane.xlu0 %6715
        %v6717 = vsel %vm2352, %v6683, 0.0
        %6718 = vadd.xlane.f32.xlu0 %v6717
        %v6719 = vpop.xlane.xlu0 %6718
        %v6720 = vsel %vm2352, %v6684, 0.0
        %6721 = vadd.xlane.f32.xlu0 %v6720
        %v6722 = vpop.xlane.xlu0 %6721
        %v6723 = vsel %vm2352, %v6685, 0.0
        %6724 = vadd.xlane.f32.xlu0 %v6723
        %v6725 = vpop.xlane.xlu0 %6724
        %v6726 = vsel %vm2352, %v6686, 0.0
        %6727 = vadd.xlane.f32.xlu0 %v6726
        %v6728 = vpop.xlane.xlu0 %6727
        %v6729 = vsel %vm2352, %v6687, 0.0
        %6730 = vadd.xlane.f32.xlu0 %v6729
        %v6731 = vpop.xlane.xlu0 %6730
        %v6732 = vsel %vm2352, %v6688, 0.0
        %6733 = vadd.xlane.f32.xlu0 %v6732
        %v6734 = vpop.xlane.xlu0 %6733
        %v6735 = vsel %vm2352, %v6689, 0.0
        %6736 = vadd.xlane.f32.xlu0 %v6735
        %v6737 = vpop.xlane.xlu0 %6736
        %v6738 = vmax.f32 %v6692, 0.0
        %v6739 = vmax.f32 %v6695, 0.0
        %v6740 = vmax.f32 %v6698, 0.0
        %v6741 = vmax.f32 %v6701, 0.0
        %v6742 = vmax.f32 %v6704, 0.0
        %v6743 = vmax.f32 %v6707, 0.0
        %v6744 = vmax.f32 %v6710, 0.0
        %v6745 = vmax.f32 %v6713, 0.0
        %v6746 = vmax.f32 %v6716, 0.0
        %v6747 = vmax.f32 %v6719, 0.0
        %v6748 = vmax.f32 %v6722, 0.0
        %v6749 = vmax.f32 %v6725, 0.0
        %v6750 = vmax.f32 %v6728, 0.0
        %v6751 = vmax.f32 %v6731, 0.0
        %v6752 = vmax.f32 %v6734, 0.0
        %v6753 = vmax.f32 %v6737, 0.0
        %v6755 = vperm.slane %v2347, 0
        %v6757 = vmul.f32 %v6738, %v6755
        %v6758 = vmul.f32 %v6739, %v6755
        %v6759 = vmul.f32 %v6740, %v6755
        %v6760 = vmul.f32 %v6741, %v6755
        %v6761 = vmul.f32 %v6742, %v6755
        %v6762 = vmul.f32 %v6743, %v6755
        %v6763 = vmul.f32 %v6744, %v6755
        %v6764 = vmul.f32 %v6745, %v6755
        %v6765 = vmul.f32 %v6746, %v6755
        %v6766 = vmul.f32 %v6747, %v6755
        %v6767 = vmul.f32 %v6748, %v6755
        %v6768 = vmul.f32 %v6749, %v6755
        %v6769 = vmul.f32 %v6750, %v6755
        %v6770 = vmul.f32 %v6751, %v6755
        %v6771 = vmul.f32 %v6752, %v6755
        %v6772 = vmul.f32 %v6753, %v6755
        %v6773 = vadd.f32 %v6655, %v6757
        %v6774 = vadd.f32 %v6656, %v6758
        %v6775 = vadd.f32 %v6657, %v6759
        %v6776 = vadd.f32 %v6658, %v6760
        %v6777 = vadd.f32 %v6659, %v6761
        %v6778 = vadd.f32 %v6660, %v6762
        %v6779 = vadd.f32 %v6661, %v6763
        %v6780 = vadd.f32 %v6662, %v6764
        %v6781 = vadd.f32 %v6663, %v6765
        %v6782 = vadd.f32 %v6664, %v6766
        %v6783 = vadd.f32 %v6665, %v6767
        %v6784 = vadd.f32 %v6666, %v6768
        %v6785 = vadd.f32 %v6667, %v6769
        %v6786 = vadd.f32 %v6668, %v6770
        %v6787 = vadd.f32 %v6669, %v6771
        %v6788 = vadd.f32 %v6670, %v6772
        %v6789 = vsel %vm2352, %v6773, 0.0
        %6790 = vadd.xlane.f32.xlu0 %v6789
        %v6791 = vpop.xlane.xlu0 %6790
        %v6792 = vsel %vm2352, %v6774, 0.0
        %6793 = vadd.xlane.f32.xlu0 %v6792
        %v6794 = vpop.xlane.xlu0 %6793
        %v6795 = vsel %vm2352, %v6775, 0.0
        %6796 = vadd.xlane.f32.xlu0 %v6795
        %v6797 = vpop.xlane.xlu0 %6796
        %v6798 = vsel %vm2352, %v6776, 0.0
        %6799 = vadd.xlane.f32.xlu0 %v6798
        %v6800 = vpop.xlane.xlu0 %6799
        %v6801 = vsel %vm2352, %v6777, 0.0
        %6802 = vadd.xlane.f32.xlu0 %v6801
        %v6803 = vpop.xlane.xlu0 %6802
        %v6804 = vsel %vm2352, %v6778, 0.0
        %6805 = vadd.xlane.f32.xlu0 %v6804
        %v6806 = vpop.xlane.xlu0 %6805
        %v6807 = vsel %vm2352, %v6779, 0.0
        %6808 = vadd.xlane.f32.xlu0 %v6807
        %v6809 = vpop.xlane.xlu0 %6808
        %v6810 = vsel %vm2352, %v6780, 0.0
        %6811 = vadd.xlane.f32.xlu0 %v6810
        %v6812 = vpop.xlane.xlu0 %6811
        %v6813 = vsel %vm2352, %v6781, 0.0
        %6814 = vadd.xlane.f32.xlu0 %v6813
        %v6815 = vpop.xlane.xlu0 %6814
        %v6816 = vsel %vm2352, %v6782, 0.0
        %6817 = vadd.xlane.f32.xlu0 %v6816
        %v6818 = vpop.xlane.xlu0 %6817
        %v6819 = vsel %vm2352, %v6783, 0.0
        %6820 = vadd.xlane.f32.xlu0 %v6819
        %v6821 = vpop.xlane.xlu0 %6820
        %v6822 = vsel %vm2352, %v6784, 0.0
        %6823 = vadd.xlane.f32.xlu0 %v6822
        %v6824 = vpop.xlane.xlu0 %6823
        %v6825 = vsel %vm2352, %v6785, 0.0
        %6826 = vadd.xlane.f32.xlu0 %v6825
        %v6827 = vpop.xlane.xlu0 %6826
        %v6828 = vsel %vm2352, %v6786, 0.0
        %6829 = vadd.xlane.f32.xlu0 %v6828
        %v6830 = vpop.xlane.xlu0 %6829
        %v6831 = vsel %vm2352, %v6787, 0.0
        %6832 = vadd.xlane.f32.xlu0 %v6831
        %v6833 = vpop.xlane.xlu0 %6832
        %v6834 = vsel %vm2352, %v6788, 0.0
        %6835 = vadd.xlane.f32.xlu0 %v6834
        %v6836 = vpop.xlane.xlu0 %6835
        %v6837 = vmul.f32 %v6791, %v6347
        %v6838 = vmul.f32 %v6794, %v6347
        %v6839 = vmul.f32 %v6797, %v6347
        %v6840 = vmul.f32 %v6800, %v6347
        %v6841 = vmul.f32 %v6803, %v6347
        %v6842 = vmul.f32 %v6806, %v6347
        %v6843 = vmul.f32 %v6809, %v6347
        %v6844 = vmul.f32 %v6812, %v6347
        %v6845 = vmul.f32 %v6815, %v6347
        %v6846 = vmul.f32 %v6818, %v6347
        %v6847 = vmul.f32 %v6821, %v6347
        %v6848 = vmul.f32 %v6824, %v6347
        %v6849 = vmul.f32 %v6827, %v6347
        %v6850 = vmul.f32 %v6830, %v6347
        %v6851 = vmul.f32 %v6833, %v6347
        %v6852 = vmul.f32 %v6836, %v6347
        %v6853 = vsub.f32 %v6773, %v6837
        %v6854 = vsub.f32 %v6774, %v6838
        %v6855 = vsub.f32 %v6775, %v6839
        %v6856 = vsub.f32 %v6776, %v6840
        %v6857 = vsub.f32 %v6777, %v6841
        %v6858 = vsub.f32 %v6778, %v6842
        %v6859 = vsub.f32 %v6779, %v6843
        %v6860 = vsub.f32 %v6780, %v6844
        %v6861 = vsub.f32 %v6781, %v6845
        %v6862 = vsub.f32 %v6782, %v6846
        %v6863 = vsub.f32 %v6783, %v6847
        %v6864 = vsub.f32 %v6784, %v6848
        %v6865 = vsub.f32 %v6785, %v6849
        %v6866 = vsub.f32 %v6786, %v6850
        %v6867 = vsub.f32 %v6787, %v6851
        %v6868 = vsub.f32 %v6788, %v6852
        %v6869 = vmul.f32 %v6853, %v6853
        %v6870 = vmul.f32 %v6854, %v6854
        %v6871 = vmul.f32 %v6855, %v6855
        %v6872 = vmul.f32 %v6856, %v6856
        %v6873 = vmul.f32 %v6857, %v6857
        %v6874 = vmul.f32 %v6858, %v6858
        %v6875 = vmul.f32 %v6859, %v6859
        %v6876 = vmul.f32 %v6860, %v6860
        %v6877 = vmul.f32 %v6861, %v6861
        %v6878 = vmul.f32 %v6862, %v6862
        %v6879 = vmul.f32 %v6863, %v6863
        %v6880 = vmul.f32 %v6864, %v6864
        %v6881 = vmul.f32 %v6865, %v6865
        %v6882 = vmul.f32 %v6866, %v6866
        %v6883 = vmul.f32 %v6867, %v6867
        %v6884 = vmul.f32 %v6868, %v6868
        %v6885 = vsel %vm2352, %v6869, 0.0
        %6886 = vadd.xlane.f32.xlu0 %v6885
        %v6887 = vpop.xlane.xlu0 %6886
        %v6888 = vsel %vm2352, %v6870, 0.0
        %6889 = vadd.xlane.f32.xlu0 %v6888
        %v6890 = vpop.xlane.xlu0 %6889
        %v6891 = vsel %vm2352, %v6871, 0.0
        %6892 = vadd.xlane.f32.xlu0 %v6891
        %v6893 = vpop.xlane.xlu0 %6892
        %v6894 = vsel %vm2352, %v6872, 0.0
        %6895 = vadd.xlane.f32.xlu0 %v6894
        %v6896 = vpop.xlane.xlu0 %6895
        %v6897 = vsel %vm2352, %v6873, 0.0
        %6898 = vadd.xlane.f32.xlu0 %v6897
        %v6899 = vpop.xlane.xlu0 %6898
        %v6900 = vsel %vm2352, %v6874, 0.0
        %6901 = vadd.xlane.f32.xlu0 %v6900
        %v6902 = vpop.xlane.xlu0 %6901
        %v6903 = vsel %vm2352, %v6875, 0.0
        %6904 = vadd.xlane.f32.xlu0 %v6903
        %v6905 = vpop.xlane.xlu0 %6904
        %v6906 = vsel %vm2352, %v6876, 0.0
        %6907 = vadd.xlane.f32.xlu0 %v6906
        %v6908 = vpop.xlane.xlu0 %6907
        %v6909 = vsel %vm2352, %v6877, 0.0
        %6910 = vadd.xlane.f32.xlu0 %v6909
        %v6911 = vpop.xlane.xlu0 %6910
        %v6912 = vsel %vm2352, %v6878, 0.0
        %6913 = vadd.xlane.f32.xlu0 %v6912
        %v6914 = vpop.xlane.xlu0 %6913
        %v6915 = vsel %vm2352, %v6879, 0.0
        %6916 = vadd.xlane.f32.xlu0 %v6915
        %v6917 = vpop.xlane.xlu0 %6916
        %v6918 = vsel %vm2352, %v6880, 0.0
        %6919 = vadd.xlane.f32.xlu0 %v6918
        %v6920 = vpop.xlane.xlu0 %6919
        %v6921 = vsel %vm2352, %v6881, 0.0
        %6922 = vadd.xlane.f32.xlu0 %v6921
        %v6923 = vpop.xlane.xlu0 %6922
        %v6924 = vsel %vm2352, %v6882, 0.0
        %6925 = vadd.xlane.f32.xlu0 %v6924
        %v6926 = vpop.xlane.xlu0 %6925
        %v6927 = vsel %vm2352, %v6883, 0.0
        %6928 = vadd.xlane.f32.xlu0 %v6927
        %v6929 = vpop.xlane.xlu0 %6928
        %v6930 = vsel %vm2352, %v6884, 0.0
        %6931 = vadd.xlane.f32.xlu0 %v6930
        %v6932 = vpop.xlane.xlu0 %6931
        %v6933 = vmul.f32 %v6887, %v6347
        %v6934 = vmul.f32 %v6890, %v6347
        %v6935 = vmul.f32 %v6893, %v6347
        %v6936 = vmul.f32 %v6896, %v6347
        %v6937 = vmul.f32 %v6899, %v6347
        %v6938 = vmul.f32 %v6902, %v6347
        %v6939 = vmul.f32 %v6905, %v6347
        %v6940 = vmul.f32 %v6908, %v6347
        %v6941 = vmul.f32 %v6911, %v6347
        %v6942 = vmul.f32 %v6914, %v6347
        %v6943 = vmul.f32 %v6917, %v6347
        %v6944 = vmul.f32 %v6920, %v6347
        %v6945 = vmul.f32 %v6923, %v6347
        %v6946 = vmul.f32 %v6926, %v6347
        %v6947 = vmul.f32 %v6929, %v6347
        %v6948 = vmul.f32 %v6932, %v6347
        %v6949 = vadd.f32 %v6933, 1e-05
        %v6950 = vadd.f32 %v6934, 1e-05
        %v6951 = vadd.f32 %v6935, 1e-05
        %v6952 = vadd.f32 %v6936, 1e-05
        %v6953 = vadd.f32 %v6937, 1e-05
        %v6954 = vadd.f32 %v6938, 1e-05
        %v6955 = vadd.f32 %v6939, 1e-05
        %v6956 = vadd.f32 %v6940, 1e-05
        %v6957 = vadd.f32 %v6941, 1e-05
        %v6958 = vadd.f32 %v6942, 1e-05
        %v6959 = vadd.f32 %v6943, 1e-05
        %v6960 = vadd.f32 %v6944, 1e-05
        %v6961 = vadd.f32 %v6945, 1e-05
        %v6962 = vadd.f32 %v6946, 1e-05
        %v6963 = vadd.f32 %v6947, 1e-05
        %v6964 = vadd.f32 %v6948, 1e-05
        %v6965 = vrsqrt.pop %v6949
        %v6966 = vmul.f32 %v6965, %v6949
        %v6967 = vmul.f32 %v6966, %v6965
        %v6968 = vmul.f32 0.5, %v6967
        %v6969 = vsub.f32 1.5, %v6968
        %v6970 = vmul.f32 %v6965, %v6969
        %vm6971 = vweird.f32 %v6949
        %vm6972 = vweird.f32 %v6965
        %vm6973 = vmor %vm6971, %vm6972
        %v6974 = vsel %vm6973, %v6965, %v6970
        %v6975 = vrsqrt.pop %v6950
        %v6976 = vmul.f32 %v6975, %v6950
        %v6977 = vmul.f32 %v6976, %v6975
        %v6978 = vmul.f32 0.5, %v6977
        %v6979 = vsub.f32 1.5, %v6978
        %v6980 = vmul.f32 %v6975, %v6979
        %vm6981 = vweird.f32 %v6950
        %vm6982 = vweird.f32 %v6975
        %vm6983 = vmor %vm6981, %vm6982
        %v6984 = vsel %vm6983, %v6975, %v6980
        %v6985 = vrsqrt.pop %v6951
        %v6986 = vmul.f32 %v6985, %v6951
        %v6987 = vmul.f32 %v6986, %v6985
        %v6988 = vmul.f32 0.5, %v6987
        %v6989 = vsub.f32 1.5, %v6988
        %v6990 = vmul.f32 %v6985, %v6989
        %vm6991 = vweird.f32 %v6951
        %vm6992 = vweird.f32 %v6985
        %vm6993 = vmor %vm6991, %vm6992
        %v6994 = vsel %vm6993, %v6985, %v6990
        %v6995 = vrsqrt.pop %v6952
        %v6996 = vmul.f32 %v6995, %v6952
        %v6997 = vmul.f32 %v6996, %v6995
        %v6998 = vmul.f32 0.5, %v6997
        %v6999 = vsub.f32 1.5, %v6998
        %v7000 = vmul.f32 %v6995, %v6999
        %vm7001 = vweird.f32 %v6952
        %vm7002 = vweird.f32 %v6995
        %vm7003 = vmor %vm7001, %vm7002
        %v7004 = vsel %vm7003, %v6995, %v7000
        %v7005 = vrsqrt.pop %v6953
        %v7006 = vmul.f32 %v7005, %v6953
        %v7007 = vmul.f32 %v7006, %v7005
        %v7008 = vmul.f32 0.5, %v7007
        %v7009 = vsub.f32 1.5, %v7008
        %v7010 = vmul.f32 %v7005, %v7009
        %vm7011 = vweird.f32 %v6953
        %vm7012 = vweird.f32 %v7005
        %vm7013 = vmor %vm7011, %vm7012
        %v7014 = vsel %vm7013, %v7005, %v7010
        %v7015 = vrsqrt.pop %v6954
        %v7016 = vmul.f32 %v7015, %v6954
        %v7017 = vmul.f32 %v7016, %v7015
        %v7018 = vmul.f32 0.5, %v7017
        %v7019 = vsub.f32 1.5, %v7018
        %v7020 = vmul.f32 %v7015, %v7019
        %vm7021 = vweird.f32 %v6954
        %vm7022 = vweird.f32 %v7015
        %vm7023 = vmor %vm7021, %vm7022
        %v7024 = vsel %vm7023, %v7015, %v7020
        %v7025 = vrsqrt.pop %v6955
        %v7026 = vmul.f32 %v7025, %v6955
        %v7027 = vmul.f32 %v7026, %v7025
        %v7028 = vmul.f32 0.5, %v7027
        %v7029 = vsub.f32 1.5, %v7028
        %v7030 = vmul.f32 %v7025, %v7029
        %vm7031 = vweird.f32 %v6955
        %vm7032 = vweird.f32 %v7025
        %vm7033 = vmor %vm7031, %vm7032
        %v7034 = vsel %vm7033, %v7025, %v7030
        %v7035 = vrsqrt.pop %v6956
        %v7036 = vmul.f32 %v7035, %v6956
        %v7037 = vmul.f32 %v7036, %v7035
        %v7038 = vmul.f32 0.5, %v7037
        %v7039 = vsub.f32 1.5, %v7038
        %v7040 = vmul.f32 %v7035, %v7039
        %vm7041 = vweird.f32 %v6956
        %vm7042 = vweird.f32 %v7035
        %vm7043 = vmor %vm7041, %vm7042
        %v7044 = vsel %vm7043, %v7035, %v7040
        %v7045 = vrsqrt.pop %v6957
        %v7046 = vmul.f32 %v7045, %v6957
        %v7047 = vmul.f32 %v7046, %v7045
        %v7048 = vmul.f32 0.5, %v7047
        %v7049 = vsub.f32 1.5, %v7048
        %v7050 = vmul.f32 %v7045, %v7049
        %vm7051 = vweird.f32 %v6957
        %vm7052 = vweird.f32 %v7045
        %vm7053 = vmor %vm7051, %vm7052
        %v7054 = vsel %vm7053, %v7045, %v7050
        %v7055 = vrsqrt.pop %v6958
        %v7056 = vmul.f32 %v7055, %v6958
        %v7057 = vmul.f32 %v7056, %v7055
        %v7058 = vmul.f32 0.5, %v7057
        %v7059 = vsub.f32 1.5, %v7058
        %v7060 = vmul.f32 %v7055, %v7059
        %vm7061 = vweird.f32 %v6958
        %vm7062 = vweird.f32 %v7055
        %vm7063 = vmor %vm7061, %vm7062
        %v7064 = vsel %vm7063, %v7055, %v7060
        %v7065 = vrsqrt.pop %v6959
        %v7066 = vmul.f32 %v7065, %v6959
        %v7067 = vmul.f32 %v7066, %v7065
        %v7068 = vmul.f32 0.5, %v7067
        %v7069 = vsub.f32 1.5, %v7068
        %v7070 = vmul.f32 %v7065, %v7069
        %vm7071 = vweird.f32 %v6959
        %vm7072 = vweird.f32 %v7065
        %vm7073 = vmor %vm7071, %vm7072
        %v7074 = vsel %vm7073, %v7065, %v7070
        %v7075 = vrsqrt.pop %v6960
        %v7076 = vmul.f32 %v7075, %v6960
        %v7077 = vmul.f32 %v7076, %v7075
        %v7078 = vmul.f32 0.5, %v7077
        %v7079 = vsub.f32 1.5, %v7078
        %v7080 = vmul.f32 %v7075, %v7079
        %vm7081 = vweird.f32 %v6960
        %vm7082 = vweird.f32 %v7075
        %vm7083 = vmor %vm7081, %vm7082
        %v7084 = vsel %vm7083, %v7075, %v7080
        %v7085 = vrsqrt.pop %v6961
        %v7086 = vmul.f32 %v7085, %v6961
        %v7087 = vmul.f32 %v7086, %v7085
        %v7088 = vmul.f32 0.5, %v7087
        %v7089 = vsub.f32 1.5, %v7088
        %v7090 = vmul.f32 %v7085, %v7089
        %vm7091 = vweird.f32 %v6961
        %vm7092 = vweird.f32 %v7085
        %vm7093 = vmor %vm7091, %vm7092
        %v7094 = vsel %vm7093, %v7085, %v7090
        %v7095 = vrsqrt.pop %v6962
        %v7096 = vmul.f32 %v7095, %v6962
        %v7097 = vmul.f32 %v7096, %v7095
        %v7098 = vmul.f32 0.5, %v7097
        %v7099 = vsub.f32 1.5, %v7098
        %v7100 = vmul.f32 %v7095, %v7099
        %vm7101 = vweird.f32 %v6962
        %vm7102 = vweird.f32 %v7095
        %vm7103 = vmor %vm7101, %vm7102
        %v7104 = vsel %vm7103, %v7095, %v7100
        %v7105 = vrsqrt.pop %v6963
        %v7106 = vmul.f32 %v7105, %v6963
        %v7107 = vmul.f32 %v7106, %v7105
        %v7108 = vmul.f32 0.5, %v7107
        %v7109 = vsub.f32 1.5, %v7108
        %v7110 = vmul.f32 %v7105, %v7109
        %vm7111 = vweird.f32 %v6963
        %vm7112 = vweird.f32 %v7105
        %vm7113 = vmor %vm7111, %vm7112
        %v7114 = vsel %vm7113, %v7105, %v7110
        %v7115 = vrsqrt.pop %v6964
        %v7116 = vmul.f32 %v7115, %v6964
        %v7117 = vmul.f32 %v7116, %v7115
        %v7118 = vmul.f32 0.5, %v7117
        %v7119 = vsub.f32 1.5, %v7118
        %v7120 = vmul.f32 %v7115, %v7119
        %vm7121 = vweird.f32 %v6964
        %vm7122 = vweird.f32 %v7115
        %vm7123 = vmor %vm7121, %vm7122
        %v7124 = vsel %vm7123, %v7115, %v7120
        %v7125 = vmul.f32 %v6853, %v6974
        %v7126 = vmul.f32 %v6854, %v6984
        %v7127 = vmul.f32 %v6855, %v6994
        %v7128 = vmul.f32 %v6856, %v7004
        %v7129 = vmul.f32 %v6857, %v7014
        %v7130 = vmul.f32 %v6858, %v7024
        %v7131 = vmul.f32 %v6859, %v7034
        %v7132 = vmul.f32 %v6860, %v7044
        %v7133 = vmul.f32 %v6861, %v7054
        %v7134 = vmul.f32 %v6862, %v7064
        %v7135 = vmul.f32 %v6863, %v7074
        %v7136 = vmul.f32 %v6864, %v7084
        %v7137 = vmul.f32 %v6865, %v7094
        %v7138 = vmul.f32 %v6866, %v7104
        %v7139 = vmul.f32 %v6867, %v7114
        %v7140 = vmul.f32 %v6868, %v7124
        %v7142 = vperm.slane %v2351, 0
        %v7144 = vmul.f32 %v7125, %v7142
        %v7145 = vmul.f32 %v7126, %v7142
        %v7146 = vmul.f32 %v7127, %v7142
        %v7147 = vmul.f32 %v7128, %v7142
        %v7148 = vmul.f32 %v7129, %v7142
        %v7149 = vmul.f32 %v7130, %v7142
        %v7150 = vmul.f32 %v7131, %v7142
        %v7151 = vmul.f32 %v7132, %v7142
        %v7152 = vmul.f32 %v7133, %v7142
        %v7153 = vmul.f32 %v7134, %v7142
        %v7154 = vmul.f32 %v7135, %v7142
        %v7155 = vmul.f32 %v7136, %v7142
        %v7156 = vmul.f32 %v7137, %v7142
        %v7157 = vmul.f32 %v7138, %v7142
        %v7158 = vmul.f32 %v7139, %v7142
        %v7159 = vmul.f32 %v7140, %v7142
        %7160 = vxpose.xlu0.b32.start [1/16] %v7144, 128
        %7161 = vxpose.xlu0.b32.cont [2/16] %v7145, 128
        %7162 = vxpose.xlu0.b32.cont [3/16] %v7146, 128
        %7163 = vxpose.xlu0.b32.cont [4/16] %v7147, 128
        %7164 = vxpose.xlu0.b32.cont [5/16] %v7148, 128
        %7165 = vxpose.xlu0.b32.cont [6/16] %v7149, 128
        %7166 = vxpose.xlu0.b32.cont [7/16] %v7150, 128
        %7167 = vxpose.xlu0.b32.cont [8/16] %v7151, 128
        %7168 = vxpose.xlu0.b32.cont [9/16] %v7152, 128
        %7169 = vxpose.xlu0.b32.cont [10/16] %v7153, 128
        %7170 = vxpose.xlu0.b32.cont [11/16] %v7154, 128
        %7171 = vxpose.xlu0.b32.cont [12/16] %v7155, 128
        %7172 = vxpose.xlu0.b32.cont [13/16] %v7156, 128
        %7173 = vxpose.xlu0.b32.cont [14/16] %v7157, 128
        %7174 = vxpose.xlu0.b32.cont [15/16] %v7158, 128
        %7175 = vxpose.xlu0.b32.end [16/16] %v7159, 128
        %v7176 = vpop.trf.xlu0
        %v7177 = vpop.trf.xlu0
        %v7178 = vpop.trf.xlu0
        %v7179 = vpop.trf.xlu0
        %v7180 = vpop.trf.xlu0
        %v7181 = vpop.trf.xlu0
        %v7182 = vpop.trf.xlu0
        %v7183 = vpop.trf.xlu0
        %v7184 = vpop.trf.xlu0
        %v7185 = vpop.trf.xlu0
        %v7186 = vpop.trf.xlu0
        %v7187 = vpop.trf.xlu0
        %v7188 = vpop.trf.xlu0
        %v7189 = vpop.trf.xlu0
        %v7190 = vpop.trf.xlu0
        %v7191 = vpop.trf.xlu0
        %v7192 = vrot.slane %v7176, 4
        %v7193 = vmax.f32 %v7176, %v7192
        %v7194 = vrot.slane %v7193, 2
        %v7195 = vmax.f32 %v7193, %v7194
        %v7196 = vrot.slane %v7195, 1
        %v7197 = vmax.f32 %v7195, %v7196
        %v7198 = vsub.f32 %v7176, %v7197
        %v7199 = vmul.f32 %v7198, 1.442695
        %v7200 = vpow.pop %v7199
        %v7201 = vrot.slane %v7200, 4
        %v7202 = vadd.f32 %v7200, %v7201
        %v7203 = vrot.slane %v7202, 2
        %v7204 = vadd.f32 %v7202, %v7203
        %v7205 = vrot.slane %v7204, 1
        %v7206 = vadd.f32 %v7204, %v7205
        %v7207 = vrcp.pop %v7206
        %v7208 = vmul.f32 %v7200, %v7207
        %7209 = vst [vmem:[%s310] sm:$0xff] %v7208
        %s7210 = sand.u32 %s142, 1
        %s7211 = scalar_lea.sflag [#allocation4], %s7210
        %s7212 = sand.u32 %s142, 1
        %s7213 = smul.addr %s7212, 8
        %s7214 = scalar_lea.vmem [#allocation11], %s7213
        // Predicated region
        $region61: #{tpu_custom_call.1} parent=39 // pred_check
          %p7215 = pneg %p152
        $region62: #{tpu_custom_call.1} parent=39 // pred_check_branch
          %7217 = sbr.rel (%p7215) target = $region64
        $region63: #{tpu_custom_call.1} parent=39 // pred_region
          %7219 = vsyncadd %s7211, 0
          %s7220 = smul.addr %s24, 8
          %s7221 = scalar_lea.hbm %s5, %s7220
          %s7223 = sshll.u32 %s7214, 4
          %s7224 = int_to_ptr.vmem [resolvable:$true] %s7223
          %s7225 = sshll.u32 %s7221, 4
          %s7226 = int_to_ptr.hbm [resolvable:$true] %s7225
          %7228 = dma.vmem_to_hbm [thread:$0]  %s7224, 128, %s7226, %s7211
        $region64: #{tpu_custom_call.1} parent=39 // pred_fallthru
          _
      $region40: #{tpu_custom_call.1} parent=5 // pred_fallthru
        _
      %p7229 = scmp.le.s32.totalorder 2, %s19
      // Predicated region
      $region65: #{tpu_custom_call.1} parent=5 // pred_check
        %p7230 = pneg %p7229
      $region66: #{tpu_custom_call.1} parent=5 // pred_check_branch
        %7232 = sbr.rel (%p7230) target = $region68
      $region67: #{tpu_custom_call.1} parent=5 // pred_region
        %s7233 = ssub.s32 %s19, 2
        // Predicated region
        $region69: #{tpu_custom_call.1} parent=67 // pred_check
          %p7234 = pneg %p158
        $region70: #{tpu_custom_call.1} parent=67 // pred_check_branch
          %7236 = sbr.rel (%p7234) target = $region72
        $region71: #{tpu_custom_call.1} parent=67 // pred_region
          %s7237 = sand.u32 %s143, 1
          %s7238 = scalar_lea.sflag [#allocation4], %s7237
          %s7239 = sand.u32 %s143, 1
          %s7240 = smul.addr %s7239, 8
          %s7241 = scalar_lea.vmem [#allocation11], %s7240
          %7243 = dma.done %s7238, 128
        $region72: #{tpu_custom_call.1} parent=67 // pred_fallthru
          _
      $region68: #{tpu_custom_call.1} parent=5 // pred_fallthru
        _
    $region6: #{tpu_custom_call.1} parent=1 // loop_footer
      %s23 = sadd.s32 1, %s19
    $region7: #{tpu_custom_call.1} parent=1 // loop_footer_branch
      %18 = sbr.rel target = $region3
    $region8: #{tpu_custom_call.1} parent=1 // loop_exit
      _
    %7244 = vsyncpa [#allocation3], 1
    %s7245 = scalar_lea.sflag [#allocation3], 1
    %7246 = vsyncpa %s7245, 1
    %7247 = vsyncpa [#allocation6], 1
    %7248 = vsyncpa [#allocation9], 1
    %7249 = vsyncpa [#allocation4], 1
    %s7250 = scalar_lea.sflag [#allocation4], 1
    %7251 = vsyncpa %s7250, 1

</llo_original>
